<compile_context>
chip_gen: v5e
topology: v5e:2x2
jax: 0.10.0
libtpu: 0.0.40
codegen_flags: <defaults>
</compile_context>

<pallas_src>
import functools
import math

import numpy as np
import jax
import jax.numpy as jnp
from jax.experimental import pallas as pl
from jax.experimental.pallas import tpu as pltpu


# Explicit scoped-VMEM budget: above the 16/32 MiB defaults, below physical on
# every generation (v5e/v6e 128 MiB, v7x 64 MiB).
_VMEM_LIMIT_BYTES = 48 * 1024 * 1024


def _largest_tile(n, cap, align):
    """Largest divisor of n that is <= cap and a multiple of `align`.

    Falls back to n itself (a full-extent block is always layout-legal), so a
    non-divisible size never silently produces an unaligned / oversized tile.
    """
    if n <= cap:
        return n
    start = cap - (cap % align)
    for t in range(start, 0, -align):
        if n % t == 0:
            return t
    return n


# ----------------------------------------------------------------------------
# Fused linear kernel: o = [residual +] [LN(] act(x @ w [+ b]) [)]
# ----------------------------------------------------------------------------

def _fused_linear_kernel(*refs, activation, has_bias, has_ln, has_res, eps):
    """Grid = (row tiles, K tiles).  K is the innermost reduction axis.

    Ref order: x, w, [b], [ln_gamma, ln_beta], [residual], out, acc(scratch).
    x/w are bf16 (pre-cast in HBM); accumulation and epilogue math are f32.
    """
    it = iter(refs)
    x_ref = next(it)
    w_ref = next(it)
    b_ref = next(it) if has_bias else None
    g_ref = next(it) if has_ln else None
    bb_ref = next(it) if has_ln else None
    r_ref = next(it) if has_res else None
    o_ref = next(it)
    acc_ref = next(it)

    k = pl.program_id(1)

    @pl.when(k == 0)
    def _():
        acc_ref[...] = jnp.zeros_like(acc_ref)

    acc_ref[...] += jnp.dot(x_ref[...], w_ref[...],
                            preferred_element_type=jnp.float32)

    @pl.when(k == pl.num_programs(1) - 1)
    def _():
        y = acc_ref[...]
        if has_bias:
            y = y + b_ref[...]
        if activation == "gelu":
            # TODO(synk): HF SwinV2 uses exact (erf) GELU; tanh approximation here.
            c = jnp.float32(0.7978845608028654)  # sqrt(2/pi)
            y = 0.5 * y * (1.0 + jnp.tanh(c * (y + 0.044715 * y * y * y)))
        if has_ln:
            mu = jnp.mean(y, axis=-1, keepdims=True)
            yc = y - mu
            var = jnp.mean(yc * yc, axis=-1, keepdims=True)
            y = yc * jax.lax.rsqrt(var + eps) * g_ref[...] + bb_ref[...]
        if has_res:
            y = y + r_ref[...].astype(jnp.float32)
        o_ref[...] = y.astype(o_ref.dtype)


def fused_linear(x, w, b=None, ln=None, residual=None, activation=None,
                 eps=1e-5, block_rows=256, block_k=512,
                 out_dtype=jnp.bfloat16):
    """Row- and K-tiled fused linear.

    x:[M,K] bf16, w:[K,N] bf16, b/ln params:[1,N] f32, residual:[M,N] bf16.
    Output dtype bf16 by default (inter-kernel activations stay bf16).
    """
    M, K = x.shape
    K2, N = w.shape
    assert K == K2
    if x.dtype != jnp.bfloat16:
        x = x.astype(jnp.bfloat16)          # one-time XLA cast, outside the kernel
    if w.dtype != jnp.bfloat16:
        w = w.astype(jnp.bfloat16)

    tm = _largest_tile(M, block_rows, 8)    # sublane-aligned row tile
    tk = _largest_tile(K, block_k, 128)     # lane-aligned reduction tile
    grid = (M // tm, K // tk)

    in_specs = [pl.BlockSpec((tm, tk), lambda i, k: (i, k)),
                pl.BlockSpec((tk, N), lambda i, k: (k, 0))]
    args = [x, w]
    if b is not None:
        in_specs.append(pl.BlockSpec((1, N), lambda i, k: (0, 0)))
        args.append(b)
    if ln is not None:
        g, bb = ln
        in_specs.append(pl.BlockSpec((1, N), lambda i, k: (0, 0)))
        in_specs.append(pl.BlockSpec((1, N), lambda i, k: (0, 0)))
        args.extend([g, bb])
    if residual is not None:
        in_specs.append(pl.BlockSpec((tm, N), lambda i, k: (i, 0)))
        args.append(residual)

    kernel = functools.partial(
        _fused_linear_kernel, activation=activation, has_bias=b is not None,
        has_ln=ln is not None, has_res=residual is not None, eps=eps)

    return pl.pallas_call(
        kernel,
        out_shape=jax.ShapeDtypeStruct((M, N), out_dtype),
        grid=grid,
        in_specs=in_specs,
        out_specs=pl.BlockSpec((tm, N), lambda i, k: (i, 0)),
        scratch_shapes=[pltpu.VMEM((tm, N), jnp.float32)],
        compiler_params=pltpu.CompilerParams(
            dimension_semantics=("parallel", "arbitrary"),
            vmem_limit_bytes=_VMEM_LIMIT_BYTES),
    )(*args)


# ----------------------------------------------------------------------------
# Windowed cosine attention (SwinV2)
# ----------------------------------------------------------------------------

def _window_attention_kernel(scale_ref, qkv_ref, rel_ref, *rest,
                             num_heads, head_dim, has_mask):
    """One grid step = one (window, batch) pair; in-kernel loop over heads.

    scale_ref: SMEM [1, H] f32 (exp(clamped logit_scale)).
    qkv_ref:   VMEM [WS, 3*dim] bf16 (fused QKV rows of this window).
    rel_ref:   VMEM [H, WS, WS] f32 (16*sigmoid(CPB)); resident across the grid.
    mask_ref:  VMEM [1, WS, WS] f32 shift mask (optional); resident across batch.
    o_ref:     VMEM [WS, dim] — lane-dense, heads merged in-kernel.
    """
    if has_mask:
        mask_ref, o_ref = rest
    else:
        (o_ref,) = rest

    dim = num_heads * head_dim
    qkv = qkv_ref[...]                                 # [WS, 3*dim] bf16
    mask = mask_ref[0] if has_mask else None           # [WS, WS] f32

    outs = []
    # TODO(synk): at real scale, additionally batch 2-8 windows per grid step to
    # raise MXU occupancy (per-head contraction dim is only Dh).
    for h in range(num_heads):
        q = qkv[:, h * head_dim:(h + 1) * head_dim].astype(jnp.float32)
        k = qkv[:, dim + h * head_dim: dim + (h + 1) * head_dim].astype(jnp.float32)
        v = qkv[:, 2 * dim + h * head_dim: 2 * dim + (h + 1) * head_dim]   # bf16

        # cosine similarity: L2-normalize q, k along head dim (f32), bf16 MXU matmul
        qn = q * jax.lax.rsqrt(jnp.sum(q * q, axis=-1, keepdims=True) + 1e-12)
        kn = k * jax.lax.rsqrt(jnp.sum(k * k, axis=-1, keepdims=True) + 1e-12)
        s = jnp.einsum("qd,kd->qk",
                       qn.astype(jnp.bfloat16), kn.astype(jnp.bfloat16),
                       preferred_element_type=jnp.float32)                  # [WS, WS]
        s = s * scale_ref[0, h] + rel_ref[h]
        if has_mask:
            s = s + mask

        m = jnp.max(s, axis=-1, keepdims=True)
        p = jnp.exp(s - m)
        p = p * pl.reciprocal(jnp.sum(p, axis=-1, keepdims=True), approx=True)

        outs.append(jnp.dot(p.astype(jnp.bfloat16), v,
                            preferred_element_type=jnp.float32))            # [WS, Dh]

    # lane-dense output: heads merged in-kernel, last dim = dim
    o_ref[...] = jnp.concatenate(outs, axis=-1).astype(o_ref.dtype)


def window_attention(qkv, rel, mask, scale, *, B, nW, WS, num_heads, head_dim,
                     out_dtype=jnp.bfloat16):
    """qkv: [B*nW*WS, 3*dim] bf16 (window-major rows per batch),
    rel: [H, WS, WS] f32, mask: [nW, WS, WS] f32 or None, scale: [1, H] f32."""
    dim = num_heads * head_dim
    rows = B * nW * WS
    has_mask = mask is not None

    kernel = functools.partial(_window_attention_kernel, num_heads=num_heads,
                               head_dim=head_dim, has_mask=has_mask)

    # grid = (window, batch): batch innermost => the per-window mask block and
    # the rel-bias block keep the same block index across consecutive steps and
    # stay VMEM-resident (no re-DMA).
    in_specs = [
        pl.BlockSpec(memory_space=pltpu.MemorySpace.SMEM),                  # scale
        pl.BlockSpec((WS, 3 * dim), lambda w, b: (b * nW + w, 0)),          # qkv rows
        pl.BlockSpec((num_heads, WS, WS), lambda w, b: (0, 0, 0)),          # rel bias
    ]
    args = [scale, qkv, rel]
    if has_mask:
        in_specs.append(pl.BlockSpec((1, WS, WS), lambda w, b: (w, 0, 0)))  # shift mask
        args.append(mask)

    return pl.pallas_call(
        kernel,
        out_shape=jax.ShapeDtypeStruct((rows, dim), out_dtype),
        grid=(nW, B),
        in_specs=in_specs,
        out_specs=pl.BlockSpec((WS, dim), lambda w, b: (b * nW + w, 0)),
        compiler_params=pltpu.CompilerParams(
            dimension_semantics=("parallel", "arbitrary"),
            vmem_limit_bytes=_VMEM_LIMIT_BYTES),
    )(*args)


# ----------------------------------------------------------------------------
# Static (data-independent) SwinV2 tables: coords, rel-pos index, shift masks
# ----------------------------------------------------------------------------

def make_relative_coords_table(ws):
    r = np.arange(-(ws - 1), ws, dtype=np.float32)
    table = np.stack(np.meshgrid(r, r, indexing="ij"), axis=-1)  # [2w-1, 2w-1, 2]
    table = table / (ws - 1)
    table = table * 8.0
    table = np.sign(table) * np.log2(np.abs(table) + 1.0) / np.log2(8.0)
    return table.reshape(-1, 2).astype(np.float32)


def make_relative_position_index(ws):
    coords = np.stack(np.meshgrid(np.arange(ws), np.arange(ws), indexing="ij"))
    coords_flat = coords.reshape(2, -1)                              # [2, WS]
    rel = coords_flat[:, :, None] - coords_flat[:, None, :]          # [2, WS, WS]
    rel = np.transpose(rel, (1, 2, 0)).copy()                        # [WS, WS, 2]
    rel[:, :, 0] += ws - 1
    rel[:, :, 1] += ws - 1
    rel[:, :, 0] *= 2 * ws - 1
    return rel.sum(-1).astype(np.int32)                              # [WS, WS]


def make_attn_mask(Hres, Wres, ws, shift):
    img_mask = np.zeros((Hres, Wres), np.float32)
    cnt = 0
    for hs in (slice(0, -ws), slice(-ws, -shift), slice(-shift, None)):
        for wsl in (slice(0, -ws), slice(-ws, -shift), slice(-shift, None)):
            img_mask[hs, wsl] = cnt
            cnt += 1
    mw = img_mask.reshape(Hres // ws, ws, Wres // ws, ws)
    mw = mw.transpose(0, 2, 1, 3).reshape(-1, ws * ws)               # [nW, WS]
    attn = mw[:, None, :] - mw[:, :, None]
    return np.where(attn != 0, -100.0, 0.0).astype(np.float32)       # [nW, WS, WS]


class Config:
    img_size = 16
    patch = 2
    channels = 3
    embed_dim = 32
    depths = (2, 2)
    num_heads = (2, 4)
    window = 4
    mlp_ratio = 4
    cpb_hidden = 64
    eps = 1e-5
    # Tile caps — small here so multi-tile row/K paths are exercised at this
    # synthetic scale.  At real swinv2-base scale: block_rows 256-512 (v5e/v6e),
    # 128-256 (v7x); block_k ~512.
    block_rows = 64
    block_k = 128


def build_static(cfg):
    stages = []
    Hres = Wres = cfg.img_size // cfg.patch
    dim = cfg.embed_dim
    for si, depth in enumerate(cfg.depths):
        ws = min(cfg.window, Hres, Wres)
        shifts, masks = [], []
        for bi in range(depth):
            s = 0 if (bi % 2 == 0 or min(Hres, Wres) <= ws) else ws // 2
            shifts.append(s)
            masks.append(jnp.asarray(make_attn_mask(Hres, Wres, ws, s)) if s > 0 else None)
        stages.append(dict(
            Hres=Hres, Wres=Wres, dim=dim, window=ws, shifts=shifts, masks=masks,
            coords_table=jnp.asarray(make_relative_coords_table(ws)),
            rel_index=jnp.asarray(make_relative_position_index(ws).reshape(-1)),
        ))
        if si < len(cfg.depths) - 1:
            Hres //= 2
            Wres //= 2
            dim *= 2
    return stages


# ----------------------------------------------------------------------------
# Parameters (synthetic; mirrors HF Swinv2 layout).  Matmul weights are stored
# in bf16 in HBM; bias / LN / CPB-MLP params stay f32 (epilogue math).
# ----------------------------------------------------------------------------

def init_params(key, cfg):
    keys = iter(jax.random.split(key, 256))
    D, P, C = cfg.embed_dim, cfg.patch, cfg.channels

    params = {
        "patch_w": (jax.random.normal(next(keys), (C * P * P, D), jnp.float32)
                    * 0.02).astype(jnp.bfloat16),
        "patch_b": jnp.zeros((1, D), jnp.float32),
        "patch_ln_g": jnp.ones((1, D), jnp.float32),
        "patch_ln_b": jnp.zeros((1, D), jnp.float32),
    }

    stages = []
    dim = D
    for si, depth in enumerate(cfg.depths):
        nh = cfg.num_heads[si]
        blocks = []
        for _ in range(depth):
            blk = {}
            wq = jax.random.normal(next(keys), (dim, dim), jnp.float32) * 0.02
            wk = jax.random.normal(next(keys), (dim, dim), jnp.float32) * 0.02
            wv = jax.random.normal(next(keys), (dim, dim), jnp.float32) * 0.02
            bq = jax.random.normal(next(keys), (dim,), jnp.float32) * 0.02
            bv = jax.random.normal(next(keys), (dim,), jnp.float32) * 0.02
            # fused QKV (SwinV2: q and v have bias, k does not), bf16 weight
            blk["wqkv"] = jnp.concatenate([wq, wk, wv], axis=1).astype(jnp.bfloat16)
            blk["bqkv"] = jnp.concatenate(
                [bq, jnp.zeros((dim,), jnp.float32), bv]).reshape(1, 3 * dim)
            blk["logit_scale"] = jnp.log(10.0 * jnp.ones((nh, 1, 1), jnp.float32))
            blk["cpb_w1"] = jax.random.normal(next(keys), (2, cfg.cpb_hidden), jnp.float32) * 0.02
            blk["cpb_b1"] = jnp.zeros((1, cfg.cpb_hidden), jnp.float32)
            blk["cpb_w2"] = jax.random.normal(next(keys), (cfg.cpb_hidden, nh), jnp.float32) * 0.02
            blk["wo"] = (jax.random.normal(next(keys), (dim, dim), jnp.float32)
                         * 0.02).astype(jnp.bfloat16)
            blk["bo"] = jnp.zeros((1, dim), jnp.float32)
            blk["ln1_g"] = jnp.ones((1, dim), jnp.float32)
            blk["ln1_b"] = jnp.zeros((1, dim), jnp.float32)
            hid = cfg.mlp_ratio * dim
            blk["w1"] = (jax.random.normal(next(keys), (dim, hid), jnp.float32)
                         * 0.02).astype(jnp.bfloat16)
            blk["b1"] = jnp.zeros((1, hid), jnp.float32)
            blk["w2"] = (jax.random.normal(next(keys), (hid, dim), jnp.float32)
                         * 0.02).astype(jnp.bfloat16)
            blk["b2"] = jnp.zeros((1, dim), jnp.float32)
            blk["ln2_g"] = jnp.ones((1, dim), jnp.float32)
            blk["ln2_b"] = jnp.zeros((1, dim), jnp.float32)
            blocks.append(blk)
        stage = {"blocks": blocks}
        if si < len(cfg.depths) - 1:
            stage["merge_w"] = (jax.random.normal(next(keys), (4 * dim, 2 * dim),
                                                  jnp.float32) * 0.02).astype(jnp.bfloat16)
            stage["merge_ln_g"] = jnp.ones((1, 2 * dim), jnp.float32)
            stage["merge_ln_b"] = jnp.zeros((1, 2 * dim), jnp.float32)
            dim *= 2
        stages.append(stage)
    params["stages"] = stages
    return params


# ----------------------------------------------------------------------------
# Forward
# ----------------------------------------------------------------------------

def make_forward(cfg, static_stages):
    P = cfg.patch

    def patchify(x):
        # NCHW -> [B, nP, C*P*P] with (c, ph, pw) flatten order (matches Conv2d).
        B, C, H, W = x.shape
        x = x.reshape(B, C, H // P, P, W // P, P)
        x = jnp.transpose(x, (0, 2, 4, 1, 3, 5))
        return x.reshape(B, (H // P) * (W // P), C * P * P)

    def swin_block(h, blk, st, shift, mask, num_heads, B):
        Hres, Wres, dim, ws = st["Hres"], st["Wres"], st["dim"], st["window"]
        L, WS = Hres * Wres, ws * ws
        nW = (Hres // ws) * (Wres // ws)
        Dh = dim // num_heads

        # cyclic shift + window partition (row permutation; bf16 glue in XLA)
        x = h.reshape(B, Hres, Wres, dim)
        if shift > 0:
            x = jnp.roll(x, shift=(-shift, -shift), axis=(1, 2))
        x = x.reshape(B, Hres // ws, ws, Wres // ws, ws, dim)
        x_windows = jnp.transpose(x, (0, 1, 3, 2, 4, 5)).reshape(B * nW * WS, dim)

        # fused QKV projection (one lane-dense [dim, 3*dim] matmul) — its output
        # is consumed directly, window-by-window, by the attention kernel.
        qkv = fused_linear(x_windows, blk["wqkv"], blk["bqkv"],
                           block_rows=cfg.block_rows, block_k=cfg.block_k)

        # data-independent per-layer prep (tiny; plain JAX, not hot path):
        # clamped/exp'd logit scale + continuous-relative-position-bias MLP
        scale = jnp.exp(jnp.minimum(blk["logit_scale"], math.log(100.0)))
        scale = scale.reshape(1, num_heads)                         # -> SMEM
        cpb = jnp.maximum(st["coords_table"] @ blk["cpb_w1"] + blk["cpb_b1"], 0.0)
        cpb = cpb @ blk["cpb_w2"]                                   # [(2w-1)^2, H]
        rel = jnp.take(cpb, st["rel_index"], axis=0).reshape(WS, WS, num_heads)
        rel = 16.0 * jax.nn.sigmoid(jnp.transpose(rel, (2, 0, 1)))  # [H, WS, WS]

        # windowed cosine attention: per-head tiling in-kernel, rel/mask added
        # in-kernel (mask resident across batch), lane-dense [WS, dim] output.
        ctx = window_attention(qkv, rel, mask, scale, B=B, nW=nW, WS=WS,
                               num_heads=num_heads, head_dim=Dh)    # [rows, dim]

        # output proj + residual-post-LN + residual add, fused (residual is the
        # window-partitioned shortcut; permutation commutes with row-wise LN/add)
        attn_out = fused_linear(ctx, blk["wo"], blk["bo"],
                                ln=(blk["ln1_g"], blk["ln1_b"]),
                                residual=x_windows, eps=cfg.eps,
                                block_rows=cfg.block_rows, block_k=cfg.block_k)

        # window reverse + reverse shift (bf16 glue)
        y = attn_out.reshape(B, Hres // ws, Wres // ws, ws, ws, dim)
        y = jnp.transpose(y, (0, 1, 3, 2, 4, 5)).reshape(B, Hres, Wres, dim)
        if shift > 0:
            y = jnp.roll(y, shift=(shift, shift), axis=(1, 2))
        hf = y.reshape(B * L, dim)

        # MLP: fc1 + GELU, then fc2 (K-tiled when large) + post-LN + residual
        m = fused_linear(hf, blk["w1"], blk["b1"], activation="gelu",
                         block_rows=cfg.block_rows, block_k=cfg.block_k)
        hf = fused_linear(m, blk["w2"], blk["b2"],
                          ln=(blk["ln2_g"], blk["ln2_b"]),
                          residual=hf, eps=cfg.eps,
                          block_rows=cfg.block_rows, block_k=cfg.block_k)
        return hf

    def forward(params, pix):
        B = pix.shape[0]
        patches = patchify(pix).astype(jnp.bfloat16)
        nP = patches.shape[1]
        # patch embedding matmul + fused LayerNorm
        h = fused_linear(patches.reshape(B * nP, -1),
                         params["patch_w"], params["patch_b"],
                         ln=(params["patch_ln_g"], params["patch_ln_b"]),
                         eps=cfg.eps, block_rows=cfg.block_rows,
                         block_k=cfg.block_k)

        for si, stage in enumerate(params["stages"]):
            st = static_stages[si]
            for bi, blk in enumerate(stage["blocks"]):
                h = swin_block(h, blk, st, st["shifts"][bi], st["masks"][bi],
                               cfg.num_heads[si], B)
            if "merge_w" in stage:
                Hres, Wres, dim = st["Hres"], st["Wres"], st["dim"]
                x = h.reshape(B, Hres, Wres, dim)
                x0 = x[:, 0::2, 0::2, :]
                x1 = x[:, 1::2, 0::2, :]
                x2 = x[:, 0::2, 1::2, :]
                x3 = x[:, 1::2, 1::2, :]
                xc = jnp.concatenate([x0, x1, x2, x3], axis=-1)
                xc = xc.reshape(B * (Hres // 2) * (Wres // 2), 4 * dim)
                # patch merging: Linear(4C->2C, no bias) + fused LayerNorm
                h = fused_linear(xc, stage["merge_w"], None,
                                 ln=(stage["merge_ln_g"], stage["merge_ln_b"]),
                                 eps=cfg.eps, block_rows=cfg.block_rows,
                                 block_k=cfg.block_k)

        last = static_stages[-1]
        out = h.reshape(B, last["Hres"] * last["Wres"], last["dim"])
        # hidden_states[-1][:, 0, :]  (last stage output before the model-level LN)
        return out[:, 0, :].astype(jnp.float32)

    return forward


# ----------------------------------------------------------------------------

if __name__ == "__main__":
    cfg = Config()
    static_stages = build_static(cfg)

    key = jax.random.PRNGKey(0)
    kp, kx = jax.random.split(key)
    params = init_params(kp, cfg)
    # Synthetic pixel_values (NCHW, RGB like the PyTorch module, small spatial).
    x = jax.random.normal(kx, (2, cfg.channels, cfg.img_size, cfg.img_size), jnp.float32)

    fwd = jax.jit(make_forward(cfg, static_stages))
    feat = fwd(params, x)
    jax.block_until_ready(feat)

    final_dim = cfg.embed_dim * (2 ** (len(cfg.depths) - 1))
    assert feat.shape == (2, final_dim), feat.shape
    assert feat.dtype == jnp.float32
    assert bool(jnp.all(jnp.isfinite(feat)))
    print("KERNEL_OK")
</pallas_src>

<mosaic_0001>
module attributes {stable_mosaic.version = 11 : i64} {
  func.func @_fused_linear_kernel(%arg0: i32, %arg1: i32, %arg2: memref<64x12xbf16, #tpu.memory_space<vmem>>, %arg3: memref<12x32xbf16, #tpu.memory_space<vmem>>, %arg4: memref<1x32xf32, #tpu.memory_space<vmem>>, %arg5: memref<1x32xf32, #tpu.memory_space<vmem>>, %arg6: memref<1x32xf32, #tpu.memory_space<vmem>>, %arg7: memref<64x32xbf16, #tpu.memory_space<vmem>>, %arg8: memref<64x32xf32, #tpu.memory_space<vmem>>) attributes {dimension_semantics = [#tpu.dimension_semantics<parallel>, #tpu.dimension_semantics<arbitrary>], iteration_bounds = array<i64: 2, 1>, scalar_prefetch = 0 : i64, scratch_operands = 1 : i64, tpu.core_type = #tpu.core_type<tc>, window_params = [{transform_indices = @transform_0, window_bounds = array<i64: 64, 12>}, {transform_indices = @transform_1, window_bounds = array<i64: 12, 32>}, {pipeline_mode = #tpu.pipeline_mode<synchronous>, transform_indices = @transform_2, window_bounds = array<i64: 1, 32>}, {pipeline_mode = #tpu.pipeline_mode<synchronous>, transform_indices = @transform_3, window_bounds = array<i64: 1, 32>}, {pipeline_mode = #tpu.pipeline_mode<synchronous>, transform_indices = @transform_4, window_bounds = array<i64: 1, 32>}, {transform_indices = @transform_5, window_bounds = array<i64: 64, 32>}]} {
    %c0_i32 = arith.constant 0 : i32
    %0 = arith.cmpi eq, %arg1, %c0_i32 : i32
    %1 = arith.extui %0 : i1 to i32
    %c0_i32_0 = arith.constant 0 : i32
    %2 = arith.cmpi ne, %1, %c0_i32_0 : i32
    scf.if %2 {
      %cst_10 = arith.constant 0.000000e+00 : f32
      %12 = vector.broadcast %cst_10 : f32 to vector<64x32xf32>
      %c0_11 = arith.constant 0 : index
      %c0_12 = arith.constant 0 : index
      %13 = vector.load %arg8[%c0_11, %c0_12] : memref<64x32xf32, #tpu.memory_space<vmem>>, vector<64x32xf32>
      tpu.vector_store %arg8[%c0_11, %c0_12], %12 {strides = array<i32>} : memref<64x32xf32, #tpu.memory_space<vmem>>, vector<64x32xf32>,
    } else {
    }
    %c0 = arith.constant 0 : index
    %c0_1 = arith.constant 0 : index
    %3 = vector.load %arg8[%c0, %c0_1] : memref<64x32xf32, #tpu.memory_space<vmem>>, vector<64x32xf32>
    %c0_2 = arith.constant 0 : index
    %c0_3 = arith.constant 0 : index
    %4 = vector.load %arg2[%c0_2, %c0_3] : memref<64x12xbf16, #tpu.memory_space<vmem>>, vector<64x12xbf16>
    %c0_4 = arith.constant 0 : index
    %c0_5 = arith.constant 0 : index
    %5 = vector.load %arg3[%c0_4, %c0_5] : memref<12x32xbf16, #tpu.memory_space<vmem>>, vector<12x32xbf16>
    %cst = arith.constant dense<0.000000e+00> : vector<64x32xf32>
    %6 = tpu.matmul %4, %5, %cst {dimension_numbers = #tpu.dot_dimension_numbers<[1], [0], [0], [1], [0, 0, 1, 1], [], []>} : vector<64x12xbf16>, vector<12x32xbf16>, vector<64x32xf32> -> vector<64x32xf32>
    %7 = arith.addf %3, %6 : vector<64x32xf32>
    %c0_6 = arith.constant 0 : index
    %c0_7 = arith.constant 0 : index
    %8 = vector.load %arg8[%c0_6, %c0_7] : memref<64x32xf32, #tpu.memory_space<vmem>>, vector<64x32xf32>
    tpu.vector_store %arg8[%c0_6, %c0_7], %7 {strides = array<i32>} : memref<64x32xf32, #tpu.memory_space<vmem>>, vector<64x32xf32>,
    %c0_i32_8 = arith.constant 0 : i32
    %9 = arith.cmpi eq, %arg1, %c0_i32_8 : i32
    %10 = arith.extui %9 : i1 to i32
    %c0_i32_9 = arith.constant 0 : i32
    %11 = arith.cmpi ne, %10, %c0_i32_9 : i32
    scf.if %11 {
      %c0_10 = arith.constant 0 : index
      %c0_11 = arith.constant 0 : index
      %12 = vector.load %arg8[%c0_10, %c0_11] : memref<64x32xf32, #tpu.memory_space<vmem>>, vector<64x32xf32>
      %c0_12 = arith.constant 0 : index
      %c0_13 = arith.constant 0 : index
      %13 = vector.load %arg4[%c0_12, %c0_13] : memref<1x32xf32, #tpu.memory_space<vmem>>, vector<1x32xf32>
      %14 = vector.broadcast %13 : vector<1x32xf32> to vector<64x32xf32>
      %15 = arith.addf %12, %14 : vector<64x32xf32>
      %cst_14 = arith.constant dense<0.000000e+00> : vector<64xf32>
      %16 = vector.multi_reduction <add>, %15, %cst_14 [1] : vector<64x32xf32> to vector<64xf32>
      %17 = vector.shape_cast %16 : vector<64xf32> to vector<64x1xf32>
      %cst_15 = arith.constant 3.200000e+01 : f32
      %18 = vector.broadcast %cst_15 : f32 to vector<64x1xf32>
      %19 = arith.divf %17, %18 : vector<64x1xf32>
      %20 = vector.broadcast %19 : vector<64x1xf32> to vector<64x32xf32>
      %21 = arith.subf %15, %20 : vector<64x32xf32>
      %22 = arith.mulf %21, %21 : vector<64x32xf32>
      %cst_16 = arith.constant dense<0.000000e+00> : vector<64xf32>
      %23 = vector.multi_reduction <add>, %22, %cst_16 [1] : vector<64x32xf32> to vector<64xf32>
      %24 = vector.shape_cast %23 : vector<64xf32> to vector<64x1xf32>
      %cst_17 = arith.constant 3.200000e+01 : f32
      %25 = vector.broadcast %cst_17 : f32 to vector<64x1xf32>
      %26 = arith.divf %24, %25 : vector<64x1xf32>
      %cst_18 = arith.constant 9.99999974E-6 : f32
      %27 = vector.broadcast %cst_18 : f32 to vector<64x1xf32>
      %28 = arith.addf %26, %27 : vector<64x1xf32>
      %29 = math.rsqrt %28 : vector<64x1xf32>
      %30 = vector.broadcast %29 : vector<64x1xf32> to vector<64x32xf32>
      %31 = arith.mulf %21, %30 : vector<64x32xf32>
      %c0_19 = arith.constant 0 : index
      %c0_20 = arith.constant 0 : index
      %32 = vector.load %arg5[%c0_19, %c0_20] : memref<1x32xf32, #tpu.memory_space<vmem>>, vector<1x32xf32>
      %33 = vector.broadcast %32 : vector<1x32xf32> to vector<64x32xf32>
      %34 = arith.mulf %31, %33 : vector<64x32xf32>
      %c0_21 = arith.constant 0 : index
      %c0_22 = arith.constant 0 : index
      %35 = vector.load %arg6[%c0_21, %c0_22] : memref<1x32xf32, #tpu.memory_space<vmem>>, vector<1x32xf32>
      %36 = vector.broadcast %35 : vector<1x32xf32> to vector<64x32xf32>
      %37 = arith.addf %34, %36 : vector<64x32xf32>
      %38 = arith.truncf %37 : vector<64x32xf32> to vector<64x32xbf16>
      %c0_23 = arith.constant 0 : index
      %c0_24 = arith.constant 0 : index
      %39 = vector.load %arg7[%c0_23, %c0_24] : memref<64x32xbf16, #tpu.memory_space<vmem>>, vector<64x32xbf16>
      tpu.vector_store %arg7[%c0_23, %c0_24], %38 {strides = array<i32>} : memref<64x32xbf16, #tpu.memory_space<vmem>>, vector<64x32xbf16>,
    } else {
    }
    return
  }
  func.func @transform_0(%arg0: i32, %arg1: i32) -> (i32, i32) {
    %c0_i32 = arith.constant 0 : i32
    return %arg0, %arg1 : i32, i32
  }
  func.func @transform_1(%arg0: i32, %arg1: i32) -> (i32, i32) {
    %c0_i32 = arith.constant 0 : i32
    %c0_i32_0 = arith.constant 0 : i32
    return %arg1, %c0_i32 : i32, i32
  }
  func.func @transform_2(%arg0: i32, %arg1: i32) -> (i32, i32) {
    %c0_i32 = arith.constant 0 : i32
    %c0_i32_0 = arith.constant 0 : i32
    %c0_i32_1 = arith.constant 0 : i32
    return %c0_i32, %c0_i32_0 : i32, i32
  }
  func.func @transform_3(%arg0: i32, %arg1: i32) -> (i32, i32) {
    %c0_i32 = arith.constant 0 : i32
    %c0_i32_0 = arith.constant 0 : i32
    %c0_i32_1 = arith.constant 0 : i32
    return %c0_i32, %c0_i32_0 : i32, i32
  }
  func.func @transform_4(%arg0: i32, %arg1: i32) -> (i32, i32) {
    %c0_i32 = arith.constant 0 : i32
    %c0_i32_0 = arith.constant 0 : i32
    %c0_i32_1 = arith.constant 0 : i32
    return %c0_i32, %c0_i32_0 : i32, i32
  }
  func.func @transform_5(%arg0: i32, %arg1: i32) -> (i32, i32) {
    %c0_i32 = arith.constant 0 : i32
    %c0_i32_0 = arith.constant 0 : i32
    return %arg0, %c0_i32 : i32, i32
  }
}

module attributes {stable_mosaic.version = 11 : i64} {
  func.func @_fused_linear_kernel(%arg0: i32, %arg1: i32, %arg2: memref<64x32xbf16, #tpu.memory_space<vmem>>, %arg3: memref<32x96xbf16, #tpu.memory_space<vmem>>, %arg4: memref<1x96xf32, #tpu.memory_space<vmem>>, %arg5: memref<64x96xbf16, #tpu.memory_space<vmem>>, %arg6: memref<64x96xf32, #tpu.memory_space<vmem>>) attributes {dimension_semantics = [#tpu.dimension_semantics<parallel>, #tpu.dimension_semantics<arbitrary>], iteration_bounds = array<i64: 2, 1>, scalar_prefetch = 0 : i64, scratch_operands = 1 : i64, tpu.core_type = #tpu.core_type<tc>, window_params = [{transform_indices = @transform_0, window_bounds = array<i64: 64, 32>}, {transform_indices = @transform_1, window_bounds = array<i64: 32, 96>}, {pipeline_mode = #tpu.pipeline_mode<synchronous>, transform_indices = @transform_2, window_bounds = array<i64: 1, 96>}, {transform_indices = @transform_3, window_bounds = array<i64: 64, 96>}]} {
    %c0_i32 = arith.constant 0 : i32
    %0 = arith.cmpi eq, %arg1, %c0_i32 : i32
    %1 = arith.extui %0 : i1 to i32
    %c0_i32_0 = arith.constant 0 : i32
    %2 = arith.cmpi ne, %1, %c0_i32_0 : i32
    scf.if %2 {
      %cst_10 = arith.constant 0.000000e+00 : f32
      %12 = vector.broadcast %cst_10 : f32 to vector<64x96xf32>
      %c0_11 = arith.constant 0 : index
      %c0_12 = arith.constant 0 : index
      %13 = vector.load %arg6[%c0_11, %c0_12] : memref<64x96xf32, #tpu.memory_space<vmem>>, vector<64x96xf32>
      tpu.vector_store %arg6[%c0_11, %c0_12], %12 {strides = array<i32>} : memref<64x96xf32, #tpu.memory_space<vmem>>, vector<64x96xf32>,
    } else {
    }
    %c0 = arith.constant 0 : index
    %c0_1 = arith.constant 0 : index
    %3 = vector.load %arg6[%c0, %c0_1] : memref<64x96xf32, #tpu.memory_space<vmem>>, vector<64x96xf32>
    %c0_2 = arith.constant 0 : index
    %c0_3 = arith.constant 0 : index
    %4 = vector.load %arg2[%c0_2, %c0_3] : memref<64x32xbf16, #tpu.memory_space<vmem>>, vector<64x32xbf16>
    %c0_4 = arith.constant 0 : index
    %c0_5 = arith.constant 0 : index
    %5 = vector.load %arg3[%c0_4, %c0_5] : memref<32x96xbf16, #tpu.memory_space<vmem>>, vector<32x96xbf16>
    %cst = arith.constant dense<0.000000e+00> : vector<64x96xf32>
    %6 = tpu.matmul %4, %5, %cst {dimension_numbers = #tpu.dot_dimension_numbers<[1], [0], [0], [1], [0, 0, 1, 1], [], []>} : vector<64x32xbf16>, vector<32x96xbf16>, vector<64x96xf32> -> vector<64x96xf32>
    %7 = arith.addf %3, %6 : vector<64x96xf32>
    %c0_6 = arith.constant 0 : index
    %c0_7 = arith.constant 0 : index
    %8 = vector.load %arg6[%c0_6, %c0_7] : memref<64x96xf32, #tpu.memory_space<vmem>>, vector<64x96xf32>
    tpu.vector_store %arg6[%c0_6, %c0_7], %7 {strides = array<i32>} : memref<64x96xf32, #tpu.memory_space<vmem>>, vector<64x96xf32>,
    %c0_i32_8 = arith.constant 0 : i32
    %9 = arith.cmpi eq, %arg1, %c0_i32_8 : i32
    %10 = arith.extui %9 : i1 to i32
    %c0_i32_9 = arith.constant 0 : i32
    %11 = arith.cmpi ne, %10, %c0_i32_9 : i32
    scf.if %11 {
      %c0_10 = arith.constant 0 : index
      %c0_11 = arith.constant 0 : index
      %12 = vector.load %arg6[%c0_10, %c0_11] : memref<64x96xf32, #tpu.memory_space<vmem>>, vector<64x96xf32>
      %c0_12 = arith.constant 0 : index
      %c0_13 = arith.constant 0 : index
      %13 = vector.load %arg4[%c0_12, %c0_13] : memref<1x96xf32, #tpu.memory_space<vmem>>, vector<1x96xf32>
      %14 = vector.broadcast %13 : vector<1x96xf32> to vector<64x96xf32>
      %15 = arith.addf %12, %14 : vector<64x96xf32>
      %16 = arith.truncf %15 : vector<64x96xf32> to vector<64x96xbf16>
      %c0_14 = arith.constant 0 : index
      %c0_15 = arith.constant 0 : index
      %17 = vector.load %arg5[%c0_14, %c0_15] : memref<64x96xbf16, #tpu.memory_space<vmem>>, vector<64x96xbf16>
      tpu.vector_store %arg5[%c0_14, %c0_15], %16 {strides = array<i32>} : memref<64x96xbf16, #tpu.memory_space<vmem>>, vector<64x96xbf16>,
    } else {
    }
    return
  }
  func.func @transform_0(%arg0: i32, %arg1: i32) -> (i32, i32) {
    %c0_i32 = arith.constant 0 : i32
    return %arg0, %arg1 : i32, i32
  }
  func.func @transform_1(%arg0: i32, %arg1: i32) -> (i32, i32) {
    %c0_i32 = arith.constant 0 : i32
    %c0_i32_0 = arith.constant 0 : i32
    return %arg1, %c0_i32 : i32, i32
  }
  func.func @transform_2(%arg0: i32, %arg1: i32) -> (i32, i32) {
    %c0_i32 = arith.constant 0 : i32
    %c0_i32_0 = arith.constant 0 : i32
    %c0_i32_1 = arith.constant 0 : i32
    return %c0_i32, %c0_i32_0 : i32, i32
  }
  func.func @transform_3(%arg0: i32, %arg1: i32) -> (i32, i32) {
    %c0_i32 = arith.constant 0 : i32
    %c0_i32_0 = arith.constant 0 : i32
    return %arg0, %c0_i32 : i32, i32
  }
}

module attributes {stable_mosaic.version = 11 : i64} {
  func.func @_window_attention_kernel(%arg0: i32, %arg1: i32, %arg2: memref<1x2xf32, #tpu.memory_space<smem>>, %arg3: memref<16x96xbf16, #tpu.memory_space<vmem>>, %arg4: memref<2x16x16xf32, #tpu.memory_space<vmem>>, %arg5: memref<16x32xbf16, #tpu.memory_space<vmem>>) attributes {dimension_semantics = [#tpu.dimension_semantics<parallel>, #tpu.dimension_semantics<arbitrary>], iteration_bounds = array<i64: 4, 2>, scalar_prefetch = 0 : i64, scratch_operands = 0 : i64, tpu.core_type = #tpu.core_type<tc>, window_params = [{transform_indices = @transform_0, window_bounds = array<i64: 1, 2>}, {transform_indices = @transform_1, window_bounds = array<i64: 16, 96>}, {pipeline_mode = #tpu.pipeline_mode<synchronous>, transform_indices = @transform_2, window_bounds = array<i64: 2, 16, 16>}, {transform_indices = @transform_3, window_bounds = array<i64: 16, 32>}]} {
    %c0 = arith.constant 0 : index
    %c0_0 = arith.constant 0 : index
    %0 = vector.load %arg3[%c0, %c0_0] : memref<16x96xbf16, #tpu.memory_space<vmem>>, vector<16x96xbf16>
    %1 = vector.extract_strided_slice %0 {offsets = [0, 0], sizes = [16, 16], strides = [1, 1]} : vector<16x96xbf16> to vector<16x16xbf16>
    %2 = arith.extf %1 : vector<16x16xbf16> to vector<16x16xf32>
    %3 = vector.extract_strided_slice %0 {offsets = [0, 32], sizes = [16, 16], strides = [1, 1]} : vector<16x96xbf16> to vector<16x16xbf16>
    %4 = arith.extf %3 : vector<16x16xbf16> to vector<16x16xf32>
    %5 = vector.extract_strided_slice %0 {offsets = [0, 64], sizes = [16, 16], strides = [1, 1]} : vector<16x96xbf16> to vector<16x16xbf16>
    %6 = arith.mulf %2, %2 : vector<16x16xf32>
    %cst = arith.constant dense<0.000000e+00> : vector<16xf32>
    %7 = vector.multi_reduction <add>, %6, %cst [1] : vector<16x16xf32> to vector<16xf32>
    %8 = vector.shape_cast %7 : vector<16xf32> to vector<16x1xf32>
    %cst_1 = arith.constant 9.99999996E-13 : f32
    %9 = vector.broadcast %cst_1 : f32 to vector<16x1xf32>
    %10 = arith.addf %8, %9 : vector<16x1xf32>
    %11 = math.rsqrt %10 : vector<16x1xf32>
    %12 = vector.broadcast %11 : vector<16x1xf32> to vector<16x16xf32>
    %13 = arith.mulf %2, %12 : vector<16x16xf32>
    %14 = arith.mulf %4, %4 : vector<16x16xf32>
    %cst_2 = arith.constant dense<0.000000e+00> : vector<16xf32>
    %15 = vector.multi_reduction <add>, %14, %cst_2 [1] : vector<16x16xf32> to vector<16xf32>
    %16 = vector.shape_cast %15 : vector<16xf32> to vector<16x1xf32>
    %cst_3 = arith.constant 9.99999996E-13 : f32
    %17 = vector.broadcast %cst_3 : f32 to vector<16x1xf32>
    %18 = arith.addf %16, %17 : vector<16x1xf32>
    %19 = math.rsqrt %18 : vector<16x1xf32>
    %20 = vector.broadcast %19 : vector<16x1xf32> to vector<16x16xf32>
    %21 = arith.mulf %4, %20 : vector<16x16xf32>
    %22 = arith.truncf %13 : vector<16x16xf32> to vector<16x16xbf16>
    %23 = arith.truncf %21 : vector<16x16xf32> to vector<16x16xbf16>
    "tpu.trace_start"() <{level = 10 : i32, message = "qd,kd->qk"}> : () -> ()
    %cst_4 = arith.constant dense<0.000000e+00> : vector<16x16xf32>
    %24 = tpu.matmul %22, %23, %cst_4 {dimension_numbers = #tpu.dot_dimension_numbers<[1], [1], [0], [0], [0, 0, 1, 0], [], []>} : vector<16x16xbf16>, vector<16x16xbf16>, vector<16x16xf32> -> vector<16x16xf32>
    "tpu.trace_stop"() : () -> ()
    %c0_5 = arith.constant 0 : index
    %c0_6 = arith.constant 0 : index
    %25 = memref.load %arg2[%c0_5, %c0_6] : memref<1x2xf32, #tpu.memory_space<smem>>
    %26 = vector.broadcast %25 : f32 to vector<16x16xf32>
    %27 = arith.mulf %24, %26 : vector<16x16xf32>
    %c0_7 = arith.constant 0 : index
    %c0_8 = arith.constant 0 : index
    %c0_9 = arith.constant 0 : index
    %28 = vector.load %arg4[%c0_7, %c0_8, %c0_9] : memref<2x16x16xf32, #tpu.memory_space<vmem>>, vector<1x16x16xf32>
    %29 = vector.shape_cast %28 : vector<1x16x16xf32> to vector<16x16xf32>
    %30 = arith.addf %27, %29 : vector<16x16xf32>
    %cst_10 = arith.constant dense<0xFF800000> : vector<16xf32>
    %31 = vector.multi_reduction <maximumf>, %30, %cst_10 [1] : vector<16x16xf32> to vector<16xf32>
    %32 = vector.shape_cast %31 : vector<16xf32> to vector<16x1xf32>
    %33 = vector.broadcast %32 : vector<16x1xf32> to vector<16x16xf32>
    %34 = arith.subf %30, %33 : vector<16x16xf32>
    %35 = math.exp %34 : vector<16x16xf32>
    %cst_11 = arith.constant dense<0.000000e+00> : vector<16xf32>
    %36 = vector.multi_reduction <add>, %35, %cst_11 [1] : vector<16x16xf32> to vector<16xf32>
    %37 = vector.shape_cast %36 : vector<16xf32> to vector<16x1xf32>
    %38 = tpu.reciprocal %37 {approx = true} : vector<16x1xf32> -> vector<16x1xf32>
    %39 = vector.broadcast %38 : vector<16x1xf32> to vector<16x16xf32>
    %40 = arith.mulf %35, %39 : vector<16x16xf32>
    %41 = arith.truncf %40 : vector<16x16xf32> to vector<16x16xbf16>
    %cst_12 = arith.constant dense<0.000000e+00> : vector<16x16xf32>
    %42 = tpu.matmul %41, %5, %cst_12 {dimension_numbers = #tpu.dot_dimension_numbers<[1], [0], [0], [1], [0, 0, 1, 1], [], []>} : vector<16x16xbf16>, vector<16x16xbf16>, vector<16x16xf32> -> vector<16x16xf32>
    %43 = vector.extract_strided_slice %0 {offsets = [0, 16], sizes = [16, 16], strides = [1, 1]} : vector<16x96xbf16> to vector<16x16xbf16>
    %44 = arith.extf %43 : vector<16x16xbf16> to vector<16x16xf32>
    %45 = vector.extract_strided_slice %0 {offsets = [0, 48], sizes = [16, 16], strides = [1, 1]} : vector<16x96xbf16> to vector<16x16xbf16>
    %46 = arith.extf %45 : vector<16x16xbf16> to vector<16x16xf32>
    %47 = vector.extract_strided_slice %0 {offsets = [0, 80], sizes = [16, 16], strides = [1, 1]} : vector<16x96xbf16> to vector<16x16xbf16>
    %48 = arith.mulf %44, %44 : vector<16x16xf32>
    %cst_13 = arith.constant dense<0.000000e+00> : vector<16xf32>
    %49 = vector.multi_reduction <add>, %48, %cst_13 [1] : vector<16x16xf32> to vector<16xf32>
    %50 = vector.shape_cast %49 : vector<16xf32> to vector<16x1xf32>
    %cst_14 = arith.constant 9.99999996E-13 : f32
    %51 = vector.broadcast %cst_14 : f32 to vector<16x1xf32>
    %52 = arith.addf %50, %51 : vector<16x1xf32>
    %53 = math.rsqrt %52 : vector<16x1xf32>
    %54 = vector.broadcast %53 : vector<16x1xf32> to vector<16x16xf32>
    %55 = arith.mulf %44, %54 : vector<16x16xf32>
    %56 = arith.mulf %46, %46 : vector<16x16xf32>
    %cst_15 = arith.constant dense<0.000000e+00> : vector<16xf32>
    %57 = vector.multi_reduction <add>, %56, %cst_15 [1] : vector<16x16xf32> to vector<16xf32>
    %58 = vector.shape_cast %57 : vector<16xf32> to vector<16x1xf32>
    %cst_16 = arith.constant 9.99999996E-13 : f32
    %59 = vector.broadcast %cst_16 : f32 to vector<16x1xf32>
    %60 = arith.addf %58, %59 : vector<16x1xf32>
    %61 = math.rsqrt %60 : vector<16x1xf32>
    %62 = vector.broadcast %61 : vector<16x1xf32> to vector<16x16xf32>
    %63 = arith.mulf %46, %62 : vector<16x16xf32>
    %64 = arith.truncf %55 : vector<16x16xf32> to vector<16x16xbf16>
    %65 = arith.truncf %63 : vector<16x16xf32> to vector<16x16xbf16>
    "tpu.trace_start"() <{level = 10 : i32, message = "qd,kd->qk"}> : () -> ()
    %cst_17 = arith.constant dense<0.000000e+00> : vector<16x16xf32>
    %66 = tpu.matmul %64, %65, %cst_17 {dimension_numbers = #tpu.dot_dimension_numbers<[1], [1], [0], [0], [0, 0, 1, 0], [], []>} : vector<16x16xbf16>, vector<16x16xbf16>, vector<16x16xf32> -> vector<16x16xf32>
    "tpu.trace_stop"() : () -> ()
    %c0_18 = arith.constant 0 : index
    %c1 = arith.constant 1 : index
    %67 = memref.load %arg2[%c0_18, %c1] : memref<1x2xf32, #tpu.memory_space<smem>>
    %68 = vector.broadcast %67 : f32 to vector<16x16xf32>
    %69 = arith.mulf %66, %68 : vector<16x16xf32>
    %c1_19 = arith.constant 1 : index
    %c0_20 = arith.constant 0 : index
    %c0_21 = arith.constant 0 : index
    %70 = vector.load %arg4[%c1_19, %c0_20, %c0_21] : memref<2x16x16xf32, #tpu.memory_space<vmem>>, vector<1x16x16xf32>
    %71 = vector.shape_cast %70 : vector<1x16x16xf32> to vector<16x16xf32>
    %72 = arith.addf %69, %71 : vector<16x16xf32>
    %cst_22 = arith.constant dense<0xFF800000> : vector<16xf32>
    %73 = vector.multi_reduction <maximumf>, %72, %cst_22 [1] : vector<16x16xf32> to vector<16xf32>
    %74 = vector.shape_cast %73 : vector<16xf32> to vector<16x1xf32>
    %75 = vector.broadcast %74 : vector<16x1xf32> to vector<16x16xf32>
    %76 = arith.subf %72, %75 : vector<16x16xf32>
    %77 = math.exp %76 : vector<16x16xf32>
    %cst_23 = arith.constant dense<0.000000e+00> : vector<16xf32>
    %78 = vector.multi_reduction <add>, %77, %cst_23 [1] : vector<16x16xf32> to vector<16xf32>
    %79 = vector.shape_cast %78 : vector<16xf32> to vector<16x1xf32>
    %80 = tpu.reciprocal %79 {approx = true} : vector<16x1xf32> -> vector<16x1xf32>
    %81 = vector.broadcast %80 : vector<16x1xf32> to vector<16x16xf32>
    %82 = arith.mulf %77, %81 : vector<16x16xf32>
    %83 = arith.truncf %82 : vector<16x16xf32> to vector<16x16xbf16>
    %cst_24 = arith.constant dense<0.000000e+00> : vector<16x16xf32>
    %84 = tpu.matmul %83, %47, %cst_24 {dimension_numbers = #tpu.dot_dimension_numbers<[1], [0], [0], [1], [0, 0, 1, 1], [], []>} : vector<16x16xbf16>, vector<16x16xbf16>, vector<16x16xf32> -> vector<16x16xf32>
    %85 = tpu.concatenate %42, %84 in 1 : vector<16x16xf32>, vector<16x16xf32> -> vector<16x32xf32>
    %86 = arith.truncf %85 : vector<16x32xf32> to vector<16x32xbf16>
    %c0_25 = arith.constant 0 : index
    %c0_26 = arith.constant 0 : index
    %87 = vector.load %arg5[%c0_25, %c0_26] : memref<16x32xbf16, #tpu.memory_space<vmem>>, vector<16x32xbf16>
    tpu.vector_store %arg5[%c0_25, %c0_26], %86 {strides = array<i32>} : memref<16x32xbf16, #tpu.memory_space<vmem>>, vector<16x32xbf16>,
    return
  }
  func.func @transform_0(%arg0: i32, %arg1: i32) -> (i32, i32) {
    %c0_i32 = arith.constant 0 : i32
    %c0_i32_0 = arith.constant 0 : i32
    %c0_i32_1 = arith.constant 0 : i32
    return %c0_i32, %c0_i32_0 : i32, i32
  }
  func.func @transform_1(%arg0: i32, %arg1: i32) -> (i32, i32) {
    %c4_i32 = arith.constant 4 : i32
    %0 = arith.muli %arg1, %c4_i32 : i32
    %1 = arith.addi %0, %arg0 : i32
    %c0_i32 = arith.constant 0 : i32
    %c0_i32_0 = arith.constant 0 : i32
    return %1, %c0_i32 : i32, i32
  }
  func.func @transform_2(%arg0: i32, %arg1: i32) -> (i32, i32, i32) {
    %c0_i32 = arith.constant 0 : i32
    %c0_i32_0 = arith.constant 0 : i32
    %c0_i32_1 = arith.constant 0 : i32
    %c0_i32_2 = arith.constant 0 : i32
    return %c0_i32, %c0_i32_0, %c0_i32_1 : i32, i32, i32
  }
  func.func @transform_3(%arg0: i32, %arg1: i32) -> (i32, i32) {
    %c4_i32 = arith.constant 4 : i32
    %0 = arith.muli %arg1, %c4_i32 : i32
    %1 = arith.addi %0, %arg0 : i32
    %c0_i32 = arith.constant 0 : i32
    %c0_i32_0 = arith.constant 0 : i32
    return %1, %c0_i32 : i32, i32
  }
}

module attributes {stable_mosaic.version = 11 : i64} {
  func.func @_fused_linear_kernel(%arg0: i32, %arg1: i32, %arg2: memref<64x32xbf16, #tpu.memory_space<vmem>>, %arg3: memref<32x32xbf16, #tpu.memory_space<vmem>>, %arg4: memref<1x32xf32, #tpu.memory_space<vmem>>, %arg5: memref<1x32xf32, #tpu.memory_space<vmem>>, %arg6: memref<1x32xf32, #tpu.memory_space<vmem>>, %arg7: memref<64x32xbf16, #tpu.memory_space<vmem>>, %arg8: memref<64x32xbf16, #tpu.memory_space<vmem>>, %arg9: memref<64x32xf32, #tpu.memory_space<vmem>>) attributes {dimension_semantics = [#tpu.dimension_semantics<parallel>, #tpu.dimension_semantics<arbitrary>], iteration_bounds = array<i64: 2, 1>, scalar_prefetch = 0 : i64, scratch_operands = 1 : i64, tpu.core_type = #tpu.core_type<tc>, window_params = [{transform_indices = @transform_0, window_bounds = array<i64: 64, 32>}, {transform_indices = @transform_1, window_bounds = array<i64: 32, 32>}, {pipeline_mode = #tpu.pipeline_mode<synchronous>, transform_indices = @transform_2, window_bounds = array<i64: 1, 32>}, {pipeline_mode = #tpu.pipeline_mode<synchronous>, transform_indices = @transform_3, window_bounds = array<i64: 1, 32>}, {pipeline_mode = #tpu.pipeline_mode<synchronous>, transform_indices = @transform_4, window_bounds = array<i64: 1, 32>}, {transform_indices = @transform_5, window_bounds = array<i64: 64, 32>}, {transform_indices = @transform_6, window_bounds = array<i64: 64, 32>}]} {
    %c0_i32 = arith.constant 0 : i32
    %0 = arith.cmpi eq, %arg1, %c0_i32 : i32
    %1 = arith.extui %0 : i1 to i32
    %c0_i32_0 = arith.constant 0 : i32
    %2 = arith.cmpi ne, %1, %c0_i32_0 : i32
    scf.if %2 {
      %cst_10 = arith.constant 0.000000e+00 : f32
      %12 = vector.broadcast %cst_10 : f32 to vector<64x32xf32>
      %c0_11 = arith.constant 0 : index
      %c0_12 = arith.constant 0 : index
      %13 = vector.load %arg9[%c0_11, %c0_12] : memref<64x32xf32, #tpu.memory_space<vmem>>, vector<64x32xf32>
      tpu.vector_store %arg9[%c0_11, %c0_12], %12 {strides = array<i32>} : memref<64x32xf32, #tpu.memory_space<vmem>>, vector<64x32xf32>,
    } else {
    }
    %c0 = arith.constant 0 : index
    %c0_1 = arith.constant 0 : index
    %3 = vector.load %arg9[%c0, %c0_1] : memref<64x32xf32, #tpu.memory_space<vmem>>, vector<64x32xf32>
    %c0_2 = arith.constant 0 : index
    %c0_3 = arith.constant 0 : index
    %4 = vector.load %arg2[%c0_2, %c0_3] : memref<64x32xbf16, #tpu.memory_space<vmem>>, vector<64x32xbf16>
    %c0_4 = arith.constant 0 : index
    %c0_5 = arith.constant 0 : index
    %5 = vector.load %arg3[%c0_4, %c0_5] : memref<32x32xbf16, #tpu.memory_space<vmem>>, vector<32x32xbf16>
    %cst = arith.constant dense<0.000000e+00> : vector<64x32xf32>
    %6 = tpu.matmul %4, %5, %cst {dimension_numbers = #tpu.dot_dimension_numbers<[1], [0], [0], [1], [0, 0, 1, 1], [], []>} : vector<64x32xbf16>, vector<32x32xbf16>, vector<64x32xf32> -> vector<64x32xf32>
    %7 = arith.addf %3, %6 : vector<64x32xf32>
    %c0_6 = arith.constant 0 : index
    %c0_7 = arith.constant 0 : index
    %8 = vector.load %arg9[%c0_6, %c0_7] : memref<64x32xf32, #tpu.memory_space<vmem>>, vector<64x32xf32>
    tpu.vector_store %arg9[%c0_6, %c0_7], %7 {strides = array<i32>} : memref<64x32xf32, #tpu.memory_space<vmem>>, vector<64x32xf32>,
    %c0_i32_8 = arith.constant 0 : i32
    %9 = arith.cmpi eq, %arg1, %c0_i32_8 : i32
    %10 = arith.extui %9 : i1 to i32
    %c0_i32_9 = arith.constant 0 : i32
    %11 = arith.cmpi ne, %10, %c0_i32_9 : i32
    scf.if %11 {
      %c0_10 = arith.constant 0 : index
      %c0_11 = arith.constant 0 : index
      %12 = vector.load %arg9[%c0_10, %c0_11] : memref<64x32xf32, #tpu.memory_space<vmem>>, vector<64x32xf32>
      %c0_12 = arith.constant 0 : index
      %c0_13 = arith.constant 0 : index
      %13 = vector.load %arg4[%c0_12, %c0_13] : memref<1x32xf32, #tpu.memory_space<vmem>>, vector<1x32xf32>
      %14 = vector.broadcast %13 : vector<1x32xf32> to vector<64x32xf32>
      %15 = arith.addf %12, %14 : vector<64x32xf32>
      %cst_14 = arith.constant dense<0.000000e+00> : vector<64xf32>
      %16 = vector.multi_reduction <add>, %15, %cst_14 [1] : vector<64x32xf32> to vector<64xf32>
      %17 = vector.shape_cast %16 : vector<64xf32> to vector<64x1xf32>
      %cst_15 = arith.constant 3.200000e+01 : f32
      %18 = vector.broadcast %cst_15 : f32 to vector<64x1xf32>
      %19 = arith.divf %17, %18 : vector<64x1xf32>
      %20 = vector.broadcast %19 : vector<64x1xf32> to vector<64x32xf32>
      %21 = arith.subf %15, %20 : vector<64x32xf32>
      %22 = arith.mulf %21, %21 : vector<64x32xf32>
      %cst_16 = arith.constant dense<0.000000e+00> : vector<64xf32>
      %23 = vector.multi_reduction <add>, %22, %cst_16 [1] : vector<64x32xf32> to vector<64xf32>
      %24 = vector.shape_cast %23 : vector<64xf32> to vector<64x1xf32>
      %cst_17 = arith.constant 3.200000e+01 : f32
      %25 = vector.broadcast %cst_17 : f32 to vector<64x1xf32>
      %26 = arith.divf %24, %25 : vector<64x1xf32>
      %cst_18 = arith.constant 9.99999974E-6 : f32
      %27 = vector.broadcast %cst_18 : f32 to vector<64x1xf32>
      %28 = arith.addf %26, %27 : vector<64x1xf32>
      %29 = math.rsqrt %28 : vector<64x1xf32>
      %30 = vector.broadcast %29 : vector<64x1xf32> to vector<64x32xf32>
      %31 = arith.mulf %21, %30 : vector<64x32xf32>
      %c0_19 = arith.constant 0 : index
      %c0_20 = arith.constant 0 : index
      %32 = vector.load %arg5[%c0_19, %c0_20] : memref<1x32xf32, #tpu.memory_space<vmem>>, vector<1x32xf32>
      %33 = vector.broadcast %32 : vector<1x32xf32> to vector<64x32xf32>
      %34 = arith.mulf %31, %33 : vector<64x32xf32>
      %c0_21 = arith.constant 0 : index
      %c0_22 = arith.constant 0 : index
      %35 = vector.load %arg6[%c0_21, %c0_22] : memref<1x32xf32, #tpu.memory_space<vmem>>, vector<1x32xf32>
      %36 = vector.broadcast %35 : vector<1x32xf32> to vector<64x32xf32>
      %37 = arith.addf %34, %36 : vector<64x32xf32>
      %c0_23 = arith.constant 0 : index
      %c0_24 = arith.constant 0 : index
      %38 = vector.load %arg7[%c0_23, %c0_24] : memref<64x32xbf16, #tpu.memory_space<vmem>>, vector<64x32xbf16>
      %39 = arith.extf %38 : vector<64x32xbf16> to vector<64x32xf32>
      %40 = arith.addf %37, %39 : vector<64x32xf32>
      %41 = arith.truncf %40 : vector<64x32xf32> to vector<64x32xbf16>
      %c0_25 = arith.constant 0 : index
      %c0_26 = arith.constant 0 : index
      %42 = vector.load %arg8[%c0_25, %c0_26] : memref<64x32xbf16, #tpu.memory_space<vmem>>, vector<64x32xbf16>
      tpu.vector_store %arg8[%c0_25, %c0_26], %41 {strides = array<i32>} : memref<64x32xbf16, #tpu.memory_space<vmem>>, vector<64x32xbf16>,
    } else {
    }
    return
  }
  func.func @transform_0(%arg0: i32, %arg1: i32) -> (i32, i32) {
    %c0_i32 = arith.constant 0 : i32
    return %arg0, %arg1 : i32, i32
  }
  func.func @transform_1(%arg0: i32, %arg1: i32) -> (i32, i32) {
    %c0_i32 = arith.constant 0 : i32
    %c0_i32_0 = arith.constant 0 : i32
    return %arg1, %c0_i32 : i32, i32
  }
  func.func @transform_2(%arg0: i32, %arg1: i32) -> (i32, i32) {
    %c0_i32 = arith.constant 0 : i32
    %c0_i32_0 = arith.constant 0 : i32
    %c0_i32_1 = arith.constant 0 : i32
    return %c0_i32, %c0_i32_0 : i32, i32
  }
  func.func @transform_3(%arg0: i32, %arg1: i32) -> (i32, i32) {
    %c0_i32 = arith.constant 0 : i32
    %c0_i32_0 = arith.constant 0 : i32
    %c0_i32_1 = arith.constant 0 : i32
    return %c0_i32, %c0_i32_0 : i32, i32
  }
  func.func @transform_4(%arg0: i32, %arg1: i32) -> (i32, i32) {
    %c0_i32 = arith.constant 0 : i32
    %c0_i32_0 = arith.constant 0 : i32
    %c0_i32_1 = arith.constant 0 : i32
    return %c0_i32, %c0_i32_0 : i32, i32
  }
  func.func @transform_5(%arg0: i32, %arg1: i32) -> (i32, i32) {
    %c0_i32 = arith.constant 0 : i32
    %c0_i32_0 = arith.constant 0 : i32
    return %arg0, %c0_i32 : i32, i32
  }
  func.func @transform_6(%arg0: i32, %arg1: i32) -> (i32, i32) {
    %c0_i32 = arith.constant 0 : i32
    %c0_i32_0 = arith.constant 0 : i32
    return %arg0, %c0_i32 : i32, i32
  }
}

module attributes {stable_mosaic.version = 11 : i64} {
  func.func @_fused_linear_kernel(%arg0: i32, %arg1: i32, %arg2: memref<64x32xbf16, #tpu.memory_space<vmem>>, %arg3: memref<32x128xbf16, #tpu.memory_space<vmem>>, %arg4: memref<1x128xf32, #tpu.memory_space<vmem>>, %arg5: memref<64x128xbf16, #tpu.memory_space<vmem>>, %arg6: memref<64x128xf32, #tpu.memory_space<vmem>>) attributes {dimension_semantics = [#tpu.dimension_semantics<parallel>, #tpu.dimension_semantics<arbitrary>], iteration_bounds = array<i64: 2, 1>, scalar_prefetch = 0 : i64, scratch_operands = 1 : i64, tpu.core_type = #tpu.core_type<tc>, window_params = [{transform_indices = @transform_0, window_bounds = array<i64: 64, 32>}, {transform_indices = @transform_1, window_bounds = array<i64: 32, 128>}, {pipeline_mode = #tpu.pipeline_mode<synchronous>, transform_indices = @transform_2, window_bounds = array<i64: 1, 128>}, {transform_indices = @transform_3, window_bounds = array<i64: 64, 128>}]} {
    %c0_i32 = arith.constant 0 : i32
    %0 = arith.cmpi eq, %arg1, %c0_i32 : i32
    %1 = arith.extui %0 : i1 to i32
    %c0_i32_0 = arith.constant 0 : i32
    %2 = arith.cmpi ne, %1, %c0_i32_0 : i32
    scf.if %2 {
      %cst_10 = arith.constant 0.000000e+00 : f32
      %12 = vector.broadcast %cst_10 : f32 to vector<64x128xf32>
      %c0_11 = arith.constant 0 : index
      %c0_12 = arith.constant 0 : index
      %13 = vector.load %arg6[%c0_11, %c0_12] : memref<64x128xf32, #tpu.memory_space<vmem>>, vector<64x128xf32>
      tpu.vector_store %arg6[%c0_11, %c0_12], %12 {strides = array<i32>} : memref<64x128xf32, #tpu.memory_space<vmem>>, vector<64x128xf32>,
    } else {
    }
    %c0 = arith.constant 0 : index
    %c0_1 = arith.constant 0 : index
    %3 = vector.load %arg6[%c0, %c0_1] : memref<64x128xf32, #tpu.memory_space<vmem>>, vector<64x128xf32>
    %c0_2 = arith.constant 0 : index
    %c0_3 = arith.constant 0 : index
    %4 = vector.load %arg2[%c0_2, %c0_3] : memref<64x32xbf16, #tpu.memory_space<vmem>>, vector<64x32xbf16>
    %c0_4 = arith.constant 0 : index
    %c0_5 = arith.constant 0 : index
    %5 = vector.load %arg3[%c0_4, %c0_5] : memref<32x128xbf16, #tpu.memory_space<vmem>>, vector<32x128xbf16>
    %cst = arith.constant dense<0.000000e+00> : vector<64x128xf32>
    %6 = tpu.matmul %4, %5, %cst {dimension_numbers = #tpu.dot_dimension_numbers<[1], [0], [0], [1], [0, 0, 1, 1], [], []>} : vector<64x32xbf16>, vector<32x128xbf16>, vector<64x128xf32> -> vector<64x128xf32>
    %7 = arith.addf %3, %6 : vector<64x128xf32>
    %c0_6 = arith.constant 0 : index
    %c0_7 = arith.constant 0 : index
    %8 = vector.load %arg6[%c0_6, %c0_7] : memref<64x128xf32, #tpu.memory_space<vmem>>, vector<64x128xf32>
    tpu.vector_store %arg6[%c0_6, %c0_7], %7 {strides = array<i32>} : memref<64x128xf32, #tpu.memory_space<vmem>>, vector<64x128xf32>,
    %c0_i32_8 = arith.constant 0 : i32
    %9 = arith.cmpi eq, %arg1, %c0_i32_8 : i32
    %10 = arith.extui %9 : i1 to i32
    %c0_i32_9 = arith.constant 0 : i32
    %11 = arith.cmpi ne, %10, %c0_i32_9 : i32
    scf.if %11 {
      %c0_10 = arith.constant 0 : index
      %c0_11 = arith.constant 0 : index
      %12 = vector.load %arg6[%c0_10, %c0_11] : memref<64x128xf32, #tpu.memory_space<vmem>>, vector<64x128xf32>
      %c0_12 = arith.constant 0 : index
      %c0_13 = arith.constant 0 : index
      %13 = vector.load %arg4[%c0_12, %c0_13] : memref<1x128xf32, #tpu.memory_space<vmem>>, vector<1x128xf32>
      %14 = vector.broadcast %13 : vector<1x128xf32> to vector<64x128xf32>
      %15 = arith.addf %12, %14 : vector<64x128xf32>
      %cst_14 = arith.constant 5.000000e-01 : f32
      %16 = vector.broadcast %cst_14 : f32 to vector<64x128xf32>
      %17 = arith.mulf %16, %15 : vector<64x128xf32>
      %cst_15 = arith.constant 4.471500e-02 : f32
      %18 = vector.broadcast %cst_15 : f32 to vector<64x128xf32>
      %19 = arith.mulf %18, %15 : vector<64x128xf32>
      %20 = arith.mulf %19, %15 : vector<64x128xf32>
      %21 = arith.mulf %20, %15 : vector<64x128xf32>
      %22 = arith.addf %15, %21 : vector<64x128xf32>
      %cst_16 = arith.constant 0.797884583 : f32
      %23 = vector.broadcast %cst_16 : f32 to vector<64x128xf32>
      %24 = arith.mulf %23, %22 : vector<64x128xf32>
      %25 = math.tanh %24 : vector<64x128xf32>
      %cst_17 = arith.constant 1.000000e+00 : f32
      %26 = vector.broadcast %cst_17 : f32 to vector<64x128xf32>
      %27 = arith.addf %26, %25 : vector<64x128xf32>
      %28 = arith.mulf %17, %27 : vector<64x128xf32>
      %29 = arith.truncf %28 : vector<64x128xf32> to vector<64x128xbf16>
      %c0_18 = arith.constant 0 : index
      %c0_19 = arith.constant 0 : index
      %30 = vector.load %arg5[%c0_18, %c0_19] : memref<64x128xbf16, #tpu.memory_space<vmem>>, vector<64x128xbf16>
      tpu.vector_store %arg5[%c0_18, %c0_19], %29 {strides = array<i32>} : memref<64x128xbf16, #tpu.memory_space<vmem>>, vector<64x128xbf16>,
    } else {
    }
    return
  }
  func.func @transform_0(%arg0: i32, %arg1: i32) -> (i32, i32) {
    %c0_i32 = arith.constant 0 : i32
    return %arg0, %arg1 : i32, i32
  }
  func.func @transform_1(%arg0: i32, %arg1: i32) -> (i32, i32) {
    %c0_i32 = arith.constant 0 : i32
    %c0_i32_0 = arith.constant 0 : i32
    return %arg1, %c0_i32 : i32, i32
  }
  func.func @transform_2(%arg0: i32, %arg1: i32) -> (i32, i32) {
    %c0_i32 = arith.constant 0 : i32
    %c0_i32_0 = arith.constant 0 : i32
    %c0_i32_1 = arith.constant 0 : i32
    return %c0_i32, %c0_i32_0 : i32, i32
  }
  func.func @transform_3(%arg0: i32, %arg1: i32) -> (i32, i32) {
    %c0_i32 = arith.constant 0 : i32
    %c0_i32_0 = arith.constant 0 : i32
    return %arg0, %c0_i32 : i32, i32
  }
}

module attributes {stable_mosaic.version = 11 : i64} {
  func.func @_fused_linear_kernel(%arg0: i32, %arg1: i32, %arg2: memref<64x128xbf16, #tpu.memory_space<vmem>>, %arg3: memref<128x32xbf16, #tpu.memory_space<vmem>>, %arg4: memref<1x32xf32, #tpu.memory_space<vmem>>, %arg5: memref<1x32xf32, #tpu.memory_space<vmem>>, %arg6: memref<1x32xf32, #tpu.memory_space<vmem>>, %arg7: memref<64x32xbf16, #tpu.memory_space<vmem>>, %arg8: memref<64x32xbf16, #tpu.memory_space<vmem>>, %arg9: memref<64x32xf32, #tpu.memory_space<vmem>>) attributes {dimension_semantics = [#tpu.dimension_semantics<parallel>, #tpu.dimension_semantics<arbitrary>], iteration_bounds = array<i64: 2, 1>, scalar_prefetch = 0 : i64, scratch_operands = 1 : i64, tpu.core_type = #tpu.core_type<tc>, window_params = [{transform_indices = @transform_0, window_bounds = array<i64: 64, 128>}, {transform_indices = @transform_1, window_bounds = array<i64: 128, 32>}, {pipeline_mode = #tpu.pipeline_mode<synchronous>, transform_indices = @transform_2, window_bounds = array<i64: 1, 32>}, {pipeline_mode = #tpu.pipeline_mode<synchronous>, transform_indices = @transform_3, window_bounds = array<i64: 1, 32>}, {pipeline_mode = #tpu.pipeline_mode<synchronous>, transform_indices = @transform_4, window_bounds = array<i64: 1, 32>}, {transform_indices = @transform_5, window_bounds = array<i64: 64, 32>}, {transform_indices = @transform_6, window_bounds = array<i64: 64, 32>}]} {
    %c0_i32 = arith.constant 0 : i32
    %0 = arith.cmpi eq, %arg1, %c0_i32 : i32
    %1 = arith.extui %0 : i1 to i32
    %c0_i32_0 = arith.constant 0 : i32
    %2 = arith.cmpi ne, %1, %c0_i32_0 : i32
    scf.if %2 {
      %cst_10 = arith.constant 0.000000e+00 : f32
      %12 = vector.broadcast %cst_10 : f32 to vector<64x32xf32>
      %c0_11 = arith.constant 0 : index
      %c0_12 = arith.constant 0 : index
      %13 = vector.load %arg9[%c0_11, %c0_12] : memref<64x32xf32, #tpu.memory_space<vmem>>, vector<64x32xf32>
      tpu.vector_store %arg9[%c0_11, %c0_12], %12 {strides = array<i32>} : memref<64x32xf32, #tpu.memory_space<vmem>>, vector<64x32xf32>,
    } else {
    }
    %c0 = arith.constant 0 : index
    %c0_1 = arith.constant 0 : index
    %3 = vector.load %arg9[%c0, %c0_1] : memref<64x32xf32, #tpu.memory_space<vmem>>, vector<64x32xf32>
    %c0_2 = arith.constant 0 : index
    %c0_3 = arith.constant 0 : index
    %4 = vector.load %arg2[%c0_2, %c0_3] : memref<64x128xbf16, #tpu.memory_space<vmem>>, vector<64x128xbf16>
    %c0_4 = arith.constant 0 : index
    %c0_5 = arith.constant 0 : index
    %5 = vector.load %arg3[%c0_4, %c0_5] : memref<128x32xbf16, #tpu.memory_space<vmem>>, vector<128x32xbf16>
    %cst = arith.constant dense<0.000000e+00> : vector<64x32xf32>
    %6 = tpu.matmul %4, %5, %cst {dimension_numbers = #tpu.dot_dimension_numbers<[1], [0], [0], [1], [0, 0, 1, 1], [], []>} : vector<64x128xbf16>, vector<128x32xbf16>, vector<64x32xf32> -> vector<64x32xf32>
    %7 = arith.addf %3, %6 : vector<64x32xf32>
    %c0_6 = arith.constant 0 : index
    %c0_7 = arith.constant 0 : index
    %8 = vector.load %arg9[%c0_6, %c0_7] : memref<64x32xf32, #tpu.memory_space<vmem>>, vector<64x32xf32>
    tpu.vector_store %arg9[%c0_6, %c0_7], %7 {strides = array<i32>} : memref<64x32xf32, #tpu.memory_space<vmem>>, vector<64x32xf32>,
    %c0_i32_8 = arith.constant 0 : i32
    %9 = arith.cmpi eq, %arg1, %c0_i32_8 : i32
    %10 = arith.extui %9 : i1 to i32
    %c0_i32_9 = arith.constant 0 : i32
    %11 = arith.cmpi ne, %10, %c0_i32_9 : i32
    scf.if %11 {
      %c0_10 = arith.constant 0 : index
      %c0_11 = arith.constant 0 : index
      %12 = vector.load %arg9[%c0_10, %c0_11] : memref<64x32xf32, #tpu.memory_space<vmem>>, vector<64x32xf32>
      %c0_12 = arith.constant 0 : index
      %c0_13 = arith.constant 0 : index
      %13 = vector.load %arg4[%c0_12, %c0_13] : memref<1x32xf32, #tpu.memory_space<vmem>>, vector<1x32xf32>
      %14 = vector.broadcast %13 : vector<1x32xf32> to vector<64x32xf32>
      %15 = arith.addf %12, %14 : vector<64x32xf32>
      %cst_14 = arith.constant dense<0.000000e+00> : vector<64xf32>
      %16 = vector.multi_reduction <add>, %15, %cst_14 [1] : vector<64x32xf32> to vector<64xf32>
      %17 = vector.shape_cast %16 : vector<64xf32> to vector<64x1xf32>
      %cst_15 = arith.constant 3.200000e+01 : f32
      %18 = vector.broadcast %cst_15 : f32 to vector<64x1xf32>
      %19 = arith.divf %17, %18 : vector<64x1xf32>
      %20 = vector.broadcast %19 : vector<64x1xf32> to vector<64x32xf32>
      %21 = arith.subf %15, %20 : vector<64x32xf32>
      %22 = arith.mulf %21, %21 : vector<64x32xf32>
      %cst_16 = arith.constant dense<0.000000e+00> : vector<64xf32>
      %23 = vector.multi_reduction <add>, %22, %cst_16 [1] : vector<64x32xf32> to vector<64xf32>
      %24 = vector.shape_cast %23 : vector<64xf32> to vector<64x1xf32>
      %cst_17 = arith.constant 3.200000e+01 : f32
      %25 = vector.broadcast %cst_17 : f32 to vector<64x1xf32>
      %26 = arith.divf %24, %25 : vector<64x1xf32>
      %cst_18 = arith.constant 9.99999974E-6 : f32
      %27 = vector.broadcast %cst_18 : f32 to vector<64x1xf32>
      %28 = arith.addf %26, %27 : vector<64x1xf32>
      %29 = math.rsqrt %28 : vector<64x1xf32>
      %30 = vector.broadcast %29 : vector<64x1xf32> to vector<64x32xf32>
      %31 = arith.mulf %21, %30 : vector<64x32xf32>
      %c0_19 = arith.constant 0 : index
      %c0_20 = arith.constant 0 : index
      %32 = vector.load %arg5[%c0_19, %c0_20] : memref<1x32xf32, #tpu.memory_space<vmem>>, vector<1x32xf32>
      %33 = vector.broadcast %32 : vector<1x32xf32> to vector<64x32xf32>
      %34 = arith.mulf %31, %33 : vector<64x32xf32>
      %c0_21 = arith.constant 0 : index
      %c0_22 = arith.constant 0 : index
      %35 = vector.load %arg6[%c0_21, %c0_22] : memref<1x32xf32, #tpu.memory_space<vmem>>, vector<1x32xf32>
      %36 = vector.broadcast %35 : vector<1x32xf32> to vector<64x32xf32>
      %37 = arith.addf %34, %36 : vector<64x32xf32>
      %c0_23 = arith.constant 0 : index
      %c0_24 = arith.constant 0 : index
      %38 = vector.load %arg7[%c0_23, %c0_24] : memref<64x32xbf16, #tpu.memory_space<vmem>>, vector<64x32xbf16>
      %39 = arith.extf %38 : vector<64x32xbf16> to vector<64x32xf32>
      %40 = arith.addf %37, %39 : vector<64x32xf32>
      %41 = arith.truncf %40 : vector<64x32xf32> to vector<64x32xbf16>
      %c0_25 = arith.constant 0 : index
      %c0_26 = arith.constant 0 : index
      %42 = vector.load %arg8[%c0_25, %c0_26] : memref<64x32xbf16, #tpu.memory_space<vmem>>, vector<64x32xbf16>
      tpu.vector_store %arg8[%c0_25, %c0_26], %41 {strides = array<i32>} : memref<64x32xbf16, #tpu.memory_space<vmem>>, vector<64x32xbf16>,
    } else {
    }
    return
  }
  func.func @transform_0(%arg0: i32, %arg1: i32) -> (i32, i32) {
    %c0_i32 = arith.constant 0 : i32
    return %arg0, %arg1 : i32, i32
  }
  func.func @transform_1(%arg0: i32, %arg1: i32) -> (i32, i32) {
    %c0_i32 = arith.constant 0 : i32
    %c0_i32_0 = arith.constant 0 : i32
    return %arg1, %c0_i32 : i32, i32
  }
  func.func @transform_2(%arg0: i32, %arg1: i32) -> (i32, i32) {
    %c0_i32 = arith.constant 0 : i32
    %c0_i32_0 = arith.constant 0 : i32
    %c0_i32_1 = arith.constant 0 : i32
    return %c0_i32, %c0_i32_0 : i32, i32
  }
  func.func @transform_3(%arg0: i32, %arg1: i32) -> (i32, i32) {
    %c0_i32 = arith.constant 0 : i32
    %c0_i32_0 = arith.constant 0 : i32
    %c0_i32_1 = arith.constant 0 : i32
    return %c0_i32, %c0_i32_0 : i32, i32
  }
  func.func @transform_4(%arg0: i32, %arg1: i32) -> (i32, i32) {
    %c0_i32 = arith.constant 0 : i32
    %c0_i32_0 = arith.constant 0 : i32
    %c0_i32_1 = arith.constant 0 : i32
    return %c0_i32, %c0_i32_0 : i32, i32
  }
  func.func @transform_5(%arg0: i32, %arg1: i32) -> (i32, i32) {
    %c0_i32 = arith.constant 0 : i32
    %c0_i32_0 = arith.constant 0 : i32
    return %arg0, %c0_i32 : i32, i32
  }
  func.func @transform_6(%arg0: i32, %arg1: i32) -> (i32, i32) {
    %c0_i32 = arith.constant 0 : i32
    %c0_i32_0 = arith.constant 0 : i32
    return %arg0, %c0_i32 : i32, i32
  }
}

module attributes {stable_mosaic.version = 11 : i64} {
  func.func @_window_attention_kernel(%arg0: i32, %arg1: i32, %arg2: memref<1x2xf32, #tpu.memory_space<smem>>, %arg3: memref<16x96xbf16, #tpu.memory_space<vmem>>, %arg4: memref<2x16x16xf32, #tpu.memory_space<vmem>>, %arg5: memref<1x16x16xf32, #tpu.memory_space<vmem>>, %arg6: memref<16x32xbf16, #tpu.memory_space<vmem>>) attributes {dimension_semantics = [#tpu.dimension_semantics<parallel>, #tpu.dimension_semantics<arbitrary>], iteration_bounds = array<i64: 4, 2>, scalar_prefetch = 0 : i64, scratch_operands = 0 : i64, tpu.core_type = #tpu.core_type<tc>, window_params = [{transform_indices = @transform_0, window_bounds = array<i64: 1, 2>}, {transform_indices = @transform_1, window_bounds = array<i64: 16, 96>}, {pipeline_mode = #tpu.pipeline_mode<synchronous>, transform_indices = @transform_2, window_bounds = array<i64: 2, 16, 16>}, {transform_indices = @transform_3, window_bounds = array<i64: 1, 16, 16>}, {transform_indices = @transform_4, window_bounds = array<i64: 16, 32>}]} {
    %c0 = arith.constant 0 : index
    %c0_0 = arith.constant 0 : index
    %0 = vector.load %arg3[%c0, %c0_0] : memref<16x96xbf16, #tpu.memory_space<vmem>>, vector<16x96xbf16>
    %c0_1 = arith.constant 0 : index
    %c0_2 = arith.constant 0 : index
    %c0_3 = arith.constant 0 : index
    %1 = vector.load %arg5[%c0_1, %c0_2, %c0_3] : memref<1x16x16xf32, #tpu.memory_space<vmem>>, vector<1x16x16xf32>
    %2 = vector.shape_cast %1 : vector<1x16x16xf32> to vector<16x16xf32>
    %3 = vector.extract_strided_slice %0 {offsets = [0, 0], sizes = [16, 16], strides = [1, 1]} : vector<16x96xbf16> to vector<16x16xbf16>
    %4 = arith.extf %3 : vector<16x16xbf16> to vector<16x16xf32>
    %5 = vector.extract_strided_slice %0 {offsets = [0, 32], sizes = [16, 16], strides = [1, 1]} : vector<16x96xbf16> to vector<16x16xbf16>
    %6 = arith.extf %5 : vector<16x16xbf16> to vector<16x16xf32>
    %7 = vector.extract_strided_slice %0 {offsets = [0, 64], sizes = [16, 16], strides = [1, 1]} : vector<16x96xbf16> to vector<16x16xbf16>
    %8 = arith.mulf %4, %4 : vector<16x16xf32>
    %cst = arith.constant dense<0.000000e+00> : vector<16xf32>
    %9 = vector.multi_reduction <add>, %8, %cst [1] : vector<16x16xf32> to vector<16xf32>
    %10 = vector.shape_cast %9 : vector<16xf32> to vector<16x1xf32>
    %cst_4 = arith.constant 9.99999996E-13 : f32
    %11 = vector.broadcast %cst_4 : f32 to vector<16x1xf32>
    %12 = arith.addf %10, %11 : vector<16x1xf32>
    %13 = math.rsqrt %12 : vector<16x1xf32>
    %14 = vector.broadcast %13 : vector<16x1xf32> to vector<16x16xf32>
    %15 = arith.mulf %4, %14 : vector<16x16xf32>
    %16 = arith.mulf %6, %6 : vector<16x16xf32>
    %cst_5 = arith.constant dense<0.000000e+00> : vector<16xf32>
    %17 = vector.multi_reduction <add>, %16, %cst_5 [1] : vector<16x16xf32> to vector<16xf32>
    %18 = vector.shape_cast %17 : vector<16xf32> to vector<16x1xf32>
    %cst_6 = arith.constant 9.99999996E-13 : f32
    %19 = vector.broadcast %cst_6 : f32 to vector<16x1xf32>
    %20 = arith.addf %18, %19 : vector<16x1xf32>
    %21 = math.rsqrt %20 : vector<16x1xf32>
    %22 = vector.broadcast %21 : vector<16x1xf32> to vector<16x16xf32>
    %23 = arith.mulf %6, %22 : vector<16x16xf32>
    %24 = arith.truncf %15 : vector<16x16xf32> to vector<16x16xbf16>
    %25 = arith.truncf %23 : vector<16x16xf32> to vector<16x16xbf16>
    "tpu.trace_start"() <{level = 10 : i32, message = "qd,kd->qk"}> : () -> ()
    %cst_7 = arith.constant dense<0.000000e+00> : vector<16x16xf32>
    %26 = tpu.matmul %24, %25, %cst_7 {dimension_numbers = #tpu.dot_dimension_numbers<[1], [1], [0], [0], [0, 0, 1, 0], [], []>} : vector<16x16xbf16>, vector<16x16xbf16>, vector<16x16xf32> -> vector<16x16xf32>
    "tpu.trace_stop"() : () -> ()
    %c0_8 = arith.constant 0 : index
    %c0_9 = arith.constant 0 : index
    %27 = memref.load %arg2[%c0_8, %c0_9] : memref<1x2xf32, #tpu.memory_space<smem>>
    %28 = vector.broadcast %27 : f32 to vector<16x16xf32>
    %29 = arith.mulf %26, %28 : vector<16x16xf32>
    %c0_10 = arith.constant 0 : index
    %c0_11 = arith.constant 0 : index
    %c0_12 = arith.constant 0 : index
    %30 = vector.load %arg4[%c0_10, %c0_11, %c0_12] : memref<2x16x16xf32, #tpu.memory_space<vmem>>, vector<1x16x16xf32>
    %31 = vector.shape_cast %30 : vector<1x16x16xf32> to vector<16x16xf32>
    %32 = arith.addf %29, %31 : vector<16x16xf32>
    %33 = arith.addf %32, %2 : vector<16x16xf32>
    %cst_13 = arith.constant dense<0xFF800000> : vector<16xf32>
    %34 = vector.multi_reduction <maximumf>, %33, %cst_13 [1] : vector<16x16xf32> to vector<16xf32>
    %35 = vector.shape_cast %34 : vector<16xf32> to vector<16x1xf32>
    %36 = vector.broadcast %35 : vector<16x1xf32> to vector<16x16xf32>
    %37 = arith.subf %33, %36 : vector<16x16xf32>
    %38 = math.exp %37 : vector<16x16xf32>
    %cst_14 = arith.constant dense<0.000000e+00> : vector<16xf32>
    %39 = vector.multi_reduction <add>, %38, %cst_14 [1] : vector<16x16xf32> to vector<16xf32>
    %40 = vector.shape_cast %39 : vector<16xf32> to vector<16x1xf32>
    %41 = tpu.reciprocal %40 {approx = true} : vector<16x1xf32> -> vector<16x1xf32>
    %42 = vector.broadcast %41 : vector<16x1xf32> to vector<16x16xf32>
    %43 = arith.mulf %38, %42 : vector<16x16xf32>
    %44 = arith.truncf %43 : vector<16x16xf32> to vector<16x16xbf16>
    %cst_15 = arith.constant dense<0.000000e+00> : vector<16x16xf32>
    %45 = tpu.matmul %44, %7, %cst_15 {dimension_numbers = #tpu.dot_dimension_numbers<[1], [0], [0], [1], [0, 0, 1, 1], [], []>} : vector<16x16xbf16>, vector<16x16xbf16>, vector<16x16xf32> -> vector<16x16xf32>
    %46 = vector.extract_strided_slice %0 {offsets = [0, 16], sizes = [16, 16], strides = [1, 1]} : vector<16x96xbf16> to vector<16x16xbf16>
    %47 = arith.extf %46 : vector<16x16xbf16> to vector<16x16xf32>
    %48 = vector.extract_strided_slice %0 {offsets = [0, 48], sizes = [16, 16], strides = [1, 1]} : vector<16x96xbf16> to vector<16x16xbf16>
    %49 = arith.extf %48 : vector<16x16xbf16> to vector<16x16xf32>
    %50 = vector.extract_strided_slice %0 {offsets = [0, 80], sizes = [16, 16], strides = [1, 1]} : vector<16x96xbf16> to vector<16x16xbf16>
    %51 = arith.mulf %47, %47 : vector<16x16xf32>
    %cst_16 = arith.constant dense<0.000000e+00> : vector<16xf32>
    %52 = vector.multi_reduction <add>, %51, %cst_16 [1] : vector<16x16xf32> to vector<16xf32>
    %53 = vector.shape_cast %52 : vector<16xf32> to vector<16x1xf32>
    %cst_17 = arith.constant 9.99999996E-13 : f32
    %54 = vector.broadcast %cst_17 : f32 to vector<16x1xf32>
    %55 = arith.addf %53, %54 : vector<16x1xf32>
    %56 = math.rsqrt %55 : vector<16x1xf32>
    %57 = vector.broadcast %56 : vector<16x1xf32> to vector<16x16xf32>
    %58 = arith.mulf %47, %57 : vector<16x16xf32>
    %59 = arith.mulf %49, %49 : vector<16x16xf32>
    %cst_18 = arith.constant dense<0.000000e+00> : vector<16xf32>
    %60 = vector.multi_reduction <add>, %59, %cst_18 [1] : vector<16x16xf32> to vector<16xf32>
    %61 = vector.shape_cast %60 : vector<16xf32> to vector<16x1xf32>
    %cst_19 = arith.constant 9.99999996E-13 : f32
    %62 = vector.broadcast %cst_19 : f32 to vector<16x1xf32>
    %63 = arith.addf %61, %62 : vector<16x1xf32>
    %64 = math.rsqrt %63 : vector<16x1xf32>
    %65 = vector.broadcast %64 : vector<16x1xf32> to vector<16x16xf32>
    %66 = arith.mulf %49, %65 : vector<16x16xf32>
    %67 = arith.truncf %58 : vector<16x16xf32> to vector<16x16xbf16>
    %68 = arith.truncf %66 : vector<16x16xf32> to vector<16x16xbf16>
    "tpu.trace_start"() <{level = 10 : i32, message = "qd,kd->qk"}> : () -> ()
    %cst_20 = arith.constant dense<0.000000e+00> : vector<16x16xf32>
    %69 = tpu.matmul %67, %68, %cst_20 {dimension_numbers = #tpu.dot_dimension_numbers<[1], [1], [0], [0], [0, 0, 1, 0], [], []>} : vector<16x16xbf16>, vector<16x16xbf16>, vector<16x16xf32> -> vector<16x16xf32>
    "tpu.trace_stop"() : () -> ()
    %c0_21 = arith.constant 0 : index
    %c1 = arith.constant 1 : index
    %70 = memref.load %arg2[%c0_21, %c1] : memref<1x2xf32, #tpu.memory_space<smem>>
    %71 = vector.broadcast %70 : f32 to vector<16x16xf32>
    %72 = arith.mulf %69, %71 : vector<16x16xf32>
    %c1_22 = arith.constant 1 : index
    %c0_23 = arith.constant 0 : index
    %c0_24 = arith.constant 0 : index
    %73 = vector.load %arg4[%c1_22, %c0_23, %c0_24] : memref<2x16x16xf32, #tpu.memory_space<vmem>>, vector<1x16x16xf32>
    %74 = vector.shape_cast %73 : vector<1x16x16xf32> to vector<16x16xf32>
    %75 = arith.addf %72, %74 : vector<16x16xf32>
    %76 = arith.addf %75, %2 : vector<16x16xf32>
    %cst_25 = arith.constant dense<0xFF800000> : vector<16xf32>
    %77 = vector.multi_reduction <maximumf>, %76, %cst_25 [1] : vector<16x16xf32> to vector<16xf32>
    %78 = vector.shape_cast %77 : vector<16xf32> to vector<16x1xf32>
    %79 = vector.broadcast %78 : vector<16x1xf32> to vector<16x16xf32>
    %80 = arith.subf %76, %79 : vector<16x16xf32>
    %81 = math.exp %80 : vector<16x16xf32>
    %cst_26 = arith.constant dense<0.000000e+00> : vector<16xf32>
    %82 = vector.multi_reduction <add>, %81, %cst_26 [1] : vector<16x16xf32> to vector<16xf32>
    %83 = vector.shape_cast %82 : vector<16xf32> to vector<16x1xf32>
    %84 = tpu.reciprocal %83 {approx = true} : vector<16x1xf32> -> vector<16x1xf32>
    %85 = vector.broadcast %84 : vector<16x1xf32> to vector<16x16xf32>
    %86 = arith.mulf %81, %85 : vector<16x16xf32>
    %87 = arith.truncf %86 : vector<16x16xf32> to vector<16x16xbf16>
    %cst_27 = arith.constant dense<0.000000e+00> : vector<16x16xf32>
    %88 = tpu.matmul %87, %50, %cst_27 {dimension_numbers = #tpu.dot_dimension_numbers<[1], [0], [0], [1], [0, 0, 1, 1], [], []>} : vector<16x16xbf16>, vector<16x16xbf16>, vector<16x16xf32> -> vector<16x16xf32>
    %89 = tpu.concatenate %45, %88 in 1 : vector<16x16xf32>, vector<16x16xf32> -> vector<16x32xf32>
    %90 = arith.truncf %89 : vector<16x32xf32> to vector<16x32xbf16>
    %c0_28 = arith.constant 0 : index
    %c0_29 = arith.constant 0 : index
    %91 = vector.load %arg6[%c0_28, %c0_29] : memref<16x32xbf16, #tpu.memory_space<vmem>>, vector<16x32xbf16>
    tpu.vector_store %arg6[%c0_28, %c0_29], %90 {strides = array<i32>} : memref<16x32xbf16, #tpu.memory_space<vmem>>, vector<16x32xbf16>,
    return
  }
  func.func @transform_0(%arg0: i32, %arg1: i32) -> (i32, i32) {
    %c0_i32 = arith.constant 0 : i32
    %c0_i32_0 = arith.constant 0 : i32
    %c0_i32_1 = arith.constant 0 : i32
    return %c0_i32, %c0_i32_0 : i32, i32
  }
  func.func @transform_1(%arg0: i32, %arg1: i32) -> (i32, i32) {
    %c4_i32 = arith.constant 4 : i32
    %0 = arith.muli %arg1, %c4_i32 : i32
    %1 = arith.addi %0, %arg0 : i32
    %c0_i32 = arith.constant 0 : i32
    %c0_i32_0 = arith.constant 0 : i32
    return %1, %c0_i32 : i32, i32
  }
  func.func @transform_2(%arg0: i32, %arg1: i32) -> (i32, i32, i32) {
    %c0_i32 = arith.constant 0 : i32
    %c0_i32_0 = arith.constant 0 : i32
    %c0_i32_1 = arith.constant 0 : i32
    %c0_i32_2 = arith.constant 0 : i32
    return %c0_i32, %c0_i32_0, %c0_i32_1 : i32, i32, i32
  }
  func.func @transform_3(%arg0: i32, %arg1: i32) -> (i32, i32, i32) {
    %c0_i32 = arith.constant 0 : i32
    %c0_i32_0 = arith.constant 0 : i32
    %c0_i32_1 = arith.constant 0 : i32
    return %arg0, %c0_i32, %c0_i32_0 : i32, i32, i32
  }
  func.func @transform_4(%arg0: i32, %arg1: i32) -> (i32, i32) {
    %c4_i32 = arith.constant 4 : i32
    %0 = arith.muli %arg1, %c4_i32 : i32
    %1 = arith.addi %0, %arg0 : i32
    %c0_i32 = arith.constant 0 : i32
    %c0_i32_0 = arith.constant 0 : i32
    return %1, %c0_i32 : i32, i32
  }
}

module attributes {stable_mosaic.version = 11 : i64} {
  func.func @_fused_linear_kernel(%arg0: i32, %arg1: i32, %arg2: memref<32x64xbf16, #tpu.memory_space<vmem>>, %arg3: memref<64x192xbf16, #tpu.memory_space<vmem>>, %arg4: memref<1x192xf32, #tpu.memory_space<vmem>>, %arg5: memref<32x192xbf16, #tpu.memory_space<vmem>>, %arg6: memref<32x192xf32, #tpu.memory_space<vmem>>) attributes {dimension_semantics = [#tpu.dimension_semantics<parallel>, #tpu.dimension_semantics<arbitrary>], iteration_bounds = array<i64: 1, 1>, scalar_prefetch = 0 : i64, scratch_operands = 1 : i64, tpu.core_type = #tpu.core_type<tc>, window_params = [{transform_indices = @transform_0, window_bounds = array<i64: 32, 64>}, {transform_indices = @transform_1, window_bounds = array<i64: 64, 192>}, {pipeline_mode = #tpu.pipeline_mode<synchronous>, transform_indices = @transform_2, window_bounds = array<i64: 1, 192>}, {transform_indices = @transform_3, window_bounds = array<i64: 32, 192>}]} {
    %c0_i32 = arith.constant 0 : i32
    %0 = arith.cmpi eq, %arg1, %c0_i32 : i32
    %1 = arith.extui %0 : i1 to i32
    %c0_i32_0 = arith.constant 0 : i32
    %2 = arith.cmpi ne, %1, %c0_i32_0 : i32
    scf.if %2 {
      %cst_10 = arith.constant 0.000000e+00 : f32
      %12 = vector.broadcast %cst_10 : f32 to vector<32x192xf32>
      %c0_11 = arith.constant 0 : index
      %c0_12 = arith.constant 0 : index
      %13 = vector.load %arg6[%c0_11, %c0_12] : memref<32x192xf32, #tpu.memory_space<vmem>>, vector<32x192xf32>
      tpu.vector_store %arg6[%c0_11, %c0_12], %12 {strides = array<i32>} : memref<32x192xf32, #tpu.memory_space<vmem>>, vector<32x192xf32>,
    } else {
    }
    %c0 = arith.constant 0 : index
    %c0_1 = arith.constant 0 : index
    %3 = vector.load %arg6[%c0, %c0_1] : memref<32x192xf32, #tpu.memory_space<vmem>>, vector<32x192xf32>
    %c0_2 = arith.constant 0 : index
    %c0_3 = arith.constant 0 : index
    %4 = vector.load %arg2[%c0_2, %c0_3] : memref<32x64xbf16, #tpu.memory_space<vmem>>, vector<32x64xbf16>
    %c0_4 = arith.constant 0 : index
    %c0_5 = arith.constant 0 : index
    %5 = vector.load %arg3[%c0_4, %c0_5] : memref<64x192xbf16, #tpu.memory_space<vmem>>, vector<64x192xbf16>
    %cst = arith.constant dense<0.000000e+00> : vector<32x192xf32>
    %6 = tpu.matmul %4, %5, %cst {dimension_numbers = #tpu.dot_dimension_numbers<[1], [0], [0], [1], [0, 0, 1, 1], [], []>} : vector<32x64xbf16>, vector<64x192xbf16>, vector<32x192xf32> -> vector<32x192xf32>
    %7 = arith.addf %3, %6 : vector<32x192xf32>
    %c0_6 = arith.constant 0 : index
    %c0_7 = arith.constant 0 : index
    %8 = vector.load %arg6[%c0_6, %c0_7] : memref<32x192xf32, #tpu.memory_space<vmem>>, vector<32x192xf32>
    tpu.vector_store %arg6[%c0_6, %c0_7], %7 {strides = array<i32>} : memref<32x192xf32, #tpu.memory_space<vmem>>, vector<32x192xf32>,
    %c0_i32_8 = arith.constant 0 : i32
    %9 = arith.cmpi eq, %arg1, %c0_i32_8 : i32
    %10 = arith.extui %9 : i1 to i32
    %c0_i32_9 = arith.constant 0 : i32
    %11 = arith.cmpi ne, %10, %c0_i32_9 : i32
    scf.if %11 {
      %c0_10 = arith.constant 0 : index
      %c0_11 = arith.constant 0 : index
      %12 = vector.load %arg6[%c0_10, %c0_11] : memref<32x192xf32, #tpu.memory_space<vmem>>, vector<32x192xf32>
      %c0_12 = arith.constant 0 : index
      %c0_13 = arith.constant 0 : index
      %13 = vector.load %arg4[%c0_12, %c0_13] : memref<1x192xf32, #tpu.memory_space<vmem>>, vector<1x192xf32>
      %14 = vector.broadcast %13 : vector<1x192xf32> to vector<32x192xf32>
      %15 = arith.addf %12, %14 : vector<32x192xf32>
      %16 = arith.truncf %15 : vector<32x192xf32> to vector<32x192xbf16>
      %c0_14 = arith.constant 0 : index
      %c0_15 = arith.constant 0 : index
      %17 = vector.load %arg5[%c0_14, %c0_15] : memref<32x192xbf16, #tpu.memory_space<vmem>>, vector<32x192xbf16>
      tpu.vector_store %arg5[%c0_14, %c0_15], %16 {strides = array<i32>} : memref<32x192xbf16, #tpu.memory_space<vmem>>, vector<32x192xbf16>,
    } else {
    }
    return
  }
  func.func @transform_0(%arg0: i32, %arg1: i32) -> (i32, i32) {
    %c0_i32 = arith.constant 0 : i32
    return %arg0, %arg1 : i32, i32
  }
  func.func @transform_1(%arg0: i32, %arg1: i32) -> (i32, i32) {
    %c0_i32 = arith.constant 0 : i32
    %c0_i32_0 = arith.constant 0 : i32
    return %arg1, %c0_i32 : i32, i32
  }
  func.func @transform_2(%arg0: i32, %arg1: i32) -> (i32, i32) {
    %c0_i32 = arith.constant 0 : i32
    %c0_i32_0 = arith.constant 0 : i32
    %c0_i32_1 = arith.constant 0 : i32
    return %c0_i32, %c0_i32_0 : i32, i32
  }
  func.func @transform_3(%arg0: i32, %arg1: i32) -> (i32, i32) {
    %c0_i32 = arith.constant 0 : i32
    %c0_i32_0 = arith.constant 0 : i32
    return %arg0, %c0_i32 : i32, i32
  }
}

module attributes {stable_mosaic.version = 11 : i64} {
  func.func @_fused_linear_kernel(%arg0: i32, %arg1: i32, %arg2: memref<32x128xbf16, #tpu.memory_space<vmem>>, %arg3: memref<128x64xbf16, #tpu.memory_space<vmem>>, %arg4: memref<1x64xf32, #tpu.memory_space<vmem>>, %arg5: memref<1x64xf32, #tpu.memory_space<vmem>>, %arg6: memref<32x64xbf16, #tpu.memory_space<vmem>>, %arg7: memref<32x64xf32, #tpu.memory_space<vmem>>) attributes {dimension_semantics = [#tpu.dimension_semantics<parallel>, #tpu.dimension_semantics<arbitrary>], iteration_bounds = array<i64: 1, 1>, scalar_prefetch = 0 : i64, scratch_operands = 1 : i64, tpu.core_type = #tpu.core_type<tc>, window_params = [{transform_indices = @transform_0, window_bounds = array<i64: 32, 128>}, {transform_indices = @transform_1, window_bounds = array<i64: 128, 64>}, {pipeline_mode = #tpu.pipeline_mode<synchronous>, transform_indices = @transform_2, window_bounds = array<i64: 1, 64>}, {pipeline_mode = #tpu.pipeline_mode<synchronous>, transform_indices = @transform_3, window_bounds = array<i64: 1, 64>}, {transform_indices = @transform_4, window_bounds = array<i64: 32, 64>}]} {
    %c0_i32 = arith.constant 0 : i32
    %0 = arith.cmpi eq, %arg1, %c0_i32 : i32
    %1 = arith.extui %0 : i1 to i32
    %c0_i32_0 = arith.constant 0 : i32
    %2 = arith.cmpi ne, %1, %c0_i32_0 : i32
    scf.if %2 {
      %cst_10 = arith.constant 0.000000e+00 : f32
      %12 = vector.broadcast %cst_10 : f32 to vector<32x64xf32>
      %c0_11 = arith.constant 0 : index
      %c0_12 = arith.constant 0 : index
      %13 = vector.load %arg7[%c0_11, %c0_12] : memref<32x64xf32, #tpu.memory_space<vmem>>, vector<32x64xf32>
      tpu.vector_store %arg7[%c0_11, %c0_12], %12 {strides = array<i32>} : memref<32x64xf32, #tpu.memory_space<vmem>>, vector<32x64xf32>,
    } else {
    }
    %c0 = arith.constant 0 : index
    %c0_1 = arith.constant 0 : index
    %3 = vector.load %arg7[%c0, %c0_1] : memref<32x64xf32, #tpu.memory_space<vmem>>, vector<32x64xf32>
    %c0_2 = arith.constant 0 : index
    %c0_3 = arith.constant 0 : index
    %4 = vector.load %arg2[%c0_2, %c0_3] : memref<32x128xbf16, #tpu.memory_space<vmem>>, vector<32x128xbf16>
    %c0_4 = arith.constant 0 : index
    %c0_5 = arith.constant 0 : index
    %5 = vector.load %arg3[%c0_4, %c0_5] : memref<128x64xbf16, #tpu.memory_space<vmem>>, vector<128x64xbf16>
    %cst = arith.constant dense<0.000000e+00> : vector<32x64xf32>
    %6 = tpu.matmul %4, %5, %cst {dimension_numbers = #tpu.dot_dimension_numbers<[1], [0], [0], [1], [0, 0, 1, 1], [], []>} : vector<32x128xbf16>, vector<128x64xbf16>, vector<32x64xf32> -> vector<32x64xf32>
    %7 = arith.addf %3, %6 : vector<32x64xf32>
    %c0_6 = arith.constant 0 : index
    %c0_7 = arith.constant 0 : index
    %8 = vector.load %arg7[%c0_6, %c0_7] : memref<32x64xf32, #tpu.memory_space<vmem>>, vector<32x64xf32>
    tpu.vector_store %arg7[%c0_6, %c0_7], %7 {strides = array<i32>} : memref<32x64xf32, #tpu.memory_space<vmem>>, vector<32x64xf32>,
    %c0_i32_8 = arith.constant 0 : i32
    %9 = arith.cmpi eq, %arg1, %c0_i32_8 : i32
    %10 = arith.extui %9 : i1 to i32
    %c0_i32_9 = arith.constant 0 : i32
    %11 = arith.cmpi ne, %10, %c0_i32_9 : i32
    scf.if %11 {
      %c0_10 = arith.constant 0 : index
      %c0_11 = arith.constant 0 : index
      %12 = vector.load %arg7[%c0_10, %c0_11] : memref<32x64xf32, #tpu.memory_space<vmem>>, vector<32x64xf32>
      %cst_12 = arith.constant dense<0.000000e+00> : vector<32xf32>
      %13 = vector.multi_reduction <add>, %12, %cst_12 [1] : vector<32x64xf32> to vector<32xf32>
      %14 = vector.shape_cast %13 : vector<32xf32> to vector<32x1xf32>
      %cst_13 = arith.constant 6.400000e+01 : f32
      %15 = vector.broadcast %cst_13 : f32 to vector<32x1xf32>
      %16 = arith.divf %14, %15 : vector<32x1xf32>
      %17 = vector.broadcast %16 : vector<32x1xf32> to vector<32x64xf32>
      %18 = arith.subf %12, %17 : vector<32x64xf32>
      %19 = arith.mulf %18, %18 : vector<32x64xf32>
      %cst_14 = arith.constant dense<0.000000e+00> : vector<32xf32>
      %20 = vector.multi_reduction <add>, %19, %cst_14 [1] : vector<32x64xf32> to vector<32xf32>
      %21 = vector.shape_cast %20 : vector<32xf32> to vector<32x1xf32>
      %cst_15 = arith.constant 6.400000e+01 : f32
      %22 = vector.broadcast %cst_15 : f32 to vector<32x1xf32>
      %23 = arith.divf %21, %22 : vector<32x1xf32>
      %cst_16 = arith.constant 9.99999974E-6 : f32
      %24 = vector.broadcast %cst_16 : f32 to vector<32x1xf32>
      %25 = arith.addf %23, %24 : vector<32x1xf32>
      %26 = math.rsqrt %25 : vector<32x1xf32>
      %27 = vector.broadcast %26 : vector<32x1xf32> to vector<32x64xf32>
      %28 = arith.mulf %18, %27 : vector<32x64xf32>
      %c0_17 = arith.constant 0 : index
      %c0_18 = arith.constant 0 : index
      %29 = vector.load %arg4[%c0_17, %c0_18] : memref<1x64xf32, #tpu.memory_space<vmem>>, vector<1x64xf32>
      %30 = vector.broadcast %29 : vector<1x64xf32> to vector<32x64xf32>
      %31 = arith.mulf %28, %30 : vector<32x64xf32>
      %c0_19 = arith.constant 0 : index
      %c0_20 = arith.constant 0 : index
      %32 = vector.load %arg5[%c0_19, %c0_20] : memref<1x64xf32, #tpu.memory_space<vmem>>, vector<1x64xf32>
      %33 = vector.broadcast %32 : vector<1x64xf32> to vector<32x64xf32>
      %34 = arith.addf %31, %33 : vector<32x64xf32>
      %35 = arith.truncf %34 : vector<32x64xf32> to vector<32x64xbf16>
      %c0_21 = arith.constant 0 : index
      %c0_22 = arith.constant 0 : index
      %36 = vector.load %arg6[%c0_21, %c0_22] : memref<32x64xbf16, #tpu.memory_space<vmem>>, vector<32x64xbf16>
      tpu.vector_store %arg6[%c0_21, %c0_22], %35 {strides = array<i32>} : memref<32x64xbf16, #tpu.memory_space<vmem>>, vector<32x64xbf16>,
    } else {
    }
    return
  }
  func.func @transform_0(%arg0: i32, %arg1: i32) -> (i32, i32) {
    %c0_i32 = arith.constant 0 : i32
    return %arg0, %arg1 : i32, i32
  }
  func.func @transform_1(%arg0: i32, %arg1: i32) -> (i32, i32) {
    %c0_i32 = arith.constant 0 : i32
    %c0_i32_0 = arith.constant 0 : i32
    return %arg1, %c0_i32 : i32, i32
  }
  func.func @transform_2(%arg0: i32, %arg1: i32) -> (i32, i32) {
    %c0_i32 = arith.constant 0 : i32
    %c0_i32_0 = arith.constant 0 : i32
    %c0_i32_1 = arith.constant 0 : i32
    return %c0_i32, %c0_i32_0 : i32, i32
  }
  func.func @transform_3(%arg0: i32, %arg1: i32) -> (i32, i32) {
    %c0_i32 = arith.constant 0 : i32
    %c0_i32_0 = arith.constant 0 : i32
    %c0_i32_1 = arith.constant 0 : i32
    return %c0_i32, %c0_i32_0 : i32, i32
  }
  func.func @transform_4(%arg0: i32, %arg1: i32) -> (i32, i32) {
    %c0_i32 = arith.constant 0 : i32
    %c0_i32_0 = arith.constant 0 : i32
    return %arg0, %c0_i32 : i32, i32
  }
}

module attributes {stable_mosaic.version = 11 : i64} {
  func.func @_window_attention_kernel(%arg0: i32, %arg1: i32, %arg2: memref<1x4xf32, #tpu.memory_space<smem>>, %arg3: memref<16x192xbf16, #tpu.memory_space<vmem>>, %arg4: memref<4x16x16xf32, #tpu.memory_space<vmem>>, %arg5: memref<16x64xbf16, #tpu.memory_space<vmem>>) attributes {dimension_semantics = [#tpu.dimension_semantics<parallel>, #tpu.dimension_semantics<arbitrary>], iteration_bounds = array<i64: 1, 2>, scalar_prefetch = 0 : i64, scratch_operands = 0 : i64, tpu.core_type = #tpu.core_type<tc>, window_params = [{transform_indices = @transform_0, window_bounds = array<i64: 1, 4>}, {transform_indices = @transform_1, window_bounds = array<i64: 16, 192>}, {pipeline_mode = #tpu.pipeline_mode<synchronous>, transform_indices = @transform_2, window_bounds = array<i64: 4, 16, 16>}, {transform_indices = @transform_3, window_bounds = array<i64: 16, 64>}]} {
    %c0 = arith.constant 0 : index
    %c0_0 = arith.constant 0 : index
    %0 = vector.load %arg3[%c0, %c0_0] : memref<16x192xbf16, #tpu.memory_space<vmem>>, vector<16x192xbf16>
    %1 = vector.extract_strided_slice %0 {offsets = [0, 0], sizes = [16, 16], strides = [1, 1]} : vector<16x192xbf16> to vector<16x16xbf16>
    %2 = arith.extf %1 : vector<16x16xbf16> to vector<16x16xf32>
    %3 = vector.extract_strided_slice %0 {offsets = [0, 64], sizes = [16, 16], strides = [1, 1]} : vector<16x192xbf16> to vector<16x16xbf16>
    %4 = arith.extf %3 : vector<16x16xbf16> to vector<16x16xf32>
    %5 = vector.extract_strided_slice %0 {offsets = [0, 128], sizes = [16, 16], strides = [1, 1]} : vector<16x192xbf16> to vector<16x16xbf16>
    %6 = arith.mulf %2, %2 : vector<16x16xf32>
    %cst = arith.constant dense<0.000000e+00> : vector<16xf32>
    %7 = vector.multi_reduction <add>, %6, %cst [1] : vector<16x16xf32> to vector<16xf32>
    %8 = vector.shape_cast %7 : vector<16xf32> to vector<16x1xf32>
    %cst_1 = arith.constant 9.99999996E-13 : f32
    %9 = vector.broadcast %cst_1 : f32 to vector<16x1xf32>
    %10 = arith.addf %8, %9 : vector<16x1xf32>
    %11 = math.rsqrt %10 : vector<16x1xf32>
    %12 = vector.broadcast %11 : vector<16x1xf32> to vector<16x16xf32>
    %13 = arith.mulf %2, %12 : vector<16x16xf32>
    %14 = arith.mulf %4, %4 : vector<16x16xf32>
    %cst_2 = arith.constant dense<0.000000e+00> : vector<16xf32>
    %15 = vector.multi_reduction <add>, %14, %cst_2 [1] : vector<16x16xf32> to vector<16xf32>
    %16 = vector.shape_cast %15 : vector<16xf32> to vector<16x1xf32>
    %cst_3 = arith.constant 9.99999996E-13 : f32
    %17 = vector.broadcast %cst_3 : f32 to vector<16x1xf32>
    %18 = arith.addf %16, %17 : vector<16x1xf32>
    %19 = math.rsqrt %18 : vector<16x1xf32>
    %20 = vector.broadcast %19 : vector<16x1xf32> to vector<16x16xf32>
    %21 = arith.mulf %4, %20 : vector<16x16xf32>
    %22 = arith.truncf %13 : vector<16x16xf32> to vector<16x16xbf16>
    %23 = arith.truncf %21 : vector<16x16xf32> to vector<16x16xbf16>
    "tpu.trace_start"() <{level = 10 : i32, message = "qd,kd->qk"}> : () -> ()
    %cst_4 = arith.constant dense<0.000000e+00> : vector<16x16xf32>
    %24 = tpu.matmul %22, %23, %cst_4 {dimension_numbers = #tpu.dot_dimension_numbers<[1], [1], [0], [0], [0, 0, 1, 0], [], []>} : vector<16x16xbf16>, vector<16x16xbf16>, vector<16x16xf32> -> vector<16x16xf32>
    "tpu.trace_stop"() : () -> ()
    %c0_5 = arith.constant 0 : index
    %c0_6 = arith.constant 0 : index
    %25 = memref.load %arg2[%c0_5, %c0_6] : memref<1x4xf32, #tpu.memory_space<smem>>
    %26 = vector.broadcast %25 : f32 to vector<16x16xf32>
    %27 = arith.mulf %24, %26 : vector<16x16xf32>
    %c0_7 = arith.constant 0 : index
    %c0_8 = arith.constant 0 : index
    %c0_9 = arith.constant 0 : index
    %28 = vector.load %arg4[%c0_7, %c0_8, %c0_9] : memref<4x16x16xf32, #tpu.memory_space<vmem>>, vector<1x16x16xf32>
    %29 = vector.shape_cast %28 : vector<1x16x16xf32> to vector<16x16xf32>
    %30 = arith.addf %27, %29 : vector<16x16xf32>
    %cst_10 = arith.constant dense<0xFF800000> : vector<16xf32>
    %31 = vector.multi_reduction <maximumf>, %30, %cst_10 [1] : vector<16x16xf32> to vector<16xf32>
    %32 = vector.shape_cast %31 : vector<16xf32> to vector<16x1xf32>
    %33 = vector.broadcast %32 : vector<16x1xf32> to vector<16x16xf32>
    %34 = arith.subf %30, %33 : vector<16x16xf32>
    %35 = math.exp %34 : vector<16x16xf32>
    %cst_11 = arith.constant dense<0.000000e+00> : vector<16xf32>
    %36 = vector.multi_reduction <add>, %35, %cst_11 [1] : vector<16x16xf32> to vector<16xf32>
    %37 = vector.shape_cast %36 : vector<16xf32> to vector<16x1xf32>
    %38 = tpu.reciprocal %37 {approx = true} : vector<16x1xf32> -> vector<16x1xf32>
    %39 = vector.broadcast %38 : vector<16x1xf32> to vector<16x16xf32>
    %40 = arith.mulf %35, %39 : vector<16x16xf32>
    %41 = arith.truncf %40 : vector<16x16xf32> to vector<16x16xbf16>
    %cst_12 = arith.constant dense<0.000000e+00> : vector<16x16xf32>
    %42 = tpu.matmul %41, %5, %cst_12 {dimension_numbers = #tpu.dot_dimension_numbers<[1], [0], [0], [1], [0, 0, 1, 1], [], []>} : vector<16x16xbf16>, vector<16x16xbf16>, vector<16x16xf32> -> vector<16x16xf32>
    %43 = vector.extract_strided_slice %0 {offsets = [0, 16], sizes = [16, 16], strides = [1, 1]} : vector<16x192xbf16> to vector<16x16xbf16>
    %44 = arith.extf %43 : vector<16x16xbf16> to vector<16x16xf32>
    %45 = vector.extract_strided_slice %0 {offsets = [0, 80], sizes = [16, 16], strides = [1, 1]} : vector<16x192xbf16> to vector<16x16xbf16>
    %46 = arith.extf %45 : vector<16x16xbf16> to vector<16x16xf32>
    %47 = vector.extract_strided_slice %0 {offsets = [0, 144], sizes = [16, 16], strides = [1, 1]} : vector<16x192xbf16> to vector<16x16xbf16>
    %48 = arith.mulf %44, %44 : vector<16x16xf32>
    %cst_13 = arith.constant dense<0.000000e+00> : vector<16xf32>
    %49 = vector.multi_reduction <add>, %48, %cst_13 [1] : vector<16x16xf32> to vector<16xf32>
    %50 = vector.shape_cast %49 : vector<16xf32> to vector<16x1xf32>
    %cst_14 = arith.constant 9.99999996E-13 : f32
    %51 = vector.broadcast %cst_14 : f32 to vector<16x1xf32>
    %52 = arith.addf %50, %51 : vector<16x1xf32>
    %53 = math.rsqrt %52 : vector<16x1xf32>
    %54 = vector.broadcast %53 : vector<16x1xf32> to vector<16x16xf32>
    %55 = arith.mulf %44, %54 : vector<16x16xf32>
    %56 = arith.mulf %46, %46 : vector<16x16xf32>
    %cst_15 = arith.constant dense<0.000000e+00> : vector<16xf32>
    %57 = vector.multi_reduction <add>, %56, %cst_15 [1] : vector<16x16xf32> to vector<16xf32>
    %58 = vector.shape_cast %57 : vector<16xf32> to vector<16x1xf32>
    %cst_16 = arith.constant 9.99999996E-13 : f32
    %59 = vector.broadcast %cst_16 : f32 to vector<16x1xf32>
    %60 = arith.addf %58, %59 : vector<16x1xf32>
    %61 = math.rsqrt %60 : vector<16x1xf32>
    %62 = vector.broadcast %61 : vector<16x1xf32> to vector<16x16xf32>
    %63 = arith.mulf %46, %62 : vector<16x16xf32>
    %64 = arith.truncf %55 : vector<16x16xf32> to vector<16x16xbf16>
    %65 = arith.truncf %63 : vector<16x16xf32> to vector<16x16xbf16>
    "tpu.trace_start"() <{level = 10 : i32, message = "qd,kd->qk"}> : () -> ()
    %cst_17 = arith.constant dense<0.000000e+00> : vector<16x16xf32>
    %66 = tpu.matmul %64, %65, %cst_17 {dimension_numbers = #tpu.dot_dimension_numbers<[1], [1], [0], [0], [0, 0, 1, 0], [], []>} : vector<16x16xbf16>, vector<16x16xbf16>, vector<16x16xf32> -> vector<16x16xf32>
    "tpu.trace_stop"() : () -> ()
    %c0_18 = arith.constant 0 : index
    %c1 = arith.constant 1 : index
    %67 = memref.load %arg2[%c0_18, %c1] : memref<1x4xf32, #tpu.memory_space<smem>>
    %68 = vector.broadcast %67 : f32 to vector<16x16xf32>
    %69 = arith.mulf %66, %68 : vector<16x16xf32>
    %c1_19 = arith.constant 1 : index
    %c0_20 = arith.constant 0 : index
    %c0_21 = arith.constant 0 : index
    %70 = vector.load %arg4[%c1_19, %c0_20, %c0_21] : memref<4x16x16xf32, #tpu.memory_space<vmem>>, vector<1x16x16xf32>
    %71 = vector.shape_cast %70 : vector<1x16x16xf32> to vector<16x16xf32>
    %72 = arith.addf %69, %71 : vector<16x16xf32>
    %cst_22 = arith.constant dense<0xFF800000> : vector<16xf32>
    %73 = vector.multi_reduction <maximumf>, %72, %cst_22 [1] : vector<16x16xf32> to vector<16xf32>
    %74 = vector.shape_cast %73 : vector<16xf32> to vector<16x1xf32>
    %75 = vector.broadcast %74 : vector<16x1xf32> to vector<16x16xf32>
    %76 = arith.subf %72, %75 : vector<16x16xf32>
    %77 = math.exp %76 : vector<16x16xf32>
    %cst_23 = arith.constant dense<0.000000e+00> : vector<16xf32>
    %78 = vector.multi_reduction <add>, %77, %cst_23 [1] : vector<16x16xf32> to vector<16xf32>
    %79 = vector.shape_cast %78 : vector<16xf32> to vector<16x1xf32>
    %80 = tpu.reciprocal %79 {approx = true} : vector<16x1xf32> -> vector<16x1xf32>
    %81 = vector.broadcast %80 : vector<16x1xf32> to vector<16x16xf32>
    %82 = arith.mulf %77, %81 : vector<16x16xf32>
    %83 = arith.truncf %82 : vector<16x16xf32> to vector<16x16xbf16>
    %cst_24 = arith.constant dense<0.000000e+00> : vector<16x16xf32>
    %84 = tpu.matmul %83, %47, %cst_24 {dimension_numbers = #tpu.dot_dimension_numbers<[1], [0], [0], [1], [0, 0, 1, 1], [], []>} : vector<16x16xbf16>, vector<16x16xbf16>, vector<16x16xf32> -> vector<16x16xf32>
    %85 = vector.extract_strided_slice %0 {offsets = [0, 32], sizes = [16, 16], strides = [1, 1]} : vector<16x192xbf16> to vector<16x16xbf16>
    %86 = arith.extf %85 : vector<16x16xbf16> to vector<16x16xf32>
    %87 = vector.extract_strided_slice %0 {offsets = [0, 96], sizes = [16, 16], strides = [1, 1]} : vector<16x192xbf16> to vector<16x16xbf16>
    %88 = arith.extf %87 : vector<16x16xbf16> to vector<16x16xf32>
    %89 = vector.extract_strided_slice %0 {offsets = [0, 160], sizes = [16, 16], strides = [1, 1]} : vector<16x192xbf16> to vector<16x16xbf16>
    %90 = arith.mulf %86, %86 : vector<16x16xf32>
    %cst_25 = arith.constant dense<0.000000e+00> : vector<16xf32>
    %91 = vector.multi_reduction <add>, %90, %cst_25 [1] : vector<16x16xf32> to vector<16xf32>
    %92 = vector.shape_cast %91 : vector<16xf32> to vector<16x1xf32>
    %cst_26 = arith.constant 9.99999996E-13 : f32
    %93 = vector.broadcast %cst_26 : f32 to vector<16x1xf32>
    %94 = arith.addf %92, %93 : vector<16x1xf32>
    %95 = math.rsqrt %94 : vector<16x1xf32>
    %96 = vector.broadcast %95 : vector<16x1xf32> to vector<16x16xf32>
    %97 = arith.mulf %86, %96 : vector<16x16xf32>
    %98 = arith.mulf %88, %88 : vector<16x16xf32>
    %cst_27 = arith.constant dense<0.000000e+00> : vector<16xf32>
    %99 = vector.multi_reduction <add>, %98, %cst_27 [1] : vector<16x16xf32> to vector<16xf32>
    %100 = vector.shape_cast %99 : vector<16xf32> to vector<16x1xf32>
    %cst_28 = arith.constant 9.99999996E-13 : f32
    %101 = vector.broadcast %cst_28 : f32 to vector<16x1xf32>
    %102 = arith.addf %100, %101 : vector<16x1xf32>
    %103 = math.rsqrt %102 : vector<16x1xf32>
    %104 = vector.broadcast %103 : vector<16x1xf32> to vector<16x16xf32>
    %105 = arith.mulf %88, %104 : vector<16x16xf32>
    %106 = arith.truncf %97 : vector<16x16xf32> to vector<16x16xbf16>
    %107 = arith.truncf %105 : vector<16x16xf32> to vector<16x16xbf16>
    "tpu.trace_start"() <{level = 10 : i32, message = "qd,kd->qk"}> : () -> ()
    %cst_29 = arith.constant dense<0.000000e+00> : vector<16x16xf32>
    %108 = tpu.matmul %106, %107, %cst_29 {dimension_numbers = #tpu.dot_dimension_numbers<[1], [1], [0], [0], [0, 0, 1, 0], [], []>} : vector<16x16xbf16>, vector<16x16xbf16>, vector<16x16xf32> -> vector<16x16xf32>
    "tpu.trace_stop"() : () -> ()
    %c0_30 = arith.constant 0 : index
    %c2 = arith.constant 2 : index
    %109 = memref.load %arg2[%c0_30, %c2] : memref<1x4xf32, #tpu.memory_space<smem>>
    %110 = vector.broadcast %109 : f32 to vector<16x16xf32>
    %111 = arith.mulf %108, %110 : vector<16x16xf32>
    %c2_31 = arith.constant 2 : index
    %c0_32 = arith.constant 0 : index
    %c0_33 = arith.constant 0 : index
    %112 = vector.load %arg4[%c2_31, %c0_32, %c0_33] : memref<4x16x16xf32, #tpu.memory_space<vmem>>, vector<1x16x16xf32>
    %113 = vector.shape_cast %112 : vector<1x16x16xf32> to vector<16x16xf32>
    %114 = arith.addf %111, %113 : vector<16x16xf32>
    %cst_34 = arith.constant dense<0xFF800000> : vector<16xf32>
    %115 = vector.multi_reduction <maximumf>, %114, %cst_34 [1] : vector<16x16xf32> to vector<16xf32>
    %116 = vector.shape_cast %115 : vector<16xf32> to vector<16x1xf32>
    %117 = vector.broadcast %116 : vector<16x1xf32> to vector<16x16xf32>
    %118 = arith.subf %114, %117 : vector<16x16xf32>
    %119 = math.exp %118 : vector<16x16xf32>
    %cst_35 = arith.constant dense<0.000000e+00> : vector<16xf32>
    %120 = vector.multi_reduction <add>, %119, %cst_35 [1] : vector<16x16xf32> to vector<16xf32>
    %121 = vector.shape_cast %120 : vector<16xf32> to vector<16x1xf32>
    %122 = tpu.reciprocal %121 {approx = true} : vector<16x1xf32> -> vector<16x1xf32>
    %123 = vector.broadcast %122 : vector<16x1xf32> to vector<16x16xf32>
    %124 = arith.mulf %119, %123 : vector<16x16xf32>
    %125 = arith.truncf %124 : vector<16x16xf32> to vector<16x16xbf16>
    %cst_36 = arith.constant dense<0.000000e+00> : vector<16x16xf32>
    %126 = tpu.matmul %125, %89, %cst_36 {dimension_numbers = #tpu.dot_dimension_numbers<[1], [0], [0], [1], [0, 0, 1, 1], [], []>} : vector<16x16xbf16>, vector<16x16xbf16>, vector<16x16xf32> -> vector<16x16xf32>
    %127 = vector.extract_strided_slice %0 {offsets = [0, 48], sizes = [16, 16], strides = [1, 1]} : vector<16x192xbf16> to vector<16x16xbf16>
    %128 = arith.extf %127 : vector<16x16xbf16> to vector<16x16xf32>
    %129 = vector.extract_strided_slice %0 {offsets = [0, 112], sizes = [16, 16], strides = [1, 1]} : vector<16x192xbf16> to vector<16x16xbf16>
    %130 = arith.extf %129 : vector<16x16xbf16> to vector<16x16xf32>
    %131 = vector.extract_strided_slice %0 {offsets = [0, 176], sizes = [16, 16], strides = [1, 1]} : vector<16x192xbf16> to vector<16x16xbf16>
    %132 = arith.mulf %128, %128 : vector<16x16xf32>
    %cst_37 = arith.constant dense<0.000000e+00> : vector<16xf32>
    %133 = vector.multi_reduction <add>, %132, %cst_37 [1] : vector<16x16xf32> to vector<16xf32>
    %134 = vector.shape_cast %133 : vector<16xf32> to vector<16x1xf32>
    %cst_38 = arith.constant 9.99999996E-13 : f32
    %135 = vector.broadcast %cst_38 : f32 to vector<16x1xf32>
    %136 = arith.addf %134, %135 : vector<16x1xf32>
    %137 = math.rsqrt %136 : vector<16x1xf32>
    %138 = vector.broadcast %137 : vector<16x1xf32> to vector<16x16xf32>
    %139 = arith.mulf %128, %138 : vector<16x16xf32>
    %140 = arith.mulf %130, %130 : vector<16x16xf32>
    %cst_39 = arith.constant dense<0.000000e+00> : vector<16xf32>
    %141 = vector.multi_reduction <add>, %140, %cst_39 [1] : vector<16x16xf32> to vector<16xf32>
    %142 = vector.shape_cast %141 : vector<16xf32> to vector<16x1xf32>
    %cst_40 = arith.constant 9.99999996E-13 : f32
    %143 = vector.broadcast %cst_40 : f32 to vector<16x1xf32>
    %144 = arith.addf %142, %143 : vector<16x1xf32>
    %145 = math.rsqrt %144 : vector<16x1xf32>
    %146 = vector.broadcast %145 : vector<16x1xf32> to vector<16x16xf32>
    %147 = arith.mulf %130, %146 : vector<16x16xf32>
    %148 = arith.truncf %139 : vector<16x16xf32> to vector<16x16xbf16>
    %149 = arith.truncf %147 : vector<16x16xf32> to vector<16x16xbf16>
    "tpu.trace_start"() <{level = 10 : i32, message = "qd,kd->qk"}> : () -> ()
    %cst_41 = arith.constant dense<0.000000e+00> : vector<16x16xf32>
    %150 = tpu.matmul %148, %149, %cst_41 {dimension_numbers = #tpu.dot_dimension_numbers<[1], [1], [0], [0], [0, 0, 1, 0], [], []>} : vector<16x16xbf16>, vector<16x16xbf16>, vector<16x16xf32> -> vector<16x16xf32>
    "tpu.trace_stop"() : () -> ()
    %c0_42 = arith.constant 0 : index
    %c3 = arith.constant 3 : index
    %151 = memref.load %arg2[%c0_42, %c3] : memref<1x4xf32, #tpu.memory_space<smem>>
    %152 = vector.broadcast %151 : f32 to vector<16x16xf32>
    %153 = arith.mulf %150, %152 : vector<16x16xf32>
    %c3_43 = arith.constant 3 : index
    %c0_44 = arith.constant 0 : index
    %c0_45 = arith.constant 0 : index
    %154 = vector.load %arg4[%c3_43, %c0_44, %c0_45] : memref<4x16x16xf32, #tpu.memory_space<vmem>>, vector<1x16x16xf32>
    %155 = vector.shape_cast %154 : vector<1x16x16xf32> to vector<16x16xf32>
    %156 = arith.addf %153, %155 : vector<16x16xf32>
    %cst_46 = arith.constant dense<0xFF800000> : vector<16xf32>
    %157 = vector.multi_reduction <maximumf>, %156, %cst_46 [1] : vector<16x16xf32> to vector<16xf32>
    %158 = vector.shape_cast %157 : vector<16xf32> to vector<16x1xf32>
    %159 = vector.broadcast %158 : vector<16x1xf32> to vector<16x16xf32>
    %160 = arith.subf %156, %159 : vector<16x16xf32>
    %161 = math.exp %160 : vector<16x16xf32>
    %cst_47 = arith.constant dense<0.000000e+00> : vector<16xf32>
    %162 = vector.multi_reduction <add>, %161, %cst_47 [1] : vector<16x16xf32> to vector<16xf32>
    %163 = vector.shape_cast %162 : vector<16xf32> to vector<16x1xf32>
    %164 = tpu.reciprocal %163 {approx = true} : vector<16x1xf32> -> vector<16x1xf32>
    %165 = vector.broadcast %164 : vector<16x1xf32> to vector<16x16xf32>
    %166 = arith.mulf %161, %165 : vector<16x16xf32>
    %167 = arith.truncf %166 : vector<16x16xf32> to vector<16x16xbf16>
    %cst_48 = arith.constant dense<0.000000e+00> : vector<16x16xf32>
    %168 = tpu.matmul %167, %131, %cst_48 {dimension_numbers = #tpu.dot_dimension_numbers<[1], [0], [0], [1], [0, 0, 1, 1], [], []>} : vector<16x16xbf16>, vector<16x16xbf16>, vector<16x16xf32> -> vector<16x16xf32>
    %169 = tpu.concatenate %42, %84, %126, %168 in 1 : vector<16x16xf32>, vector<16x16xf32>, vector<16x16xf32>, vector<16x16xf32> -> vector<16x64xf32>
    %170 = arith.truncf %169 : vector<16x64xf32> to vector<16x64xbf16>
    %c0_49 = arith.constant 0 : index
    %c0_50 = arith.constant 0 : index
    %171 = vector.load %arg5[%c0_49, %c0_50] : memref<16x64xbf16, #tpu.memory_space<vmem>>, vector<16x64xbf16>
    tpu.vector_store %arg5[%c0_49, %c0_50], %170 {strides = array<i32>} : memref<16x64xbf16, #tpu.memory_space<vmem>>, vector<16x64xbf16>,
    return
  }
  func.func @transform_0(%arg0: i32, %arg1: i32) -> (i32, i32) {
    %c0_i32 = arith.constant 0 : i32
    %c0_i32_0 = arith.constant 0 : i32
    %c0_i32_1 = arith.constant 0 : i32
    return %c0_i32, %c0_i32_0 : i32, i32
  }
  func.func @transform_1(%arg0: i32, %arg1: i32) -> (i32, i32) {
    %c1_i32 = arith.constant 1 : i32
    %0 = arith.muli %arg1, %c1_i32 : i32
    %1 = arith.addi %0, %arg0 : i32
    %c0_i32 = arith.constant 0 : i32
    %c0_i32_0 = arith.constant 0 : i32
    return %1, %c0_i32 : i32, i32
  }
  func.func @transform_2(%arg0: i32, %arg1: i32) -> (i32, i32, i32) {
    %c0_i32 = arith.constant 0 : i32
    %c0_i32_0 = arith.constant 0 : i32
    %c0_i32_1 = arith.constant 0 : i32
    %c0_i32_2 = arith.constant 0 : i32
    return %c0_i32, %c0_i32_0, %c0_i32_1 : i32, i32, i32
  }
  func.func @transform_3(%arg0: i32, %arg1: i32) -> (i32, i32) {
    %c1_i32 = arith.constant 1 : i32
    %0 = arith.muli %arg1, %c1_i32 : i32
    %1 = arith.addi %0, %arg0 : i32
    %c0_i32 = arith.constant 0 : i32
    %c0_i32_0 = arith.constant 0 : i32
    return %1, %c0_i32 : i32, i32
  }
}

module attributes {stable_mosaic.version = 11 : i64} {
  func.func @_fused_linear_kernel(%arg0: i32, %arg1: i32, %arg2: memref<32x64xbf16, #tpu.memory_space<vmem>>, %arg3: memref<64x64xbf16, #tpu.memory_space<vmem>>, %arg4: memref<1x64xf32, #tpu.memory_space<vmem>>, %arg5: memref<1x64xf32, #tpu.memory_space<vmem>>, %arg6: memref<1x64xf32, #tpu.memory_space<vmem>>, %arg7: memref<32x64xbf16, #tpu.memory_space<vmem>>, %arg8: memref<32x64xbf16, #tpu.memory_space<vmem>>, %arg9: memref<32x64xf32, #tpu.memory_space<vmem>>) attributes {dimension_semantics = [#tpu.dimension_semantics<parallel>, #tpu.dimension_semantics<arbitrary>], iteration_bounds = array<i64: 1, 1>, scalar_prefetch = 0 : i64, scratch_operands = 1 : i64, tpu.core_type = #tpu.core_type<tc>, window_params = [{transform_indices = @transform_0, window_bounds = array<i64: 32, 64>}, {transform_indices = @transform_1, window_bounds = array<i64: 64, 64>}, {pipeline_mode = #tpu.pipeline_mode<synchronous>, transform_indices = @transform_2, window_bounds = array<i64: 1, 64>}, {pipeline_mode = #tpu.pipeline_mode<synchronous>, transform_indices = @transform_3, window_bounds = array<i64: 1, 64>}, {pipeline_mode = #tpu.pipeline_mode<synchronous>, transform_indices = @transform_4, window_bounds = array<i64: 1, 64>}, {transform_indices = @transform_5, window_bounds = array<i64: 32, 64>}, {transform_indices = @transform_6, window_bounds = array<i64: 32, 64>}]} {
    %c0_i32 = arith.constant 0 : i32
    %0 = arith.cmpi eq, %arg1, %c0_i32 : i32
    %1 = arith.extui %0 : i1 to i32
    %c0_i32_0 = arith.constant 0 : i32
    %2 = arith.cmpi ne, %1, %c0_i32_0 : i32
    scf.if %2 {
      %cst_10 = arith.constant 0.000000e+00 : f32
      %12 = vector.broadcast %cst_10 : f32 to vector<32x64xf32>
      %c0_11 = arith.constant 0 : index
      %c0_12 = arith.constant 0 : index
      %13 = vector.load %arg9[%c0_11, %c0_12] : memref<32x64xf32, #tpu.memory_space<vmem>>, vector<32x64xf32>
      tpu.vector_store %arg9[%c0_11, %c0_12], %12 {strides = array<i32>} : memref<32x64xf32, #tpu.memory_space<vmem>>, vector<32x64xf32>,
    } else {
    }
    %c0 = arith.constant 0 : index
    %c0_1 = arith.constant 0 : index
    %3 = vector.load %arg9[%c0, %c0_1] : memref<32x64xf32, #tpu.memory_space<vmem>>, vector<32x64xf32>
    %c0_2 = arith.constant 0 : index
    %c0_3 = arith.constant 0 : index
    %4 = vector.load %arg2[%c0_2, %c0_3] : memref<32x64xbf16, #tpu.memory_space<vmem>>, vector<32x64xbf16>
    %c0_4 = arith.constant 0 : index
    %c0_5 = arith.constant 0 : index
    %5 = vector.load %arg3[%c0_4, %c0_5] : memref<64x64xbf16, #tpu.memory_space<vmem>>, vector<64x64xbf16>
    %cst = arith.constant dense<0.000000e+00> : vector<32x64xf32>
    %6 = tpu.matmul %4, %5, %cst {dimension_numbers = #tpu.dot_dimension_numbers<[1], [0], [0], [1], [0, 0, 1, 1], [], []>} : vector<32x64xbf16>, vector<64x64xbf16>, vector<32x64xf32> -> vector<32x64xf32>
    %7 = arith.addf %3, %6 : vector<32x64xf32>
    %c0_6 = arith.constant 0 : index
    %c0_7 = arith.constant 0 : index
    %8 = vector.load %arg9[%c0_6, %c0_7] : memref<32x64xf32, #tpu.memory_space<vmem>>, vector<32x64xf32>
    tpu.vector_store %arg9[%c0_6, %c0_7], %7 {strides = array<i32>} : memref<32x64xf32, #tpu.memory_space<vmem>>, vector<32x64xf32>,
    %c0_i32_8 = arith.constant 0 : i32
    %9 = arith.cmpi eq, %arg1, %c0_i32_8 : i32
    %10 = arith.extui %9 : i1 to i32
    %c0_i32_9 = arith.constant 0 : i32
    %11 = arith.cmpi ne, %10, %c0_i32_9 : i32
    scf.if %11 {
      %c0_10 = arith.constant 0 : index
      %c0_11 = arith.constant 0 : index
      %12 = vector.load %arg9[%c0_10, %c0_11] : memref<32x64xf32, #tpu.memory_space<vmem>>, vector<32x64xf32>
      %c0_12 = arith.constant 0 : index
      %c0_13 = arith.constant 0 : index
      %13 = vector.load %arg4[%c0_12, %c0_13] : memref<1x64xf32, #tpu.memory_space<vmem>>, vector<1x64xf32>
      %14 = vector.broadcast %13 : vector<1x64xf32> to vector<32x64xf32>
      %15 = arith.addf %12, %14 : vector<32x64xf32>
      %cst_14 = arith.constant dense<0.000000e+00> : vector<32xf32>
      %16 = vector.multi_reduction <add>, %15, %cst_14 [1] : vector<32x64xf32> to vector<32xf32>
      %17 = vector.shape_cast %16 : vector<32xf32> to vector<32x1xf32>
      %cst_15 = arith.constant 6.400000e+01 : f32
      %18 = vector.broadcast %cst_15 : f32 to vector<32x1xf32>
      %19 = arith.divf %17, %18 : vector<32x1xf32>
      %20 = vector.broadcast %19 : vector<32x1xf32> to vector<32x64xf32>
      %21 = arith.subf %15, %20 : vector<32x64xf32>
      %22 = arith.mulf %21, %21 : vector<32x64xf32>
      %cst_16 = arith.constant dense<0.000000e+00> : vector<32xf32>
      %23 = vector.multi_reduction <add>, %22, %cst_16 [1] : vector<32x64xf32> to vector<32xf32>
      %24 = vector.shape_cast %23 : vector<32xf32> to vector<32x1xf32>
      %cst_17 = arith.constant 6.400000e+01 : f32
      %25 = vector.broadcast %cst_17 : f32 to vector<32x1xf32>
      %26 = arith.divf %24, %25 : vector<32x1xf32>
      %cst_18 = arith.constant 9.99999974E-6 : f32
      %27 = vector.broadcast %cst_18 : f32 to vector<32x1xf32>
      %28 = arith.addf %26, %27 : vector<32x1xf32>
      %29 = math.rsqrt %28 : vector<32x1xf32>
      %30 = vector.broadcast %29 : vector<32x1xf32> to vector<32x64xf32>
      %31 = arith.mulf %21, %30 : vector<32x64xf32>
      %c0_19 = arith.constant 0 : index
      %c0_20 = arith.constant 0 : index
      %32 = vector.load %arg5[%c0_19, %c0_20] : memref<1x64xf32, #tpu.memory_space<vmem>>, vector<1x64xf32>
      %33 = vector.broadcast %32 : vector<1x64xf32> to vector<32x64xf32>
      %34 = arith.mulf %31, %33 : vector<32x64xf32>
      %c0_21 = arith.constant 0 : index
      %c0_22 = arith.constant 0 : index
      %35 = vector.load %arg6[%c0_21, %c0_22] : memref<1x64xf32, #tpu.memory_space<vmem>>, vector<1x64xf32>
      %36 = vector.broadcast %35 : vector<1x64xf32> to vector<32x64xf32>
      %37 = arith.addf %34, %36 : vector<32x64xf32>
      %c0_23 = arith.constant 0 : index
      %c0_24 = arith.constant 0 : index
      %38 = vector.load %arg7[%c0_23, %c0_24] : memref<32x64xbf16, #tpu.memory_space<vmem>>, vector<32x64xbf16>
      %39 = arith.extf %38 : vector<32x64xbf16> to vector<32x64xf32>
      %40 = arith.addf %37, %39 : vector<32x64xf32>
      %41 = arith.truncf %40 : vector<32x64xf32> to vector<32x64xbf16>
      %c0_25 = arith.constant 0 : index
      %c0_26 = arith.constant 0 : index
      %42 = vector.load %arg8[%c0_25, %c0_26] : memref<32x64xbf16, #tpu.memory_space<vmem>>, vector<32x64xbf16>
      tpu.vector_store %arg8[%c0_25, %c0_26], %41 {strides = array<i32>} : memref<32x64xbf16, #tpu.memory_space<vmem>>, vector<32x64xbf16>,
    } else {
    }
    return
  }
  func.func @transform_0(%arg0: i32, %arg1: i32) -> (i32, i32) {
    %c0_i32 = arith.constant 0 : i32
    return %arg0, %arg1 : i32, i32
  }
  func.func @transform_1(%arg0: i32, %arg1: i32) -> (i32, i32) {
    %c0_i32 = arith.constant 0 : i32
    %c0_i32_0 = arith.constant 0 : i32
    return %arg1, %c0_i32 : i32, i32
  }
  func.func @transform_2(%arg0: i32, %arg1: i32) -> (i32, i32) {
    %c0_i32 = arith.constant 0 : i32
    %c0_i32_0 = arith.constant 0 : i32
    %c0_i32_1 = arith.constant 0 : i32
    return %c0_i32, %c0_i32_0 : i32, i32
  }
  func.func @transform_3(%arg0: i32, %arg1: i32) -> (i32, i32) {
    %c0_i32 = arith.constant 0 : i32
    %c0_i32_0 = arith.constant 0 : i32
    %c0_i32_1 = arith.constant 0 : i32
    return %c0_i32, %c0_i32_0 : i32, i32
  }
  func.func @transform_4(%arg0: i32, %arg1: i32) -> (i32, i32) {
    %c0_i32 = arith.constant 0 : i32
    %c0_i32_0 = arith.constant 0 : i32
    %c0_i32_1 = arith.constant 0 : i32
    return %c0_i32, %c0_i32_0 : i32, i32
  }
  func.func @transform_5(%arg0: i32, %arg1: i32) -> (i32, i32) {
    %c0_i32 = arith.constant 0 : i32
    %c0_i32_0 = arith.constant 0 : i32
    return %arg0, %c0_i32 : i32, i32
  }
  func.func @transform_6(%arg0: i32, %arg1: i32) -> (i32, i32) {
    %c0_i32 = arith.constant 0 : i32
    %c0_i32_0 = arith.constant 0 : i32
    return %arg0, %c0_i32 : i32, i32
  }
}

module attributes {stable_mosaic.version = 11 : i64} {
  func.func @_fused_linear_kernel(%arg0: i32, %arg1: i32, %arg2: memref<32x64xbf16, #tpu.memory_space<vmem>>, %arg3: memref<64x256xbf16, #tpu.memory_space<vmem>>, %arg4: memref<1x256xf32, #tpu.memory_space<vmem>>, %arg5: memref<32x256xbf16, #tpu.memory_space<vmem>>, %arg6: memref<32x256xf32, #tpu.memory_space<vmem>>) attributes {dimension_semantics = [#tpu.dimension_semantics<parallel>, #tpu.dimension_semantics<arbitrary>], iteration_bounds = array<i64: 1, 1>, scalar_prefetch = 0 : i64, scratch_operands = 1 : i64, tpu.core_type = #tpu.core_type<tc>, window_params = [{transform_indices = @transform_0, window_bounds = array<i64: 32, 64>}, {transform_indices = @transform_1, window_bounds = array<i64: 64, 256>}, {pipeline_mode = #tpu.pipeline_mode<synchronous>, transform_indices = @transform_2, window_bounds = array<i64: 1, 256>}, {transform_indices = @transform_3, window_bounds = array<i64: 32, 256>}]} {
    %c0_i32 = arith.constant 0 : i32
    %0 = arith.cmpi eq, %arg1, %c0_i32 : i32
    %1 = arith.extui %0 : i1 to i32
    %c0_i32_0 = arith.constant 0 : i32
    %2 = arith.cmpi ne, %1, %c0_i32_0 : i32
    scf.if %2 {
      %cst_10 = arith.constant 0.000000e+00 : f32
      %12 = vector.broadcast %cst_10 : f32 to vector<32x256xf32>
      %c0_11 = arith.constant 0 : index
      %c0_12 = arith.constant 0 : index
      %13 = vector.load %arg6[%c0_11, %c0_12] : memref<32x256xf32, #tpu.memory_space<vmem>>, vector<32x256xf32>
      tpu.vector_store %arg6[%c0_11, %c0_12], %12 {strides = array<i32>} : memref<32x256xf32, #tpu.memory_space<vmem>>, vector<32x256xf32>,
    } else {
    }
    %c0 = arith.constant 0 : index
    %c0_1 = arith.constant 0 : index
    %3 = vector.load %arg6[%c0, %c0_1] : memref<32x256xf32, #tpu.memory_space<vmem>>, vector<32x256xf32>
    %c0_2 = arith.constant 0 : index
    %c0_3 = arith.constant 0 : index
    %4 = vector.load %arg2[%c0_2, %c0_3] : memref<32x64xbf16, #tpu.memory_space<vmem>>, vector<32x64xbf16>
    %c0_4 = arith.constant 0 : index
    %c0_5 = arith.constant 0 : index
    %5 = vector.load %arg3[%c0_4, %c0_5] : memref<64x256xbf16, #tpu.memory_space<vmem>>, vector<64x256xbf16>
    %cst = arith.constant dense<0.000000e+00> : vector<32x256xf32>
    %6 = tpu.matmul %4, %5, %cst {dimension_numbers = #tpu.dot_dimension_numbers<[1], [0], [0], [1], [0, 0, 1, 1], [], []>} : vector<32x64xbf16>, vector<64x256xbf16>, vector<32x256xf32> -> vector<32x256xf32>
    %7 = arith.addf %3, %6 : vector<32x256xf32>
    %c0_6 = arith.constant 0 : index
    %c0_7 = arith.constant 0 : index
    %8 = vector.load %arg6[%c0_6, %c0_7] : memref<32x256xf32, #tpu.memory_space<vmem>>, vector<32x256xf32>
    tpu.vector_store %arg6[%c0_6, %c0_7], %7 {strides = array<i32>} : memref<32x256xf32, #tpu.memory_space<vmem>>, vector<32x256xf32>,
    %c0_i32_8 = arith.constant 0 : i32
    %9 = arith.cmpi eq, %arg1, %c0_i32_8 : i32
    %10 = arith.extui %9 : i1 to i32
    %c0_i32_9 = arith.constant 0 : i32
    %11 = arith.cmpi ne, %10, %c0_i32_9 : i32
    scf.if %11 {
      %c0_10 = arith.constant 0 : index
      %c0_11 = arith.constant 0 : index
      %12 = vector.load %arg6[%c0_10, %c0_11] : memref<32x256xf32, #tpu.memory_space<vmem>>, vector<32x256xf32>
      %c0_12 = arith.constant 0 : index
      %c0_13 = arith.constant 0 : index
      %13 = vector.load %arg4[%c0_12, %c0_13] : memref<1x256xf32, #tpu.memory_space<vmem>>, vector<1x256xf32>
      %14 = vector.broadcast %13 : vector<1x256xf32> to vector<32x256xf32>
      %15 = arith.addf %12, %14 : vector<32x256xf32>
      %cst_14 = arith.constant 5.000000e-01 : f32
      %16 = vector.broadcast %cst_14 : f32 to vector<32x256xf32>
      %17 = arith.mulf %16, %15 : vector<32x256xf32>
      %cst_15 = arith.constant 4.471500e-02 : f32
      %18 = vector.broadcast %cst_15 : f32 to vector<32x256xf32>
      %19 = arith.mulf %18, %15 : vector<32x256xf32>
      %20 = arith.mulf %19, %15 : vector<32x256xf32>
      %21 = arith.mulf %20, %15 : vector<32x256xf32>
      %22 = arith.addf %15, %21 : vector<32x256xf32>
      %cst_16 = arith.constant 0.797884583 : f32
      %23 = vector.broadcast %cst_16 : f32 to vector<32x256xf32>
      %24 = arith.mulf %23, %22 : vector<32x256xf32>
      %25 = math.tanh %24 : vector<32x256xf32>
      %cst_17 = arith.constant 1.000000e+00 : f32
      %26 = vector.broadcast %cst_17 : f32 to vector<32x256xf32>
      %27 = arith.addf %26, %25 : vector<32x256xf32>
      %28 = arith.mulf %17, %27 : vector<32x256xf32>
      %29 = arith.truncf %28 : vector<32x256xf32> to vector<32x256xbf16>
      %c0_18 = arith.constant 0 : index
      %c0_19 = arith.constant 0 : index
      %30 = vector.load %arg5[%c0_18, %c0_19] : memref<32x256xbf16, #tpu.memory_space<vmem>>, vector<32x256xbf16>
      tpu.vector_store %arg5[%c0_18, %c0_19], %29 {strides = array<i32>} : memref<32x256xbf16, #tpu.memory_space<vmem>>, vector<32x256xbf16>,
    } else {
    }
    return
  }
  func.func @transform_0(%arg0: i32, %arg1: i32) -> (i32, i32) {
    %c0_i32 = arith.constant 0 : i32
    return %arg0, %arg1 : i32, i32
  }
  func.func @transform_1(%arg0: i32, %arg1: i32) -> (i32, i32) {
    %c0_i32 = arith.constant 0 : i32
    %c0_i32_0 = arith.constant 0 : i32
    return %arg1, %c0_i32 : i32, i32
  }
  func.func @transform_2(%arg0: i32, %arg1: i32) -> (i32, i32) {
    %c0_i32 = arith.constant 0 : i32
    %c0_i32_0 = arith.constant 0 : i32
    %c0_i32_1 = arith.constant 0 : i32
    return %c0_i32, %c0_i32_0 : i32, i32
  }
  func.func @transform_3(%arg0: i32, %arg1: i32) -> (i32, i32) {
    %c0_i32 = arith.constant 0 : i32
    %c0_i32_0 = arith.constant 0 : i32
    return %arg0, %c0_i32 : i32, i32
  }
}

module attributes {stable_mosaic.version = 11 : i64} {
  func.func @_fused_linear_kernel(%arg0: i32, %arg1: i32, %arg2: memref<32x128xbf16, #tpu.memory_space<vmem>>, %arg3: memref<128x64xbf16, #tpu.memory_space<vmem>>, %arg4: memref<1x64xf32, #tpu.memory_space<vmem>>, %arg5: memref<1x64xf32, #tpu.memory_space<vmem>>, %arg6: memref<1x64xf32, #tpu.memory_space<vmem>>, %arg7: memref<32x64xbf16, #tpu.memory_space<vmem>>, %arg8: memref<32x64xbf16, #tpu.memory_space<vmem>>, %arg9: memref<32x64xf32, #tpu.memory_space<vmem>>) attributes {dimension_semantics = [#tpu.dimension_semantics<parallel>, #tpu.dimension_semantics<arbitrary>], iteration_bounds = array<i64: 1, 2>, scalar_prefetch = 0 : i64, scratch_operands = 1 : i64, tpu.core_type = #tpu.core_type<tc>, window_params = [{transform_indices = @transform_0, window_bounds = array<i64: 32, 128>}, {transform_indices = @transform_1, window_bounds = array<i64: 128, 64>}, {pipeline_mode = #tpu.pipeline_mode<synchronous>, transform_indices = @transform_2, window_bounds = array<i64: 1, 64>}, {pipeline_mode = #tpu.pipeline_mode<synchronous>, transform_indices = @transform_3, window_bounds = array<i64: 1, 64>}, {pipeline_mode = #tpu.pipeline_mode<synchronous>, transform_indices = @transform_4, window_bounds = array<i64: 1, 64>}, {transform_indices = @transform_5, window_bounds = array<i64: 32, 64>}, {transform_indices = @transform_6, window_bounds = array<i64: 32, 64>}]} {
    %c0_i32 = arith.constant 0 : i32
    %0 = arith.cmpi eq, %arg1, %c0_i32 : i32
    %1 = arith.extui %0 : i1 to i32
    %c0_i32_0 = arith.constant 0 : i32
    %2 = arith.cmpi ne, %1, %c0_i32_0 : i32
    scf.if %2 {
      %cst_9 = arith.constant 0.000000e+00 : f32
      %12 = vector.broadcast %cst_9 : f32 to vector<32x64xf32>
      %c0_10 = arith.constant 0 : index
      %c0_11 = arith.constant 0 : index
      %13 = vector.load %arg9[%c0_10, %c0_11] : memref<32x64xf32, #tpu.memory_space<vmem>>, vector<32x64xf32>
      tpu.vector_store %arg9[%c0_10, %c0_11], %12 {strides = array<i32>} : memref<32x64xf32, #tpu.memory_space<vmem>>, vector<32x64xf32>,
    } else {
    }
    %c0 = arith.constant 0 : index
    %c0_1 = arith.constant 0 : index
    %3 = vector.load %arg9[%c0, %c0_1] : memref<32x64xf32, #tpu.memory_space<vmem>>, vector<32x64xf32>
    %c0_2 = arith.constant 0 : index
    %c0_3 = arith.constant 0 : index
    %4 = vector.load %arg2[%c0_2, %c0_3] : memref<32x128xbf16, #tpu.memory_space<vmem>>, vector<32x128xbf16>
    %c0_4 = arith.constant 0 : index
    %c0_5 = arith.constant 0 : index
    %5 = vector.load %arg3[%c0_4, %c0_5] : memref<128x64xbf16, #tpu.memory_space<vmem>>, vector<128x64xbf16>
    %cst = arith.constant dense<0.000000e+00> : vector<32x64xf32>
    %6 = tpu.matmul %4, %5, %cst {dimension_numbers = #tpu.dot_dimension_numbers<[1], [0], [0], [1], [0, 0, 1, 1], [], []>} : vector<32x128xbf16>, vector<128x64xbf16>, vector<32x64xf32> -> vector<32x64xf32>
    %7 = arith.addf %3, %6 : vector<32x64xf32>
    %c0_6 = arith.constant 0 : index
    %c0_7 = arith.constant 0 : index
    %8 = vector.load %arg9[%c0_6, %c0_7] : memref<32x64xf32, #tpu.memory_space<vmem>>, vector<32x64xf32>
    tpu.vector_store %arg9[%c0_6, %c0_7], %7 {strides = array<i32>} : memref<32x64xf32, #tpu.memory_space<vmem>>, vector<32x64xf32>,
    %c1_i32 = arith.constant 1 : i32
    %9 = arith.cmpi eq, %arg1, %c1_i32 : i32
    %10 = arith.extui %9 : i1 to i32
    %c0_i32_8 = arith.constant 0 : i32
    %11 = arith.cmpi ne, %10, %c0_i32_8 : i32
    scf.if %11 {
      %c0_9 = arith.constant 0 : index
      %c0_10 = arith.constant 0 : index
      %12 = vector.load %arg9[%c0_9, %c0_10] : memref<32x64xf32, #tpu.memory_space<vmem>>, vector<32x64xf32>
      %c0_11 = arith.constant 0 : index
      %c0_12 = arith.constant 0 : index
      %13 = vector.load %arg4[%c0_11, %c0_12] : memref<1x64xf32, #tpu.memory_space<vmem>>, vector<1x64xf32>
      %14 = vector.broadcast %13 : vector<1x64xf32> to vector<32x64xf32>
      %15 = arith.addf %12, %14 : vector<32x64xf32>
      %cst_13 = arith.constant dense<0.000000e+00> : vector<32xf32>
      %16 = vector.multi_reduction <add>, %15, %cst_13 [1] : vector<32x64xf32> to vector<32xf32>
      %17 = vector.shape_cast %16 : vector<32xf32> to vector<32x1xf32>
      %cst_14 = arith.constant 6.400000e+01 : f32
      %18 = vector.broadcast %cst_14 : f32 to vector<32x1xf32>
      %19 = arith.divf %17, %18 : vector<32x1xf32>
      %20 = vector.broadcast %19 : vector<32x1xf32> to vector<32x64xf32>
      %21 = arith.subf %15, %20 : vector<32x64xf32>
      %22 = arith.mulf %21, %21 : vector<32x64xf32>
      %cst_15 = arith.constant dense<0.000000e+00> : vector<32xf32>
      %23 = vector.multi_reduction <add>, %22, %cst_15 [1] : vector<32x64xf32> to vector<32xf32>
      %24 = vector.shape_cast %23 : vector<32xf32> to vector<32x1xf32>
      %cst_16 = arith.constant 6.400000e+01 : f32
      %25 = vector.broadcast %cst_16 : f32 to vector<32x1xf32>
      %26 = arith.divf %24, %25 : vector<32x1xf32>
      %cst_17 = arith.constant 9.99999974E-6 : f32
      %27 = vector.broadcast %cst_17 : f32 to vector<32x1xf32>
      %28 = arith.addf %26, %27 : vector<32x1xf32>
      %29 = math.rsqrt %28 : vector<32x1xf32>
      %30 = vector.broadcast %29 : vector<32x1xf32> to vector<32x64xf32>
      %31 = arith.mulf %21, %30 : vector<32x64xf32>
      %c0_18 = arith.constant 0 : index
      %c0_19 = arith.constant 0 : index
      %32 = vector.load %arg5[%c0_18, %c0_19] : memref<1x64xf32, #tpu.memory_space<vmem>>, vector<1x64xf32>
      %33 = vector.broadcast %32 : vector<1x64xf32> to vector<32x64xf32>
      %34 = arith.mulf %31, %33 : vector<32x64xf32>
      %c0_20 = arith.constant 0 : index
      %c0_21 = arith.constant 0 : index
      %35 = vector.load %arg6[%c0_20, %c0_21] : memref<1x64xf32, #tpu.memory_space<vmem>>, vector<1x64xf32>
      %36 = vector.broadcast %35 : vector<1x64xf32> to vector<32x64xf32>
      %37 = arith.addf %34, %36 : vector<32x64xf32>
      %c0_22 = arith.constant 0 : index
      %c0_23 = arith.constant 0 : index
      %38 = vector.load %arg7[%c0_22, %c0_23] : memref<32x64xbf16, #tpu.memory_space<vmem>>, vector<32x64xbf16>
      %39 = arith.extf %38 : vector<32x64xbf16> to vector<32x64xf32>
      %40 = arith.addf %37, %39 : vector<32x64xf32>
      %41 = arith.truncf %40 : vector<32x64xf32> to vector<32x64xbf16>
      %c0_24 = arith.constant 0 : index
      %c0_25 = arith.constant 0 : index
      %42 = vector.load %arg8[%c0_24, %c0_25] : memref<32x64xbf16, #tpu.memory_space<vmem>>, vector<32x64xbf16>
      tpu.vector_store %arg8[%c0_24, %c0_25], %41 {strides = array<i32>} : memref<32x64xbf16, #tpu.memory_space<vmem>>, vector<32x64xbf16>,
    } else {
    }
    return
  }
  func.func @transform_0(%arg0: i32, %arg1: i32) -> (i32, i32) {
    %c0_i32 = arith.constant 0 : i32
    return %arg0, %arg1 : i32, i32
  }
  func.func @transform_1(%arg0: i32, %arg1: i32) -> (i32, i32) {
    %c0_i32 = arith.constant 0 : i32
    %c0_i32_0 = arith.constant 0 : i32
    return %arg1, %c0_i32 : i32, i32
  }
  func.func @transform_2(%arg0: i32, %arg1: i32) -> (i32, i32) {
    %c0_i32 = arith.constant 0 : i32
    %c0_i32_0 = arith.constant 0 : i32
    %c0_i32_1 = arith.constant 0 : i32
    return %c0_i32, %c0_i32_0 : i32, i32
  }
  func.func @transform_3(%arg0: i32, %arg1: i32) -> (i32, i32) {
    %c0_i32 = arith.constant 0 : i32
    %c0_i32_0 = arith.constant 0 : i32
    %c0_i32_1 = arith.constant 0 : i32
    return %c0_i32, %c0_i32_0 : i32, i32
  }
  func.func @transform_4(%arg0: i32, %arg1: i32) -> (i32, i32) {
    %c0_i32 = arith.constant 0 : i32
    %c0_i32_0 = arith.constant 0 : i32
    %c0_i32_1 = arith.constant 0 : i32
    return %c0_i32, %c0_i32_0 : i32, i32
  }
  func.func @transform_5(%arg0: i32, %arg1: i32) -> (i32, i32) {
    %c0_i32 = arith.constant 0 : i32
    %c0_i32_0 = arith.constant 0 : i32
    return %arg0, %c0_i32 : i32, i32
  }
  func.func @transform_6(%arg0: i32, %arg1: i32) -> (i32, i32) {
    %c0_i32 = arith.constant 0 : i32
    %c0_i32_0 = arith.constant 0 : i32
    return %arg0, %c0_i32 : i32, i32
  }
}

</mosaic_0001>

<llo_original>
// kernel: forward.23
$region0: #{forward.23}
  #allocation0 [shape = 'u32[]', space=smem, size = 0x4, offset = 0x4, fixed_abs, tag = 'smem constant byte address 0x4 - core index']
  #allocation1 [shape = 'u32[72,128]{1,0:T(1,128)}', space=vmem, size = 0x9000, scoped, tag = 'internal scratch']
  #allocation2 [shape = 'f32[64,96]{1,0:T(8,128)}', space=vmem, size = 0x8000, scoped, tag = 'scratch operand']
  %s0 = inlined_call_operand.vmem [shape: bf16[128,32], index: 0, kind: input, shape index: {}]
  %s1 = inlined_call_operand.vmem [shape: bf16[32,96], index: 1, kind: input, shape index: {}]
  %s2 = inlined_call_operand.vmem [shape: f32[1,96], index: 2, kind: input, shape index: {}]
  %s3 = inlined_call_operand.vmem [shape: bf16[128,96], index: 3, kind: output, shape index: {}]
  %s4 = sld [smem:[#allocation0]]
  $region53: #{forward.23} parent=0
    _
  %s6 = ssub.s32 1, %s4
  %s7 = scalar_select 0, %s6, %s4
  loop: start=0, step=1, limit=4
  $region2: #{forward.23} parent=0 // loop_pre_header
    _
  $region3: #{forward.23} parent=0 // loop_header
    %s9 = sphi 0, %s13
    %p10 = scmp.ge.s32.totalorder %s9, 4
    %s16 = sphi 0, %s28
    %s17 = sphi 0, %s24
    %s18 = sphi 0, %s16
    %s19 = sphi 0, %s17
    %s20 = sphi 0, %s18
    %s21 = sphi 0, %s19
    %s33 = sphi 0, %s35
    %s36 = sphi 0, %s33
    %s37 = sphi 0, %s36
    %s53 = sphi 0, %s37
    %s59 = sphi 0, %s61
    %s62 = sphi 0, %s59
    %s63 = sphi 0, %s62
    %s79 = sphi 0, %s63
    %s83 = sphi 0, %s83
    %s85 = sphi 0, %s83
    %s86 = sphi 0, %s85
    %s100 = sphi 0, %s86
    %s106 = sphi 0, %s108
    %s109 = sphi 0, %s106
    %s110 = sphi 0, %s109
    %s126 = sphi 0, %s110
  $region4: #{forward.23} parent=0 // loop_header_branch
    %12 = sbr.rel (%p10) target = $region8
  $region5: #{forward.23} parent=0 // loop_body
    %s14 = ssub.s32 %s9, 1
    %s15 = ssub.s32 %s9, 2
    %s22 = sadd.s32 1, %s17
    %p23 = scmp.ge.s32.totalorder %s22, 1
    %s24 = scalar_select %p23, 0, %s22
    %s25 = sadd.s32 1, %s16
    %s26 = scalar_select %p23, %s25, %s16
    %p27 = scmp.ge.s32.totalorder %s26, 2
    %s28 = scalar_select %p27, 0, %s26
    %s29 = ssub.s32 %s16, %s28
    %s30 = ssub.s32 %s17, %s24
    %s31 = sor.u32 %s29, %s30
    %p32 = scmp.eq.s32.totalorder %s31, 0
    %s34 = sadd.s32 %s33, 1
    %s35 = scalar_select %p32, %s33, %s34
    %p38 = pneg %p32
    %p39 = scmp.eq.s32.totalorder %s9, 1
    %p40 = por %p38, %p39
    %p41 = scmp.ne.s32.totalorder %s33, %s36
    %p42 = scmp.eq.s32.totalorder %s9, 0
    %p43 = por %p41, %p42
    %p44 = scmp.ne.s32.totalorder %s33, %s36
    %p45 = scmp.eq.s32.totalorder %s14, 1
    %p46 = por %p44, %p45
    %p47 = scmp.ne.s32.totalorder %s36, %s37
    %p48 = scmp.eq.s32.totalorder %s14, 0
    %p49 = por %p47, %p48
    %p50 = scmp.ne.s32.totalorder %s36, %s37
    %p51 = scmp.eq.s32.totalorder %s15, 1
    %p52 = por %p50, %p51
    %p54 = scmp.ne.s32.totalorder %s37, %s53
    %p55 = scmp.eq.s32.totalorder %s15, 0
    %p56 = por %p54, %p55
    %s57 = ssub.s32 %s17, %s24
    %p58 = scmp.eq.s32.totalorder %s57, 0
    %s60 = sadd.s32 %s59, 1
    %s61 = scalar_select %p58, %s59, %s60
    %p64 = pneg %p58
    %p65 = scmp.eq.s32.totalorder %s9, 1
    %p66 = por %p64, %p65
    %p67 = scmp.ne.s32.totalorder %s59, %s62
    %p68 = scmp.eq.s32.totalorder %s9, 0
    %p69 = por %p67, %p68
    %p70 = scmp.ne.s32.totalorder %s59, %s62
    %p71 = scmp.eq.s32.totalorder %s14, 1
    %p72 = por %p70, %p71
    %p73 = scmp.ne.s32.totalorder %s62, %s63
    %p74 = scmp.eq.s32.totalorder %s14, 0
    %p75 = por %p73, %p74
    %p76 = scmp.ne.s32.totalorder %s62, %s63
    %p77 = scmp.eq.s32.totalorder %s15, 1
    %p78 = por %p76, %p77
    %p80 = scmp.ne.s32.totalorder %s63, %s79
    %p81 = scmp.eq.s32.totalorder %s15, 0
    %p82 = por %p80, %p81
    %s84 = sadd.s32 %s83, 1
    %p87 = scmp.eq.s32.totalorder %s9, 1
    %p88 = scmp.ne.s32.totalorder %s83, %s85
    %p89 = scmp.eq.s32.totalorder %s9, 0
    %p90 = por %p88, %p89
    %p91 = scmp.ne.s32.totalorder %s83, %s85
    %p92 = scmp.eq.s32.totalorder %s14, 1
    %p93 = por %p91, %p92
    %p94 = scmp.ne.s32.totalorder %s85, %s86
    %p95 = scmp.eq.s32.totalorder %s14, 0
    %p96 = por %p94, %p95
    %p97 = scmp.ne.s32.totalorder %s85, %s86
    %p98 = scmp.eq.s32.totalorder %s15, 1
    %p99 = por %p97, %p98
    %p101 = scmp.ne.s32.totalorder %s86, %s100
    %p102 = scmp.eq.s32.totalorder %s15, 0
    %p103 = por %p101, %p102
    %s104 = ssub.s32 %s16, %s28
    %p105 = scmp.eq.s32.totalorder %s104, 0
    %s107 = sadd.s32 %s106, 1
    %s108 = scalar_select %p105, %s106, %s107
    %p111 = pneg %p105
    %p112 = scmp.eq.s32.totalorder %s9, 1
    %p113 = por %p111, %p112
    %p114 = scmp.ne.s32.totalorder %s106, %s109
    %p115 = scmp.eq.s32.totalorder %s9, 0
    %p116 = por %p114, %p115
    %p117 = scmp.ne.s32.totalorder %s106, %s109
    %p118 = scmp.eq.s32.totalorder %s14, 1
    %p119 = por %p117, %p118
    %p120 = scmp.ne.s32.totalorder %s109, %s110
    %p121 = scmp.eq.s32.totalorder %s14, 0
    %p122 = por %p120, %p121
    %p123 = scmp.ne.s32.totalorder %s109, %s110
    %p124 = scmp.eq.s32.totalorder %s15, 1
    %p125 = por %p123, %p124
    %p127 = scmp.ne.s32.totalorder %s110, %s126
    %p128 = scmp.eq.s32.totalorder %s15, 0
    %p129 = por %p127, %p128
    %p130 = scmp.le.s32.totalorder 1, %s9
    %p131 = scmp.lt.s32.totalorder %s9, 3
    %p132 = pnand %p130, %p131
    %p133 = pneg %p132
    // Predicated region
    $region9: #{forward.23} parent=5 // pred_check
      _
    $region10: #{forward.23} parent=5 // pred_check_branch
      %135 = sbr.rel (%p132) target = $region12
    $region11: #{forward.23} parent=5 // pred_region
      %s136 = ssub.s32 %s9, 1
      // Predicated region
      $region13: #{forward.23} parent=11 // pred_check
        %p137 = pneg %p75
      $region14: #{forward.23} parent=11 // pred_check_branch
        %139 = sbr.rel (%p137) target = $region16
      $region15: #{forward.23} parent=11 // pred_region
        %s140 = smul.u32 4, %s19
        %p141 = scmp.lt.s32.totalorder %s140, 3
        %s142 = scalar_select %p141, %s140, 3
        %s143 = smul.addr %s142, 4
        %s144 = scalar_lea.vmem %s1, %s143
        %s145 = smul.u32 4, %s19
      $region16: #{forward.23} parent=11 // pred_fallthru
        _
      // Predicated region
      $region17: #{forward.23} parent=11 // pred_check
        %p146 = pneg %p96
      $region18: #{forward.23} parent=11 // pred_check_branch
        %148 = sbr.rel (%p146) target = $region20
      $region19: #{forward.23} parent=11 // pred_region
        _
      $region20: #{forward.23} parent=11 // pred_fallthru
        _
    $region12: #{forward.23} parent=5 // pred_fallthru
      _
    %p149 = scmp.lt.s32.totalorder %s9, 2
    // Predicated region
    $region21: #{forward.23} parent=5 // pred_check
      %p150 = pneg %p149
    $region22: #{forward.23} parent=5 // pred_check_branch
      %152 = sbr.rel (%p150) target = $region24
    $region23: #{forward.23} parent=5 // pred_region
      // Predicated region
      $region25: #{forward.23} parent=23 // pred_check
        %p153 = pneg %p43
      $region26: #{forward.23} parent=23 // pred_check_branch
        %155 = sbr.rel (%p153) target = $region28
      $region27: #{forward.23} parent=23 // pred_region
        %s156 = smul.u32 8, %s16
        %p157 = scmp.lt.s32.totalorder %s156, 15
        %s158 = scalar_select %p157, %s156, 15
        %p159 = scmp.lt.s32.totalorder %s17, 0
        %s160 = scalar_select %p159, %s17, 0
        %s161 = sadd.s32 %s160, %s158
        %s162 = smul.addr %s161, 4
        %s163 = scalar_lea.vmem %s0, %s162
        %s164 = smul.u32 8, %s16
      $region28: #{forward.23} parent=23 // pred_fallthru
        _
    $region24: #{forward.23} parent=5 // pred_fallthru
      _
    %p165 = scmp.le.s32.totalorder 1, %s9
    %p166 = scmp.lt.s32.totalorder %s9, 3
    %p167 = pnand %p165, %p166
    %p168 = pneg %p167
    // Predicated region
    $region29: #{forward.23} parent=5 // pred_check
      _
    $region30: #{forward.23} parent=5 // pred_check_branch
      %170 = sbr.rel (%p167) target = $region32
    $region31: #{forward.23} parent=5 // pred_region
      %s171 = ssub.s32 %s9, 1
      %s172 = smul.u32 8, %s18
      %p173 = scmp.lt.s32.totalorder %s172, 15
      %s174 = scalar_select %p173, %s172, 15
      %p175 = scmp.lt.s32.totalorder %s19, 0
      %s176 = scalar_select %p175, %s19, 0
      %s177 = sadd.s32 %s176, %s174
      %s178 = smul.addr %s177, 4
      %s179 = scalar_lea.vmem %s0, %s178
      %p180 = pneg %p49
      %p181 = pneg %p46
      %s182 = smul.u32 4, %s19
      %p183 = scmp.lt.s32.totalorder %s182, 3
      %s184 = scalar_select %p183, %s182, 3
      %s185 = smul.addr %s184, 4
      %s186 = scalar_lea.vmem %s1, %s185
      %p187 = pneg %p75
      %p188 = pneg %p72
      %p189 = pneg %p96
      %p190 = pneg %p93
      %p191 = pneg %p122
      %p192 = pneg %p119
      %s193 = smul.u32 8, %s18
      %p194 = scmp.lt.s32.totalorder %s193, 15
      %s195 = scalar_select %p194, %s193, 15
      %s196 = smul.addr %s195, 4
      %s197 = scalar_lea.vmem %s3, %s196
      %s198 = smul.u32 8, %s18
      %p199 = scmp.lt.s32.totalorder %s198, 15
      %s200 = scalar_select %p199, %s198, 15
      %p201 = scmp.lt.s32.totalorder %s19, 0
      %s202 = scalar_select %p201, %s19, 0
      %s203 = sadd.s32 %s202, %s200
      %s204 = smul.addr %s203, 4
      %s205 = scalar_lea.vmem %s0, %s204
      %s206 = smul.u32 8, %s18
      %s207 = smul.u32 4, %s19
      %p208 = scmp.lt.s32.totalorder %s207, 3
      %s209 = scalar_select %p208, %s207, 3
      %s210 = smul.addr %s209, 4
      %s211 = scalar_lea.vmem %s1, %s210
      %s212 = smul.u32 4, %s19
      %s213 = smul.u32 8, %s18
      %p214 = scmp.lt.s32.totalorder %s213, 15
      %s215 = scalar_select %p214, %s213, 15
      %s216 = smul.addr %s215, 4
      %s217 = scalar_lea.vmem %s3, %s216
      %s218 = smul.u32 8, %s18
      %p220 = scmp.eq.s32.totalorder %s19, 0
      // Predicated region
      $region33: #{forward.23} parent=31 // pred_check
        %p221 = pneg %p220
      $region34: #{forward.23} parent=31 // pred_check_branch
        %223 = sbr.rel (%p221) target = $region36
      $region35: #{forward.23} parent=31 // pred_region
        %vm224 = vcmask 785408
        %225 = vst.msk [vmem:[#allocation2] sm:$0xff] %vm224, 0.0
        %226 = vst.msk [vmem:[#allocation2 + $0x8] sm:$0xff] %vm224, 0.0
        %227 = vst.msk [vmem:[#allocation2 + $0x10] sm:$0xff] %vm224, 0.0
        %228 = vst.msk [vmem:[#allocation2 + $0x18] sm:$0xff] %vm224, 0.0
        %229 = vst.msk [vmem:[#allocation2 + $0x20] sm:$0xff] %vm224, 0.0
        %230 = vst.msk [vmem:[#allocation2 + $0x28] sm:$0xff] %vm224, 0.0
        %231 = vst.msk [vmem:[#allocation2 + $0x30] sm:$0xff] %vm224, 0.0
        %232 = vst.msk [vmem:[#allocation2 + $0x38] sm:$0xff] %vm224, 0.0
      $region36: #{forward.23} parent=31 // pred_fallthru
        _
      %v233 = vld [vmem:[#allocation2] sm:$0xff]
      %v234 = vld [vmem:[#allocation2 + $0x8] sm:$0xff]
      %v235 = vld [vmem:[#allocation2 + $0x10] sm:$0xff]
      %v236 = vld [vmem:[#allocation2 + $0x18] sm:$0xff]
      %v237 = vld [vmem:[#allocation2 + $0x20] sm:$0xff]
      %v238 = vld [vmem:[#allocation2 + $0x28] sm:$0xff]
      %v239 = vld [vmem:[#allocation2 + $0x30] sm:$0xff]
      %v240 = vld [vmem:[#allocation2 + $0x38] sm:$0xff]
      %v241 = vld [vmem:[%s205] sm:$0xf]
      %v242 = vld [vmem:[%s205 + $0x4] sm:$0xf]
      %v243 = vld [vmem:[%s205 + $0x8] sm:$0xf]
      %v244 = vld [vmem:[%s205 + $0xc] sm:$0xf]
      %v245 = vld [vmem:[%s205 + $0x10] sm:$0xf]
      %v246 = vld [vmem:[%s205 + $0x14] sm:$0xf]
      %v247 = vld [vmem:[%s205 + $0x18] sm:$0xf]
      %v248 = vld [vmem:[%s205 + $0x1c] sm:$0xf]
      %v249 = vld [vmem:[%s211] sm:$0xf]
      %v250 = vld [vmem:[%s211 + $0x4] sm:$0xf]
      %v251 = vld [vmem:[%s211 + $0x8] sm:$0xf]
      %v252 = vld [vmem:[%s211 + $0xc] sm:$0xf]
      %v261 = vunpack.c.l.b16 %v241
      %v262 = vunpack.c.l.b16 %v242
      %v263 = vunpack.c.l.b16 %v243
      %v264 = vunpack.c.l.b16 %v244
      %v265 = vunpack.c.l.b16 %v245
      %v266 = vunpack.c.l.b16 %v246
      %v267 = vunpack.c.l.b16 %v247
      %v268 = vunpack.c.l.b16 %v248
      %v269 = vpack.c.b16 %v262, %v261
      %v270 = vpack.c.b16 %v264, %v263
      %v271 = vpack.c.b16 %v266, %v265
      %v272 = vpack.c.b16 %v268, %v267
      %v277 = vunpack.c.l.b16 %v249
      %v278 = vunpack.c.l.b16 %v250
      %v279 = vunpack.c.l.b16 %v251
      %v280 = vunpack.c.l.b16 %v252
      %v281 = vpack.c.b16 %v278, %v277
      %v282 = vpack.c.b16 %v280, %v279
      %vm285 = vcmask 261120
      %v287 = vsel %vm285, %v269, 0
      %v290 = vsel %vm285, %v270, 0
      %v293 = vsel %vm285, %v271, 0
      %v296 = vsel %vm285, %v272, 0
      %298 = vmatpush.bf16.msra.mxu0 0
      %299 = vmatpush.bf16.msra.mxu0 0
      %300 = vmatpush.bf16.msra.mxu0 0
      %301 = vmatpush.bf16.msra.mxu0 0
      %302 = vmatpush.bf16.msra.mxu0 0
      %303 = vmatpush.bf16.msra.mxu0 0
      %304 = vmatpush.bf16.msra.mxu0 %v282
      %305 = vmatpush.bf16.msra.mxu0 %v281
      %306 = vmatmul.bf16.gmra.mxu0 %v287
      %v307 = vpop.f32.mrf.mxu0
      %v308 = vadd.f32 0.0, %v307
      %v309 = vpop.f32.mrf.mxu0
      %v310 = vadd.f32 0.0, %v309
      %311 = vmatmul.bf16.gmra.mxu0 %v290
      %v312 = vpop.f32.mrf.mxu0
      %v313 = vadd.f32 0.0, %v312
      %v314 = vpop.f32.mrf.mxu0
      %v315 = vadd.f32 0.0, %v314
      %316 = vmatmul.bf16.gmra.mxu0 %v293
      %v317 = vpop.f32.mrf.mxu0
      %v318 = vadd.f32 0.0, %v317
      %v319 = vpop.f32.mrf.mxu0
      %v320 = vadd.f32 0.0, %v319
      %321 = vmatmul.bf16.gmra.mxu0 %v296
      %v322 = vpop.f32.mrf.mxu0
      %v323 = vadd.f32 0.0, %v322
      %v324 = vpop.f32.mrf.mxu0
      %v325 = vadd.f32 0.0, %v324
      %326 = vdwg.mxu0
      %v327 = vadd.f32 %v233, %v308
      %v328 = vadd.f32 %v234, %v310
      %v329 = vadd.f32 %v235, %v313
      %v330 = vadd.f32 %v236, %v315
      %v331 = vadd.f32 %v237, %v318
      %v332 = vadd.f32 %v238, %v320
      %v333 = vadd.f32 %v239, %v323
      %v334 = vadd.f32 %v240, %v325
      %vm335 = vcmask 785408
      %336 = vst.msk [vmem:[#allocation2] sm:$0xff] %vm335, %v327
      %337 = vst.msk [vmem:[#allocation2 + $0x8] sm:$0xff] %vm335, %v328
      %338 = vst.msk [vmem:[#allocation2 + $0x10] sm:$0xff] %vm335, %v329
      %339 = vst.msk [vmem:[#allocation2 + $0x18] sm:$0xff] %vm335, %v330
      %340 = vst.msk [vmem:[#allocation2 + $0x20] sm:$0xff] %vm335, %v331
      %341 = vst.msk [vmem:[#allocation2 + $0x28] sm:$0xff] %vm335, %v332
      %342 = vst.msk [vmem:[#allocation2 + $0x30] sm:$0xff] %vm335, %v333
      %343 = vst.msk [vmem:[#allocation2 + $0x38] sm:$0xff] %vm335, %v334
      // Predicated region
      $region37: #{forward.23} parent=31 // pred_check
        %p344 = pneg %p220
      $region38: #{forward.23} parent=31 // pred_check_branch
        %346 = sbr.rel (%p344) target = $region40
      $region39: #{forward.23} parent=31 // pred_region
        %v347 = vld [vmem:[#allocation2] sm:$0xff]
        %v348 = vld [vmem:[#allocation2 + $0x8] sm:$0xff]
        %v349 = vld [vmem:[#allocation2 + $0x10] sm:$0xff]
        %v350 = vld [vmem:[#allocation2 + $0x18] sm:$0xff]
        %v351 = vld [vmem:[#allocation2 + $0x20] sm:$0xff]
        %v352 = vld [vmem:[#allocation2 + $0x28] sm:$0xff]
        %v353 = vld [vmem:[#allocation2 + $0x30] sm:$0xff]
        %v354 = vld [vmem:[#allocation2 + $0x38] sm:$0xff]
        %v355 = vld [vmem:[%s2] sm:$0x1]
        %v357 = vperm.slane %v355, 0
        %v359 = vadd.f32 %v347, %v357
        %v360 = vadd.f32 %v348, %v357
        %v361 = vadd.f32 %v349, %v357
        %v362 = vadd.f32 %v350, %v357
        %v363 = vadd.f32 %v351, %v357
        %v364 = vadd.f32 %v352, %v357
        %v365 = vadd.f32 %v353, %v357
        %v366 = vadd.f32 %v354, %v357
        %v367 = vpack.c.bf16 %v359, %v359
        %v368 = vpack.c.bf16 %v360, %v360
        %v369 = vpack.c.bf16 %v361, %v361
        %v370 = vpack.c.bf16 %v362, %v362
        %v371 = vpack.c.bf16 %v363, %v363
        %v372 = vpack.c.bf16 %v364, %v364
        %v373 = vpack.c.bf16 %v365, %v365
        %v374 = vpack.c.bf16 %v366, %v366
        %vm375 = vcmask 781312
        %376 = vst.msk [vmem:[%s217] sm:$0xf] %vm375, %v367
        %377 = vst.msk [vmem:[%s217 + $0x4] sm:$0xf] %vm375, %v368
        %378 = vst.msk [vmem:[%s217 + $0x8] sm:$0xf] %vm375, %v369
        %379 = vst.msk [vmem:[%s217 + $0xc] sm:$0xf] %vm375, %v370
        %380 = vst.msk [vmem:[%s217 + $0x10] sm:$0xf] %vm375, %v371
        %381 = vst.msk [vmem:[%s217 + $0x14] sm:$0xf] %vm375, %v372
        %382 = vst.msk [vmem:[%s217 + $0x18] sm:$0xf] %vm375, %v373
        %383 = vst.msk [vmem:[%s217 + $0x1c] sm:$0xf] %vm375, %v374
      $region40: #{forward.23} parent=31 // pred_fallthru
        _
      %s384 = smul.u32 8, %s18
      %p385 = scmp.lt.s32.totalorder %s384, 15
      %s386 = scalar_select %p385, %s384, 15
      %s387 = smul.addr %s386, 4
      %s388 = scalar_lea.vmem %s3, %s387
      // Predicated region
      $region41: #{forward.23} parent=31 // pred_check
        %p389 = pneg %p119
      $region42: #{forward.23} parent=31 // pred_check_branch
        %391 = sbr.rel (%p389) target = $region44
      $region43: #{forward.23} parent=31 // pred_region
        %s392 = smul.u32 8, %s18
      $region44: #{forward.23} parent=31 // pred_fallthru
        _
    $region32: #{forward.23} parent=5 // pred_fallthru
      _
    %p393 = scmp.le.s32.totalorder 2, %s9
    // Predicated region
    $region45: #{forward.23} parent=5 // pred_check
      %p394 = pneg %p393
    $region46: #{forward.23} parent=5 // pred_check_branch
      %396 = sbr.rel (%p394) target = $region48
    $region47: #{forward.23} parent=5 // pred_region
      %s397 = ssub.s32 %s9, 2
      // Predicated region
      $region49: #{forward.23} parent=47 // pred_check
        %p398 = pneg %p125
      $region50: #{forward.23} parent=47 // pred_check_branch
        %400 = sbr.rel (%p398) target = $region52
      $region51: #{forward.23} parent=47 // pred_region
        %s401 = smul.u32 8, %s20
        %p402 = scmp.lt.s32.totalorder %s401, 15
        %s403 = scalar_select %p402, %s401, 15
        %s404 = smul.addr %s403, 4
        %s405 = scalar_lea.vmem %s3, %s404
      $region52: #{forward.23} parent=47 // pred_fallthru
        _
    $region48: #{forward.23} parent=5 // pred_fallthru
      _
  $region6: #{forward.23} parent=0 // loop_footer
    %s13 = sadd.s32 1, %s9
  $region7: #{forward.23} parent=0 // loop_footer_branch
    %8 = sbr.rel target = $region3
  $region8: #{forward.23} parent=0 // loop_exit
    _

// kernel: forward.22
$region0: #{forward.22}
  #allocation0 [shape = 'u32[]', space=smem, size = 0x4, offset = 0x4, fixed_abs, tag = 'smem constant byte address 0x4 - core index']
  #allocation1 [shape = 'u32[72,128]{1,0:T(1,128)}', space=vmem, size = 0x9000, scoped, tag = 'internal scratch']
  #allocation2 [shape = 'f32[64,32]{1,0:T(8,128)}', space=vmem, size = 0x8000, scoped, tag = 'scratch operand']
  %s0 = inlined_call_operand.vmem [shape: bf16[128,12], index: 0, kind: input, shape index: {}]
  %s1 = inlined_call_operand.vmem [shape: bf16[12,32], index: 1, kind: input, shape index: {}]
  %s2 = inlined_call_operand.vmem [shape: f32[1,32], index: 2, kind: input, shape index: {}]
  %s3 = inlined_call_operand.vmem [shape: f32[1,32], index: 3, kind: input, shape index: {}]
  %s4 = inlined_call_operand.vmem [shape: f32[1,32], index: 4, kind: input, shape index: {}]
  %s5 = inlined_call_operand.vmem [shape: bf16[128,32], index: 5, kind: output, shape index: {}]
  %s6 = sld [smem:[#allocation0]]
  $region61: #{forward.22} parent=0
    _
  %s8 = ssub.s32 1, %s6
  %s9 = scalar_select 0, %s8, %s6
  loop: start=0, step=1, limit=4
  $region2: #{forward.22} parent=0 // loop_pre_header
    _
  $region3: #{forward.22} parent=0 // loop_header
    %s11 = sphi 0, %s15
    %p12 = scmp.ge.s32.totalorder %s11, 4
    %s18 = sphi 0, %s30
    %s19 = sphi 0, %s26
    %s20 = sphi 0, %s18
    %s21 = sphi 0, %s19
    %s22 = sphi 0, %s20
    %s23 = sphi 0, %s21
    %s35 = sphi 0, %s37
    %s38 = sphi 0, %s35
    %s39 = sphi 0, %s38
    %s55 = sphi 0, %s39
    %s61 = sphi 0, %s63
    %s64 = sphi 0, %s61
    %s65 = sphi 0, %s64
    %s81 = sphi 0, %s65
    %s85 = sphi 0, %s85
    %s87 = sphi 0, %s85
    %s88 = sphi 0, %s87
    %s102 = sphi 0, %s88
    %s106 = sphi 0, %s106
    %s108 = sphi 0, %s106
    %s109 = sphi 0, %s108
    %s123 = sphi 0, %s109
    %s127 = sphi 0, %s127
    %s129 = sphi 0, %s127
    %s130 = sphi 0, %s129
    %s144 = sphi 0, %s130
    %s150 = sphi 0, %s152
    %s153 = sphi 0, %s150
    %s154 = sphi 0, %s153
    %s170 = sphi 0, %s154
  $region4: #{forward.22} parent=0 // loop_header_branch
    %14 = sbr.rel (%p12) target = $region8
  $region5: #{forward.22} parent=0 // loop_body
    %s16 = ssub.s32 %s11, 1
    %s17 = ssub.s32 %s11, 2
    %s24 = sadd.s32 1, %s19
    %p25 = scmp.ge.s32.totalorder %s24, 1
    %s26 = scalar_select %p25, 0, %s24
    %s27 = sadd.s32 1, %s18
    %s28 = scalar_select %p25, %s27, %s18
    %p29 = scmp.ge.s32.totalorder %s28, 2
    %s30 = scalar_select %p29, 0, %s28
    %s31 = ssub.s32 %s18, %s30
    %s32 = ssub.s32 %s19, %s26
    %s33 = sor.u32 %s31, %s32
    %p34 = scmp.eq.s32.totalorder %s33, 0
    %s36 = sadd.s32 %s35, 1
    %s37 = scalar_select %p34, %s35, %s36
    %p40 = pneg %p34
    %p41 = scmp.eq.s32.totalorder %s11, 1
    %p42 = por %p40, %p41
    %p43 = scmp.ne.s32.totalorder %s35, %s38
    %p44 = scmp.eq.s32.totalorder %s11, 0
    %p45 = por %p43, %p44
    %p46 = scmp.ne.s32.totalorder %s35, %s38
    %p47 = scmp.eq.s32.totalorder %s16, 1
    %p48 = por %p46, %p47
    %p49 = scmp.ne.s32.totalorder %s38, %s39
    %p50 = scmp.eq.s32.totalorder %s16, 0
    %p51 = por %p49, %p50
    %p52 = scmp.ne.s32.totalorder %s38, %s39
    %p53 = scmp.eq.s32.totalorder %s17, 1
    %p54 = por %p52, %p53
    %p56 = scmp.ne.s32.totalorder %s39, %s55
    %p57 = scmp.eq.s32.totalorder %s17, 0
    %p58 = por %p56, %p57
    %s59 = ssub.s32 %s19, %s26
    %p60 = scmp.eq.s32.totalorder %s59, 0
    %s62 = sadd.s32 %s61, 1
    %s63 = scalar_select %p60, %s61, %s62
    %p66 = pneg %p60
    %p67 = scmp.eq.s32.totalorder %s11, 1
    %p68 = por %p66, %p67
    %p69 = scmp.ne.s32.totalorder %s61, %s64
    %p70 = scmp.eq.s32.totalorder %s11, 0
    %p71 = por %p69, %p70
    %p72 = scmp.ne.s32.totalorder %s61, %s64
    %p73 = scmp.eq.s32.totalorder %s16, 1
    %p74 = por %p72, %p73
    %p75 = scmp.ne.s32.totalorder %s64, %s65
    %p76 = scmp.eq.s32.totalorder %s16, 0
    %p77 = por %p75, %p76
    %p78 = scmp.ne.s32.totalorder %s64, %s65
    %p79 = scmp.eq.s32.totalorder %s17, 1
    %p80 = por %p78, %p79
    %p82 = scmp.ne.s32.totalorder %s65, %s81
    %p83 = scmp.eq.s32.totalorder %s17, 0
    %p84 = por %p82, %p83
    %s86 = sadd.s32 %s85, 1
    %p89 = scmp.eq.s32.totalorder %s11, 1
    %p90 = scmp.ne.s32.totalorder %s85, %s87
    %p91 = scmp.eq.s32.totalorder %s11, 0
    %p92 = por %p90, %p91
    %p93 = scmp.ne.s32.totalorder %s85, %s87
    %p94 = scmp.eq.s32.totalorder %s16, 1
    %p95 = por %p93, %p94
    %p96 = scmp.ne.s32.totalorder %s87, %s88
    %p97 = scmp.eq.s32.totalorder %s16, 0
    %p98 = por %p96, %p97
    %p99 = scmp.ne.s32.totalorder %s87, %s88
    %p100 = scmp.eq.s32.totalorder %s17, 1
    %p101 = por %p99, %p100
    %p103 = scmp.ne.s32.totalorder %s88, %s102
    %p104 = scmp.eq.s32.totalorder %s17, 0
    %p105 = por %p103, %p104
    %s107 = sadd.s32 %s106, 1
    %p110 = scmp.eq.s32.totalorder %s11, 1
    %p111 = scmp.ne.s32.totalorder %s106, %s108
    %p112 = scmp.eq.s32.totalorder %s11, 0
    %p113 = por %p111, %p112
    %p114 = scmp.ne.s32.totalorder %s106, %s108
    %p115 = scmp.eq.s32.totalorder %s16, 1
    %p116 = por %p114, %p115
    %p117 = scmp.ne.s32.totalorder %s108, %s109
    %p118 = scmp.eq.s32.totalorder %s16, 0
    %p119 = por %p117, %p118
    %p120 = scmp.ne.s32.totalorder %s108, %s109
    %p121 = scmp.eq.s32.totalorder %s17, 1
    %p122 = por %p120, %p121
    %p124 = scmp.ne.s32.totalorder %s109, %s123
    %p125 = scmp.eq.s32.totalorder %s17, 0
    %p126 = por %p124, %p125
    %s128 = sadd.s32 %s127, 1
    %p131 = scmp.eq.s32.totalorder %s11, 1
    %p132 = scmp.ne.s32.totalorder %s127, %s129
    %p133 = scmp.eq.s32.totalorder %s11, 0
    %p134 = por %p132, %p133
    %p135 = scmp.ne.s32.totalorder %s127, %s129
    %p136 = scmp.eq.s32.totalorder %s16, 1
    %p137 = por %p135, %p136
    %p138 = scmp.ne.s32.totalorder %s129, %s130
    %p139 = scmp.eq.s32.totalorder %s16, 0
    %p140 = por %p138, %p139
    %p141 = scmp.ne.s32.totalorder %s129, %s130
    %p142 = scmp.eq.s32.totalorder %s17, 1
    %p143 = por %p141, %p142
    %p145 = scmp.ne.s32.totalorder %s130, %s144
    %p146 = scmp.eq.s32.totalorder %s17, 0
    %p147 = por %p145, %p146
    %s148 = ssub.s32 %s18, %s30
    %p149 = scmp.eq.s32.totalorder %s148, 0
    %s151 = sadd.s32 %s150, 1
    %s152 = scalar_select %p149, %s150, %s151
    %p155 = pneg %p149
    %p156 = scmp.eq.s32.totalorder %s11, 1
    %p157 = por %p155, %p156
    %p158 = scmp.ne.s32.totalorder %s150, %s153
    %p159 = scmp.eq.s32.totalorder %s11, 0
    %p160 = por %p158, %p159
    %p161 = scmp.ne.s32.totalorder %s150, %s153
    %p162 = scmp.eq.s32.totalorder %s16, 1
    %p163 = por %p161, %p162
    %p164 = scmp.ne.s32.totalorder %s153, %s154
    %p165 = scmp.eq.s32.totalorder %s16, 0
    %p166 = por %p164, %p165
    %p167 = scmp.ne.s32.totalorder %s153, %s154
    %p168 = scmp.eq.s32.totalorder %s17, 1
    %p169 = por %p167, %p168
    %p171 = scmp.ne.s32.totalorder %s154, %s170
    %p172 = scmp.eq.s32.totalorder %s17, 0
    %p173 = por %p171, %p172
    %p174 = scmp.le.s32.totalorder 1, %s11
    %p175 = scmp.lt.s32.totalorder %s11, 3
    %p176 = pnand %p174, %p175
    %p177 = pneg %p176
    // Predicated region
    $region9: #{forward.22} parent=5 // pred_check
      _
    $region10: #{forward.22} parent=5 // pred_check_branch
      %179 = sbr.rel (%p176) target = $region12
    $region11: #{forward.22} parent=5 // pred_region
      %s180 = ssub.s32 %s11, 1
      // Predicated region
      $region13: #{forward.22} parent=11 // pred_check
        %p181 = pneg %p77
      $region14: #{forward.22} parent=11 // pred_check_branch
        %183 = sbr.rel (%p181) target = $region16
      $region15: #{forward.22} parent=11 // pred_region
        %s184 = smul.u32 2, %s21
        %p185 = scmp.lt.s32.totalorder %s184, 1
        %s186 = scalar_select %p185, %s184, 1
        %s187 = smul.addr %s186, 4
        %s188 = scalar_lea.vmem %s1, %s187
        %s189 = smul.u32 2, %s21
      $region16: #{forward.22} parent=11 // pred_fallthru
        _
      // Predicated region
      $region17: #{forward.22} parent=11 // pred_check
        %p190 = pneg %p98
      $region18: #{forward.22} parent=11 // pred_check_branch
        %192 = sbr.rel (%p190) target = $region20
      $region19: #{forward.22} parent=11 // pred_region
        _
      $region20: #{forward.22} parent=11 // pred_fallthru
        _
      // Predicated region
      $region21: #{forward.22} parent=11 // pred_check
        %p193 = pneg %p119
      $region22: #{forward.22} parent=11 // pred_check_branch
        %195 = sbr.rel (%p193) target = $region24
      $region23: #{forward.22} parent=11 // pred_region
        _
      $region24: #{forward.22} parent=11 // pred_fallthru
        _
      // Predicated region
      $region25: #{forward.22} parent=11 // pred_check
        %p196 = pneg %p140
      $region26: #{forward.22} parent=11 // pred_check_branch
        %198 = sbr.rel (%p196) target = $region28
      $region27: #{forward.22} parent=11 // pred_region
        _
      $region28: #{forward.22} parent=11 // pred_fallthru
        _
    $region12: #{forward.22} parent=5 // pred_fallthru
      _
    %p199 = scmp.lt.s32.totalorder %s11, 2
    // Predicated region
    $region29: #{forward.22} parent=5 // pred_check
      %p200 = pneg %p199
    $region30: #{forward.22} parent=5 // pred_check_branch
      %202 = sbr.rel (%p200) target = $region32
    $region31: #{forward.22} parent=5 // pred_region
      // Predicated region
      $region33: #{forward.22} parent=31 // pred_check
        %p203 = pneg %p45
      $region34: #{forward.22} parent=31 // pred_check_branch
        %205 = sbr.rel (%p203) target = $region36
      $region35: #{forward.22} parent=31 // pred_region
        %s206 = smul.u32 8, %s18
        %p207 = scmp.lt.s32.totalorder %s206, 15
        %s208 = scalar_select %p207, %s206, 15
        %p209 = scmp.lt.s32.totalorder %s19, 0
        %s210 = scalar_select %p209, %s19, 0
        %s211 = sadd.s32 %s210, %s208
        %s212 = smul.addr %s211, 4
        %s213 = scalar_lea.vmem %s0, %s212
        %s214 = smul.u32 8, %s18
      $region36: #{forward.22} parent=31 // pred_fallthru
        _
    $region32: #{forward.22} parent=5 // pred_fallthru
      _
    %p215 = scmp.le.s32.totalorder 1, %s11
    %p216 = scmp.lt.s32.totalorder %s11, 3
    %p217 = pnand %p215, %p216
    %p218 = pneg %p217
    // Predicated region
    $region37: #{forward.22} parent=5 // pred_check
      _
    $region38: #{forward.22} parent=5 // pred_check_branch
      %220 = sbr.rel (%p217) target = $region40
    $region39: #{forward.22} parent=5 // pred_region
      %s221 = ssub.s32 %s11, 1
      %s222 = smul.u32 8, %s20
      %p223 = scmp.lt.s32.totalorder %s222, 15
      %s224 = scalar_select %p223, %s222, 15
      %p225 = scmp.lt.s32.totalorder %s21, 0
      %s226 = scalar_select %p225, %s21, 0
      %s227 = sadd.s32 %s226, %s224
      %s228 = smul.addr %s227, 4
      %s229 = scalar_lea.vmem %s0, %s228
      %p230 = pneg %p51
      %p231 = pneg %p48
      %s232 = smul.u32 2, %s21
      %p233 = scmp.lt.s32.totalorder %s232, 1
      %s234 = scalar_select %p233, %s232, 1
      %s235 = smul.addr %s234, 4
      %s236 = scalar_lea.vmem %s1, %s235
      %p237 = pneg %p77
      %p238 = pneg %p74
      %p239 = pneg %p98
      %p240 = pneg %p95
      %p241 = pneg %p119
      %p242 = pneg %p116
      %p243 = pneg %p140
      %p244 = pneg %p137
      %p245 = pneg %p166
      %p246 = pneg %p163
      %s247 = smul.u32 8, %s20
      %p248 = scmp.lt.s32.totalorder %s247, 15
      %s249 = scalar_select %p248, %s247, 15
      %s250 = smul.addr %s249, 4
      %s251 = scalar_lea.vmem %s5, %s250
      %s252 = smul.u32 8, %s20
      %p253 = scmp.lt.s32.totalorder %s252, 15
      %s254 = scalar_select %p253, %s252, 15
      %p255 = scmp.lt.s32.totalorder %s21, 0
      %s256 = scalar_select %p255, %s21, 0
      %s257 = sadd.s32 %s256, %s254
      %s258 = smul.addr %s257, 4
      %s259 = scalar_lea.vmem %s0, %s258
      %s260 = smul.u32 8, %s20
      %s261 = smul.u32 2, %s21
      %p262 = scmp.lt.s32.totalorder %s261, 1
      %s263 = scalar_select %p262, %s261, 1
      %s264 = smul.addr %s263, 4
      %s265 = scalar_lea.vmem %s1, %s264
      %s266 = smul.u32 2, %s21
      %s267 = smul.u32 8, %s20
      %p268 = scmp.lt.s32.totalorder %s267, 15
      %s269 = scalar_select %p268, %s267, 15
      %s270 = smul.addr %s269, 4
      %s271 = scalar_lea.vmem %s5, %s270
      %s272 = smul.u32 8, %s20
      %p274 = scmp.eq.s32.totalorder %s21, 0
      // Predicated region
      $region41: #{forward.22} parent=39 // pred_check
        %p275 = pneg %p274
      $region42: #{forward.22} parent=39 // pred_check_branch
        %277 = sbr.rel (%p275) target = $region44
      $region43: #{forward.22} parent=39 // pred_region
        %vm278 = vcmask 261120
        %279 = vst.msk [vmem:[#allocation2] sm:$0xff] %vm278, 0.0
        %280 = vst.msk [vmem:[#allocation2 + $0x8] sm:$0xff] %vm278, 0.0
        %281 = vst.msk [vmem:[#allocation2 + $0x10] sm:$0xff] %vm278, 0.0
        %282 = vst.msk [vmem:[#allocation2 + $0x18] sm:$0xff] %vm278, 0.0
        %283 = vst.msk [vmem:[#allocation2 + $0x20] sm:$0xff] %vm278, 0.0
        %284 = vst.msk [vmem:[#allocation2 + $0x28] sm:$0xff] %vm278, 0.0
        %285 = vst.msk [vmem:[#allocation2 + $0x30] sm:$0xff] %vm278, 0.0
        %286 = vst.msk [vmem:[#allocation2 + $0x38] sm:$0xff] %vm278, 0.0
      $region44: #{forward.22} parent=39 // pred_fallthru
        _
      %v287 = vld [vmem:[#allocation2] sm:$0xff]
      %v288 = vld [vmem:[#allocation2 + $0x8] sm:$0xff]
      %v289 = vld [vmem:[#allocation2 + $0x10] sm:$0xff]
      %v290 = vld [vmem:[#allocation2 + $0x18] sm:$0xff]
      %v291 = vld [vmem:[#allocation2 + $0x20] sm:$0xff]
      %v292 = vld [vmem:[#allocation2 + $0x28] sm:$0xff]
      %v293 = vld [vmem:[#allocation2 + $0x30] sm:$0xff]
      %v294 = vld [vmem:[#allocation2 + $0x38] sm:$0xff]
      %v295 = vld [vmem:[%s259] sm:$0xf]
      %v296 = vld [vmem:[%s259 + $0x4] sm:$0xf]
      %v297 = vld [vmem:[%s259 + $0x8] sm:$0xf]
      %v298 = vld [vmem:[%s259 + $0xc] sm:$0xf]
      %v299 = vld [vmem:[%s259 + $0x10] sm:$0xf]
      %v300 = vld [vmem:[%s259 + $0x14] sm:$0xf]
      %v301 = vld [vmem:[%s259 + $0x18] sm:$0xf]
      %v302 = vld [vmem:[%s259 + $0x1c] sm:$0xf]
      %v303 = vld [vmem:[%s265] sm:$0xf]
      %v304 = vld [vmem:[%s265 + $0x4] sm:$0x3]
      %v313 = vunpack.c.l.b16 %v295
      %v314 = vunpack.c.l.b16 %v296
      %v315 = vunpack.c.l.b16 %v297
      %v316 = vunpack.c.l.b16 %v298
      %v317 = vunpack.c.l.b16 %v299
      %v318 = vunpack.c.l.b16 %v300
      %v319 = vunpack.c.l.b16 %v301
      %v320 = vunpack.c.l.b16 %v302
      %v321 = vpack.c.b16 %v314, %v313
      %v322 = vpack.c.b16 %v316, %v315
      %v323 = vpack.c.b16 %v318, %v317
      %v324 = vpack.c.b16 %v320, %v319
      %v327 = vunpack.c.l.b16 %v303
      %v328 = vunpack.c.l.b16 %v304
      %v329 = vpack.c.b16 %v328, %v327
      %vm330 = vcmask 97280
      %v332 = vsel %vm330, %v321, 0
      %v335 = vsel %vm330, %v322, 0
      %v338 = vsel %vm330, %v323, 0
      %v341 = vsel %vm330, %v324, 0
      %vm343 = vcmask 1045504
      %v345 = vsel %vm343, %v329, 0
      %347 = vmatpush.bf16.msra.mxu0 0
      %348 = vmatpush.bf16.msra.mxu0 0
      %349 = vmatpush.bf16.msra.mxu0 0
      %350 = vmatpush.bf16.msra.mxu0 0
      %351 = vmatpush.bf16.msra.mxu0 0
      %352 = vmatpush.bf16.msra.mxu0 0
      %353 = vmatpush.bf16.msra.mxu0 0
      %354 = vmatpush.bf16.msra.mxu0 %v345
      %355 = vmatmul.bf16.gmra.mxu0 %v332
      %v356 = vpop.f32.mrf.mxu0
      %v357 = vadd.f32 0.0, %v356
      %v358 = vpop.f32.mrf.mxu0
      %v359 = vadd.f32 0.0, %v358
      %360 = vmatmul.bf16.gmra.mxu0 %v335
      %v361 = vpop.f32.mrf.mxu0
      %v362 = vadd.f32 0.0, %v361
      %v363 = vpop.f32.mrf.mxu0
      %v364 = vadd.f32 0.0, %v363
      %365 = vmatmul.bf16.gmra.mxu0 %v338
      %v366 = vpop.f32.mrf.mxu0
      %v367 = vadd.f32 0.0, %v366
      %v368 = vpop.f32.mrf.mxu0
      %v369 = vadd.f32 0.0, %v368
      %370 = vmatmul.bf16.gmra.mxu0 %v341
      %v371 = vpop.f32.mrf.mxu0
      %v372 = vadd.f32 0.0, %v371
      %v373 = vpop.f32.mrf.mxu0
      %v374 = vadd.f32 0.0, %v373
      %375 = vdwg.mxu0
      %v376 = vadd.f32 %v287, %v357
      %v377 = vadd.f32 %v288, %v359
      %v378 = vadd.f32 %v289, %v362
      %v379 = vadd.f32 %v290, %v364
      %v380 = vadd.f32 %v291, %v367
      %v381 = vadd.f32 %v292, %v369
      %v382 = vadd.f32 %v293, %v372
      %v383 = vadd.f32 %v294, %v374
      %vm384 = vcmask 261120
      %385 = vst.msk [vmem:[#allocation2] sm:$0xff] %vm384, %v376
      %386 = vst.msk [vmem:[#allocation2 + $0x8] sm:$0xff] %vm384, %v377
      %387 = vst.msk [vmem:[#allocation2 + $0x10] sm:$0xff] %vm384, %v378
      %388 = vst.msk [vmem:[#allocation2 + $0x18] sm:$0xff] %vm384, %v379
      %389 = vst.msk [vmem:[#allocation2 + $0x20] sm:$0xff] %vm384, %v380
      %390 = vst.msk [vmem:[#allocation2 + $0x28] sm:$0xff] %vm384, %v381
      %391 = vst.msk [vmem:[#allocation2 + $0x30] sm:$0xff] %vm384, %v382
      %392 = vst.msk [vmem:[#allocation2 + $0x38] sm:$0xff] %vm384, %v383
      // Predicated region
      $region45: #{forward.22} parent=39 // pred_check
        %p393 = pneg %p274
      $region46: #{forward.22} parent=39 // pred_check_branch
        %395 = sbr.rel (%p393) target = $region48
      $region47: #{forward.22} parent=39 // pred_region
        %v396 = vld [vmem:[#allocation2] sm:$0xff]
        %v397 = vld [vmem:[#allocation2 + $0x8] sm:$0xff]
        %v398 = vld [vmem:[#allocation2 + $0x10] sm:$0xff]
        %v399 = vld [vmem:[#allocation2 + $0x18] sm:$0xff]
        %v400 = vld [vmem:[#allocation2 + $0x20] sm:$0xff]
        %v401 = vld [vmem:[#allocation2 + $0x28] sm:$0xff]
        %v402 = vld [vmem:[#allocation2 + $0x30] sm:$0xff]
        %v403 = vld [vmem:[#allocation2 + $0x38] sm:$0xff]
        %v404 = vld [vmem:[%s2] sm:$0x1]
        %v406 = vperm.slane %v404, 0
        %v408 = vadd.f32 %v396, %v406
        %v409 = vadd.f32 %v397, %v406
        %v410 = vadd.f32 %v398, %v406
        %v411 = vadd.f32 %v399, %v406
        %v412 = vadd.f32 %v400, %v406
        %v413 = vadd.f32 %v401, %v406
        %v414 = vadd.f32 %v402, %v406
        %v415 = vadd.f32 %v403, %v406
        %v416 = vsel %vm384, %v408, 0.0
        %417 = vadd.xlane.f32.xlu0 %v416
        %v418 = vpop.xlane.xlu0 %417
        %v419 = vsel %vm384, %v409, 0.0
        %420 = vadd.xlane.f32.xlu0 %v419
        %v421 = vpop.xlane.xlu0 %420
        %v422 = vsel %vm384, %v410, 0.0
        %423 = vadd.xlane.f32.xlu0 %v422
        %v424 = vpop.xlane.xlu0 %423
        %v425 = vsel %vm384, %v411, 0.0
        %426 = vadd.xlane.f32.xlu0 %v425
        %v427 = vpop.xlane.xlu0 %426
        %v428 = vsel %vm384, %v412, 0.0
        %429 = vadd.xlane.f32.xlu0 %v428
        %v430 = vpop.xlane.xlu0 %429
        %v431 = vsel %vm384, %v413, 0.0
        %432 = vadd.xlane.f32.xlu0 %v431
        %v433 = vpop.xlane.xlu0 %432
        %v434 = vsel %vm384, %v414, 0.0
        %435 = vadd.xlane.f32.xlu0 %v434
        %v436 = vpop.xlane.xlu0 %435
        %v437 = vsel %vm384, %v415, 0.0
        %438 = vadd.xlane.f32.xlu0 %v437
        %v439 = vpop.xlane.xlu0 %438
        %v440 = vrcp.pop 32.0
        %v441 = vmul.f32 32.0, %v440
        %v442 = vsub.f32 1.0, %v441
        %v443 = vmul.f32 %v440, %v442
        %v444 = vadd.f32 %v440, %v443
        %vm445 = vweird.f32 %v440
        %v446 = vsel %vm445, %v440, %v444
        %v447 = vmul.f32 %v418, %v446
        %v448 = vmul.f32 %v421, %v446
        %v449 = vmul.f32 %v424, %v446
        %v450 = vmul.f32 %v427, %v446
        %v451 = vmul.f32 %v430, %v446
        %v452 = vmul.f32 %v433, %v446
        %v453 = vmul.f32 %v436, %v446
        %v454 = vmul.f32 %v439, %v446
        %v455 = vsub.f32 %v408, %v447
        %v456 = vsub.f32 %v409, %v448
        %v457 = vsub.f32 %v410, %v449
        %v458 = vsub.f32 %v411, %v450
        %v459 = vsub.f32 %v412, %v451
        %v460 = vsub.f32 %v413, %v452
        %v461 = vsub.f32 %v414, %v453
        %v462 = vsub.f32 %v415, %v454
        %v463 = vmul.f32 %v455, %v455
        %v464 = vmul.f32 %v456, %v456
        %v465 = vmul.f32 %v457, %v457
        %v466 = vmul.f32 %v458, %v458
        %v467 = vmul.f32 %v459, %v459
        %v468 = vmul.f32 %v460, %v460
        %v469 = vmul.f32 %v461, %v461
        %v470 = vmul.f32 %v462, %v462
        %v471 = vsel %vm384, %v463, 0.0
        %472 = vadd.xlane.f32.xlu0 %v471
        %v473 = vpop.xlane.xlu0 %472
        %v474 = vsel %vm384, %v464, 0.0
        %475 = vadd.xlane.f32.xlu0 %v474
        %v476 = vpop.xlane.xlu0 %475
        %v477 = vsel %vm384, %v465, 0.0
        %478 = vadd.xlane.f32.xlu0 %v477
        %v479 = vpop.xlane.xlu0 %478
        %v480 = vsel %vm384, %v466, 0.0
        %481 = vadd.xlane.f32.xlu0 %v480
        %v482 = vpop.xlane.xlu0 %481
        %v483 = vsel %vm384, %v467, 0.0
        %484 = vadd.xlane.f32.xlu0 %v483
        %v485 = vpop.xlane.xlu0 %484
        %v486 = vsel %vm384, %v468, 0.0
        %487 = vadd.xlane.f32.xlu0 %v486
        %v488 = vpop.xlane.xlu0 %487
        %v489 = vsel %vm384, %v469, 0.0
        %490 = vadd.xlane.f32.xlu0 %v489
        %v491 = vpop.xlane.xlu0 %490
        %v492 = vsel %vm384, %v470, 0.0
        %493 = vadd.xlane.f32.xlu0 %v492
        %v494 = vpop.xlane.xlu0 %493
        %v495 = vmul.f32 %v473, %v446
        %v496 = vmul.f32 %v476, %v446
        %v497 = vmul.f32 %v479, %v446
        %v498 = vmul.f32 %v482, %v446
        %v499 = vmul.f32 %v485, %v446
        %v500 = vmul.f32 %v488, %v446
        %v501 = vmul.f32 %v491, %v446
        %v502 = vmul.f32 %v494, %v446
        %v503 = vadd.f32 %v495, 1e-05
        %v504 = vadd.f32 %v496, 1e-05
        %v505 = vadd.f32 %v497, 1e-05
        %v506 = vadd.f32 %v498, 1e-05
        %v507 = vadd.f32 %v499, 1e-05
        %v508 = vadd.f32 %v500, 1e-05
        %v509 = vadd.f32 %v501, 1e-05
        %v510 = vadd.f32 %v502, 1e-05
        %v511 = vrsqrt.pop %v503
        %v512 = vmul.f32 %v511, %v503
        %v513 = vmul.f32 %v512, %v511
        %v514 = vmul.f32 0.5, %v513
        %v515 = vsub.f32 1.5, %v514
        %v516 = vmul.f32 %v511, %v515
        %vm517 = vweird.f32 %v503
        %vm518 = vweird.f32 %v511
        %vm519 = vmor %vm517, %vm518
        %v520 = vsel %vm519, %v511, %v516
        %v521 = vrsqrt.pop %v504
        %v522 = vmul.f32 %v521, %v504
        %v523 = vmul.f32 %v522, %v521
        %v524 = vmul.f32 0.5, %v523
        %v525 = vsub.f32 1.5, %v524
        %v526 = vmul.f32 %v521, %v525
        %vm527 = vweird.f32 %v504
        %vm528 = vweird.f32 %v521
        %vm529 = vmor %vm527, %vm528
        %v530 = vsel %vm529, %v521, %v526
        %v531 = vrsqrt.pop %v505
        %v532 = vmul.f32 %v531, %v505
        %v533 = vmul.f32 %v532, %v531
        %v534 = vmul.f32 0.5, %v533
        %v535 = vsub.f32 1.5, %v534
        %v536 = vmul.f32 %v531, %v535
        %vm537 = vweird.f32 %v505
        %vm538 = vweird.f32 %v531
        %vm539 = vmor %vm537, %vm538
        %v540 = vsel %vm539, %v531, %v536
        %v541 = vrsqrt.pop %v506
        %v542 = vmul.f32 %v541, %v506
        %v543 = vmul.f32 %v542, %v541
        %v544 = vmul.f32 0.5, %v543
        %v545 = vsub.f32 1.5, %v544
        %v546 = vmul.f32 %v541, %v545
        %vm547 = vweird.f32 %v506
        %vm548 = vweird.f32 %v541
        %vm549 = vmor %vm547, %vm548
        %v550 = vsel %vm549, %v541, %v546
        %v551 = vrsqrt.pop %v507
        %v552 = vmul.f32 %v551, %v507
        %v553 = vmul.f32 %v552, %v551
        %v554 = vmul.f32 0.5, %v553
        %v555 = vsub.f32 1.5, %v554
        %v556 = vmul.f32 %v551, %v555
        %vm557 = vweird.f32 %v507
        %vm558 = vweird.f32 %v551
        %vm559 = vmor %vm557, %vm558
        %v560 = vsel %vm559, %v551, %v556
        %v561 = vrsqrt.pop %v508
        %v562 = vmul.f32 %v561, %v508
        %v563 = vmul.f32 %v562, %v561
        %v564 = vmul.f32 0.5, %v563
        %v565 = vsub.f32 1.5, %v564
        %v566 = vmul.f32 %v561, %v565
        %vm567 = vweird.f32 %v508
        %vm568 = vweird.f32 %v561
        %vm569 = vmor %vm567, %vm568
        %v570 = vsel %vm569, %v561, %v566
        %v571 = vrsqrt.pop %v509
        %v572 = vmul.f32 %v571, %v509
        %v573 = vmul.f32 %v572, %v571
        %v574 = vmul.f32 0.5, %v573
        %v575 = vsub.f32 1.5, %v574
        %v576 = vmul.f32 %v571, %v575
        %vm577 = vweird.f32 %v509
        %vm578 = vweird.f32 %v571
        %vm579 = vmor %vm577, %vm578
        %v580 = vsel %vm579, %v571, %v576
        %v581 = vrsqrt.pop %v510
        %v582 = vmul.f32 %v581, %v510
        %v583 = vmul.f32 %v582, %v581
        %v584 = vmul.f32 0.5, %v583
        %v585 = vsub.f32 1.5, %v584
        %v586 = vmul.f32 %v581, %v585
        %vm587 = vweird.f32 %v510
        %vm588 = vweird.f32 %v581
        %vm589 = vmor %vm587, %vm588
        %v590 = vsel %vm589, %v581, %v586
        %v591 = vmul.f32 %v455, %v520
        %v592 = vmul.f32 %v456, %v530
        %v593 = vmul.f32 %v457, %v540
        %v594 = vmul.f32 %v458, %v550
        %v595 = vmul.f32 %v459, %v560
        %v596 = vmul.f32 %v460, %v570
        %v597 = vmul.f32 %v461, %v580
        %v598 = vmul.f32 %v462, %v590
        %v599 = vld [vmem:[%s3] sm:$0x1]
        %v601 = vperm.slane %v599, 0
        %v603 = vmul.f32 %v591, %v601
        %v604 = vmul.f32 %v592, %v601
        %v605 = vmul.f32 %v593, %v601
        %v606 = vmul.f32 %v594, %v601
        %v607 = vmul.f32 %v595, %v601
        %v608 = vmul.f32 %v596, %v601
        %v609 = vmul.f32 %v597, %v601
        %v610 = vmul.f32 %v598, %v601
        %v611 = vld [vmem:[%s4] sm:$0x1]
        %v613 = vperm.slane %v611, 0
        %v615 = vadd.f32 %v603, %v613
        %v616 = vadd.f32 %v604, %v613
        %v617 = vadd.f32 %v605, %v613
        %v618 = vadd.f32 %v606, %v613
        %v619 = vadd.f32 %v607, %v613
        %v620 = vadd.f32 %v608, %v613
        %v621 = vadd.f32 %v609, %v613
        %v622 = vadd.f32 %v610, %v613
        %v623 = vpack.c.bf16 %v615, %v615
        %v624 = vpack.c.bf16 %v616, %v616
        %v625 = vpack.c.bf16 %v617, %v617
        %v626 = vpack.c.bf16 %v618, %v618
        %v627 = vpack.c.bf16 %v619, %v619
        %v628 = vpack.c.bf16 %v620, %v620
        %v629 = vpack.c.bf16 %v621, %v621
        %v630 = vpack.c.bf16 %v622, %v622
        %vm631 = vcmask 257024
        %632 = vst.msk [vmem:[%s271] sm:$0xf] %vm631, %v623
        %633 = vst.msk [vmem:[%s271 + $0x4] sm:$0xf] %vm631, %v624
        %634 = vst.msk [vmem:[%s271 + $0x8] sm:$0xf] %vm631, %v625
        %635 = vst.msk [vmem:[%s271 + $0xc] sm:$0xf] %vm631, %v626
        %636 = vst.msk [vmem:[%s271 + $0x10] sm:$0xf] %vm631, %v627
        %637 = vst.msk [vmem:[%s271 + $0x14] sm:$0xf] %vm631, %v628
        %638 = vst.msk [vmem:[%s271 + $0x18] sm:$0xf] %vm631, %v629
        %639 = vst.msk [vmem:[%s271 + $0x1c] sm:$0xf] %vm631, %v630
      $region48: #{forward.22} parent=39 // pred_fallthru
        _
      %s640 = smul.u32 8, %s20
      %p641 = scmp.lt.s32.totalorder %s640, 15
      %s642 = scalar_select %p641, %s640, 15
      %s643 = smul.addr %s642, 4
      %s644 = scalar_lea.vmem %s5, %s643
      // Predicated region
      $region49: #{forward.22} parent=39 // pred_check
        %p645 = pneg %p163
      $region50: #{forward.22} parent=39 // pred_check_branch
        %647 = sbr.rel (%p645) target = $region52
      $region51: #{forward.22} parent=39 // pred_region
        %s648 = smul.u32 8, %s20
      $region52: #{forward.22} parent=39 // pred_fallthru
        _
    $region40: #{forward.22} parent=5 // pred_fallthru
      _
    %p649 = scmp.le.s32.totalorder 2, %s11
    // Predicated region
    $region53: #{forward.22} parent=5 // pred_check
      %p650 = pneg %p649
    $region54: #{forward.22} parent=5 // pred_check_branch
      %652 = sbr.rel (%p650) target = $region56
    $region55: #{forward.22} parent=5 // pred_region
      %s653 = ssub.s32 %s11, 2
      // Predicated region
      $region57: #{forward.22} parent=55 // pred_check
        %p654 = pneg %p169
      $region58: #{forward.22} parent=55 // pred_check_branch
        %656 = sbr.rel (%p654) target = $region60
      $region59: #{forward.22} parent=55 // pred_region
        %s657 = smul.u32 8, %s22
        %p658 = scmp.lt.s32.totalorder %s657, 15
        %s659 = scalar_select %p658, %s657, 15
        %s660 = smul.addr %s659, 4
        %s661 = scalar_lea.vmem %s5, %s660
      $region60: #{forward.22} parent=55 // pred_fallthru
        _
    $region56: #{forward.22} parent=5 // pred_fallthru
      _
  $region6: #{forward.22} parent=0 // loop_footer
    %s15 = sadd.s32 1, %s11
  $region7: #{forward.22} parent=0 // loop_footer_branch
    %10 = sbr.rel target = $region3
  $region8: #{forward.22} parent=0 // loop_exit
    _

// kernel: forward.24
$region0: #{forward.24}
  #allocation0 [shape = 'u32[]', space=smem, size = 0x4, offset = 0x4, fixed_abs, tag = 'smem constant byte address 0x4 - core index']
  #allocation1 [shape = 'u32[72,128]{1,0:T(1,128)}', space=vmem, size = 0x9000, scoped, tag = 'internal scratch']
  %s0 = inlined_call_operand.vmem [shape: f32[1,2], index: 0, kind: input, shape index: {}]
  %s1 = inlined_call_operand.vmem [shape: bf16[128,96], index: 1, kind: input, shape index: {}]
  %s2 = inlined_call_operand.vmem [shape: f32[2,16,16], index: 2, kind: input, shape index: {}]
  %s3 = inlined_call_operand.vmem [shape: bf16[128,32], index: 3, kind: output, shape index: {}]
  %s4 = sld [smem:[#allocation0]]
  $region49: #{forward.24} parent=0
    _
  %s6 = ssub.s32 1, %s4
  %s7 = scalar_select 0, %s6, %s4
  $region1: #{forward.24} parent=0
    #allocation2 [shape = 'u8[512]{0}', space=smem, size = 0x200, scoped, tag = 'input window, operand 0, single buffered']
    #allocation3 [shape = 's32[2]{0}', space=sflag, size = 0x8, scoped, tag = 'scoped memory for forward.24']
    %8 = vsyncpa [#allocation3], 0
    loop: start=0, step=1, limit=10
    $region2: #{forward.24} parent=1 // loop_pre_header
      _
    $region3: #{forward.24} parent=1 // loop_header
      %s10 = sphi 0, %s14
      %p11 = scmp.ge.s32.totalorder %s10, 10
      %s17 = sphi 0, %s29
      %s18 = sphi 0, %s25
      %s19 = sphi 0, %s17
      %s20 = sphi 0, %s18
      %s21 = sphi 0, %s19
      %s22 = sphi 0, %s20
      %s30 = sphi 0, %s30
      %s32 = sphi 0, %s30
      %s33 = sphi 0, %s32
      %s47 = sphi 0, %s33
      %s57 = sphi 0, %s59
      %s60 = sphi 0, %s57
      %s61 = sphi 0, %s60
      %s77 = sphi 0, %s61
      %s81 = sphi 0, %s81
      %s83 = sphi 0, %s81
      %s84 = sphi 0, %s83
      %s98 = sphi 0, %s84
      %s108 = sphi 0, %s110
      %s111 = sphi 0, %s108
      %s112 = sphi 0, %s111
      %s128 = sphi 0, %s112
    $region4: #{forward.24} parent=1 // loop_header_branch
      %13 = sbr.rel (%p11) target = $region8
    $region5: #{forward.24} parent=1 // loop_body
      %s15 = ssub.s32 %s10, 1
      %s16 = ssub.s32 %s10, 2
      %s23 = sadd.s32 1, %s18
      %p24 = scmp.ge.s32.totalorder %s23, 2
      %s25 = scalar_select %p24, 0, %s23
      %s26 = sadd.s32 1, %s17
      %s27 = scalar_select %p24, %s26, %s17
      %p28 = scmp.ge.s32.totalorder %s27, 4
      %s29 = scalar_select %p28, 0, %s27
      %s31 = sadd.s32 %s30, 1
      %p34 = scmp.eq.s32.totalorder %s10, 7
      %p35 = scmp.ne.s32.totalorder %s30, %s32
      %p36 = scmp.eq.s32.totalorder %s10, 0
      %p37 = por %p35, %p36
      %p38 = scmp.ne.s32.totalorder %s30, %s32
      %p39 = scmp.eq.s32.totalorder %s15, 7
      %p40 = por %p38, %p39
      %p41 = scmp.ne.s32.totalorder %s32, %s33
      %p42 = scmp.eq.s32.totalorder %s15, 0
      %p43 = por %p41, %p42
      %p44 = scmp.ne.s32.totalorder %s32, %s33
      %p45 = scmp.eq.s32.totalorder %s16, 7
      %p46 = por %p44, %p45
      %p48 = scmp.ne.s32.totalorder %s33, %s47
      %p49 = scmp.eq.s32.totalorder %s16, 0
      %p50 = por %p48, %p49
      %s51 = smul.u32 %s18, 4
      %s52 = sadd.s32 %s51, %s17
      %s53 = smul.u32 %s25, 4
      %s54 = sadd.s32 %s53, %s29
      %s55 = ssub.s32 %s52, %s54
      %p56 = scmp.eq.s32.totalorder %s55, 0
      %s58 = sadd.s32 %s57, 1
      %s59 = scalar_select %p56, %s57, %s58
      %p62 = pneg %p56
      %p63 = scmp.eq.s32.totalorder %s10, 7
      %p64 = por %p62, %p63
      %p65 = scmp.ne.s32.totalorder %s57, %s60
      %p66 = scmp.eq.s32.totalorder %s10, 0
      %p67 = por %p65, %p66
      %p68 = scmp.ne.s32.totalorder %s57, %s60
      %p69 = scmp.eq.s32.totalorder %s15, 7
      %p70 = por %p68, %p69
      %p71 = scmp.ne.s32.totalorder %s60, %s61
      %p72 = scmp.eq.s32.totalorder %s15, 0
      %p73 = por %p71, %p72
      %p74 = scmp.ne.s32.totalorder %s60, %s61
      %p75 = scmp.eq.s32.totalorder %s16, 7
      %p76 = por %p74, %p75
      %p78 = scmp.ne.s32.totalorder %s61, %s77
      %p79 = scmp.eq.s32.totalorder %s16, 0
      %p80 = por %p78, %p79
      %s82 = sadd.s32 %s81, 1
      %p85 = scmp.eq.s32.totalorder %s10, 7
      %p86 = scmp.ne.s32.totalorder %s81, %s83
      %p87 = scmp.eq.s32.totalorder %s10, 0
      %p88 = por %p86, %p87
      %p89 = scmp.ne.s32.totalorder %s81, %s83
      %p90 = scmp.eq.s32.totalorder %s15, 7
      %p91 = por %p89, %p90
      %p92 = scmp.ne.s32.totalorder %s83, %s84
      %p93 = scmp.eq.s32.totalorder %s15, 0
      %p94 = por %p92, %p93
      %p95 = scmp.ne.s32.totalorder %s83, %s84
      %p96 = scmp.eq.s32.totalorder %s16, 7
      %p97 = por %p95, %p96
      %p99 = scmp.ne.s32.totalorder %s84, %s98
      %p100 = scmp.eq.s32.totalorder %s16, 0
      %p101 = por %p99, %p100
      %s102 = smul.u32 %s18, 4
      %s103 = sadd.s32 %s102, %s17
      %s104 = smul.u32 %s25, 4
      %s105 = sadd.s32 %s104, %s29
      %s106 = ssub.s32 %s103, %s105
      %p107 = scmp.eq.s32.totalorder %s106, 0
      %s109 = sadd.s32 %s108, 1
      %s110 = scalar_select %p107, %s108, %s109
      %p113 = pneg %p107
      %p114 = scmp.eq.s32.totalorder %s10, 7
      %p115 = por %p113, %p114
      %p116 = scmp.ne.s32.totalorder %s108, %s111
      %p117 = scmp.eq.s32.totalorder %s10, 0
      %p118 = por %p116, %p117
      %p119 = scmp.ne.s32.totalorder %s108, %s111
      %p120 = scmp.eq.s32.totalorder %s15, 7
      %p121 = por %p119, %p120
      %p122 = scmp.ne.s32.totalorder %s111, %s112
      %p123 = scmp.eq.s32.totalorder %s15, 0
      %p124 = por %p122, %p123
      %p125 = scmp.ne.s32.totalorder %s111, %s112
      %p126 = scmp.eq.s32.totalorder %s16, 7
      %p127 = por %p125, %p126
      %p129 = scmp.ne.s32.totalorder %s112, %s128
      %p130 = scmp.eq.s32.totalorder %s16, 0
      %p131 = por %p129, %p130
      %p132 = scmp.le.s32.totalorder 1, %s10
      %p133 = scmp.lt.s32.totalorder %s10, 9
      %p134 = pnand %p132, %p133
      %p135 = pneg %p134
      // Predicated region
      $region9: #{forward.24} parent=5 // pred_check
        _
      $region10: #{forward.24} parent=5 // pred_check_branch
        %137 = sbr.rel (%p134) target = $region12
      $region11: #{forward.24} parent=5 // pred_region
        %s138 = ssub.s32 %s10, 1
        // Predicated region
        $region13: #{forward.24} parent=11 // pred_check
          %p139 = pneg %p43
        $region14: #{forward.24} parent=11 // pred_check_branch
          %141 = sbr.rel (%p139) target = $region16
        $region15: #{forward.24} parent=11 // pred_region
          %143 = vsyncadd [#allocation3], 0
          %s145 = sshll.u32 %s0, 4
          %s146 = int_to_ptr.vmem [resolvable:$true] %s145
          %148 = dma.vmem_to_smem %s146, 16, [#allocation2], [#allocation3]
        $region16: #{forward.24} parent=11 // pred_fallthru
          _
        // Predicated region
        $region17: #{forward.24} parent=11 // pred_check
          %p149 = pneg %p94
        $region18: #{forward.24} parent=11 // pred_check_branch
          %151 = sbr.rel (%p149) target = $region20
        $region19: #{forward.24} parent=11 // pred_region
          _
        $region20: #{forward.24} parent=11 // pred_fallthru
          _
      $region12: #{forward.24} parent=5 // pred_fallthru
        _
      %p152 = scmp.lt.s32.totalorder %s10, 8
      // Predicated region
      $region21: #{forward.24} parent=5 // pred_check
        %p153 = pneg %p152
      $region22: #{forward.24} parent=5 // pred_check_branch
        %155 = sbr.rel (%p153) target = $region24
      $region23: #{forward.24} parent=5 // pred_region
        // Predicated region
        $region25: #{forward.24} parent=23 // pred_check
          %p156 = pneg %p67
        $region26: #{forward.24} parent=23 // pred_check_branch
          %158 = sbr.rel (%p156) target = $region28
        $region27: #{forward.24} parent=23 // pred_region
          %s159 = smul.u32 %s18, 4
          %s160 = sadd.s32 %s159, %s17
          %s161 = smul.u32 2, %s160
          %p162 = scmp.lt.s32.totalorder %s161, 15
          %s163 = scalar_select %p162, %s161, 15
          %s164 = smul.addr %s163, 4
          %s165 = scalar_lea.vmem %s1, %s164
          %s166 = smul.u32 %s18, 4
          %s167 = sadd.s32 %s166, %s17
          %s168 = smul.u32 2, %s167
        $region28: #{forward.24} parent=23 // pred_fallthru
          _
      $region24: #{forward.24} parent=5 // pred_fallthru
        _
      %p169 = scmp.le.s32.totalorder 1, %s10
      %p170 = scmp.lt.s32.totalorder %s10, 9
      %p171 = pnand %p169, %p170
      %p172 = pneg %p171
      // Predicated region
      $region29: #{forward.24} parent=5 // pred_check
        _
      $region30: #{forward.24} parent=5 // pred_check_branch
        %174 = sbr.rel (%p171) target = $region32
      $region31: #{forward.24} parent=5 // pred_region
        %s175 = ssub.s32 %s10, 1
        // Predicated region
        $region33: #{forward.24} parent=31 // pred_check
          %p176 = pneg %p43
        $region34: #{forward.24} parent=31 // pred_check_branch
          %178 = sbr.rel (%p176) target = $region36
        $region35: #{forward.24} parent=31 // pred_region
          %180 = dma.done [#allocation3], 16
        $region36: #{forward.24} parent=31 // pred_fallthru
          _
        %181 = sfence
        %p182 = pneg %p43
        %p183 = pneg %p40
        %s184 = smul.u32 %s20, 4
        %s185 = sadd.s32 %s184, %s19
        %s186 = smul.u32 2, %s185
        %p187 = scmp.lt.s32.totalorder %s186, 15
        %s188 = scalar_select %p187, %s186, 15
        %s189 = smul.addr %s188, 4
        %s190 = scalar_lea.vmem %s1, %s189
        %p191 = pneg %p73
        %p192 = pneg %p70
        %p193 = pneg %p94
        %p194 = pneg %p91
        %p195 = pneg %p124
        %p196 = pneg %p121
        %s197 = smul.u32 %s20, 4
        %s198 = sadd.s32 %s197, %s19
        %s199 = smul.u32 2, %s198
        %p200 = scmp.lt.s32.totalorder %s199, 15
        %s201 = scalar_select %p200, %s199, 15
        %s202 = smul.addr %s201, 4
        %s203 = scalar_lea.vmem %s3, %s202
        %s204 = smul.u32 %s20, 4
        %s205 = sadd.s32 %s204, %s19
        %s206 = smul.u32 2, %s205
        %p207 = scmp.lt.s32.totalorder %s206, 15
        %s208 = scalar_select %p207, %s206, 15
        %s209 = smul.addr %s208, 4
        %s210 = scalar_lea.vmem %s1, %s209
        %s211 = smul.u32 %s20, 4
        %s212 = sadd.s32 %s211, %s19
        %s213 = smul.u32 2, %s212
        %s214 = smul.u32 %s20, 4
        %s215 = sadd.s32 %s214, %s19
        %s216 = smul.u32 2, %s215
        %p217 = scmp.lt.s32.totalorder %s216, 15
        %s218 = scalar_select %p217, %s216, 15
        %s219 = smul.addr %s218, 4
        %s220 = scalar_lea.vmem %s3, %s219
        %s221 = smul.u32 %s20, 4
        %s222 = sadd.s32 %s221, %s19
        %s223 = smul.u32 2, %s222
        %v225 = vld [vmem:[%s210] sm:$0xf]
        %v226 = vld [vmem:[%s210 + $0x4] sm:$0xf]
        %v227 = vunpack.c.l.bf16 %v225
        %v228 = vunpack.c.l.bf16 %v226
        %v229 = vmul.f32 %v227, %v227
        %v230 = vmul.f32 %v228, %v228
        %vm231 = vcmask 130048
        %v232 = vsel %vm231, %v229, 0.0
        %233 = vadd.xlane.f32.xlu0 %v232
        %v234 = vpop.xlane.xlu0 %233
        %v235 = vsel %vm231, %v230, 0.0
        %236 = vadd.xlane.f32.xlu0 %v235
        %v237 = vpop.xlane.xlu0 %236
        %v238 = vadd.f32 %v234, 1e-12
        %v239 = vadd.f32 %v237, 1e-12
        %v240 = vrsqrt.pop %v238
        %v241 = vmul.f32 %v240, %v238
        %v242 = vmul.f32 %v241, %v240
        %v243 = vmul.f32 0.5, %v242
        %v244 = vsub.f32 1.5, %v243
        %v245 = vmul.f32 %v240, %v244
        %vm246 = vweird.f32 %v238
        %vm247 = vweird.f32 %v240
        %vm248 = vmor %vm246, %vm247
        %v249 = vsel %vm248, %v240, %v245
        %v250 = vrsqrt.pop %v239
        %v251 = vmul.f32 %v250, %v239
        %v252 = vmul.f32 %v251, %v250
        %v253 = vmul.f32 0.5, %v252
        %v254 = vsub.f32 1.5, %v253
        %v255 = vmul.f32 %v250, %v254
        %vm256 = vweird.f32 %v239
        %vm257 = vweird.f32 %v250
        %vm258 = vmor %vm256, %vm257
        %v259 = vsel %vm258, %v250, %v255
        %v260 = vmul.f32 %v227, %v249
        %v261 = vmul.f32 %v228, %v259
        %264 = vrot.lane.b32.xlu0 %v229, 96
        %v265 = vpop.permute.xlu0 %264
        %266 = vrot.lane.b32.xlu0 %v230, 96
        %v267 = vpop.permute.xlu0 %266
        %v270 = vsel %vm231, %v265, 0.0
        %271 = vadd.xlane.f32.xlu0 %v270
        %v272 = vpop.xlane.xlu0 %271
        %v273 = vsel %vm231, %v267, 0.0
        %274 = vadd.xlane.f32.xlu0 %v273
        %v275 = vpop.xlane.xlu0 %274
        %v276 = vadd.f32 %v272, 1e-12
        %v277 = vadd.f32 %v275, 1e-12
        %v278 = vrsqrt.pop %v276
        %v279 = vmul.f32 %v278, %v276
        %v280 = vmul.f32 %v279, %v278
        %v281 = vmul.f32 0.5, %v280
        %v282 = vsub.f32 1.5, %v281
        %v283 = vmul.f32 %v278, %v282
        %vm284 = vweird.f32 %v276
        %vm285 = vweird.f32 %v278
        %vm286 = vmor %vm284, %vm285
        %v287 = vsel %vm286, %v278, %v283
        %v288 = vrsqrt.pop %v277
        %v289 = vmul.f32 %v288, %v277
        %v290 = vmul.f32 %v289, %v288
        %v291 = vmul.f32 0.5, %v290
        %v292 = vsub.f32 1.5, %v291
        %v293 = vmul.f32 %v288, %v292
        %vm294 = vweird.f32 %v277
        %vm295 = vweird.f32 %v288
        %vm296 = vmor %vm294, %vm295
        %v297 = vsel %vm296, %v288, %v293
        %v298 = vmul.f32 %v227, %v287
        %v299 = vmul.f32 %v228, %v297
        %v300 = vpack.c.bf16 %v261, %v260
        %v301 = vpack.c.bf16 %v299, %v298
        %303 = vrot.lane.b32.xlu0 %v301, 96
        %v304 = vpop.permute.xlu0 %303
        %v306 = vsel %vm231, %v300, 0
        %v309 = vsel %vm231, %v304, 0
        %311 = vmatpush.bf16.xpose.msra.mxu0 0
        %312 = vmatpush.bf16.xpose.msra.mxu0 0
        %313 = vmatpush.bf16.xpose.msra.mxu0 0
        %314 = vmatpush.bf16.xpose.msra.mxu0 0
        %315 = vmatpush.bf16.xpose.msra.mxu0 0
        %316 = vmatpush.bf16.xpose.msra.mxu0 0
        %317 = vmatpush.bf16.xpose.msra.mxu0 0
        %318 = vmatpush.bf16.xpose.msra.mxu0 %v309
        %319 = vmatmul.bf16.gmra.mxu0 %v306
        %v320 = vpop.f32.mrf.mxu0
        %v321 = vadd.f32 0.0, %v320
        %v322 = vpop.f32.mrf.mxu0
        %v323 = vadd.f32 0.0, %v322
        %324 = vdwg.mxu0
        %s325 = sld [smem:[#allocation2]]
        %v326 = vstv %s325
        %v327 = vmul.f32 %v321, %v326
        %v328 = vmul.f32 %v323, %v326
        %v329 = vld [vmem:[%s2] sm:$0xff]
        %v330 = vld [vmem:[%s2 + $0x8] sm:$0xff]
        %v331 = vadd.f32 %v327, %v329
        %v332 = vadd.f32 %v328, %v330
        %v333 = vsel %vm231, %v331, -inf
        %334 = vmax.xlane.f32.xlu0 %v333
        %v335 = vpop.xlane.xlu0 %334
        %v336 = vsel %vm231, %v332, -inf
        %337 = vmax.xlane.f32.xlu0 %v336
        %v338 = vpop.xlane.xlu0 %337
        %v339 = vsub.f32 %v331, %v335
        %v340 = vsub.f32 %v332, %v338
        %v341 = vmul.f32 %v339, 1.442695
        %v342 = vpow.pop %v341
        %v343 = vmul.f32 %v340, 1.442695
        %v344 = vpow.pop %v343
        %v345 = vsel %vm231, %v342, 0.0
        %346 = vadd.xlane.f32.xlu0 %v345
        %v347 = vpop.xlane.xlu0 %346
        %v348 = vsel %vm231, %v344, 0.0
        %349 = vadd.xlane.f32.xlu0 %v348
        %v350 = vpop.xlane.xlu0 %349
        %v351 = vrcp.pop %v347
        %v352 = vrcp.pop %v350
        %v353 = vmul.f32 %v342, %v351
        %v354 = vmul.f32 %v344, %v352
        %v355 = vpack.c.bf16 %v354, %v353
        %v358 = vunpack.c.l.b16 %v225
        %v359 = vunpack.c.l.b16 %v226
        %v360 = vpack.c.b16 %v359, %v358
        %361 = vrot.lane.b32.xlu0 %v360, 64
        %v362 = vpop.permute.xlu0 %361
        %v365 = vsel %vm231, %v355, 0
        %367 = vmatpush.bf16.msra.mxu0 0
        %368 = vmatpush.bf16.msra.mxu0 0
        %369 = vmatpush.bf16.msra.mxu0 0
        %370 = vmatpush.bf16.msra.mxu0 0
        %371 = vmatpush.bf16.msra.mxu0 0
        %372 = vmatpush.bf16.msra.mxu0 0
        %373 = vmatpush.bf16.msra.mxu0 0
        %374 = vmatpush.bf16.msra.mxu0 %v362
        %375 = vmatmul.bf16.gmra.mxu0 %v365
        %v376 = vpop.f32.mrf.mxu0
        %v377 = vadd.f32 0.0, %v376
        %v378 = vpop.f32.mrf.mxu0
        %v379 = vadd.f32 0.0, %v378
        %380 = vdwg.mxu0
        %381 = vrot.lane.b32.xlu0 %v229, 112
        %v382 = vpop.permute.xlu0 %381
        %383 = vrot.lane.b32.xlu0 %v230, 112
        %v384 = vpop.permute.xlu0 %383
        %v387 = vsel %vm231, %v382, 0.0
        %388 = vadd.xlane.f32.xlu0 %v387
        %v389 = vpop.xlane.xlu0 %388
        %v390 = vsel %vm231, %v384, 0.0
        %391 = vadd.xlane.f32.xlu0 %v390
        %v392 = vpop.xlane.xlu0 %391
        %v393 = vadd.f32 %v389, 1e-12
        %v394 = vadd.f32 %v392, 1e-12
        %v395 = vrsqrt.pop %v393
        %v396 = vmul.f32 %v395, %v393
        %v397 = vmul.f32 %v396, %v395
        %v398 = vmul.f32 0.5, %v397
        %v399 = vsub.f32 1.5, %v398
        %v400 = vmul.f32 %v395, %v399
        %vm401 = vweird.f32 %v393
        %vm402 = vweird.f32 %v395
        %vm403 = vmor %vm401, %vm402
        %v404 = vsel %vm403, %v395, %v400
        %v405 = vrsqrt.pop %v394
        %v406 = vmul.f32 %v405, %v394
        %v407 = vmul.f32 %v406, %v405
        %v408 = vmul.f32 0.5, %v407
        %v409 = vsub.f32 1.5, %v408
        %v410 = vmul.f32 %v405, %v409
        %vm411 = vweird.f32 %v394
        %vm412 = vweird.f32 %v405
        %vm413 = vmor %vm411, %vm412
        %v414 = vsel %vm413, %v405, %v410
        %v415 = vmul.f32 %v227, %v404
        %v416 = vmul.f32 %v228, %v414
        %417 = vrot.lane.b32.xlu0 %v229, 80
        %v418 = vpop.permute.xlu0 %417
        %419 = vrot.lane.b32.xlu0 %v230, 80
        %v420 = vpop.permute.xlu0 %419
        %v423 = vsel %vm231, %v418, 0.0
        %424 = vadd.xlane.f32.xlu0 %v423
        %v425 = vpop.xlane.xlu0 %424
        %v426 = vsel %vm231, %v420, 0.0
        %427 = vadd.xlane.f32.xlu0 %v426
        %v428 = vpop.xlane.xlu0 %427
        %v429 = vadd.f32 %v425, 1e-12
        %v430 = vadd.f32 %v428, 1e-12
        %v431 = vrsqrt.pop %v429
        %v432 = vmul.f32 %v431, %v429
        %v433 = vmul.f32 %v432, %v431
        %v434 = vmul.f32 0.5, %v433
        %v435 = vsub.f32 1.5, %v434
        %v436 = vmul.f32 %v431, %v435
        %vm437 = vweird.f32 %v429
        %vm438 = vweird.f32 %v431
        %vm439 = vmor %vm437, %vm438
        %v440 = vsel %vm439, %v431, %v436
        %v441 = vrsqrt.pop %v430
        %v442 = vmul.f32 %v441, %v430
        %v443 = vmul.f32 %v442, %v441
        %v444 = vmul.f32 0.5, %v443
        %v445 = vsub.f32 1.5, %v444
        %v446 = vmul.f32 %v441, %v445
        %vm447 = vweird.f32 %v430
        %vm448 = vweird.f32 %v441
        %vm449 = vmor %vm447, %vm448
        %v450 = vsel %vm449, %v441, %v446
        %v451 = vmul.f32 %v227, %v440
        %v452 = vmul.f32 %v228, %v450
        %v453 = vpack.c.bf16 %v416, %v415
        %v454 = vpack.c.bf16 %v452, %v451
        %456 = vrot.lane.b32.xlu0 %v453, 112
        %v457 = vpop.permute.xlu0 %456
        %459 = vrot.lane.b32.xlu0 %v454, 80
        %v460 = vpop.permute.xlu0 %459
        %v462 = vsel %vm231, %v457, 0
        %v465 = vsel %vm231, %v460, 0
        %467 = vmatpush.bf16.xpose.msra.mxu0 0
        %468 = vmatpush.bf16.xpose.msra.mxu0 0
        %469 = vmatpush.bf16.xpose.msra.mxu0 0
        %470 = vmatpush.bf16.xpose.msra.mxu0 0
        %471 = vmatpush.bf16.xpose.msra.mxu0 0
        %472 = vmatpush.bf16.xpose.msra.mxu0 0
        %473 = vmatpush.bf16.xpose.msra.mxu0 0
        %474 = vmatpush.bf16.xpose.msra.mxu0 %v465
        %475 = vmatmul.bf16.gmra.mxu0 %v462
        %v476 = vpop.f32.mrf.mxu0
        %v477 = vadd.f32 0.0, %v476
        %v478 = vpop.f32.mrf.mxu0
        %v479 = vadd.f32 0.0, %v478
        %480 = vdwg.mxu0
        %s481 = sld [smem:[#allocation2 + $0x1]]
        %v482 = vstv %s481
        %v483 = vmul.f32 %v477, %v482
        %v484 = vmul.f32 %v479, %v482
        %s485 = scalar_lea.vmem %s2, 16
        %v486 = vld [vmem:[%s485] sm:$0xff]
        %v487 = vld [vmem:[%s485 + $0x8] sm:$0xff]
        %v488 = vadd.f32 %v483, %v486
        %v489 = vadd.f32 %v484, %v487
        %v490 = vsel %vm231, %v488, -inf
        %491 = vmax.xlane.f32.xlu0 %v490
        %v492 = vpop.xlane.xlu0 %491
        %v493 = vsel %vm231, %v489, -inf
        %494 = vmax.xlane.f32.xlu0 %v493
        %v495 = vpop.xlane.xlu0 %494
        %v496 = vsub.f32 %v488, %v492
        %v497 = vsub.f32 %v489, %v495
        %v498 = vmul.f32 %v496, 1.442695
        %v499 = vpow.pop %v498
        %v500 = vmul.f32 %v497, 1.442695
        %v501 = vpow.pop %v500
        %v502 = vsel %vm231, %v499, 0.0
        %503 = vadd.xlane.f32.xlu0 %v502
        %v504 = vpop.xlane.xlu0 %503
        %v505 = vsel %vm231, %v501, 0.0
        %506 = vadd.xlane.f32.xlu0 %v505
        %v507 = vpop.xlane.xlu0 %506
        %v508 = vrcp.pop %v504
        %v509 = vrcp.pop %v507
        %v510 = vmul.f32 %v499, %v508
        %v511 = vmul.f32 %v501, %v509
        %v512 = vpack.c.bf16 %v511, %v510
        %513 = vrot.lane.b32.xlu0 %v360, 48
        %v514 = vpop.permute.xlu0 %513
        %v517 = vsel %vm231, %v512, 0
        %519 = vmatpush.bf16.msra.mxu0 0
        %520 = vmatpush.bf16.msra.mxu0 0
        %521 = vmatpush.bf16.msra.mxu0 0
        %522 = vmatpush.bf16.msra.mxu0 0
        %523 = vmatpush.bf16.msra.mxu0 0
        %524 = vmatpush.bf16.msra.mxu0 0
        %525 = vmatpush.bf16.msra.mxu0 0
        %526 = vmatpush.bf16.msra.mxu0 %v514
        %527 = vmatmul.bf16.gmra.mxu0 %v517
        %v528 = vpop.f32.mrf.mxu0
        %v529 = vadd.f32 0.0, %v528
        %v530 = vpop.f32.mrf.mxu0
        %v531 = vadd.f32 0.0, %v530
        %532 = vdwg.mxu0
        %535 = vrot.lane.b32.xlu0 %v529, 16
        %v536 = vpop.permute.xlu0 %535
        %537 = vrot.lane.b32.xlu0 %v531, 16
        %v538 = vpop.permute.xlu0 %537
        %v541 = vsel %vm231, %v377, %v536
        %v542 = vsel %vm231, %v379, %v538
        %v543 = vpack.c.bf16 %v541, %v541
        %v544 = vpack.c.bf16 %v542, %v542
        %vm545 = vcmask 257024
        %546 = vst.msk [vmem:[%s220] sm:$0xf] %vm545, %v543
        %547 = vst.msk [vmem:[%s220 + $0x4] sm:$0xf] %vm545, %v544
        %s548 = smul.u32 %s20, 4
        %s549 = sadd.s32 %s548, %s19
        %s550 = smul.u32 2, %s549
        %p551 = scmp.lt.s32.totalorder %s550, 15
        %s552 = scalar_select %p551, %s550, 15
        %s553 = smul.addr %s552, 4
        %s554 = scalar_lea.vmem %s3, %s553
        // Predicated region
        $region37: #{forward.24} parent=31 // pred_check
          %p555 = pneg %p121
        $region38: #{forward.24} parent=31 // pred_check_branch
          %557 = sbr.rel (%p555) target = $region40
        $region39: #{forward.24} parent=31 // pred_region
          %s558 = smul.u32 %s20, 4
          %s559 = sadd.s32 %s558, %s19
          %s560 = smul.u32 2, %s559
        $region40: #{forward.24} parent=31 // pred_fallthru
          _
      $region32: #{forward.24} parent=5 // pred_fallthru
        _
      %p561 = scmp.le.s32.totalorder 2, %s10
      // Predicated region
      $region41: #{forward.24} parent=5 // pred_check
        %p562 = pneg %p561
      $region42: #{forward.24} parent=5 // pred_check_branch
        %564 = sbr.rel (%p562) target = $region44
      $region43: #{forward.24} parent=5 // pred_region
        %s565 = ssub.s32 %s10, 2
        // Predicated region
        $region45: #{forward.24} parent=43 // pred_check
          %p566 = pneg %p127
        $region46: #{forward.24} parent=43 // pred_check_branch
          %568 = sbr.rel (%p566) target = $region48
        $region47: #{forward.24} parent=43 // pred_region
          %s569 = smul.u32 %s22, 4
          %s570 = sadd.s32 %s569, %s21
          %s571 = smul.u32 2, %s570
          %p572 = scmp.lt.s32.totalorder %s571, 15
          %s573 = scalar_select %p572, %s571, 15
          %s574 = smul.addr %s573, 4
          %s575 = scalar_lea.vmem %s3, %s574
        $region48: #{forward.24} parent=43 // pred_fallthru
          _
      $region44: #{forward.24} parent=5 // pred_fallthru
        _
    $region6: #{forward.24} parent=1 // loop_footer
      %s14 = sadd.s32 1, %s10
    $region7: #{forward.24} parent=1 // loop_footer_branch
      %9 = sbr.rel target = $region3
    $region8: #{forward.24} parent=1 // loop_exit
      _
    %576 = vsyncpa [#allocation3], 1
    %s577 = scalar_lea.sflag [#allocation3], 1
    %578 = vsyncpa %s577, 1

// kernel: forward.26
$region0: #{forward.26}
  #allocation0 [shape = 'u32[]', space=smem, size = 0x4, offset = 0x4, fixed_abs, tag = 'smem constant byte address 0x4 - core index']
  #allocation1 [shape = 'u32[72,128]{1,0:T(1,128)}', space=vmem, size = 0x9000, scoped, tag = 'internal scratch']
  #allocation2 [shape = 'f32[64,128]{1,0:T(8,128)}', space=vmem, size = 0x8000, scoped, tag = 'scratch operand']
  %s0 = inlined_call_operand.vmem [shape: bf16[128,32], index: 0, kind: input, shape index: {}]
  %s1 = inlined_call_operand.vmem [shape: bf16[32,128], index: 1, kind: input, shape index: {}]
  %s2 = inlined_call_operand.vmem [shape: f32[1,128], index: 2, kind: input, shape index: {}]
  %s3 = inlined_call_operand.vmem [shape: bf16[128,128], index: 3, kind: output, shape index: {}]
  %s4 = sld [smem:[#allocation0]]
  $region53: #{forward.26} parent=0
    _
  %s6 = ssub.s32 1, %s4
  %s7 = scalar_select 0, %s6, %s4
  loop: start=0, step=1, limit=4
  $region2: #{forward.26} parent=0 // loop_pre_header
    _
  $region3: #{forward.26} parent=0 // loop_header
    %s9 = sphi 0, %s13
    %p10 = scmp.ge.s32.totalorder %s9, 4
    %s16 = sphi 0, %s28
    %s17 = sphi 0, %s24
    %s18 = sphi 0, %s16
    %s19 = sphi 0, %s17
    %s20 = sphi 0, %s18
    %s21 = sphi 0, %s19
    %s33 = sphi 0, %s35
    %s36 = sphi 0, %s33
    %s37 = sphi 0, %s36
    %s53 = sphi 0, %s37
    %s59 = sphi 0, %s61
    %s62 = sphi 0, %s59
    %s63 = sphi 0, %s62
    %s79 = sphi 0, %s63
    %s83 = sphi 0, %s83
    %s85 = sphi 0, %s83
    %s86 = sphi 0, %s85
    %s100 = sphi 0, %s86
    %s106 = sphi 0, %s108
    %s109 = sphi 0, %s106
    %s110 = sphi 0, %s109
    %s126 = sphi 0, %s110
  $region4: #{forward.26} parent=0 // loop_header_branch
    %12 = sbr.rel (%p10) target = $region8
  $region5: #{forward.26} parent=0 // loop_body
    %s14 = ssub.s32 %s9, 1
    %s15 = ssub.s32 %s9, 2
    %s22 = sadd.s32 1, %s17
    %p23 = scmp.ge.s32.totalorder %s22, 1
    %s24 = scalar_select %p23, 0, %s22
    %s25 = sadd.s32 1, %s16
    %s26 = scalar_select %p23, %s25, %s16
    %p27 = scmp.ge.s32.totalorder %s26, 2
    %s28 = scalar_select %p27, 0, %s26
    %s29 = ssub.s32 %s16, %s28
    %s30 = ssub.s32 %s17, %s24
    %s31 = sor.u32 %s29, %s30
    %p32 = scmp.eq.s32.totalorder %s31, 0
    %s34 = sadd.s32 %s33, 1
    %s35 = scalar_select %p32, %s33, %s34
    %p38 = pneg %p32
    %p39 = scmp.eq.s32.totalorder %s9, 1
    %p40 = por %p38, %p39
    %p41 = scmp.ne.s32.totalorder %s33, %s36
    %p42 = scmp.eq.s32.totalorder %s9, 0
    %p43 = por %p41, %p42
    %p44 = scmp.ne.s32.totalorder %s33, %s36
    %p45 = scmp.eq.s32.totalorder %s14, 1
    %p46 = por %p44, %p45
    %p47 = scmp.ne.s32.totalorder %s36, %s37
    %p48 = scmp.eq.s32.totalorder %s14, 0
    %p49 = por %p47, %p48
    %p50 = scmp.ne.s32.totalorder %s36, %s37
    %p51 = scmp.eq.s32.totalorder %s15, 1
    %p52 = por %p50, %p51
    %p54 = scmp.ne.s32.totalorder %s37, %s53
    %p55 = scmp.eq.s32.totalorder %s15, 0
    %p56 = por %p54, %p55
    %s57 = ssub.s32 %s17, %s24
    %p58 = scmp.eq.s32.totalorder %s57, 0
    %s60 = sadd.s32 %s59, 1
    %s61 = scalar_select %p58, %s59, %s60
    %p64 = pneg %p58
    %p65 = scmp.eq.s32.totalorder %s9, 1
    %p66 = por %p64, %p65
    %p67 = scmp.ne.s32.totalorder %s59, %s62
    %p68 = scmp.eq.s32.totalorder %s9, 0
    %p69 = por %p67, %p68
    %p70 = scmp.ne.s32.totalorder %s59, %s62
    %p71 = scmp.eq.s32.totalorder %s14, 1
    %p72 = por %p70, %p71
    %p73 = scmp.ne.s32.totalorder %s62, %s63
    %p74 = scmp.eq.s32.totalorder %s14, 0
    %p75 = por %p73, %p74
    %p76 = scmp.ne.s32.totalorder %s62, %s63
    %p77 = scmp.eq.s32.totalorder %s15, 1
    %p78 = por %p76, %p77
    %p80 = scmp.ne.s32.totalorder %s63, %s79
    %p81 = scmp.eq.s32.totalorder %s15, 0
    %p82 = por %p80, %p81
    %s84 = sadd.s32 %s83, 1
    %p87 = scmp.eq.s32.totalorder %s9, 1
    %p88 = scmp.ne.s32.totalorder %s83, %s85
    %p89 = scmp.eq.s32.totalorder %s9, 0
    %p90 = por %p88, %p89
    %p91 = scmp.ne.s32.totalorder %s83, %s85
    %p92 = scmp.eq.s32.totalorder %s14, 1
    %p93 = por %p91, %p92
    %p94 = scmp.ne.s32.totalorder %s85, %s86
    %p95 = scmp.eq.s32.totalorder %s14, 0
    %p96 = por %p94, %p95
    %p97 = scmp.ne.s32.totalorder %s85, %s86
    %p98 = scmp.eq.s32.totalorder %s15, 1
    %p99 = por %p97, %p98
    %p101 = scmp.ne.s32.totalorder %s86, %s100
    %p102 = scmp.eq.s32.totalorder %s15, 0
    %p103 = por %p101, %p102
    %s104 = ssub.s32 %s16, %s28
    %p105 = scmp.eq.s32.totalorder %s104, 0
    %s107 = sadd.s32 %s106, 1
    %s108 = scalar_select %p105, %s106, %s107
    %p111 = pneg %p105
    %p112 = scmp.eq.s32.totalorder %s9, 1
    %p113 = por %p111, %p112
    %p114 = scmp.ne.s32.totalorder %s106, %s109
    %p115 = scmp.eq.s32.totalorder %s9, 0
    %p116 = por %p114, %p115
    %p117 = scmp.ne.s32.totalorder %s106, %s109
    %p118 = scmp.eq.s32.totalorder %s14, 1
    %p119 = por %p117, %p118
    %p120 = scmp.ne.s32.totalorder %s109, %s110
    %p121 = scmp.eq.s32.totalorder %s14, 0
    %p122 = por %p120, %p121
    %p123 = scmp.ne.s32.totalorder %s109, %s110
    %p124 = scmp.eq.s32.totalorder %s15, 1
    %p125 = por %p123, %p124
    %p127 = scmp.ne.s32.totalorder %s110, %s126
    %p128 = scmp.eq.s32.totalorder %s15, 0
    %p129 = por %p127, %p128
    %p130 = scmp.le.s32.totalorder 1, %s9
    %p131 = scmp.lt.s32.totalorder %s9, 3
    %p132 = pnand %p130, %p131
    %p133 = pneg %p132
    // Predicated region
    $region9: #{forward.26} parent=5 // pred_check
      _
    $region10: #{forward.26} parent=5 // pred_check_branch
      %135 = sbr.rel (%p132) target = $region12
    $region11: #{forward.26} parent=5 // pred_region
      %s136 = ssub.s32 %s9, 1
      // Predicated region
      $region13: #{forward.26} parent=11 // pred_check
        %p137 = pneg %p75
      $region14: #{forward.26} parent=11 // pred_check_branch
        %139 = sbr.rel (%p137) target = $region16
      $region15: #{forward.26} parent=11 // pred_region
        %s140 = smul.u32 4, %s19
        %p141 = scmp.lt.s32.totalorder %s140, 3
        %s142 = scalar_select %p141, %s140, 3
        %s143 = smul.addr %s142, 4
        %s144 = scalar_lea.vmem %s1, %s143
        %s145 = smul.u32 4, %s19
      $region16: #{forward.26} parent=11 // pred_fallthru
        _
      // Predicated region
      $region17: #{forward.26} parent=11 // pred_check
        %p146 = pneg %p96
      $region18: #{forward.26} parent=11 // pred_check_branch
        %148 = sbr.rel (%p146) target = $region20
      $region19: #{forward.26} parent=11 // pred_region
        _
      $region20: #{forward.26} parent=11 // pred_fallthru
        _
    $region12: #{forward.26} parent=5 // pred_fallthru
      _
    %p149 = scmp.lt.s32.totalorder %s9, 2
    // Predicated region
    $region21: #{forward.26} parent=5 // pred_check
      %p150 = pneg %p149
    $region22: #{forward.26} parent=5 // pred_check_branch
      %152 = sbr.rel (%p150) target = $region24
    $region23: #{forward.26} parent=5 // pred_region
      // Predicated region
      $region25: #{forward.26} parent=23 // pred_check
        %p153 = pneg %p43
      $region26: #{forward.26} parent=23 // pred_check_branch
        %155 = sbr.rel (%p153) target = $region28
      $region27: #{forward.26} parent=23 // pred_region
        %s156 = smul.u32 8, %s16
        %p157 = scmp.lt.s32.totalorder %s156, 15
        %s158 = scalar_select %p157, %s156, 15
        %p159 = scmp.lt.s32.totalorder %s17, 0
        %s160 = scalar_select %p159, %s17, 0
        %s161 = sadd.s32 %s160, %s158
        %s162 = smul.addr %s161, 4
        %s163 = scalar_lea.vmem %s0, %s162
        %s164 = smul.u32 8, %s16
      $region28: #{forward.26} parent=23 // pred_fallthru
        _
    $region24: #{forward.26} parent=5 // pred_fallthru
      _
    %p165 = scmp.le.s32.totalorder 1, %s9
    %p166 = scmp.lt.s32.totalorder %s9, 3
    %p167 = pnand %p165, %p166
    %p168 = pneg %p167
    // Predicated region
    $region29: #{forward.26} parent=5 // pred_check
      _
    $region30: #{forward.26} parent=5 // pred_check_branch
      %170 = sbr.rel (%p167) target = $region32
    $region31: #{forward.26} parent=5 // pred_region
      %s171 = ssub.s32 %s9, 1
      %s172 = smul.u32 8, %s18
      %p173 = scmp.lt.s32.totalorder %s172, 15
      %s174 = scalar_select %p173, %s172, 15
      %p175 = scmp.lt.s32.totalorder %s19, 0
      %s176 = scalar_select %p175, %s19, 0
      %s177 = sadd.s32 %s176, %s174
      %s178 = smul.addr %s177, 4
      %s179 = scalar_lea.vmem %s0, %s178
      %p180 = pneg %p49
      %p181 = pneg %p46
      %s182 = smul.u32 4, %s19
      %p183 = scmp.lt.s32.totalorder %s182, 3
      %s184 = scalar_select %p183, %s182, 3
      %s185 = smul.addr %s184, 4
      %s186 = scalar_lea.vmem %s1, %s185
      %p187 = pneg %p75
      %p188 = pneg %p72
      %p189 = pneg %p96
      %p190 = pneg %p93
      %p191 = pneg %p122
      %p192 = pneg %p119
      %s193 = smul.u32 8, %s18
      %p194 = scmp.lt.s32.totalorder %s193, 15
      %s195 = scalar_select %p194, %s193, 15
      %s196 = smul.addr %s195, 4
      %s197 = scalar_lea.vmem %s3, %s196
      %s198 = smul.u32 8, %s18
      %p199 = scmp.lt.s32.totalorder %s198, 15
      %s200 = scalar_select %p199, %s198, 15
      %p201 = scmp.lt.s32.totalorder %s19, 0
      %s202 = scalar_select %p201, %s19, 0
      %s203 = sadd.s32 %s202, %s200
      %s204 = smul.addr %s203, 4
      %s205 = scalar_lea.vmem %s0, %s204
      %s206 = smul.u32 8, %s18
      %s207 = smul.u32 4, %s19
      %p208 = scmp.lt.s32.totalorder %s207, 3
      %s209 = scalar_select %p208, %s207, 3
      %s210 = smul.addr %s209, 4
      %s211 = scalar_lea.vmem %s1, %s210
      %s212 = smul.u32 4, %s19
      %s213 = smul.u32 8, %s18
      %p214 = scmp.lt.s32.totalorder %s213, 15
      %s215 = scalar_select %p214, %s213, 15
      %s216 = smul.addr %s215, 4
      %s217 = scalar_lea.vmem %s3, %s216
      %s218 = smul.u32 8, %s18
      %p220 = scmp.eq.s32.totalorder %s19, 0
      // Predicated region
      $region33: #{forward.26} parent=31 // pred_check
        %p221 = pneg %p220
      $region34: #{forward.26} parent=31 // pred_check_branch
        %223 = sbr.rel (%p221) target = $region36
      $region35: #{forward.26} parent=31 // pred_region
        %224 = vst [vmem:[#allocation2] sm:$0xff] 0.0
        %225 = vst [vmem:[#allocation2 + $0x8] sm:$0xff] 0.0
        %226 = vst [vmem:[#allocation2 + $0x10] sm:$0xff] 0.0
        %227 = vst [vmem:[#allocation2 + $0x18] sm:$0xff] 0.0
        %228 = vst [vmem:[#allocation2 + $0x20] sm:$0xff] 0.0
        %229 = vst [vmem:[#allocation2 + $0x28] sm:$0xff] 0.0
        %230 = vst [vmem:[#allocation2 + $0x30] sm:$0xff] 0.0
        %231 = vst [vmem:[#allocation2 + $0x38] sm:$0xff] 0.0
      $region36: #{forward.26} parent=31 // pred_fallthru
        _
      %v232 = vld [vmem:[#allocation2] sm:$0xff]
      %v233 = vld [vmem:[#allocation2 + $0x8] sm:$0xff]
      %v234 = vld [vmem:[#allocation2 + $0x10] sm:$0xff]
      %v235 = vld [vmem:[#allocation2 + $0x18] sm:$0xff]
      %v236 = vld [vmem:[#allocation2 + $0x20] sm:$0xff]
      %v237 = vld [vmem:[#allocation2 + $0x28] sm:$0xff]
      %v238 = vld [vmem:[#allocation2 + $0x30] sm:$0xff]
      %v239 = vld [vmem:[#allocation2 + $0x38] sm:$0xff]
      %v240 = vld [vmem:[%s205] sm:$0xf]
      %v241 = vld [vmem:[%s205 + $0x4] sm:$0xf]
      %v242 = vld [vmem:[%s205 + $0x8] sm:$0xf]
      %v243 = vld [vmem:[%s205 + $0xc] sm:$0xf]
      %v244 = vld [vmem:[%s205 + $0x10] sm:$0xf]
      %v245 = vld [vmem:[%s205 + $0x14] sm:$0xf]
      %v246 = vld [vmem:[%s205 + $0x18] sm:$0xf]
      %v247 = vld [vmem:[%s205 + $0x1c] sm:$0xf]
      %v248 = vld [vmem:[%s211] sm:$0xf]
      %v249 = vld [vmem:[%s211 + $0x4] sm:$0xf]
      %v250 = vld [vmem:[%s211 + $0x8] sm:$0xf]
      %v251 = vld [vmem:[%s211 + $0xc] sm:$0xf]
      %v260 = vunpack.c.l.b16 %v240
      %v261 = vunpack.c.l.b16 %v241
      %v262 = vunpack.c.l.b16 %v242
      %v263 = vunpack.c.l.b16 %v243
      %v264 = vunpack.c.l.b16 %v244
      %v265 = vunpack.c.l.b16 %v245
      %v266 = vunpack.c.l.b16 %v246
      %v267 = vunpack.c.l.b16 %v247
      %v268 = vpack.c.b16 %v261, %v260
      %v269 = vpack.c.b16 %v263, %v262
      %v270 = vpack.c.b16 %v265, %v264
      %v271 = vpack.c.b16 %v267, %v266
      %v276 = vunpack.c.l.b16 %v248
      %v277 = vunpack.c.l.b16 %v249
      %v278 = vunpack.c.l.b16 %v250
      %v279 = vunpack.c.l.b16 %v251
      %v280 = vpack.c.b16 %v277, %v276
      %v281 = vpack.c.b16 %v279, %v278
      %vm284 = vcmask 261120
      %v286 = vsel %vm284, %v268, 0
      %v289 = vsel %vm284, %v269, 0
      %v292 = vsel %vm284, %v270, 0
      %v295 = vsel %vm284, %v271, 0
      %297 = vmatpush.bf16.msra.mxu0 0
      %298 = vmatpush.bf16.msra.mxu0 0
      %299 = vmatpush.bf16.msra.mxu0 0
      %300 = vmatpush.bf16.msra.mxu0 0
      %301 = vmatpush.bf16.msra.mxu0 0
      %302 = vmatpush.bf16.msra.mxu0 0
      %303 = vmatpush.bf16.msra.mxu0 %v281
      %304 = vmatpush.bf16.msra.mxu0 %v280
      %305 = vmatmul.bf16.gmra.mxu0 %v286
      %v306 = vpop.f32.mrf.mxu0
      %v307 = vadd.f32 0.0, %v306
      %v308 = vpop.f32.mrf.mxu0
      %v309 = vadd.f32 0.0, %v308
      %310 = vmatmul.bf16.gmra.mxu0 %v289
      %v311 = vpop.f32.mrf.mxu0
      %v312 = vadd.f32 0.0, %v311
      %v313 = vpop.f32.mrf.mxu0
      %v314 = vadd.f32 0.0, %v313
      %315 = vmatmul.bf16.gmra.mxu0 %v292
      %v316 = vpop.f32.mrf.mxu0
      %v317 = vadd.f32 0.0, %v316
      %v318 = vpop.f32.mrf.mxu0
      %v319 = vadd.f32 0.0, %v318
      %320 = vmatmul.bf16.gmra.mxu0 %v295
      %v321 = vpop.f32.mrf.mxu0
      %v322 = vadd.f32 0.0, %v321
      %v323 = vpop.f32.mrf.mxu0
      %v324 = vadd.f32 0.0, %v323
      %325 = vdwg.mxu0
      %v326 = vadd.f32 %v232, %v307
      %v327 = vadd.f32 %v233, %v309
      %v328 = vadd.f32 %v234, %v312
      %v329 = vadd.f32 %v235, %v314
      %v330 = vadd.f32 %v236, %v317
      %v331 = vadd.f32 %v237, %v319
      %v332 = vadd.f32 %v238, %v322
      %v333 = vadd.f32 %v239, %v324
      %334 = vst [vmem:[#allocation2] sm:$0xff] %v326
      %335 = vst [vmem:[#allocation2 + $0x8] sm:$0xff] %v327
      %336 = vst [vmem:[#allocation2 + $0x10] sm:$0xff] %v328
      %337 = vst [vmem:[#allocation2 + $0x18] sm:$0xff] %v329
      %338 = vst [vmem:[#allocation2 + $0x20] sm:$0xff] %v330
      %339 = vst [vmem:[#allocation2 + $0x28] sm:$0xff] %v331
      %340 = vst [vmem:[#allocation2 + $0x30] sm:$0xff] %v332
      %341 = vst [vmem:[#allocation2 + $0x38] sm:$0xff] %v333
      // Predicated region
      $region37: #{forward.26} parent=31 // pred_check
        %p342 = pneg %p220
      $region38: #{forward.26} parent=31 // pred_check_branch
        %344 = sbr.rel (%p342) target = $region40
      $region39: #{forward.26} parent=31 // pred_region
        %v345 = vld [vmem:[#allocation2] sm:$0xff]
        %v346 = vld [vmem:[#allocation2 + $0x8] sm:$0xff]
        %v347 = vld [vmem:[#allocation2 + $0x10] sm:$0xff]
        %v348 = vld [vmem:[#allocation2 + $0x18] sm:$0xff]
        %v349 = vld [vmem:[#allocation2 + $0x20] sm:$0xff]
        %v350 = vld [vmem:[#allocation2 + $0x28] sm:$0xff]
        %v351 = vld [vmem:[#allocation2 + $0x30] sm:$0xff]
        %v352 = vld [vmem:[#allocation2 + $0x38] sm:$0xff]
        %v353 = vld [vmem:[%s2] sm:$0x1]
        %v355 = vperm.slane %v353, 0
        %v357 = vadd.f32 %v345, %v355
        %v358 = vadd.f32 %v346, %v355
        %v359 = vadd.f32 %v347, %v355
        %v360 = vadd.f32 %v348, %v355
        %v361 = vadd.f32 %v349, %v355
        %v362 = vadd.f32 %v350, %v355
        %v363 = vadd.f32 %v351, %v355
        %v364 = vadd.f32 %v352, %v355
        %v365 = vmul.f32 %v357, 0.5
        %v366 = vmul.f32 %v358, 0.5
        %v367 = vmul.f32 %v359, 0.5
        %v368 = vmul.f32 %v360, 0.5
        %v369 = vmul.f32 %v361, 0.5
        %v370 = vmul.f32 %v362, 0.5
        %v371 = vmul.f32 %v363, 0.5
        %v372 = vmul.f32 %v364, 0.5
        %v373 = vmul.f32 %v357, 0.044715
        %v374 = vmul.f32 %v358, 0.044715
        %v375 = vmul.f32 %v359, 0.044715
        %v376 = vmul.f32 %v360, 0.044715
        %v377 = vmul.f32 %v361, 0.044715
        %v378 = vmul.f32 %v362, 0.044715
        %v379 = vmul.f32 %v363, 0.044715
        %v380 = vmul.f32 %v364, 0.044715
        %v381 = vmul.f32 %v373, %v357
        %v382 = vmul.f32 %v374, %v358
        %v383 = vmul.f32 %v375, %v359
        %v384 = vmul.f32 %v376, %v360
        %v385 = vmul.f32 %v377, %v361
        %v386 = vmul.f32 %v378, %v362
        %v387 = vmul.f32 %v379, %v363
        %v388 = vmul.f32 %v380, %v364
        %v389 = vmul.f32 %v381, %v357
        %v390 = vmul.f32 %v382, %v358
        %v391 = vmul.f32 %v383, %v359
        %v392 = vmul.f32 %v384, %v360
        %v393 = vmul.f32 %v385, %v361
        %v394 = vmul.f32 %v386, %v362
        %v395 = vmul.f32 %v387, %v363
        %v396 = vmul.f32 %v388, %v364
        %v397 = vadd.f32 %v357, %v389
        %v398 = vadd.f32 %v358, %v390
        %v399 = vadd.f32 %v359, %v391
        %v400 = vadd.f32 %v360, %v392
        %v401 = vadd.f32 %v361, %v393
        %v402 = vadd.f32 %v362, %v394
        %v403 = vadd.f32 %v363, %v395
        %v404 = vadd.f32 %v364, %v396
        %v405 = vmul.f32 %v397, 0.7978846
        %v406 = vmul.f32 %v398, 0.7978846
        %v407 = vmul.f32 %v399, 0.7978846
        %v408 = vmul.f32 %v400, 0.7978846
        %v409 = vmul.f32 %v401, 0.7978846
        %v410 = vmul.f32 %v402, 0.7978846
        %v411 = vmul.f32 %v403, 0.7978846
        %v412 = vmul.f32 %v404, 0.7978846
        %v413 = vtanh.pop %v405
        %v414 = vtanh.pop %v406
        %v415 = vtanh.pop %v407
        %v416 = vtanh.pop %v408
        %v417 = vtanh.pop %v409
        %v418 = vtanh.pop %v410
        %v419 = vtanh.pop %v411
        %v420 = vtanh.pop %v412
        %v421 = vadd.f32 %v413, 1.0
        %v422 = vadd.f32 %v414, 1.0
        %v423 = vadd.f32 %v415, 1.0
        %v424 = vadd.f32 %v416, 1.0
        %v425 = vadd.f32 %v417, 1.0
        %v426 = vadd.f32 %v418, 1.0
        %v427 = vadd.f32 %v419, 1.0
        %v428 = vadd.f32 %v420, 1.0
        %v429 = vmul.f32 %v365, %v421
        %v430 = vmul.f32 %v366, %v422
        %v431 = vmul.f32 %v367, %v423
        %v432 = vmul.f32 %v368, %v424
        %v433 = vmul.f32 %v369, %v425
        %v434 = vmul.f32 %v370, %v426
        %v435 = vmul.f32 %v371, %v427
        %v436 = vmul.f32 %v372, %v428
        %v437 = vpack.c.bf16 %v429, %v429
        %v438 = vpack.c.bf16 %v430, %v430
        %v439 = vpack.c.bf16 %v431, %v431
        %v440 = vpack.c.bf16 %v432, %v432
        %v441 = vpack.c.bf16 %v433, %v433
        %v442 = vpack.c.bf16 %v434, %v434
        %v443 = vpack.c.bf16 %v435, %v435
        %v444 = vpack.c.bf16 %v436, %v436
        %445 = vst [vmem:[%s217] sm:$0xf] %v437
        %446 = vst [vmem:[%s217 + $0x4] sm:$0xf] %v438
        %447 = vst [vmem:[%s217 + $0x8] sm:$0xf] %v439
        %448 = vst [vmem:[%s217 + $0xc] sm:$0xf] %v440
        %449 = vst [vmem:[%s217 + $0x10] sm:$0xf] %v441
        %450 = vst [vmem:[%s217 + $0x14] sm:$0xf] %v442
        %451 = vst [vmem:[%s217 + $0x18] sm:$0xf] %v443
        %452 = vst [vmem:[%s217 + $0x1c] sm:$0xf] %v444
      $region40: #{forward.26} parent=31 // pred_fallthru
        _
      %s453 = smul.u32 8, %s18
      %p454 = scmp.lt.s32.totalorder %s453, 15
      %s455 = scalar_select %p454, %s453, 15
      %s456 = smul.addr %s455, 4
      %s457 = scalar_lea.vmem %s3, %s456
      // Predicated region
      $region41: #{forward.26} parent=31 // pred_check
        %p458 = pneg %p119
      $region42: #{forward.26} parent=31 // pred_check_branch
        %460 = sbr.rel (%p458) target = $region44
      $region43: #{forward.26} parent=31 // pred_region
        %s461 = smul.u32 8, %s18
      $region44: #{forward.26} parent=31 // pred_fallthru
        _
    $region32: #{forward.26} parent=5 // pred_fallthru
      _
    %p462 = scmp.le.s32.totalorder 2, %s9
    // Predicated region
    $region45: #{forward.26} parent=5 // pred_check
      %p463 = pneg %p462
    $region46: #{forward.26} parent=5 // pred_check_branch
      %465 = sbr.rel (%p463) target = $region48
    $region47: #{forward.26} parent=5 // pred_region
      %s466 = ssub.s32 %s9, 2
      // Predicated region
      $region49: #{forward.26} parent=47 // pred_check
        %p467 = pneg %p125
      $region50: #{forward.26} parent=47 // pred_check_branch
        %469 = sbr.rel (%p467) target = $region52
      $region51: #{forward.26} parent=47 // pred_region
        %s470 = smul.u32 8, %s20
        %p471 = scmp.lt.s32.totalorder %s470, 15
        %s472 = scalar_select %p471, %s470, 15
        %s473 = smul.addr %s472, 4
        %s474 = scalar_lea.vmem %s3, %s473
      $region52: #{forward.26} parent=47 // pred_fallthru
        _
    $region48: #{forward.26} parent=5 // pred_fallthru
      _
  $region6: #{forward.26} parent=0 // loop_footer
    %s13 = sadd.s32 1, %s9
  $region7: #{forward.26} parent=0 // loop_footer_branch
    %8 = sbr.rel target = $region3
  $region8: #{forward.26} parent=0 // loop_exit
    _

// kernel: forward.25
$region0: #{forward.25}
  #allocation0 [shape = 'u32[]', space=smem, size = 0x4, offset = 0x4, fixed_abs, tag = 'smem constant byte address 0x4 - core index']
  #allocation1 [shape = 'u32[72,128]{1,0:T(1,128)}', space=vmem, size = 0x9000, scoped, tag = 'internal scratch']
  #allocation2 [shape = 'f32[64,32]{1,0:T(8,128)}', space=vmem, size = 0x8000, scoped, tag = 'scratch operand']
  %s0 = inlined_call_operand.vmem [shape: bf16[128,32], index: 0, kind: input, shape index: {}]
  %s1 = inlined_call_operand.vmem [shape: bf16[32,32], index: 1, kind: input, shape index: {}]
  %s2 = inlined_call_operand.vmem [shape: f32[1,32], index: 2, kind: input, shape index: {}]
  %s3 = inlined_call_operand.vmem [shape: f32[1,32], index: 3, kind: input, shape index: {}]
  %s4 = inlined_call_operand.vmem [shape: f32[1,32], index: 4, kind: input, shape index: {}]
  %s5 = inlined_call_operand.vmem [shape: bf16[128,32], index: 5, kind: input, shape index: {}]
  %s6 = inlined_call_operand.vmem [shape: bf16[128,32], index: 6, kind: output, shape index: {}]
  %s7 = sld [smem:[#allocation0]]
  $region65: #{forward.25} parent=0
    _
  %s9 = ssub.s32 1, %s7
  %s10 = scalar_select 0, %s9, %s7
  loop: start=0, step=1, limit=4
  $region2: #{forward.25} parent=0 // loop_pre_header
    _
  $region3: #{forward.25} parent=0 // loop_header
    %s12 = sphi 0, %s16
    %p13 = scmp.ge.s32.totalorder %s12, 4
    %s19 = sphi 0, %s31
    %s20 = sphi 0, %s27
    %s21 = sphi 0, %s19
    %s22 = sphi 0, %s20
    %s23 = sphi 0, %s21
    %s24 = sphi 0, %s22
    %s36 = sphi 0, %s38
    %s39 = sphi 0, %s36
    %s40 = sphi 0, %s39
    %s56 = sphi 0, %s40
    %s62 = sphi 0, %s64
    %s65 = sphi 0, %s62
    %s66 = sphi 0, %s65
    %s82 = sphi 0, %s66
    %s86 = sphi 0, %s86
    %s88 = sphi 0, %s86
    %s89 = sphi 0, %s88
    %s103 = sphi 0, %s89
    %s107 = sphi 0, %s107
    %s109 = sphi 0, %s107
    %s110 = sphi 0, %s109
    %s124 = sphi 0, %s110
    %s128 = sphi 0, %s128
    %s130 = sphi 0, %s128
    %s131 = sphi 0, %s130
    %s145 = sphi 0, %s131
    %s151 = sphi 0, %s153
    %s154 = sphi 0, %s151
    %s155 = sphi 0, %s154
    %s171 = sphi 0, %s155
    %s177 = sphi 0, %s179
    %s180 = sphi 0, %s177
    %s181 = sphi 0, %s180
    %s197 = sphi 0, %s181
  $region4: #{forward.25} parent=0 // loop_header_branch
    %15 = sbr.rel (%p13) target = $region8
  $region5: #{forward.25} parent=0 // loop_body
    %s17 = ssub.s32 %s12, 1
    %s18 = ssub.s32 %s12, 2
    %s25 = sadd.s32 1, %s20
    %p26 = scmp.ge.s32.totalorder %s25, 1
    %s27 = scalar_select %p26, 0, %s25
    %s28 = sadd.s32 1, %s19
    %s29 = scalar_select %p26, %s28, %s19
    %p30 = scmp.ge.s32.totalorder %s29, 2
    %s31 = scalar_select %p30, 0, %s29
    %s32 = ssub.s32 %s19, %s31
    %s33 = ssub.s32 %s20, %s27
    %s34 = sor.u32 %s32, %s33
    %p35 = scmp.eq.s32.totalorder %s34, 0
    %s37 = sadd.s32 %s36, 1
    %s38 = scalar_select %p35, %s36, %s37
    %p41 = pneg %p35
    %p42 = scmp.eq.s32.totalorder %s12, 1
    %p43 = por %p41, %p42
    %p44 = scmp.ne.s32.totalorder %s36, %s39
    %p45 = scmp.eq.s32.totalorder %s12, 0
    %p46 = por %p44, %p45
    %p47 = scmp.ne.s32.totalorder %s36, %s39
    %p48 = scmp.eq.s32.totalorder %s17, 1
    %p49 = por %p47, %p48
    %p50 = scmp.ne.s32.totalorder %s39, %s40
    %p51 = scmp.eq.s32.totalorder %s17, 0
    %p52 = por %p50, %p51
    %p53 = scmp.ne.s32.totalorder %s39, %s40
    %p54 = scmp.eq.s32.totalorder %s18, 1
    %p55 = por %p53, %p54
    %p57 = scmp.ne.s32.totalorder %s40, %s56
    %p58 = scmp.eq.s32.totalorder %s18, 0
    %p59 = por %p57, %p58
    %s60 = ssub.s32 %s20, %s27
    %p61 = scmp.eq.s32.totalorder %s60, 0
    %s63 = sadd.s32 %s62, 1
    %s64 = scalar_select %p61, %s62, %s63
    %p67 = pneg %p61
    %p68 = scmp.eq.s32.totalorder %s12, 1
    %p69 = por %p67, %p68
    %p70 = scmp.ne.s32.totalorder %s62, %s65
    %p71 = scmp.eq.s32.totalorder %s12, 0
    %p72 = por %p70, %p71
    %p73 = scmp.ne.s32.totalorder %s62, %s65
    %p74 = scmp.eq.s32.totalorder %s17, 1
    %p75 = por %p73, %p74
    %p76 = scmp.ne.s32.totalorder %s65, %s66
    %p77 = scmp.eq.s32.totalorder %s17, 0
    %p78 = por %p76, %p77
    %p79 = scmp.ne.s32.totalorder %s65, %s66
    %p80 = scmp.eq.s32.totalorder %s18, 1
    %p81 = por %p79, %p80
    %p83 = scmp.ne.s32.totalorder %s66, %s82
    %p84 = scmp.eq.s32.totalorder %s18, 0
    %p85 = por %p83, %p84
    %s87 = sadd.s32 %s86, 1
    %p90 = scmp.eq.s32.totalorder %s12, 1
    %p91 = scmp.ne.s32.totalorder %s86, %s88
    %p92 = scmp.eq.s32.totalorder %s12, 0
    %p93 = por %p91, %p92
    %p94 = scmp.ne.s32.totalorder %s86, %s88
    %p95 = scmp.eq.s32.totalorder %s17, 1
    %p96 = por %p94, %p95
    %p97 = scmp.ne.s32.totalorder %s88, %s89
    %p98 = scmp.eq.s32.totalorder %s17, 0
    %p99 = por %p97, %p98
    %p100 = scmp.ne.s32.totalorder %s88, %s89
    %p101 = scmp.eq.s32.totalorder %s18, 1
    %p102 = por %p100, %p101
    %p104 = scmp.ne.s32.totalorder %s89, %s103
    %p105 = scmp.eq.s32.totalorder %s18, 0
    %p106 = por %p104, %p105
    %s108 = sadd.s32 %s107, 1
    %p111 = scmp.eq.s32.totalorder %s12, 1
    %p112 = scmp.ne.s32.totalorder %s107, %s109
    %p113 = scmp.eq.s32.totalorder %s12, 0
    %p114 = por %p112, %p113
    %p115 = scmp.ne.s32.totalorder %s107, %s109
    %p116 = scmp.eq.s32.totalorder %s17, 1
    %p117 = por %p115, %p116
    %p118 = scmp.ne.s32.totalorder %s109, %s110
    %p119 = scmp.eq.s32.totalorder %s17, 0
    %p120 = por %p118, %p119
    %p121 = scmp.ne.s32.totalorder %s109, %s110
    %p122 = scmp.eq.s32.totalorder %s18, 1
    %p123 = por %p121, %p122
    %p125 = scmp.ne.s32.totalorder %s110, %s124
    %p126 = scmp.eq.s32.totalorder %s18, 0
    %p127 = por %p125, %p126
    %s129 = sadd.s32 %s128, 1
    %p132 = scmp.eq.s32.totalorder %s12, 1
    %p133 = scmp.ne.s32.totalorder %s128, %s130
    %p134 = scmp.eq.s32.totalorder %s12, 0
    %p135 = por %p133, %p134
    %p136 = scmp.ne.s32.totalorder %s128, %s130
    %p137 = scmp.eq.s32.totalorder %s17, 1
    %p138 = por %p136, %p137
    %p139 = scmp.ne.s32.totalorder %s130, %s131
    %p140 = scmp.eq.s32.totalorder %s17, 0
    %p141 = por %p139, %p140
    %p142 = scmp.ne.s32.totalorder %s130, %s131
    %p143 = scmp.eq.s32.totalorder %s18, 1
    %p144 = por %p142, %p143
    %p146 = scmp.ne.s32.totalorder %s131, %s145
    %p147 = scmp.eq.s32.totalorder %s18, 0
    %p148 = por %p146, %p147
    %s149 = ssub.s32 %s19, %s31
    %p150 = scmp.eq.s32.totalorder %s149, 0
    %s152 = sadd.s32 %s151, 1
    %s153 = scalar_select %p150, %s151, %s152
    %p156 = pneg %p150
    %p157 = scmp.eq.s32.totalorder %s12, 1
    %p158 = por %p156, %p157
    %p159 = scmp.ne.s32.totalorder %s151, %s154
    %p160 = scmp.eq.s32.totalorder %s12, 0
    %p161 = por %p159, %p160
    %p162 = scmp.ne.s32.totalorder %s151, %s154
    %p163 = scmp.eq.s32.totalorder %s17, 1
    %p164 = por %p162, %p163
    %p165 = scmp.ne.s32.totalorder %s154, %s155
    %p166 = scmp.eq.s32.totalorder %s17, 0
    %p167 = por %p165, %p166
    %p168 = scmp.ne.s32.totalorder %s154, %s155
    %p169 = scmp.eq.s32.totalorder %s18, 1
    %p170 = por %p168, %p169
    %p172 = scmp.ne.s32.totalorder %s155, %s171
    %p173 = scmp.eq.s32.totalorder %s18, 0
    %p174 = por %p172, %p173
    %s175 = ssub.s32 %s19, %s31
    %p176 = scmp.eq.s32.totalorder %s175, 0
    %s178 = sadd.s32 %s177, 1
    %s179 = scalar_select %p176, %s177, %s178
    %p182 = pneg %p176
    %p183 = scmp.eq.s32.totalorder %s12, 1
    %p184 = por %p182, %p183
    %p185 = scmp.ne.s32.totalorder %s177, %s180
    %p186 = scmp.eq.s32.totalorder %s12, 0
    %p187 = por %p185, %p186
    %p188 = scmp.ne.s32.totalorder %s177, %s180
    %p189 = scmp.eq.s32.totalorder %s17, 1
    %p190 = por %p188, %p189
    %p191 = scmp.ne.s32.totalorder %s180, %s181
    %p192 = scmp.eq.s32.totalorder %s17, 0
    %p193 = por %p191, %p192
    %p194 = scmp.ne.s32.totalorder %s180, %s181
    %p195 = scmp.eq.s32.totalorder %s18, 1
    %p196 = por %p194, %p195
    %p198 = scmp.ne.s32.totalorder %s181, %s197
    %p199 = scmp.eq.s32.totalorder %s18, 0
    %p200 = por %p198, %p199
    %p201 = scmp.le.s32.totalorder 1, %s12
    %p202 = scmp.lt.s32.totalorder %s12, 3
    %p203 = pnand %p201, %p202
    %p204 = pneg %p203
    // Predicated region
    $region9: #{forward.25} parent=5 // pred_check
      _
    $region10: #{forward.25} parent=5 // pred_check_branch
      %206 = sbr.rel (%p203) target = $region12
    $region11: #{forward.25} parent=5 // pred_region
      %s207 = ssub.s32 %s12, 1
      // Predicated region
      $region13: #{forward.25} parent=11 // pred_check
        %p208 = pneg %p78
      $region14: #{forward.25} parent=11 // pred_check_branch
        %210 = sbr.rel (%p208) target = $region16
      $region15: #{forward.25} parent=11 // pred_region
        %s211 = smul.u32 4, %s22
        %p212 = scmp.lt.s32.totalorder %s211, 3
        %s213 = scalar_select %p212, %s211, 3
        %s214 = smul.addr %s213, 4
        %s215 = scalar_lea.vmem %s1, %s214
        %s216 = smul.u32 4, %s22
      $region16: #{forward.25} parent=11 // pred_fallthru
        _
      // Predicated region
      $region17: #{forward.25} parent=11 // pred_check
        %p217 = pneg %p99
      $region18: #{forward.25} parent=11 // pred_check_branch
        %219 = sbr.rel (%p217) target = $region20
      $region19: #{forward.25} parent=11 // pred_region
        _
      $region20: #{forward.25} parent=11 // pred_fallthru
        _
      // Predicated region
      $region21: #{forward.25} parent=11 // pred_check
        %p220 = pneg %p120
      $region22: #{forward.25} parent=11 // pred_check_branch
        %222 = sbr.rel (%p220) target = $region24
      $region23: #{forward.25} parent=11 // pred_region
        _
      $region24: #{forward.25} parent=11 // pred_fallthru
        _
      // Predicated region
      $region25: #{forward.25} parent=11 // pred_check
        %p223 = pneg %p141
      $region26: #{forward.25} parent=11 // pred_check_branch
        %225 = sbr.rel (%p223) target = $region28
      $region27: #{forward.25} parent=11 // pred_region
        _
      $region28: #{forward.25} parent=11 // pred_fallthru
        _
    $region12: #{forward.25} parent=5 // pred_fallthru
      _
    %p226 = scmp.lt.s32.totalorder %s12, 2
    // Predicated region
    $region29: #{forward.25} parent=5 // pred_check
      %p227 = pneg %p226
    $region30: #{forward.25} parent=5 // pred_check_branch
      %229 = sbr.rel (%p227) target = $region32
    $region31: #{forward.25} parent=5 // pred_region
      // Predicated region
      $region33: #{forward.25} parent=31 // pred_check
        %p230 = pneg %p46
      $region34: #{forward.25} parent=31 // pred_check_branch
        %232 = sbr.rel (%p230) target = $region36
      $region35: #{forward.25} parent=31 // pred_region
        %s233 = smul.u32 8, %s19
        %p234 = scmp.lt.s32.totalorder %s233, 15
        %s235 = scalar_select %p234, %s233, 15
        %p236 = scmp.lt.s32.totalorder %s20, 0
        %s237 = scalar_select %p236, %s20, 0
        %s238 = sadd.s32 %s237, %s235
        %s239 = smul.addr %s238, 4
        %s240 = scalar_lea.vmem %s0, %s239
        %s241 = smul.u32 8, %s19
      $region36: #{forward.25} parent=31 // pred_fallthru
        _
      // Predicated region
      $region37: #{forward.25} parent=31 // pred_check
        %p242 = pneg %p161
      $region38: #{forward.25} parent=31 // pred_check_branch
        %244 = sbr.rel (%p242) target = $region40
      $region39: #{forward.25} parent=31 // pred_region
        %s245 = smul.u32 8, %s19
        %p246 = scmp.lt.s32.totalorder %s245, 15
        %s247 = scalar_select %p246, %s245, 15
        %s248 = smul.addr %s247, 4
        %s249 = scalar_lea.vmem %s5, %s248
        %s250 = smul.u32 8, %s19
      $region40: #{forward.25} parent=31 // pred_fallthru
        _
    $region32: #{forward.25} parent=5 // pred_fallthru
      _
    %p251 = scmp.le.s32.totalorder 1, %s12
    %p252 = scmp.lt.s32.totalorder %s12, 3
    %p253 = pnand %p251, %p252
    %p254 = pneg %p253
    // Predicated region
    $region41: #{forward.25} parent=5 // pred_check
      _
    $region42: #{forward.25} parent=5 // pred_check_branch
      %256 = sbr.rel (%p253) target = $region44
    $region43: #{forward.25} parent=5 // pred_region
      %s257 = ssub.s32 %s12, 1
      %s258 = smul.u32 8, %s21
      %p259 = scmp.lt.s32.totalorder %s258, 15
      %s260 = scalar_select %p259, %s258, 15
      %p261 = scmp.lt.s32.totalorder %s22, 0
      %s262 = scalar_select %p261, %s22, 0
      %s263 = sadd.s32 %s262, %s260
      %s264 = smul.addr %s263, 4
      %s265 = scalar_lea.vmem %s0, %s264
      %p266 = pneg %p52
      %p267 = pneg %p49
      %s268 = smul.u32 4, %s22
      %p269 = scmp.lt.s32.totalorder %s268, 3
      %s270 = scalar_select %p269, %s268, 3
      %s271 = smul.addr %s270, 4
      %s272 = scalar_lea.vmem %s1, %s271
      %p273 = pneg %p78
      %p274 = pneg %p75
      %p275 = pneg %p99
      %p276 = pneg %p96
      %p277 = pneg %p120
      %p278 = pneg %p117
      %p279 = pneg %p141
      %p280 = pneg %p138
      %s281 = smul.u32 8, %s21
      %p282 = scmp.lt.s32.totalorder %s281, 15
      %s283 = scalar_select %p282, %s281, 15
      %s284 = smul.addr %s283, 4
      %s285 = scalar_lea.vmem %s5, %s284
      %p286 = pneg %p167
      %p287 = pneg %p164
      %p288 = pneg %p193
      %p289 = pneg %p190
      %s290 = smul.u32 8, %s21
      %p291 = scmp.lt.s32.totalorder %s290, 15
      %s292 = scalar_select %p291, %s290, 15
      %s293 = smul.addr %s292, 4
      %s294 = scalar_lea.vmem %s6, %s293
      %s295 = smul.u32 8, %s21
      %p296 = scmp.lt.s32.totalorder %s295, 15
      %s297 = scalar_select %p296, %s295, 15
      %p298 = scmp.lt.s32.totalorder %s22, 0
      %s299 = scalar_select %p298, %s22, 0
      %s300 = sadd.s32 %s299, %s297
      %s301 = smul.addr %s300, 4
      %s302 = scalar_lea.vmem %s0, %s301
      %s303 = smul.u32 8, %s21
      %s304 = smul.u32 4, %s22
      %p305 = scmp.lt.s32.totalorder %s304, 3
      %s306 = scalar_select %p305, %s304, 3
      %s307 = smul.addr %s306, 4
      %s308 = scalar_lea.vmem %s1, %s307
      %s309 = smul.u32 4, %s22
      %s310 = smul.u32 8, %s21
      %p311 = scmp.lt.s32.totalorder %s310, 15
      %s312 = scalar_select %p311, %s310, 15
      %s313 = smul.addr %s312, 4
      %s314 = scalar_lea.vmem %s5, %s313
      %s315 = smul.u32 8, %s21
      %s316 = smul.u32 8, %s21
      %p317 = scmp.lt.s32.totalorder %s316, 15
      %s318 = scalar_select %p317, %s316, 15
      %s319 = smul.addr %s318, 4
      %s320 = scalar_lea.vmem %s6, %s319
      %s321 = smul.u32 8, %s21
      %p323 = scmp.eq.s32.totalorder %s22, 0
      // Predicated region
      $region45: #{forward.25} parent=43 // pred_check
        %p324 = pneg %p323
      $region46: #{forward.25} parent=43 // pred_check_branch
        %326 = sbr.rel (%p324) target = $region48
      $region47: #{forward.25} parent=43 // pred_region
        %vm327 = vcmask 261120
        %328 = vst.msk [vmem:[#allocation2] sm:$0xff] %vm327, 0.0
        %329 = vst.msk [vmem:[#allocation2 + $0x8] sm:$0xff] %vm327, 0.0
        %330 = vst.msk [vmem:[#allocation2 + $0x10] sm:$0xff] %vm327, 0.0
        %331 = vst.msk [vmem:[#allocation2 + $0x18] sm:$0xff] %vm327, 0.0
        %332 = vst.msk [vmem:[#allocation2 + $0x20] sm:$0xff] %vm327, 0.0
        %333 = vst.msk [vmem:[#allocation2 + $0x28] sm:$0xff] %vm327, 0.0
        %334 = vst.msk [vmem:[#allocation2 + $0x30] sm:$0xff] %vm327, 0.0
        %335 = vst.msk [vmem:[#allocation2 + $0x38] sm:$0xff] %vm327, 0.0
      $region48: #{forward.25} parent=43 // pred_fallthru
        _
      %v336 = vld [vmem:[#allocation2] sm:$0xff]
      %v337 = vld [vmem:[#allocation2 + $0x8] sm:$0xff]
      %v338 = vld [vmem:[#allocation2 + $0x10] sm:$0xff]
      %v339 = vld [vmem:[#allocation2 + $0x18] sm:$0xff]
      %v340 = vld [vmem:[#allocation2 + $0x20] sm:$0xff]
      %v341 = vld [vmem:[#allocation2 + $0x28] sm:$0xff]
      %v342 = vld [vmem:[#allocation2 + $0x30] sm:$0xff]
      %v343 = vld [vmem:[#allocation2 + $0x38] sm:$0xff]
      %v344 = vld [vmem:[%s302] sm:$0xf]
      %v345 = vld [vmem:[%s302 + $0x4] sm:$0xf]
      %v346 = vld [vmem:[%s302 + $0x8] sm:$0xf]
      %v347 = vld [vmem:[%s302 + $0xc] sm:$0xf]
      %v348 = vld [vmem:[%s302 + $0x10] sm:$0xf]
      %v349 = vld [vmem:[%s302 + $0x14] sm:$0xf]
      %v350 = vld [vmem:[%s302 + $0x18] sm:$0xf]
      %v351 = vld [vmem:[%s302 + $0x1c] sm:$0xf]
      %v352 = vld [vmem:[%s308] sm:$0xf]
      %v353 = vld [vmem:[%s308 + $0x4] sm:$0xf]
      %v354 = vld [vmem:[%s308 + $0x8] sm:$0xf]
      %v355 = vld [vmem:[%s308 + $0xc] sm:$0xf]
      %v364 = vunpack.c.l.b16 %v344
      %v365 = vunpack.c.l.b16 %v345
      %v366 = vunpack.c.l.b16 %v346
      %v367 = vunpack.c.l.b16 %v347
      %v368 = vunpack.c.l.b16 %v348
      %v369 = vunpack.c.l.b16 %v349
      %v370 = vunpack.c.l.b16 %v350
      %v371 = vunpack.c.l.b16 %v351
      %v372 = vpack.c.b16 %v365, %v364
      %v373 = vpack.c.b16 %v367, %v366
      %v374 = vpack.c.b16 %v369, %v368
      %v375 = vpack.c.b16 %v371, %v370
      %v380 = vunpack.c.l.b16 %v352
      %v381 = vunpack.c.l.b16 %v353
      %v382 = vunpack.c.l.b16 %v354
      %v383 = vunpack.c.l.b16 %v355
      %v384 = vpack.c.b16 %v381, %v380
      %v385 = vpack.c.b16 %v383, %v382
      %vm388 = vcmask 261120
      %v390 = vsel %vm388, %v372, 0
      %v393 = vsel %vm388, %v373, 0
      %v396 = vsel %vm388, %v374, 0
      %v399 = vsel %vm388, %v375, 0
      %401 = vmatpush.bf16.msra.mxu0 0
      %402 = vmatpush.bf16.msra.mxu0 0
      %403 = vmatpush.bf16.msra.mxu0 0
      %404 = vmatpush.bf16.msra.mxu0 0
      %405 = vmatpush.bf16.msra.mxu0 0
      %406 = vmatpush.bf16.msra.mxu0 0
      %407 = vmatpush.bf16.msra.mxu0 %v385
      %408 = vmatpush.bf16.msra.mxu0 %v384
      %409 = vmatmul.bf16.gmra.mxu0 %v390
      %v410 = vpop.f32.mrf.mxu0
      %v411 = vadd.f32 0.0, %v410
      %v412 = vpop.f32.mrf.mxu0
      %v413 = vadd.f32 0.0, %v412
      %414 = vmatmul.bf16.gmra.mxu0 %v393
      %v415 = vpop.f32.mrf.mxu0
      %v416 = vadd.f32 0.0, %v415
      %v417 = vpop.f32.mrf.mxu0
      %v418 = vadd.f32 0.0, %v417
      %419 = vmatmul.bf16.gmra.mxu0 %v396
      %v420 = vpop.f32.mrf.mxu0
      %v421 = vadd.f32 0.0, %v420
      %v422 = vpop.f32.mrf.mxu0
      %v423 = vadd.f32 0.0, %v422
      %424 = vmatmul.bf16.gmra.mxu0 %v399
      %v425 = vpop.f32.mrf.mxu0
      %v426 = vadd.f32 0.0, %v425
      %v427 = vpop.f32.mrf.mxu0
      %v428 = vadd.f32 0.0, %v427
      %429 = vdwg.mxu0
      %v430 = vadd.f32 %v336, %v411
      %v431 = vadd.f32 %v337, %v413
      %v432 = vadd.f32 %v338, %v416
      %v433 = vadd.f32 %v339, %v418
      %v434 = vadd.f32 %v340, %v421
      %v435 = vadd.f32 %v341, %v423
      %v436 = vadd.f32 %v342, %v426
      %v437 = vadd.f32 %v343, %v428
      %438 = vst.msk [vmem:[#allocation2] sm:$0xff] %vm388, %v430
      %439 = vst.msk [vmem:[#allocation2 + $0x8] sm:$0xff] %vm388, %v431
      %440 = vst.msk [vmem:[#allocation2 + $0x10] sm:$0xff] %vm388, %v432
      %441 = vst.msk [vmem:[#allocation2 + $0x18] sm:$0xff] %vm388, %v433
      %442 = vst.msk [vmem:[#allocation2 + $0x20] sm:$0xff] %vm388, %v434
      %443 = vst.msk [vmem:[#allocation2 + $0x28] sm:$0xff] %vm388, %v435
      %444 = vst.msk [vmem:[#allocation2 + $0x30] sm:$0xff] %vm388, %v436
      %445 = vst.msk [vmem:[#allocation2 + $0x38] sm:$0xff] %vm388, %v437
      // Predicated region
      $region49: #{forward.25} parent=43 // pred_check
        %p446 = pneg %p323
      $region50: #{forward.25} parent=43 // pred_check_branch
        %448 = sbr.rel (%p446) target = $region52
      $region51: #{forward.25} parent=43 // pred_region
        %v449 = vld [vmem:[#allocation2] sm:$0xff]
        %v450 = vld [vmem:[#allocation2 + $0x8] sm:$0xff]
        %v451 = vld [vmem:[#allocation2 + $0x10] sm:$0xff]
        %v452 = vld [vmem:[#allocation2 + $0x18] sm:$0xff]
        %v453 = vld [vmem:[#allocation2 + $0x20] sm:$0xff]
        %v454 = vld [vmem:[#allocation2 + $0x28] sm:$0xff]
        %v455 = vld [vmem:[#allocation2 + $0x30] sm:$0xff]
        %v456 = vld [vmem:[#allocation2 + $0x38] sm:$0xff]
        %v457 = vld [vmem:[%s2] sm:$0x1]
        %v459 = vperm.slane %v457, 0
        %v461 = vadd.f32 %v449, %v459
        %v462 = vadd.f32 %v450, %v459
        %v463 = vadd.f32 %v451, %v459
        %v464 = vadd.f32 %v452, %v459
        %v465 = vadd.f32 %v453, %v459
        %v466 = vadd.f32 %v454, %v459
        %v467 = vadd.f32 %v455, %v459
        %v468 = vadd.f32 %v456, %v459
        %v469 = vsel %vm388, %v461, 0.0
        %470 = vadd.xlane.f32.xlu0 %v469
        %v471 = vpop.xlane.xlu0 %470
        %v472 = vsel %vm388, %v462, 0.0
        %473 = vadd.xlane.f32.xlu0 %v472
        %v474 = vpop.xlane.xlu0 %473
        %v475 = vsel %vm388, %v463, 0.0
        %476 = vadd.xlane.f32.xlu0 %v475
        %v477 = vpop.xlane.xlu0 %476
        %v478 = vsel %vm388, %v464, 0.0
        %479 = vadd.xlane.f32.xlu0 %v478
        %v480 = vpop.xlane.xlu0 %479
        %v481 = vsel %vm388, %v465, 0.0
        %482 = vadd.xlane.f32.xlu0 %v481
        %v483 = vpop.xlane.xlu0 %482
        %v484 = vsel %vm388, %v466, 0.0
        %485 = vadd.xlane.f32.xlu0 %v484
        %v486 = vpop.xlane.xlu0 %485
        %v487 = vsel %vm388, %v467, 0.0
        %488 = vadd.xlane.f32.xlu0 %v487
        %v489 = vpop.xlane.xlu0 %488
        %v490 = vsel %vm388, %v468, 0.0
        %491 = vadd.xlane.f32.xlu0 %v490
        %v492 = vpop.xlane.xlu0 %491
        %v493 = vrcp.pop 32.0
        %v494 = vmul.f32 32.0, %v493
        %v495 = vsub.f32 1.0, %v494
        %v496 = vmul.f32 %v493, %v495
        %v497 = vadd.f32 %v493, %v496
        %vm498 = vweird.f32 %v493
        %v499 = vsel %vm498, %v493, %v497
        %v500 = vmul.f32 %v471, %v499
        %v501 = vmul.f32 %v474, %v499
        %v502 = vmul.f32 %v477, %v499
        %v503 = vmul.f32 %v480, %v499
        %v504 = vmul.f32 %v483, %v499
        %v505 = vmul.f32 %v486, %v499
        %v506 = vmul.f32 %v489, %v499
        %v507 = vmul.f32 %v492, %v499
        %v508 = vsub.f32 %v461, %v500
        %v509 = vsub.f32 %v462, %v501
        %v510 = vsub.f32 %v463, %v502
        %v511 = vsub.f32 %v464, %v503
        %v512 = vsub.f32 %v465, %v504
        %v513 = vsub.f32 %v466, %v505
        %v514 = vsub.f32 %v467, %v506
        %v515 = vsub.f32 %v468, %v507
        %v516 = vmul.f32 %v508, %v508
        %v517 = vmul.f32 %v509, %v509
        %v518 = vmul.f32 %v510, %v510
        %v519 = vmul.f32 %v511, %v511
        %v520 = vmul.f32 %v512, %v512
        %v521 = vmul.f32 %v513, %v513
        %v522 = vmul.f32 %v514, %v514
        %v523 = vmul.f32 %v515, %v515
        %v524 = vsel %vm388, %v516, 0.0
        %525 = vadd.xlane.f32.xlu0 %v524
        %v526 = vpop.xlane.xlu0 %525
        %v527 = vsel %vm388, %v517, 0.0
        %528 = vadd.xlane.f32.xlu0 %v527
        %v529 = vpop.xlane.xlu0 %528
        %v530 = vsel %vm388, %v518, 0.0
        %531 = vadd.xlane.f32.xlu0 %v530
        %v532 = vpop.xlane.xlu0 %531
        %v533 = vsel %vm388, %v519, 0.0
        %534 = vadd.xlane.f32.xlu0 %v533
        %v535 = vpop.xlane.xlu0 %534
        %v536 = vsel %vm388, %v520, 0.0
        %537 = vadd.xlane.f32.xlu0 %v536
        %v538 = vpop.xlane.xlu0 %537
        %v539 = vsel %vm388, %v521, 0.0
        %540 = vadd.xlane.f32.xlu0 %v539
        %v541 = vpop.xlane.xlu0 %540
        %v542 = vsel %vm388, %v522, 0.0
        %543 = vadd.xlane.f32.xlu0 %v542
        %v544 = vpop.xlane.xlu0 %543
        %v545 = vsel %vm388, %v523, 0.0
        %546 = vadd.xlane.f32.xlu0 %v545
        %v547 = vpop.xlane.xlu0 %546
        %v548 = vmul.f32 %v526, %v499
        %v549 = vmul.f32 %v529, %v499
        %v550 = vmul.f32 %v532, %v499
        %v551 = vmul.f32 %v535, %v499
        %v552 = vmul.f32 %v538, %v499
        %v553 = vmul.f32 %v541, %v499
        %v554 = vmul.f32 %v544, %v499
        %v555 = vmul.f32 %v547, %v499
        %v556 = vadd.f32 %v548, 1e-05
        %v557 = vadd.f32 %v549, 1e-05
        %v558 = vadd.f32 %v550, 1e-05
        %v559 = vadd.f32 %v551, 1e-05
        %v560 = vadd.f32 %v552, 1e-05
        %v561 = vadd.f32 %v553, 1e-05
        %v562 = vadd.f32 %v554, 1e-05
        %v563 = vadd.f32 %v555, 1e-05
        %v564 = vrsqrt.pop %v556
        %v565 = vmul.f32 %v564, %v556
        %v566 = vmul.f32 %v565, %v564
        %v567 = vmul.f32 0.5, %v566
        %v568 = vsub.f32 1.5, %v567
        %v569 = vmul.f32 %v564, %v568
        %vm570 = vweird.f32 %v556
        %vm571 = vweird.f32 %v564
        %vm572 = vmor %vm570, %vm571
        %v573 = vsel %vm572, %v564, %v569
        %v574 = vrsqrt.pop %v557
        %v575 = vmul.f32 %v574, %v557
        %v576 = vmul.f32 %v575, %v574
        %v577 = vmul.f32 0.5, %v576
        %v578 = vsub.f32 1.5, %v577
        %v579 = vmul.f32 %v574, %v578
        %vm580 = vweird.f32 %v557
        %vm581 = vweird.f32 %v574
        %vm582 = vmor %vm580, %vm581
        %v583 = vsel %vm582, %v574, %v579
        %v584 = vrsqrt.pop %v558
        %v585 = vmul.f32 %v584, %v558
        %v586 = vmul.f32 %v585, %v584
        %v587 = vmul.f32 0.5, %v586
        %v588 = vsub.f32 1.5, %v587
        %v589 = vmul.f32 %v584, %v588
        %vm590 = vweird.f32 %v558
        %vm591 = vweird.f32 %v584
        %vm592 = vmor %vm590, %vm591
        %v593 = vsel %vm592, %v584, %v589
        %v594 = vrsqrt.pop %v559
        %v595 = vmul.f32 %v594, %v559
        %v596 = vmul.f32 %v595, %v594
        %v597 = vmul.f32 0.5, %v596
        %v598 = vsub.f32 1.5, %v597
        %v599 = vmul.f32 %v594, %v598
        %vm600 = vweird.f32 %v559
        %vm601 = vweird.f32 %v594
        %vm602 = vmor %vm600, %vm601
        %v603 = vsel %vm602, %v594, %v599
        %v604 = vrsqrt.pop %v560
        %v605 = vmul.f32 %v604, %v560
        %v606 = vmul.f32 %v605, %v604
        %v607 = vmul.f32 0.5, %v606
        %v608 = vsub.f32 1.5, %v607
        %v609 = vmul.f32 %v604, %v608
        %vm610 = vweird.f32 %v560
        %vm611 = vweird.f32 %v604
        %vm612 = vmor %vm610, %vm611
        %v613 = vsel %vm612, %v604, %v609
        %v614 = vrsqrt.pop %v561
        %v615 = vmul.f32 %v614, %v561
        %v616 = vmul.f32 %v615, %v614
        %v617 = vmul.f32 0.5, %v616
        %v618 = vsub.f32 1.5, %v617
        %v619 = vmul.f32 %v614, %v618
        %vm620 = vweird.f32 %v561
        %vm621 = vweird.f32 %v614
        %vm622 = vmor %vm620, %vm621
        %v623 = vsel %vm622, %v614, %v619
        %v624 = vrsqrt.pop %v562
        %v625 = vmul.f32 %v624, %v562
        %v626 = vmul.f32 %v625, %v624
        %v627 = vmul.f32 0.5, %v626
        %v628 = vsub.f32 1.5, %v627
        %v629 = vmul.f32 %v624, %v628
        %vm630 = vweird.f32 %v562
        %vm631 = vweird.f32 %v624
        %vm632 = vmor %vm630, %vm631
        %v633 = vsel %vm632, %v624, %v629
        %v634 = vrsqrt.pop %v563
        %v635 = vmul.f32 %v634, %v563
        %v636 = vmul.f32 %v635, %v634
        %v637 = vmul.f32 0.5, %v636
        %v638 = vsub.f32 1.5, %v637
        %v639 = vmul.f32 %v634, %v638
        %vm640 = vweird.f32 %v563
        %vm641 = vweird.f32 %v634
        %vm642 = vmor %vm640, %vm641
        %v643 = vsel %vm642, %v634, %v639
        %v644 = vmul.f32 %v508, %v573
        %v645 = vmul.f32 %v509, %v583
        %v646 = vmul.f32 %v510, %v593
        %v647 = vmul.f32 %v511, %v603
        %v648 = vmul.f32 %v512, %v613
        %v649 = vmul.f32 %v513, %v623
        %v650 = vmul.f32 %v514, %v633
        %v651 = vmul.f32 %v515, %v643
        %v652 = vld [vmem:[%s3] sm:$0x1]
        %v654 = vperm.slane %v652, 0
        %v656 = vmul.f32 %v644, %v654
        %v657 = vmul.f32 %v645, %v654
        %v658 = vmul.f32 %v646, %v654
        %v659 = vmul.f32 %v647, %v654
        %v660 = vmul.f32 %v648, %v654
        %v661 = vmul.f32 %v649, %v654
        %v662 = vmul.f32 %v650, %v654
        %v663 = vmul.f32 %v651, %v654
        %v664 = vld [vmem:[%s4] sm:$0x1]
        %v666 = vperm.slane %v664, 0
        %v668 = vadd.f32 %v656, %v666
        %v669 = vadd.f32 %v657, %v666
        %v670 = vadd.f32 %v658, %v666
        %v671 = vadd.f32 %v659, %v666
        %v672 = vadd.f32 %v660, %v666
        %v673 = vadd.f32 %v661, %v666
        %v674 = vadd.f32 %v662, %v666
        %v675 = vadd.f32 %v663, %v666
        %v676 = vld [vmem:[%s314] sm:$0xf]
        %v677 = vld [vmem:[%s314 + $0x4] sm:$0xf]
        %v678 = vld [vmem:[%s314 + $0x8] sm:$0xf]
        %v679 = vld [vmem:[%s314 + $0xc] sm:$0xf]
        %v680 = vld [vmem:[%s314 + $0x10] sm:$0xf]
        %v681 = vld [vmem:[%s314 + $0x14] sm:$0xf]
        %v682 = vld [vmem:[%s314 + $0x18] sm:$0xf]
        %v683 = vld [vmem:[%s314 + $0x1c] sm:$0xf]
        %v684 = vunpack.c.l.bf16 %v676
        %v685 = vunpack.c.l.bf16 %v677
        %v686 = vunpack.c.l.bf16 %v678
        %v687 = vunpack.c.l.bf16 %v679
        %v688 = vunpack.c.l.bf16 %v680
        %v689 = vunpack.c.l.bf16 %v681
        %v690 = vunpack.c.l.bf16 %v682
        %v691 = vunpack.c.l.bf16 %v683
        %v692 = vadd.f32 %v668, %v684
        %v693 = vadd.f32 %v669, %v685
        %v694 = vadd.f32 %v670, %v686
        %v695 = vadd.f32 %v671, %v687
        %v696 = vadd.f32 %v672, %v688
        %v697 = vadd.f32 %v673, %v689
        %v698 = vadd.f32 %v674, %v690
        %v699 = vadd.f32 %v675, %v691
        %v700 = vpack.c.bf16 %v692, %v692
        %v701 = vpack.c.bf16 %v693, %v693
        %v702 = vpack.c.bf16 %v694, %v694
        %v703 = vpack.c.bf16 %v695, %v695
        %v704 = vpack.c.bf16 %v696, %v696
        %v705 = vpack.c.bf16 %v697, %v697
        %v706 = vpack.c.bf16 %v698, %v698
        %v707 = vpack.c.bf16 %v699, %v699
        %vm708 = vcmask 257024
        %709 = vst.msk [vmem:[%s320] sm:$0xf] %vm708, %v700
        %710 = vst.msk [vmem:[%s320 + $0x4] sm:$0xf] %vm708, %v701
        %711 = vst.msk [vmem:[%s320 + $0x8] sm:$0xf] %vm708, %v702
        %712 = vst.msk [vmem:[%s320 + $0xc] sm:$0xf] %vm708, %v703
        %713 = vst.msk [vmem:[%s320 + $0x10] sm:$0xf] %vm708, %v704
        %714 = vst.msk [vmem:[%s320 + $0x14] sm:$0xf] %vm708, %v705
        %715 = vst.msk [vmem:[%s320 + $0x18] sm:$0xf] %vm708, %v706
        %716 = vst.msk [vmem:[%s320 + $0x1c] sm:$0xf] %vm708, %v707
      $region52: #{forward.25} parent=43 // pred_fallthru
        _
      %s717 = smul.u32 8, %s21
      %p718 = scmp.lt.s32.totalorder %s717, 15
      %s719 = scalar_select %p718, %s717, 15
      %s720 = smul.addr %s719, 4
      %s721 = scalar_lea.vmem %s6, %s720
      // Predicated region
      $region53: #{forward.25} parent=43 // pred_check
        %p722 = pneg %p190
      $region54: #{forward.25} parent=43 // pred_check_branch
        %724 = sbr.rel (%p722) target = $region56
      $region55: #{forward.25} parent=43 // pred_region
        %s725 = smul.u32 8, %s21
      $region56: #{forward.25} parent=43 // pred_fallthru
        _
    $region44: #{forward.25} parent=5 // pred_fallthru
      _
    %p726 = scmp.le.s32.totalorder 2, %s12
    // Predicated region
    $region57: #{forward.25} parent=5 // pred_check
      %p727 = pneg %p726
    $region58: #{forward.25} parent=5 // pred_check_branch
      %729 = sbr.rel (%p727) target = $region60
    $region59: #{forward.25} parent=5 // pred_region
      %s730 = ssub.s32 %s12, 2
      // Predicated region
      $region61: #{forward.25} parent=59 // pred_check
        %p731 = pneg %p196
      $region62: #{forward.25} parent=59 // pred_check_branch
        %733 = sbr.rel (%p731) target = $region64
      $region63: #{forward.25} parent=59 // pred_region
        %s734 = smul.u32 8, %s23
        %p735 = scmp.lt.s32.totalorder %s734, 15
        %s736 = scalar_select %p735, %s734, 15
        %s737 = smul.addr %s736, 4
        %s738 = scalar_lea.vmem %s6, %s737
      $region64: #{forward.25} parent=59 // pred_fallthru
        _
    $region60: #{forward.25} parent=5 // pred_fallthru
      _
  $region6: #{forward.25} parent=0 // loop_footer
    %s16 = sadd.s32 1, %s12
  $region7: #{forward.25} parent=0 // loop_footer_branch
    %11 = sbr.rel target = $region3
  $region8: #{forward.25} parent=0 // loop_exit
    _

// kernel: forward.27
$region0: #{forward.27}
  #allocation0 [shape = 'u32[]', space=smem, size = 0x4, offset = 0x4, fixed_abs, tag = 'smem constant byte address 0x4 - core index']
  #allocation1 [shape = 'u32[72,128]{1,0:T(1,128)}', space=vmem, size = 0x9000, scoped, tag = 'internal scratch']
  #allocation2 [shape = 'f32[64,32]{1,0:T(8,128)}', space=vmem, size = 0x8000, scoped, tag = 'scratch operand']
  %s0 = inlined_call_operand.vmem [shape: bf16[128,128], index: 0, kind: input, shape index: {}]
  %s1 = inlined_call_operand.vmem [shape: bf16[128,32], index: 1, kind: input, shape index: {}]
  %s2 = inlined_call_operand.vmem [shape: f32[1,32], index: 2, kind: input, shape index: {}]
  %s3 = inlined_call_operand.vmem [shape: f32[1,32], index: 3, kind: input, shape index: {}]
  %s4 = inlined_call_operand.vmem [shape: f32[1,32], index: 4, kind: input, shape index: {}]
  %s5 = inlined_call_operand.vmem [shape: bf16[128,32], index: 5, kind: input, shape index: {}]
  %s6 = inlined_call_operand.vmem [shape: bf16[128,32], index: 6, kind: output, shape index: {}]
  %s7 = sld [smem:[#allocation0]]
  $region65: #{forward.27} parent=0
    _
  %s9 = ssub.s32 1, %s7
  %s10 = scalar_select 0, %s9, %s7
  loop: start=0, step=1, limit=4
  $region2: #{forward.27} parent=0 // loop_pre_header
    _
  $region3: #{forward.27} parent=0 // loop_header
    %s12 = sphi 0, %s16
    %p13 = scmp.ge.s32.totalorder %s12, 4
    %s19 = sphi 0, %s31
    %s20 = sphi 0, %s27
    %s21 = sphi 0, %s19
    %s22 = sphi 0, %s20
    %s23 = sphi 0, %s21
    %s24 = sphi 0, %s22
    %s36 = sphi 0, %s38
    %s39 = sphi 0, %s36
    %s40 = sphi 0, %s39
    %s56 = sphi 0, %s40
    %s62 = sphi 0, %s64
    %s65 = sphi 0, %s62
    %s66 = sphi 0, %s65
    %s82 = sphi 0, %s66
    %s86 = sphi 0, %s86
    %s88 = sphi 0, %s86
    %s89 = sphi 0, %s88
    %s103 = sphi 0, %s89
    %s107 = sphi 0, %s107
    %s109 = sphi 0, %s107
    %s110 = sphi 0, %s109
    %s124 = sphi 0, %s110
    %s128 = sphi 0, %s128
    %s130 = sphi 0, %s128
    %s131 = sphi 0, %s130
    %s145 = sphi 0, %s131
    %s151 = sphi 0, %s153
    %s154 = sphi 0, %s151
    %s155 = sphi 0, %s154
    %s171 = sphi 0, %s155
    %s177 = sphi 0, %s179
    %s180 = sphi 0, %s177
    %s181 = sphi 0, %s180
    %s197 = sphi 0, %s181
  $region4: #{forward.27} parent=0 // loop_header_branch
    %15 = sbr.rel (%p13) target = $region8
  $region5: #{forward.27} parent=0 // loop_body
    %s17 = ssub.s32 %s12, 1
    %s18 = ssub.s32 %s12, 2
    %s25 = sadd.s32 1, %s20
    %p26 = scmp.ge.s32.totalorder %s25, 1
    %s27 = scalar_select %p26, 0, %s25
    %s28 = sadd.s32 1, %s19
    %s29 = scalar_select %p26, %s28, %s19
    %p30 = scmp.ge.s32.totalorder %s29, 2
    %s31 = scalar_select %p30, 0, %s29
    %s32 = ssub.s32 %s19, %s31
    %s33 = ssub.s32 %s20, %s27
    %s34 = sor.u32 %s32, %s33
    %p35 = scmp.eq.s32.totalorder %s34, 0
    %s37 = sadd.s32 %s36, 1
    %s38 = scalar_select %p35, %s36, %s37
    %p41 = pneg %p35
    %p42 = scmp.eq.s32.totalorder %s12, 1
    %p43 = por %p41, %p42
    %p44 = scmp.ne.s32.totalorder %s36, %s39
    %p45 = scmp.eq.s32.totalorder %s12, 0
    %p46 = por %p44, %p45
    %p47 = scmp.ne.s32.totalorder %s36, %s39
    %p48 = scmp.eq.s32.totalorder %s17, 1
    %p49 = por %p47, %p48
    %p50 = scmp.ne.s32.totalorder %s39, %s40
    %p51 = scmp.eq.s32.totalorder %s17, 0
    %p52 = por %p50, %p51
    %p53 = scmp.ne.s32.totalorder %s39, %s40
    %p54 = scmp.eq.s32.totalorder %s18, 1
    %p55 = por %p53, %p54
    %p57 = scmp.ne.s32.totalorder %s40, %s56
    %p58 = scmp.eq.s32.totalorder %s18, 0
    %p59 = por %p57, %p58
    %s60 = ssub.s32 %s20, %s27
    %p61 = scmp.eq.s32.totalorder %s60, 0
    %s63 = sadd.s32 %s62, 1
    %s64 = scalar_select %p61, %s62, %s63
    %p67 = pneg %p61
    %p68 = scmp.eq.s32.totalorder %s12, 1
    %p69 = por %p67, %p68
    %p70 = scmp.ne.s32.totalorder %s62, %s65
    %p71 = scmp.eq.s32.totalorder %s12, 0
    %p72 = por %p70, %p71
    %p73 = scmp.ne.s32.totalorder %s62, %s65
    %p74 = scmp.eq.s32.totalorder %s17, 1
    %p75 = por %p73, %p74
    %p76 = scmp.ne.s32.totalorder %s65, %s66
    %p77 = scmp.eq.s32.totalorder %s17, 0
    %p78 = por %p76, %p77
    %p79 = scmp.ne.s32.totalorder %s65, %s66
    %p80 = scmp.eq.s32.totalorder %s18, 1
    %p81 = por %p79, %p80
    %p83 = scmp.ne.s32.totalorder %s66, %s82
    %p84 = scmp.eq.s32.totalorder %s18, 0
    %p85 = por %p83, %p84
    %s87 = sadd.s32 %s86, 1
    %p90 = scmp.eq.s32.totalorder %s12, 1
    %p91 = scmp.ne.s32.totalorder %s86, %s88
    %p92 = scmp.eq.s32.totalorder %s12, 0
    %p93 = por %p91, %p92
    %p94 = scmp.ne.s32.totalorder %s86, %s88
    %p95 = scmp.eq.s32.totalorder %s17, 1
    %p96 = por %p94, %p95
    %p97 = scmp.ne.s32.totalorder %s88, %s89
    %p98 = scmp.eq.s32.totalorder %s17, 0
    %p99 = por %p97, %p98
    %p100 = scmp.ne.s32.totalorder %s88, %s89
    %p101 = scmp.eq.s32.totalorder %s18, 1
    %p102 = por %p100, %p101
    %p104 = scmp.ne.s32.totalorder %s89, %s103
    %p105 = scmp.eq.s32.totalorder %s18, 0
    %p106 = por %p104, %p105
    %s108 = sadd.s32 %s107, 1
    %p111 = scmp.eq.s32.totalorder %s12, 1
    %p112 = scmp.ne.s32.totalorder %s107, %s109
    %p113 = scmp.eq.s32.totalorder %s12, 0
    %p114 = por %p112, %p113
    %p115 = scmp.ne.s32.totalorder %s107, %s109
    %p116 = scmp.eq.s32.totalorder %s17, 1
    %p117 = por %p115, %p116
    %p118 = scmp.ne.s32.totalorder %s109, %s110
    %p119 = scmp.eq.s32.totalorder %s17, 0
    %p120 = por %p118, %p119
    %p121 = scmp.ne.s32.totalorder %s109, %s110
    %p122 = scmp.eq.s32.totalorder %s18, 1
    %p123 = por %p121, %p122
    %p125 = scmp.ne.s32.totalorder %s110, %s124
    %p126 = scmp.eq.s32.totalorder %s18, 0
    %p127 = por %p125, %p126
    %s129 = sadd.s32 %s128, 1
    %p132 = scmp.eq.s32.totalorder %s12, 1
    %p133 = scmp.ne.s32.totalorder %s128, %s130
    %p134 = scmp.eq.s32.totalorder %s12, 0
    %p135 = por %p133, %p134
    %p136 = scmp.ne.s32.totalorder %s128, %s130
    %p137 = scmp.eq.s32.totalorder %s17, 1
    %p138 = por %p136, %p137
    %p139 = scmp.ne.s32.totalorder %s130, %s131
    %p140 = scmp.eq.s32.totalorder %s17, 0
    %p141 = por %p139, %p140
    %p142 = scmp.ne.s32.totalorder %s130, %s131
    %p143 = scmp.eq.s32.totalorder %s18, 1
    %p144 = por %p142, %p143
    %p146 = scmp.ne.s32.totalorder %s131, %s145
    %p147 = scmp.eq.s32.totalorder %s18, 0
    %p148 = por %p146, %p147
    %s149 = ssub.s32 %s19, %s31
    %p150 = scmp.eq.s32.totalorder %s149, 0
    %s152 = sadd.s32 %s151, 1
    %s153 = scalar_select %p150, %s151, %s152
    %p156 = pneg %p150
    %p157 = scmp.eq.s32.totalorder %s12, 1
    %p158 = por %p156, %p157
    %p159 = scmp.ne.s32.totalorder %s151, %s154
    %p160 = scmp.eq.s32.totalorder %s12, 0
    %p161 = por %p159, %p160
    %p162 = scmp.ne.s32.totalorder %s151, %s154
    %p163 = scmp.eq.s32.totalorder %s17, 1
    %p164 = por %p162, %p163
    %p165 = scmp.ne.s32.totalorder %s154, %s155
    %p166 = scmp.eq.s32.totalorder %s17, 0
    %p167 = por %p165, %p166
    %p168 = scmp.ne.s32.totalorder %s154, %s155
    %p169 = scmp.eq.s32.totalorder %s18, 1
    %p170 = por %p168, %p169
    %p172 = scmp.ne.s32.totalorder %s155, %s171
    %p173 = scmp.eq.s32.totalorder %s18, 0
    %p174 = por %p172, %p173
    %s175 = ssub.s32 %s19, %s31
    %p176 = scmp.eq.s32.totalorder %s175, 0
    %s178 = sadd.s32 %s177, 1
    %s179 = scalar_select %p176, %s177, %s178
    %p182 = pneg %p176
    %p183 = scmp.eq.s32.totalorder %s12, 1
    %p184 = por %p182, %p183
    %p185 = scmp.ne.s32.totalorder %s177, %s180
    %p186 = scmp.eq.s32.totalorder %s12, 0
    %p187 = por %p185, %p186
    %p188 = scmp.ne.s32.totalorder %s177, %s180
    %p189 = scmp.eq.s32.totalorder %s17, 1
    %p190 = por %p188, %p189
    %p191 = scmp.ne.s32.totalorder %s180, %s181
    %p192 = scmp.eq.s32.totalorder %s17, 0
    %p193 = por %p191, %p192
    %p194 = scmp.ne.s32.totalorder %s180, %s181
    %p195 = scmp.eq.s32.totalorder %s18, 1
    %p196 = por %p194, %p195
    %p198 = scmp.ne.s32.totalorder %s181, %s197
    %p199 = scmp.eq.s32.totalorder %s18, 0
    %p200 = por %p198, %p199
    %p201 = scmp.le.s32.totalorder 1, %s12
    %p202 = scmp.lt.s32.totalorder %s12, 3
    %p203 = pnand %p201, %p202
    %p204 = pneg %p203
    // Predicated region
    $region9: #{forward.27} parent=5 // pred_check
      _
    $region10: #{forward.27} parent=5 // pred_check_branch
      %206 = sbr.rel (%p203) target = $region12
    $region11: #{forward.27} parent=5 // pred_region
      %s207 = ssub.s32 %s12, 1
      // Predicated region
      $region13: #{forward.27} parent=11 // pred_check
        %p208 = pneg %p78
      $region14: #{forward.27} parent=11 // pred_check_branch
        %210 = sbr.rel (%p208) target = $region16
      $region15: #{forward.27} parent=11 // pred_region
        %s211 = smul.u32 16, %s22
        %p212 = scmp.lt.s32.totalorder %s211, 15
        %s213 = scalar_select %p212, %s211, 15
        %s214 = smul.addr %s213, 4
        %s215 = scalar_lea.vmem %s1, %s214
        %s216 = smul.u32 16, %s22
      $region16: #{forward.27} parent=11 // pred_fallthru
        _
      // Predicated region
      $region17: #{forward.27} parent=11 // pred_check
        %p217 = pneg %p99
      $region18: #{forward.27} parent=11 // pred_check_branch
        %219 = sbr.rel (%p217) target = $region20
      $region19: #{forward.27} parent=11 // pred_region
        _
      $region20: #{forward.27} parent=11 // pred_fallthru
        _
      // Predicated region
      $region21: #{forward.27} parent=11 // pred_check
        %p220 = pneg %p120
      $region22: #{forward.27} parent=11 // pred_check_branch
        %222 = sbr.rel (%p220) target = $region24
      $region23: #{forward.27} parent=11 // pred_region
        _
      $region24: #{forward.27} parent=11 // pred_fallthru
        _
      // Predicated region
      $region25: #{forward.27} parent=11 // pred_check
        %p223 = pneg %p141
      $region26: #{forward.27} parent=11 // pred_check_branch
        %225 = sbr.rel (%p223) target = $region28
      $region27: #{forward.27} parent=11 // pred_region
        _
      $region28: #{forward.27} parent=11 // pred_fallthru
        _
    $region12: #{forward.27} parent=5 // pred_fallthru
      _
    %p226 = scmp.lt.s32.totalorder %s12, 2
    // Predicated region
    $region29: #{forward.27} parent=5 // pred_check
      %p227 = pneg %p226
    $region30: #{forward.27} parent=5 // pred_check_branch
      %229 = sbr.rel (%p227) target = $region32
    $region31: #{forward.27} parent=5 // pred_region
      // Predicated region
      $region33: #{forward.27} parent=31 // pred_check
        %p230 = pneg %p46
      $region34: #{forward.27} parent=31 // pred_check_branch
        %232 = sbr.rel (%p230) target = $region36
      $region35: #{forward.27} parent=31 // pred_region
        %s233 = smul.u32 8, %s19
        %p234 = scmp.lt.s32.totalorder %s233, 15
        %s235 = scalar_select %p234, %s233, 15
        %p236 = scmp.lt.s32.totalorder %s20, 0
        %s237 = scalar_select %p236, %s20, 0
        %s238 = sadd.s32 %s237, %s235
        %s239 = smul.addr %s238, 4
        %s240 = scalar_lea.vmem %s0, %s239
        %s241 = smul.u32 8, %s19
      $region36: #{forward.27} parent=31 // pred_fallthru
        _
      // Predicated region
      $region37: #{forward.27} parent=31 // pred_check
        %p242 = pneg %p161
      $region38: #{forward.27} parent=31 // pred_check_branch
        %244 = sbr.rel (%p242) target = $region40
      $region39: #{forward.27} parent=31 // pred_region
        %s245 = smul.u32 8, %s19
        %p246 = scmp.lt.s32.totalorder %s245, 15
        %s247 = scalar_select %p246, %s245, 15
        %s248 = smul.addr %s247, 4
        %s249 = scalar_lea.vmem %s5, %s248
        %s250 = smul.u32 8, %s19
      $region40: #{forward.27} parent=31 // pred_fallthru
        _
    $region32: #{forward.27} parent=5 // pred_fallthru
      _
    %p251 = scmp.le.s32.totalorder 1, %s12
    %p252 = scmp.lt.s32.totalorder %s12, 3
    %p253 = pnand %p251, %p252
    %p254 = pneg %p253
    // Predicated region
    $region41: #{forward.27} parent=5 // pred_check
      _
    $region42: #{forward.27} parent=5 // pred_check_branch
      %256 = sbr.rel (%p253) target = $region44
    $region43: #{forward.27} parent=5 // pred_region
      %s257 = ssub.s32 %s12, 1
      %s258 = smul.u32 8, %s21
      %p259 = scmp.lt.s32.totalorder %s258, 15
      %s260 = scalar_select %p259, %s258, 15
      %p261 = scmp.lt.s32.totalorder %s22, 0
      %s262 = scalar_select %p261, %s22, 0
      %s263 = sadd.s32 %s262, %s260
      %s264 = smul.addr %s263, 4
      %s265 = scalar_lea.vmem %s0, %s264
      %p266 = pneg %p52
      %p267 = pneg %p49
      %s268 = smul.u32 16, %s22
      %p269 = scmp.lt.s32.totalorder %s268, 15
      %s270 = scalar_select %p269, %s268, 15
      %s271 = smul.addr %s270, 4
      %s272 = scalar_lea.vmem %s1, %s271
      %p273 = pneg %p78
      %p274 = pneg %p75
      %p275 = pneg %p99
      %p276 = pneg %p96
      %p277 = pneg %p120
      %p278 = pneg %p117
      %p279 = pneg %p141
      %p280 = pneg %p138
      %s281 = smul.u32 8, %s21
      %p282 = scmp.lt.s32.totalorder %s281, 15
      %s283 = scalar_select %p282, %s281, 15
      %s284 = smul.addr %s283, 4
      %s285 = scalar_lea.vmem %s5, %s284
      %p286 = pneg %p167
      %p287 = pneg %p164
      %p288 = pneg %p193
      %p289 = pneg %p190
      %s290 = smul.u32 8, %s21
      %p291 = scmp.lt.s32.totalorder %s290, 15
      %s292 = scalar_select %p291, %s290, 15
      %s293 = smul.addr %s292, 4
      %s294 = scalar_lea.vmem %s6, %s293
      %s295 = smul.u32 8, %s21
      %p296 = scmp.lt.s32.totalorder %s295, 15
      %s297 = scalar_select %p296, %s295, 15
      %p298 = scmp.lt.s32.totalorder %s22, 0
      %s299 = scalar_select %p298, %s22, 0
      %s300 = sadd.s32 %s299, %s297
      %s301 = smul.addr %s300, 4
      %s302 = scalar_lea.vmem %s0, %s301
      %s303 = smul.u32 8, %s21
      %s304 = smul.u32 16, %s22
      %p305 = scmp.lt.s32.totalorder %s304, 15
      %s306 = scalar_select %p305, %s304, 15
      %s307 = smul.addr %s306, 4
      %s308 = scalar_lea.vmem %s1, %s307
      %s309 = smul.u32 16, %s22
      %s310 = smul.u32 8, %s21
      %p311 = scmp.lt.s32.totalorder %s310, 15
      %s312 = scalar_select %p311, %s310, 15
      %s313 = smul.addr %s312, 4
      %s314 = scalar_lea.vmem %s5, %s313
      %s315 = smul.u32 8, %s21
      %s316 = smul.u32 8, %s21
      %p317 = scmp.lt.s32.totalorder %s316, 15
      %s318 = scalar_select %p317, %s316, 15
      %s319 = smul.addr %s318, 4
      %s320 = scalar_lea.vmem %s6, %s319
      %s321 = smul.u32 8, %s21
      %p322 = scmp.eq.s32.totalorder %s22, 0
      // Predicated region
      $region45: #{forward.27} parent=43 // pred_check
        %p323 = pneg %p322
      $region46: #{forward.27} parent=43 // pred_check_branch
        %325 = sbr.rel (%p323) target = $region48
      $region47: #{forward.27} parent=43 // pred_region
        %vm326 = vcmask 261120
        %327 = vst.msk [vmem:[#allocation2] sm:$0xff] %vm326, 0.0
        %328 = vst.msk [vmem:[#allocation2 + $0x8] sm:$0xff] %vm326, 0.0
        %329 = vst.msk [vmem:[#allocation2 + $0x10] sm:$0xff] %vm326, 0.0
        %330 = vst.msk [vmem:[#allocation2 + $0x18] sm:$0xff] %vm326, 0.0
        %331 = vst.msk [vmem:[#allocation2 + $0x20] sm:$0xff] %vm326, 0.0
        %332 = vst.msk [vmem:[#allocation2 + $0x28] sm:$0xff] %vm326, 0.0
        %333 = vst.msk [vmem:[#allocation2 + $0x30] sm:$0xff] %vm326, 0.0
        %334 = vst.msk [vmem:[#allocation2 + $0x38] sm:$0xff] %vm326, 0.0
      $region48: #{forward.27} parent=43 // pred_fallthru
        _
      %v335 = vld [vmem:[#allocation2] sm:$0xff]
      %v336 = vld [vmem:[#allocation2 + $0x8] sm:$0xff]
      %v337 = vld [vmem:[#allocation2 + $0x10] sm:$0xff]
      %v338 = vld [vmem:[#allocation2 + $0x18] sm:$0xff]
      %v339 = vld [vmem:[#allocation2 + $0x20] sm:$0xff]
      %v340 = vld [vmem:[#allocation2 + $0x28] sm:$0xff]
      %v341 = vld [vmem:[#allocation2 + $0x30] sm:$0xff]
      %v342 = vld [vmem:[#allocation2 + $0x38] sm:$0xff]
      %v343 = vld [vmem:[%s302] sm:$0xf]
      %v344 = vld [vmem:[%s302 + $0x4] sm:$0xf]
      %v345 = vld [vmem:[%s302 + $0x8] sm:$0xf]
      %v346 = vld [vmem:[%s302 + $0xc] sm:$0xf]
      %v347 = vld [vmem:[%s302 + $0x10] sm:$0xf]
      %v348 = vld [vmem:[%s302 + $0x14] sm:$0xf]
      %v349 = vld [vmem:[%s302 + $0x18] sm:$0xf]
      %v350 = vld [vmem:[%s302 + $0x1c] sm:$0xf]
      %v351 = vld [vmem:[%s308] sm:$0xf]
      %v352 = vld [vmem:[%s308 + $0x4] sm:$0xf]
      %v353 = vld [vmem:[%s308 + $0x8] sm:$0xf]
      %v354 = vld [vmem:[%s308 + $0xc] sm:$0xf]
      %v355 = vld [vmem:[%s308 + $0x10] sm:$0xf]
      %v356 = vld [vmem:[%s308 + $0x14] sm:$0xf]
      %v357 = vld [vmem:[%s308 + $0x18] sm:$0xf]
      %v358 = vld [vmem:[%s308 + $0x1c] sm:$0xf]
      %v359 = vld [vmem:[%s308 + $0x20] sm:$0xf]
      %v360 = vld [vmem:[%s308 + $0x24] sm:$0xf]
      %v361 = vld [vmem:[%s308 + $0x28] sm:$0xf]
      %v362 = vld [vmem:[%s308 + $0x2c] sm:$0xf]
      %v363 = vld [vmem:[%s308 + $0x30] sm:$0xf]
      %v364 = vld [vmem:[%s308 + $0x34] sm:$0xf]
      %v365 = vld [vmem:[%s308 + $0x38] sm:$0xf]
      %v366 = vld [vmem:[%s308 + $0x3c] sm:$0xf]
      %v375 = vunpack.c.l.b16 %v343
      %v376 = vunpack.c.l.b16 %v344
      %v377 = vunpack.c.l.b16 %v345
      %v378 = vunpack.c.l.b16 %v346
      %v379 = vunpack.c.l.b16 %v347
      %v380 = vunpack.c.l.b16 %v348
      %v381 = vunpack.c.l.b16 %v349
      %v382 = vunpack.c.l.b16 %v350
      %v383 = vpack.c.b16 %v376, %v375
      %v384 = vpack.c.b16 %v378, %v377
      %v385 = vpack.c.b16 %v380, %v379
      %v386 = vpack.c.b16 %v382, %v381
      %v407 = vunpack.c.l.b16 %v351
      %v408 = vunpack.c.l.b16 %v352
      %v409 = vunpack.c.l.b16 %v353
      %v410 = vunpack.c.l.b16 %v354
      %v411 = vunpack.c.l.b16 %v355
      %v412 = vunpack.c.l.b16 %v356
      %v413 = vunpack.c.l.b16 %v357
      %v414 = vunpack.c.l.b16 %v358
      %v415 = vunpack.c.l.b16 %v359
      %v416 = vunpack.c.l.b16 %v360
      %v417 = vunpack.c.l.b16 %v361
      %v418 = vunpack.c.l.b16 %v362
      %v419 = vunpack.c.l.b16 %v363
      %v420 = vunpack.c.l.b16 %v364
      %v421 = vunpack.c.l.b16 %v365
      %v422 = vunpack.c.l.b16 %v366
      %v423 = vpack.c.b16 %v408, %v407
      %v424 = vpack.c.b16 %v410, %v409
      %v425 = vpack.c.b16 %v412, %v411
      %v426 = vpack.c.b16 %v414, %v413
      %v427 = vpack.c.b16 %v416, %v415
      %v428 = vpack.c.b16 %v418, %v417
      %v429 = vpack.c.b16 %v420, %v419
      %v430 = vpack.c.b16 %v422, %v421
      %439 = vmatpush.bf16.msra.mxu0 %v430
      %440 = vmatpush.bf16.msra.mxu0 %v429
      %441 = vmatpush.bf16.msra.mxu0 %v428
      %442 = vmatpush.bf16.msra.mxu0 %v427
      %443 = vmatpush.bf16.msra.mxu0 %v426
      %444 = vmatpush.bf16.msra.mxu0 %v425
      %445 = vmatpush.bf16.msra.mxu0 %v424
      %446 = vmatpush.bf16.msra.mxu0 %v423
      %447 = vmatmul.bf16.gmra.mxu0 %v383
      %v448 = vpop.f32.mrf.mxu0
      %v449 = vadd.f32 0.0, %v448
      %v450 = vpop.f32.mrf.mxu0
      %v451 = vadd.f32 0.0, %v450
      %452 = vmatmul.bf16.gmra.mxu0 %v384
      %v453 = vpop.f32.mrf.mxu0
      %v454 = vadd.f32 0.0, %v453
      %v455 = vpop.f32.mrf.mxu0
      %v456 = vadd.f32 0.0, %v455
      %457 = vmatmul.bf16.gmra.mxu0 %v385
      %v458 = vpop.f32.mrf.mxu0
      %v459 = vadd.f32 0.0, %v458
      %v460 = vpop.f32.mrf.mxu0
      %v461 = vadd.f32 0.0, %v460
      %462 = vmatmul.bf16.gmra.mxu0 %v386
      %v463 = vpop.f32.mrf.mxu0
      %v464 = vadd.f32 0.0, %v463
      %v465 = vpop.f32.mrf.mxu0
      %v466 = vadd.f32 0.0, %v465
      %467 = vdwg.mxu0
      %v468 = vadd.f32 %v335, %v449
      %v469 = vadd.f32 %v336, %v451
      %v470 = vadd.f32 %v337, %v454
      %v471 = vadd.f32 %v338, %v456
      %v472 = vadd.f32 %v339, %v459
      %v473 = vadd.f32 %v340, %v461
      %v474 = vadd.f32 %v341, %v464
      %v475 = vadd.f32 %v342, %v466
      %vm476 = vcmask 261120
      %477 = vst.msk [vmem:[#allocation2] sm:$0xff] %vm476, %v468
      %478 = vst.msk [vmem:[#allocation2 + $0x8] sm:$0xff] %vm476, %v469
      %479 = vst.msk [vmem:[#allocation2 + $0x10] sm:$0xff] %vm476, %v470
      %480 = vst.msk [vmem:[#allocation2 + $0x18] sm:$0xff] %vm476, %v471
      %481 = vst.msk [vmem:[#allocation2 + $0x20] sm:$0xff] %vm476, %v472
      %482 = vst.msk [vmem:[#allocation2 + $0x28] sm:$0xff] %vm476, %v473
      %483 = vst.msk [vmem:[#allocation2 + $0x30] sm:$0xff] %vm476, %v474
      %484 = vst.msk [vmem:[#allocation2 + $0x38] sm:$0xff] %vm476, %v475
      // Predicated region
      $region49: #{forward.27} parent=43 // pred_check
        %p485 = pneg %p322
      $region50: #{forward.27} parent=43 // pred_check_branch
        %487 = sbr.rel (%p485) target = $region52
      $region51: #{forward.27} parent=43 // pred_region
        %v488 = vld [vmem:[#allocation2] sm:$0xff]
        %v489 = vld [vmem:[#allocation2 + $0x8] sm:$0xff]
        %v490 = vld [vmem:[#allocation2 + $0x10] sm:$0xff]
        %v491 = vld [vmem:[#allocation2 + $0x18] sm:$0xff]
        %v492 = vld [vmem:[#allocation2 + $0x20] sm:$0xff]
        %v493 = vld [vmem:[#allocation2 + $0x28] sm:$0xff]
        %v494 = vld [vmem:[#allocation2 + $0x30] sm:$0xff]
        %v495 = vld [vmem:[#allocation2 + $0x38] sm:$0xff]
        %v496 = vld [vmem:[%s2] sm:$0x1]
        %v498 = vperm.slane %v496, 0
        %v500 = vadd.f32 %v488, %v498
        %v501 = vadd.f32 %v489, %v498
        %v502 = vadd.f32 %v490, %v498
        %v503 = vadd.f32 %v491, %v498
        %v504 = vadd.f32 %v492, %v498
        %v505 = vadd.f32 %v493, %v498
        %v506 = vadd.f32 %v494, %v498
        %v507 = vadd.f32 %v495, %v498
        %v508 = vsel %vm476, %v500, 0.0
        %509 = vadd.xlane.f32.xlu0 %v508
        %v510 = vpop.xlane.xlu0 %509
        %v511 = vsel %vm476, %v501, 0.0
        %512 = vadd.xlane.f32.xlu0 %v511
        %v513 = vpop.xlane.xlu0 %512
        %v514 = vsel %vm476, %v502, 0.0
        %515 = vadd.xlane.f32.xlu0 %v514
        %v516 = vpop.xlane.xlu0 %515
        %v517 = vsel %vm476, %v503, 0.0
        %518 = vadd.xlane.f32.xlu0 %v517
        %v519 = vpop.xlane.xlu0 %518
        %v520 = vsel %vm476, %v504, 0.0
        %521 = vadd.xlane.f32.xlu0 %v520
        %v522 = vpop.xlane.xlu0 %521
        %v523 = vsel %vm476, %v505, 0.0
        %524 = vadd.xlane.f32.xlu0 %v523
        %v525 = vpop.xlane.xlu0 %524
        %v526 = vsel %vm476, %v506, 0.0
        %527 = vadd.xlane.f32.xlu0 %v526
        %v528 = vpop.xlane.xlu0 %527
        %v529 = vsel %vm476, %v507, 0.0
        %530 = vadd.xlane.f32.xlu0 %v529
        %v531 = vpop.xlane.xlu0 %530
        %v532 = vrcp.pop 32.0
        %v533 = vmul.f32 32.0, %v532
        %v534 = vsub.f32 1.0, %v533
        %v535 = vmul.f32 %v532, %v534
        %v536 = vadd.f32 %v532, %v535
        %vm537 = vweird.f32 %v532
        %v538 = vsel %vm537, %v532, %v536
        %v539 = vmul.f32 %v510, %v538
        %v540 = vmul.f32 %v513, %v538
        %v541 = vmul.f32 %v516, %v538
        %v542 = vmul.f32 %v519, %v538
        %v543 = vmul.f32 %v522, %v538
        %v544 = vmul.f32 %v525, %v538
        %v545 = vmul.f32 %v528, %v538
        %v546 = vmul.f32 %v531, %v538
        %v547 = vsub.f32 %v500, %v539
        %v548 = vsub.f32 %v501, %v540
        %v549 = vsub.f32 %v502, %v541
        %v550 = vsub.f32 %v503, %v542
        %v551 = vsub.f32 %v504, %v543
        %v552 = vsub.f32 %v505, %v544
        %v553 = vsub.f32 %v506, %v545
        %v554 = vsub.f32 %v507, %v546
        %v555 = vmul.f32 %v547, %v547
        %v556 = vmul.f32 %v548, %v548
        %v557 = vmul.f32 %v549, %v549
        %v558 = vmul.f32 %v550, %v550
        %v559 = vmul.f32 %v551, %v551
        %v560 = vmul.f32 %v552, %v552
        %v561 = vmul.f32 %v553, %v553
        %v562 = vmul.f32 %v554, %v554
        %v563 = vsel %vm476, %v555, 0.0
        %564 = vadd.xlane.f32.xlu0 %v563
        %v565 = vpop.xlane.xlu0 %564
        %v566 = vsel %vm476, %v556, 0.0
        %567 = vadd.xlane.f32.xlu0 %v566
        %v568 = vpop.xlane.xlu0 %567
        %v569 = vsel %vm476, %v557, 0.0
        %570 = vadd.xlane.f32.xlu0 %v569
        %v571 = vpop.xlane.xlu0 %570
        %v572 = vsel %vm476, %v558, 0.0
        %573 = vadd.xlane.f32.xlu0 %v572
        %v574 = vpop.xlane.xlu0 %573
        %v575 = vsel %vm476, %v559, 0.0
        %576 = vadd.xlane.f32.xlu0 %v575
        %v577 = vpop.xlane.xlu0 %576
        %v578 = vsel %vm476, %v560, 0.0
        %579 = vadd.xlane.f32.xlu0 %v578
        %v580 = vpop.xlane.xlu0 %579
        %v581 = vsel %vm476, %v561, 0.0
        %582 = vadd.xlane.f32.xlu0 %v581
        %v583 = vpop.xlane.xlu0 %582
        %v584 = vsel %vm476, %v562, 0.0
        %585 = vadd.xlane.f32.xlu0 %v584
        %v586 = vpop.xlane.xlu0 %585
        %v587 = vmul.f32 %v565, %v538
        %v588 = vmul.f32 %v568, %v538
        %v589 = vmul.f32 %v571, %v538
        %v590 = vmul.f32 %v574, %v538
        %v591 = vmul.f32 %v577, %v538
        %v592 = vmul.f32 %v580, %v538
        %v593 = vmul.f32 %v583, %v538
        %v594 = vmul.f32 %v586, %v538
        %v595 = vadd.f32 %v587, 1e-05
        %v596 = vadd.f32 %v588, 1e-05
        %v597 = vadd.f32 %v589, 1e-05
        %v598 = vadd.f32 %v590, 1e-05
        %v599 = vadd.f32 %v591, 1e-05
        %v600 = vadd.f32 %v592, 1e-05
        %v601 = vadd.f32 %v593, 1e-05
        %v602 = vadd.f32 %v594, 1e-05
        %v603 = vrsqrt.pop %v595
        %v604 = vmul.f32 %v603, %v595
        %v605 = vmul.f32 %v604, %v603
        %v606 = vmul.f32 0.5, %v605
        %v607 = vsub.f32 1.5, %v606
        %v608 = vmul.f32 %v603, %v607
        %vm609 = vweird.f32 %v595
        %vm610 = vweird.f32 %v603
        %vm611 = vmor %vm609, %vm610
        %v612 = vsel %vm611, %v603, %v608
        %v613 = vrsqrt.pop %v596
        %v614 = vmul.f32 %v613, %v596
        %v615 = vmul.f32 %v614, %v613
        %v616 = vmul.f32 0.5, %v615
        %v617 = vsub.f32 1.5, %v616
        %v618 = vmul.f32 %v613, %v617
        %vm619 = vweird.f32 %v596
        %vm620 = vweird.f32 %v613
        %vm621 = vmor %vm619, %vm620
        %v622 = vsel %vm621, %v613, %v618
        %v623 = vrsqrt.pop %v597
        %v624 = vmul.f32 %v623, %v597
        %v625 = vmul.f32 %v624, %v623
        %v626 = vmul.f32 0.5, %v625
        %v627 = vsub.f32 1.5, %v626
        %v628 = vmul.f32 %v623, %v627
        %vm629 = vweird.f32 %v597
        %vm630 = vweird.f32 %v623
        %vm631 = vmor %vm629, %vm630
        %v632 = vsel %vm631, %v623, %v628
        %v633 = vrsqrt.pop %v598
        %v634 = vmul.f32 %v633, %v598
        %v635 = vmul.f32 %v634, %v633
        %v636 = vmul.f32 0.5, %v635
        %v637 = vsub.f32 1.5, %v636
        %v638 = vmul.f32 %v633, %v637
        %vm639 = vweird.f32 %v598
        %vm640 = vweird.f32 %v633
        %vm641 = vmor %vm639, %vm640
        %v642 = vsel %vm641, %v633, %v638
        %v643 = vrsqrt.pop %v599
        %v644 = vmul.f32 %v643, %v599
        %v645 = vmul.f32 %v644, %v643
        %v646 = vmul.f32 0.5, %v645
        %v647 = vsub.f32 1.5, %v646
        %v648 = vmul.f32 %v643, %v647
        %vm649 = vweird.f32 %v599
        %vm650 = vweird.f32 %v643
        %vm651 = vmor %vm649, %vm650
        %v652 = vsel %vm651, %v643, %v648
        %v653 = vrsqrt.pop %v600
        %v654 = vmul.f32 %v653, %v600
        %v655 = vmul.f32 %v654, %v653
        %v656 = vmul.f32 0.5, %v655
        %v657 = vsub.f32 1.5, %v656
        %v658 = vmul.f32 %v653, %v657
        %vm659 = vweird.f32 %v600
        %vm660 = vweird.f32 %v653
        %vm661 = vmor %vm659, %vm660
        %v662 = vsel %vm661, %v653, %v658
        %v663 = vrsqrt.pop %v601
        %v664 = vmul.f32 %v663, %v601
        %v665 = vmul.f32 %v664, %v663
        %v666 = vmul.f32 0.5, %v665
        %v667 = vsub.f32 1.5, %v666
        %v668 = vmul.f32 %v663, %v667
        %vm669 = vweird.f32 %v601
        %vm670 = vweird.f32 %v663
        %vm671 = vmor %vm669, %vm670
        %v672 = vsel %vm671, %v663, %v668
        %v673 = vrsqrt.pop %v602
        %v674 = vmul.f32 %v673, %v602
        %v675 = vmul.f32 %v674, %v673
        %v676 = vmul.f32 0.5, %v675
        %v677 = vsub.f32 1.5, %v676
        %v678 = vmul.f32 %v673, %v677
        %vm679 = vweird.f32 %v602
        %vm680 = vweird.f32 %v673
        %vm681 = vmor %vm679, %vm680
        %v682 = vsel %vm681, %v673, %v678
        %v683 = vmul.f32 %v547, %v612
        %v684 = vmul.f32 %v548, %v622
        %v685 = vmul.f32 %v549, %v632
        %v686 = vmul.f32 %v550, %v642
        %v687 = vmul.f32 %v551, %v652
        %v688 = vmul.f32 %v552, %v662
        %v689 = vmul.f32 %v553, %v672
        %v690 = vmul.f32 %v554, %v682
        %v691 = vld [vmem:[%s3] sm:$0x1]
        %v693 = vperm.slane %v691, 0
        %v695 = vmul.f32 %v683, %v693
        %v696 = vmul.f32 %v684, %v693
        %v697 = vmul.f32 %v685, %v693
        %v698 = vmul.f32 %v686, %v693
        %v699 = vmul.f32 %v687, %v693
        %v700 = vmul.f32 %v688, %v693
        %v701 = vmul.f32 %v689, %v693
        %v702 = vmul.f32 %v690, %v693
        %v703 = vld [vmem:[%s4] sm:$0x1]
        %v705 = vperm.slane %v703, 0
        %v707 = vadd.f32 %v695, %v705
        %v708 = vadd.f32 %v696, %v705
        %v709 = vadd.f32 %v697, %v705
        %v710 = vadd.f32 %v698, %v705
        %v711 = vadd.f32 %v699, %v705
        %v712 = vadd.f32 %v700, %v705
        %v713 = vadd.f32 %v701, %v705
        %v714 = vadd.f32 %v702, %v705
        %v715 = vld [vmem:[%s314] sm:$0xf]
        %v716 = vld [vmem:[%s314 + $0x4] sm:$0xf]
        %v717 = vld [vmem:[%s314 + $0x8] sm:$0xf]
        %v718 = vld [vmem:[%s314 + $0xc] sm:$0xf]
        %v719 = vld [vmem:[%s314 + $0x10] sm:$0xf]
        %v720 = vld [vmem:[%s314 + $0x14] sm:$0xf]
        %v721 = vld [vmem:[%s314 + $0x18] sm:$0xf]
        %v722 = vld [vmem:[%s314 + $0x1c] sm:$0xf]
        %v723 = vunpack.c.l.bf16 %v715
        %v724 = vunpack.c.l.bf16 %v716
        %v725 = vunpack.c.l.bf16 %v717
        %v726 = vunpack.c.l.bf16 %v718
        %v727 = vunpack.c.l.bf16 %v719
        %v728 = vunpack.c.l.bf16 %v720
        %v729 = vunpack.c.l.bf16 %v721
        %v730 = vunpack.c.l.bf16 %v722
        %v731 = vadd.f32 %v707, %v723
        %v732 = vadd.f32 %v708, %v724
        %v733 = vadd.f32 %v709, %v725
        %v734 = vadd.f32 %v710, %v726
        %v735 = vadd.f32 %v711, %v727
        %v736 = vadd.f32 %v712, %v728
        %v737 = vadd.f32 %v713, %v729
        %v738 = vadd.f32 %v714, %v730
        %v739 = vpack.c.bf16 %v731, %v731
        %v740 = vpack.c.bf16 %v732, %v732
        %v741 = vpack.c.bf16 %v733, %v733
        %v742 = vpack.c.bf16 %v734, %v734
        %v743 = vpack.c.bf16 %v735, %v735
        %v744 = vpack.c.bf16 %v736, %v736
        %v745 = vpack.c.bf16 %v737, %v737
        %v746 = vpack.c.bf16 %v738, %v738
        %vm747 = vcmask 257024
        %748 = vst.msk [vmem:[%s320] sm:$0xf] %vm747, %v739
        %749 = vst.msk [vmem:[%s320 + $0x4] sm:$0xf] %vm747, %v740
        %750 = vst.msk [vmem:[%s320 + $0x8] sm:$0xf] %vm747, %v741
        %751 = vst.msk [vmem:[%s320 + $0xc] sm:$0xf] %vm747, %v742
        %752 = vst.msk [vmem:[%s320 + $0x10] sm:$0xf] %vm747, %v743
        %753 = vst.msk [vmem:[%s320 + $0x14] sm:$0xf] %vm747, %v744
        %754 = vst.msk [vmem:[%s320 + $0x18] sm:$0xf] %vm747, %v745
        %755 = vst.msk [vmem:[%s320 + $0x1c] sm:$0xf] %vm747, %v746
      $region52: #{forward.27} parent=43 // pred_fallthru
        _
      %s756 = smul.u32 8, %s21
      %p757 = scmp.lt.s32.totalorder %s756, 15
      %s758 = scalar_select %p757, %s756, 15
      %s759 = smul.addr %s758, 4
      %s760 = scalar_lea.vmem %s6, %s759
      // Predicated region
      $region53: #{forward.27} parent=43 // pred_check
        %p761 = pneg %p190
      $region54: #{forward.27} parent=43 // pred_check_branch
        %763 = sbr.rel (%p761) target = $region56
      $region55: #{forward.27} parent=43 // pred_region
        %s764 = smul.u32 8, %s21
      $region56: #{forward.27} parent=43 // pred_fallthru
        _
    $region44: #{forward.27} parent=5 // pred_fallthru
      _
    %p765 = scmp.le.s32.totalorder 2, %s12
    // Predicated region
    $region57: #{forward.27} parent=5 // pred_check
      %p766 = pneg %p765
    $region58: #{forward.27} parent=5 // pred_check_branch
      %768 = sbr.rel (%p766) target = $region60
    $region59: #{forward.27} parent=5 // pred_region
      %s769 = ssub.s32 %s12, 2
      // Predicated region
      $region61: #{forward.27} parent=59 // pred_check
        %p770 = pneg %p196
      $region62: #{forward.27} parent=59 // pred_check_branch
        %772 = sbr.rel (%p770) target = $region64
      $region63: #{forward.27} parent=59 // pred_region
        %s773 = smul.u32 8, %s23
        %p774 = scmp.lt.s32.totalorder %s773, 15
        %s775 = scalar_select %p774, %s773, 15
        %s776 = smul.addr %s775, 4
        %s777 = scalar_lea.vmem %s6, %s776
      $region64: #{forward.27} parent=59 // pred_fallthru
        _
    $region60: #{forward.27} parent=5 // pred_fallthru
      _
  $region6: #{forward.27} parent=0 // loop_footer
    %s16 = sadd.s32 1, %s12
  $region7: #{forward.27} parent=0 // loop_footer_branch
    %11 = sbr.rel target = $region3
  $region8: #{forward.27} parent=0 // loop_exit
    _

// kernel: forward.29
$region0: #{forward.29}
  #allocation0 [shape = 'u32[]', space=smem, size = 0x4, offset = 0x4, fixed_abs, tag = 'smem constant byte address 0x4 - core index']
  #allocation1 [shape = 'u32[72,128]{1,0:T(1,128)}', space=vmem, size = 0x9000, scoped, tag = 'internal scratch']
  %s0 = inlined_call_operand.vmem [shape: f32[1,2], index: 0, kind: input, shape index: {}]
  %s1 = inlined_call_operand.vmem [shape: bf16[128,96], index: 1, kind: input, shape index: {}]
  %s2 = inlined_call_operand.vmem [shape: f32[2,16,16], index: 2, kind: input, shape index: {}]
  %s3 = inlined_call_operand.vmem [shape: f32[4,16,16], index: 3, kind: input, shape index: {}]
  %s4 = inlined_call_operand.vmem [shape: bf16[128,32], index: 4, kind: output, shape index: {}]
  %s5 = sld [smem:[#allocation0]]
  $region53: #{forward.29} parent=0
    _
  %s7 = ssub.s32 1, %s5
  %s8 = scalar_select 0, %s7, %s5
  $region1: #{forward.29} parent=0
    #allocation2 [shape = 'u8[512]{0}', space=smem, size = 0x200, scoped, tag = 'input window, operand 0, single buffered']
    #allocation3 [shape = 's32[2]{0}', space=sflag, size = 0x8, scoped, tag = 'scoped memory for forward.29']
    %9 = vsyncpa [#allocation3], 0
    loop: start=0, step=1, limit=10
    $region2: #{forward.29} parent=1 // loop_pre_header
      _
    $region3: #{forward.29} parent=1 // loop_header
      %s11 = sphi 0, %s15
      %p12 = scmp.ge.s32.totalorder %s11, 10
      %s18 = sphi 0, %s30
      %s19 = sphi 0, %s26
      %s20 = sphi 0, %s18
      %s21 = sphi 0, %s19
      %s22 = sphi 0, %s20
      %s23 = sphi 0, %s21
      %s31 = sphi 0, %s31
      %s33 = sphi 0, %s31
      %s34 = sphi 0, %s33
      %s48 = sphi 0, %s34
      %s58 = sphi 0, %s60
      %s61 = sphi 0, %s58
      %s62 = sphi 0, %s61
      %s78 = sphi 0, %s62
      %s82 = sphi 0, %s82
      %s84 = sphi 0, %s82
      %s85 = sphi 0, %s84
      %s99 = sphi 0, %s85
      %s105 = sphi 0, %s107
      %s108 = sphi 0, %s105
      %s109 = sphi 0, %s108
      %s125 = sphi 0, %s109
      %s135 = sphi 0, %s137
      %s138 = sphi 0, %s135
      %s139 = sphi 0, %s138
      %s155 = sphi 0, %s139
    $region4: #{forward.29} parent=1 // loop_header_branch
      %14 = sbr.rel (%p12) target = $region8
    $region5: #{forward.29} parent=1 // loop_body
      %s16 = ssub.s32 %s11, 1
      %s17 = ssub.s32 %s11, 2
      %s24 = sadd.s32 1, %s19
      %p25 = scmp.ge.s32.totalorder %s24, 2
      %s26 = scalar_select %p25, 0, %s24
      %s27 = sadd.s32 1, %s18
      %s28 = scalar_select %p25, %s27, %s18
      %p29 = scmp.ge.s32.totalorder %s28, 4
      %s30 = scalar_select %p29, 0, %s28
      %s32 = sadd.s32 %s31, 1
      %p35 = scmp.eq.s32.totalorder %s11, 7
      %p36 = scmp.ne.s32.totalorder %s31, %s33
      %p37 = scmp.eq.s32.totalorder %s11, 0
      %p38 = por %p36, %p37
      %p39 = scmp.ne.s32.totalorder %s31, %s33
      %p40 = scmp.eq.s32.totalorder %s16, 7
      %p41 = por %p39, %p40
      %p42 = scmp.ne.s32.totalorder %s33, %s34
      %p43 = scmp.eq.s32.totalorder %s16, 0
      %p44 = por %p42, %p43
      %p45 = scmp.ne.s32.totalorder %s33, %s34
      %p46 = scmp.eq.s32.totalorder %s17, 7
      %p47 = por %p45, %p46
      %p49 = scmp.ne.s32.totalorder %s34, %s48
      %p50 = scmp.eq.s32.totalorder %s17, 0
      %p51 = por %p49, %p50
      %s52 = smul.u32 %s19, 4
      %s53 = sadd.s32 %s52, %s18
      %s54 = smul.u32 %s26, 4
      %s55 = sadd.s32 %s54, %s30
      %s56 = ssub.s32 %s53, %s55
      %p57 = scmp.eq.s32.totalorder %s56, 0
      %s59 = sadd.s32 %s58, 1
      %s60 = scalar_select %p57, %s58, %s59
      %p63 = pneg %p57
      %p64 = scmp.eq.s32.totalorder %s11, 7
      %p65 = por %p63, %p64
      %p66 = scmp.ne.s32.totalorder %s58, %s61
      %p67 = scmp.eq.s32.totalorder %s11, 0
      %p68 = por %p66, %p67
      %p69 = scmp.ne.s32.totalorder %s58, %s61
      %p70 = scmp.eq.s32.totalorder %s16, 7
      %p71 = por %p69, %p70
      %p72 = scmp.ne.s32.totalorder %s61, %s62
      %p73 = scmp.eq.s32.totalorder %s16, 0
      %p74 = por %p72, %p73
      %p75 = scmp.ne.s32.totalorder %s61, %s62
      %p76 = scmp.eq.s32.totalorder %s17, 7
      %p77 = por %p75, %p76
      %p79 = scmp.ne.s32.totalorder %s62, %s78
      %p80 = scmp.eq.s32.totalorder %s17, 0
      %p81 = por %p79, %p80
      %s83 = sadd.s32 %s82, 1
      %p86 = scmp.eq.s32.totalorder %s11, 7
      %p87 = scmp.ne.s32.totalorder %s82, %s84
      %p88 = scmp.eq.s32.totalorder %s11, 0
      %p89 = por %p87, %p88
      %p90 = scmp.ne.s32.totalorder %s82, %s84
      %p91 = scmp.eq.s32.totalorder %s16, 7
      %p92 = por %p90, %p91
      %p93 = scmp.ne.s32.totalorder %s84, %s85
      %p94 = scmp.eq.s32.totalorder %s16, 0
      %p95 = por %p93, %p94
      %p96 = scmp.ne.s32.totalorder %s84, %s85
      %p97 = scmp.eq.s32.totalorder %s17, 7
      %p98 = por %p96, %p97
      %p100 = scmp.ne.s32.totalorder %s85, %s99
      %p101 = scmp.eq.s32.totalorder %s17, 0
      %p102 = por %p100, %p101
      %s103 = ssub.s32 %s18, %s30
      %p104 = scmp.eq.s32.totalorder %s103, 0
      %s106 = sadd.s32 %s105, 1
      %s107 = scalar_select %p104, %s105, %s106
      %p110 = pneg %p104
      %p111 = scmp.eq.s32.totalorder %s11, 7
      %p112 = por %p110, %p111
      %p113 = scmp.ne.s32.totalorder %s105, %s108
      %p114 = scmp.eq.s32.totalorder %s11, 0
      %p115 = por %p113, %p114
      %p116 = scmp.ne.s32.totalorder %s105, %s108
      %p117 = scmp.eq.s32.totalorder %s16, 7
      %p118 = por %p116, %p117
      %p119 = scmp.ne.s32.totalorder %s108, %s109
      %p120 = scmp.eq.s32.totalorder %s16, 0
      %p121 = por %p119, %p120
      %p122 = scmp.ne.s32.totalorder %s108, %s109
      %p123 = scmp.eq.s32.totalorder %s17, 7
      %p124 = por %p122, %p123
      %p126 = scmp.ne.s32.totalorder %s109, %s125
      %p127 = scmp.eq.s32.totalorder %s17, 0
      %p128 = por %p126, %p127
      %s129 = smul.u32 %s19, 4
      %s130 = sadd.s32 %s129, %s18
      %s131 = smul.u32 %s26, 4
      %s132 = sadd.s32 %s131, %s30
      %s133 = ssub.s32 %s130, %s132
      %p134 = scmp.eq.s32.totalorder %s133, 0
      %s136 = sadd.s32 %s135, 1
      %s137 = scalar_select %p134, %s135, %s136
      %p140 = pneg %p134
      %p141 = scmp.eq.s32.totalorder %s11, 7
      %p142 = por %p140, %p141
      %p143 = scmp.ne.s32.totalorder %s135, %s138
      %p144 = scmp.eq.s32.totalorder %s11, 0
      %p145 = por %p143, %p144
      %p146 = scmp.ne.s32.totalorder %s135, %s138
      %p147 = scmp.eq.s32.totalorder %s16, 7
      %p148 = por %p146, %p147
      %p149 = scmp.ne.s32.totalorder %s138, %s139
      %p150 = scmp.eq.s32.totalorder %s16, 0
      %p151 = por %p149, %p150
      %p152 = scmp.ne.s32.totalorder %s138, %s139
      %p153 = scmp.eq.s32.totalorder %s17, 7
      %p154 = por %p152, %p153
      %p156 = scmp.ne.s32.totalorder %s139, %s155
      %p157 = scmp.eq.s32.totalorder %s17, 0
      %p158 = por %p156, %p157
      %p159 = scmp.le.s32.totalorder 1, %s11
      %p160 = scmp.lt.s32.totalorder %s11, 9
      %p161 = pnand %p159, %p160
      %p162 = pneg %p161
      // Predicated region
      $region9: #{forward.29} parent=5 // pred_check
        _
      $region10: #{forward.29} parent=5 // pred_check_branch
        %164 = sbr.rel (%p161) target = $region12
      $region11: #{forward.29} parent=5 // pred_region
        %s165 = ssub.s32 %s11, 1
        // Predicated region
        $region13: #{forward.29} parent=11 // pred_check
          %p166 = pneg %p44
        $region14: #{forward.29} parent=11 // pred_check_branch
          %168 = sbr.rel (%p166) target = $region16
        $region15: #{forward.29} parent=11 // pred_region
          %170 = vsyncadd [#allocation3], 0
          %s172 = sshll.u32 %s0, 4
          %s173 = int_to_ptr.vmem [resolvable:$true] %s172
          %175 = dma.vmem_to_smem %s173, 16, [#allocation2], [#allocation3]
        $region16: #{forward.29} parent=11 // pred_fallthru
          _
        // Predicated region
        $region17: #{forward.29} parent=11 // pred_check
          %p176 = pneg %p95
        $region18: #{forward.29} parent=11 // pred_check_branch
          %178 = sbr.rel (%p176) target = $region20
        $region19: #{forward.29} parent=11 // pred_region
          _
        $region20: #{forward.29} parent=11 // pred_fallthru
          _
      $region12: #{forward.29} parent=5 // pred_fallthru
        _
      %p179 = scmp.lt.s32.totalorder %s11, 8
      // Predicated region
      $region21: #{forward.29} parent=5 // pred_check
        %p180 = pneg %p179
      $region22: #{forward.29} parent=5 // pred_check_branch
        %182 = sbr.rel (%p180) target = $region24
      $region23: #{forward.29} parent=5 // pred_region
        // Predicated region
        $region25: #{forward.29} parent=23 // pred_check
          %p183 = pneg %p68
        $region26: #{forward.29} parent=23 // pred_check_branch
          %185 = sbr.rel (%p183) target = $region28
        $region27: #{forward.29} parent=23 // pred_region
          %s186 = smul.u32 %s19, 4
          %s187 = sadd.s32 %s186, %s18
          %s188 = smul.u32 2, %s187
          %p189 = scmp.lt.s32.totalorder %s188, 15
          %s190 = scalar_select %p189, %s188, 15
          %s191 = smul.addr %s190, 4
          %s192 = scalar_lea.vmem %s1, %s191
          %s193 = smul.u32 %s19, 4
          %s194 = sadd.s32 %s193, %s18
          %s195 = smul.u32 2, %s194
        $region28: #{forward.29} parent=23 // pred_fallthru
          _
        // Predicated region
        $region29: #{forward.29} parent=23 // pred_check
          %p196 = pneg %p115
        $region30: #{forward.29} parent=23 // pred_check_branch
          %198 = sbr.rel (%p196) target = $region32
        $region31: #{forward.29} parent=23 // pred_region
          %p199 = scmp.lt.s32.totalorder %s18, 3
          %s200 = scalar_select %p199, %s18, 3
          %s201 = smul.addr %s200, 2
          %s202 = smul.addr %s201, 8
          %s203 = scalar_lea.vmem %s3, %s202
        $region32: #{forward.29} parent=23 // pred_fallthru
          _
      $region24: #{forward.29} parent=5 // pred_fallthru
        _
      %p204 = scmp.le.s32.totalorder 1, %s11
      %p205 = scmp.lt.s32.totalorder %s11, 9
      %p206 = pnand %p204, %p205
      %p207 = pneg %p206
      // Predicated region
      $region33: #{forward.29} parent=5 // pred_check
        _
      $region34: #{forward.29} parent=5 // pred_check_branch
        %209 = sbr.rel (%p206) target = $region36
      $region35: #{forward.29} parent=5 // pred_region
        %s210 = ssub.s32 %s11, 1
        // Predicated region
        $region37: #{forward.29} parent=35 // pred_check
          %p211 = pneg %p44
        $region38: #{forward.29} parent=35 // pred_check_branch
          %213 = sbr.rel (%p211) target = $region40
        $region39: #{forward.29} parent=35 // pred_region
          %215 = dma.done [#allocation3], 16
        $region40: #{forward.29} parent=35 // pred_fallthru
          _
        %216 = sfence
        %p217 = pneg %p44
        %p218 = pneg %p41
        %s219 = smul.u32 %s21, 4
        %s220 = sadd.s32 %s219, %s20
        %s221 = smul.u32 2, %s220
        %p222 = scmp.lt.s32.totalorder %s221, 15
        %s223 = scalar_select %p222, %s221, 15
        %s224 = smul.addr %s223, 4
        %s225 = scalar_lea.vmem %s1, %s224
        %p226 = pneg %p74
        %p227 = pneg %p71
        %p228 = pneg %p95
        %p229 = pneg %p92
        %p230 = scmp.lt.s32.totalorder %s20, 3
        %s231 = scalar_select %p230, %s20, 3
        %s232 = smul.addr %s231, 2
        %s233 = smul.addr %s232, 8
        %s234 = scalar_lea.vmem %s3, %s233
        %p235 = pneg %p121
        %p236 = pneg %p118
        %p237 = pneg %p151
        %p238 = pneg %p148
        %s239 = smul.u32 %s21, 4
        %s240 = sadd.s32 %s239, %s20
        %s241 = smul.u32 2, %s240
        %p242 = scmp.lt.s32.totalorder %s241, 15
        %s243 = scalar_select %p242, %s241, 15
        %s244 = smul.addr %s243, 4
        %s245 = scalar_lea.vmem %s4, %s244
        %s246 = smul.u32 %s21, 4
        %s247 = sadd.s32 %s246, %s20
        %s248 = smul.u32 2, %s247
        %p249 = scmp.lt.s32.totalorder %s248, 15
        %s250 = scalar_select %p249, %s248, 15
        %s251 = smul.addr %s250, 4
        %s252 = scalar_lea.vmem %s1, %s251
        %s253 = smul.u32 %s21, 4
        %s254 = sadd.s32 %s253, %s20
        %s255 = smul.u32 2, %s254
        %p256 = scmp.lt.s32.totalorder %s20, 3
        %s257 = scalar_select %p256, %s20, 3
        %s258 = smul.addr %s257, 2
        %s259 = smul.addr %s258, 8
        %s260 = scalar_lea.vmem %s3, %s259
        %s261 = smul.u32 %s21, 4
        %s262 = sadd.s32 %s261, %s20
        %s263 = smul.u32 2, %s262
        %p264 = scmp.lt.s32.totalorder %s263, 15
        %s265 = scalar_select %p264, %s263, 15
        %s266 = smul.addr %s265, 4
        %s267 = scalar_lea.vmem %s4, %s266
        %s268 = smul.u32 %s21, 4
        %s269 = sadd.s32 %s268, %s20
        %s270 = smul.u32 2, %s269
        %v272 = vld [vmem:[%s252] sm:$0xf]
        %v273 = vld [vmem:[%s252 + $0x4] sm:$0xf]
        %v274 = vld [vmem:[%s260] sm:$0xff]
        %v275 = vld [vmem:[%s260 + $0x8] sm:$0xff]
        %v276 = vunpack.c.l.bf16 %v272
        %v277 = vunpack.c.l.bf16 %v273
        %v278 = vmul.f32 %v276, %v276
        %v279 = vmul.f32 %v277, %v277
        %vm280 = vcmask 130048
        %v281 = vsel %vm280, %v278, 0.0
        %282 = vadd.xlane.f32.xlu0 %v281
        %v283 = vpop.xlane.xlu0 %282
        %v284 = vsel %vm280, %v279, 0.0
        %285 = vadd.xlane.f32.xlu0 %v284
        %v286 = vpop.xlane.xlu0 %285
        %v287 = vadd.f32 %v283, 1e-12
        %v288 = vadd.f32 %v286, 1e-12
        %v289 = vrsqrt.pop %v287
        %v290 = vmul.f32 %v289, %v287
        %v291 = vmul.f32 %v290, %v289
        %v292 = vmul.f32 0.5, %v291
        %v293 = vsub.f32 1.5, %v292
        %v294 = vmul.f32 %v289, %v293
        %vm295 = vweird.f32 %v287
        %vm296 = vweird.f32 %v289
        %vm297 = vmor %vm295, %vm296
        %v298 = vsel %vm297, %v289, %v294
        %v299 = vrsqrt.pop %v288
        %v300 = vmul.f32 %v299, %v288
        %v301 = vmul.f32 %v300, %v299
        %v302 = vmul.f32 0.5, %v301
        %v303 = vsub.f32 1.5, %v302
        %v304 = vmul.f32 %v299, %v303
        %vm305 = vweird.f32 %v288
        %vm306 = vweird.f32 %v299
        %vm307 = vmor %vm305, %vm306
        %v308 = vsel %vm307, %v299, %v304
        %v309 = vmul.f32 %v276, %v298
        %v310 = vmul.f32 %v277, %v308
        %313 = vrot.lane.b32.xlu0 %v278, 96
        %v314 = vpop.permute.xlu0 %313
        %315 = vrot.lane.b32.xlu0 %v279, 96
        %v316 = vpop.permute.xlu0 %315
        %v319 = vsel %vm280, %v314, 0.0
        %320 = vadd.xlane.f32.xlu0 %v319
        %v321 = vpop.xlane.xlu0 %320
        %v322 = vsel %vm280, %v316, 0.0
        %323 = vadd.xlane.f32.xlu0 %v322
        %v324 = vpop.xlane.xlu0 %323
        %v325 = vadd.f32 %v321, 1e-12
        %v326 = vadd.f32 %v324, 1e-12
        %v327 = vrsqrt.pop %v325
        %v328 = vmul.f32 %v327, %v325
        %v329 = vmul.f32 %v328, %v327
        %v330 = vmul.f32 0.5, %v329
        %v331 = vsub.f32 1.5, %v330
        %v332 = vmul.f32 %v327, %v331
        %vm333 = vweird.f32 %v325
        %vm334 = vweird.f32 %v327
        %vm335 = vmor %vm333, %vm334
        %v336 = vsel %vm335, %v327, %v332
        %v337 = vrsqrt.pop %v326
        %v338 = vmul.f32 %v337, %v326
        %v339 = vmul.f32 %v338, %v337
        %v340 = vmul.f32 0.5, %v339
        %v341 = vsub.f32 1.5, %v340
        %v342 = vmul.f32 %v337, %v341
        %vm343 = vweird.f32 %v326
        %vm344 = vweird.f32 %v337
        %vm345 = vmor %vm343, %vm344
        %v346 = vsel %vm345, %v337, %v342
        %v347 = vmul.f32 %v276, %v336
        %v348 = vmul.f32 %v277, %v346
        %v349 = vpack.c.bf16 %v310, %v309
        %v350 = vpack.c.bf16 %v348, %v347
        %352 = vrot.lane.b32.xlu0 %v350, 96
        %v353 = vpop.permute.xlu0 %352
        %v355 = vsel %vm280, %v349, 0
        %v358 = vsel %vm280, %v353, 0
        %360 = vmatpush.bf16.xpose.msra.mxu0 0
        %361 = vmatpush.bf16.xpose.msra.mxu0 0
        %362 = vmatpush.bf16.xpose.msra.mxu0 0
        %363 = vmatpush.bf16.xpose.msra.mxu0 0
        %364 = vmatpush.bf16.xpose.msra.mxu0 0
        %365 = vmatpush.bf16.xpose.msra.mxu0 0
        %366 = vmatpush.bf16.xpose.msra.mxu0 0
        %367 = vmatpush.bf16.xpose.msra.mxu0 %v358
        %368 = vmatmul.bf16.gmra.mxu0 %v355
        %v369 = vpop.f32.mrf.mxu0
        %v370 = vadd.f32 0.0, %v369
        %v371 = vpop.f32.mrf.mxu0
        %v372 = vadd.f32 0.0, %v371
        %373 = vdwg.mxu0
        %s374 = sld [smem:[#allocation2]]
        %v375 = vstv %s374
        %v376 = vmul.f32 %v370, %v375
        %v377 = vmul.f32 %v372, %v375
        %v378 = vld [vmem:[%s2] sm:$0xff]
        %v379 = vld [vmem:[%s2 + $0x8] sm:$0xff]
        %v380 = vadd.f32 %v376, %v378
        %v381 = vadd.f32 %v377, %v379
        %v382 = vadd.f32 %v380, %v274
        %v383 = vadd.f32 %v381, %v275
        %v384 = vsel %vm280, %v382, -inf
        %385 = vmax.xlane.f32.xlu0 %v384
        %v386 = vpop.xlane.xlu0 %385
        %v387 = vsel %vm280, %v383, -inf
        %388 = vmax.xlane.f32.xlu0 %v387
        %v389 = vpop.xlane.xlu0 %388
        %v390 = vsub.f32 %v382, %v386
        %v391 = vsub.f32 %v383, %v389
        %v392 = vmul.f32 %v390, 1.442695
        %v393 = vpow.pop %v392
        %v394 = vmul.f32 %v391, 1.442695
        %v395 = vpow.pop %v394
        %v396 = vsel %vm280, %v393, 0.0
        %397 = vadd.xlane.f32.xlu0 %v396
        %v398 = vpop.xlane.xlu0 %397
        %v399 = vsel %vm280, %v395, 0.0
        %400 = vadd.xlane.f32.xlu0 %v399
        %v401 = vpop.xlane.xlu0 %400
        %v402 = vrcp.pop %v398
        %v403 = vrcp.pop %v401
        %v404 = vmul.f32 %v393, %v402
        %v405 = vmul.f32 %v395, %v403
        %v406 = vpack.c.bf16 %v405, %v404
        %v409 = vunpack.c.l.b16 %v272
        %v410 = vunpack.c.l.b16 %v273
        %v411 = vpack.c.b16 %v410, %v409
        %412 = vrot.lane.b32.xlu0 %v411, 64
        %v413 = vpop.permute.xlu0 %412
        %v416 = vsel %vm280, %v406, 0
        %418 = vmatpush.bf16.msra.mxu0 0
        %419 = vmatpush.bf16.msra.mxu0 0
        %420 = vmatpush.bf16.msra.mxu0 0
        %421 = vmatpush.bf16.msra.mxu0 0
        %422 = vmatpush.bf16.msra.mxu0 0
        %423 = vmatpush.bf16.msra.mxu0 0
        %424 = vmatpush.bf16.msra.mxu0 0
        %425 = vmatpush.bf16.msra.mxu0 %v413
        %426 = vmatmul.bf16.gmra.mxu0 %v416
        %v427 = vpop.f32.mrf.mxu0
        %v428 = vadd.f32 0.0, %v427
        %v429 = vpop.f32.mrf.mxu0
        %v430 = vadd.f32 0.0, %v429
        %431 = vdwg.mxu0
        %432 = vrot.lane.b32.xlu0 %v278, 112
        %v433 = vpop.permute.xlu0 %432
        %434 = vrot.lane.b32.xlu0 %v279, 112
        %v435 = vpop.permute.xlu0 %434
        %v438 = vsel %vm280, %v433, 0.0
        %439 = vadd.xlane.f32.xlu0 %v438
        %v440 = vpop.xlane.xlu0 %439
        %v441 = vsel %vm280, %v435, 0.0
        %442 = vadd.xlane.f32.xlu0 %v441
        %v443 = vpop.xlane.xlu0 %442
        %v444 = vadd.f32 %v440, 1e-12
        %v445 = vadd.f32 %v443, 1e-12
        %v446 = vrsqrt.pop %v444
        %v447 = vmul.f32 %v446, %v444
        %v448 = vmul.f32 %v447, %v446
        %v449 = vmul.f32 0.5, %v448
        %v450 = vsub.f32 1.5, %v449
        %v451 = vmul.f32 %v446, %v450
        %vm452 = vweird.f32 %v444
        %vm453 = vweird.f32 %v446
        %vm454 = vmor %vm452, %vm453
        %v455 = vsel %vm454, %v446, %v451
        %v456 = vrsqrt.pop %v445
        %v457 = vmul.f32 %v456, %v445
        %v458 = vmul.f32 %v457, %v456
        %v459 = vmul.f32 0.5, %v458
        %v460 = vsub.f32 1.5, %v459
        %v461 = vmul.f32 %v456, %v460
        %vm462 = vweird.f32 %v445
        %vm463 = vweird.f32 %v456
        %vm464 = vmor %vm462, %vm463
        %v465 = vsel %vm464, %v456, %v461
        %v466 = vmul.f32 %v276, %v455
        %v467 = vmul.f32 %v277, %v465
        %468 = vrot.lane.b32.xlu0 %v278, 80
        %v469 = vpop.permute.xlu0 %468
        %470 = vrot.lane.b32.xlu0 %v279, 80
        %v471 = vpop.permute.xlu0 %470
        %v474 = vsel %vm280, %v469, 0.0
        %475 = vadd.xlane.f32.xlu0 %v474
        %v476 = vpop.xlane.xlu0 %475
        %v477 = vsel %vm280, %v471, 0.0
        %478 = vadd.xlane.f32.xlu0 %v477
        %v479 = vpop.xlane.xlu0 %478
        %v480 = vadd.f32 %v476, 1e-12
        %v481 = vadd.f32 %v479, 1e-12
        %v482 = vrsqrt.pop %v480
        %v483 = vmul.f32 %v482, %v480
        %v484 = vmul.f32 %v483, %v482
        %v485 = vmul.f32 0.5, %v484
        %v486 = vsub.f32 1.5, %v485
        %v487 = vmul.f32 %v482, %v486
        %vm488 = vweird.f32 %v480
        %vm489 = vweird.f32 %v482
        %vm490 = vmor %vm488, %vm489
        %v491 = vsel %vm490, %v482, %v487
        %v492 = vrsqrt.pop %v481
        %v493 = vmul.f32 %v492, %v481
        %v494 = vmul.f32 %v493, %v492
        %v495 = vmul.f32 0.5, %v494
        %v496 = vsub.f32 1.5, %v495
        %v497 = vmul.f32 %v492, %v496
        %vm498 = vweird.f32 %v481
        %vm499 = vweird.f32 %v492
        %vm500 = vmor %vm498, %vm499
        %v501 = vsel %vm500, %v492, %v497
        %v502 = vmul.f32 %v276, %v491
        %v503 = vmul.f32 %v277, %v501
        %v504 = vpack.c.bf16 %v467, %v466
        %v505 = vpack.c.bf16 %v503, %v502
        %507 = vrot.lane.b32.xlu0 %v504, 112
        %v508 = vpop.permute.xlu0 %507
        %510 = vrot.lane.b32.xlu0 %v505, 80
        %v511 = vpop.permute.xlu0 %510
        %v513 = vsel %vm280, %v508, 0
        %v516 = vsel %vm280, %v511, 0
        %518 = vmatpush.bf16.xpose.msra.mxu0 0
        %519 = vmatpush.bf16.xpose.msra.mxu0 0
        %520 = vmatpush.bf16.xpose.msra.mxu0 0
        %521 = vmatpush.bf16.xpose.msra.mxu0 0
        %522 = vmatpush.bf16.xpose.msra.mxu0 0
        %523 = vmatpush.bf16.xpose.msra.mxu0 0
        %524 = vmatpush.bf16.xpose.msra.mxu0 0
        %525 = vmatpush.bf16.xpose.msra.mxu0 %v516
        %526 = vmatmul.bf16.gmra.mxu0 %v513
        %v527 = vpop.f32.mrf.mxu0
        %v528 = vadd.f32 0.0, %v527
        %v529 = vpop.f32.mrf.mxu0
        %v530 = vadd.f32 0.0, %v529
        %531 = vdwg.mxu0
        %s532 = sld [smem:[#allocation2 + $0x1]]
        %v533 = vstv %s532
        %v534 = vmul.f32 %v528, %v533
        %v535 = vmul.f32 %v530, %v533
        %s536 = scalar_lea.vmem %s2, 16
        %v537 = vld [vmem:[%s536] sm:$0xff]
        %v538 = vld [vmem:[%s536 + $0x8] sm:$0xff]
        %v539 = vadd.f32 %v534, %v537
        %v540 = vadd.f32 %v535, %v538
        %v541 = vadd.f32 %v539, %v274
        %v542 = vadd.f32 %v540, %v275
        %v543 = vsel %vm280, %v541, -inf
        %544 = vmax.xlane.f32.xlu0 %v543
        %v545 = vpop.xlane.xlu0 %544
        %v546 = vsel %vm280, %v542, -inf
        %547 = vmax.xlane.f32.xlu0 %v546
        %v548 = vpop.xlane.xlu0 %547
        %v549 = vsub.f32 %v541, %v545
        %v550 = vsub.f32 %v542, %v548
        %v551 = vmul.f32 %v549, 1.442695
        %v552 = vpow.pop %v551
        %v553 = vmul.f32 %v550, 1.442695
        %v554 = vpow.pop %v553
        %v555 = vsel %vm280, %v552, 0.0
        %556 = vadd.xlane.f32.xlu0 %v555
        %v557 = vpop.xlane.xlu0 %556
        %v558 = vsel %vm280, %v554, 0.0
        %559 = vadd.xlane.f32.xlu0 %v558
        %v560 = vpop.xlane.xlu0 %559
        %v561 = vrcp.pop %v557
        %v562 = vrcp.pop %v560
        %v563 = vmul.f32 %v552, %v561
        %v564 = vmul.f32 %v554, %v562
        %v565 = vpack.c.bf16 %v564, %v563
        %566 = vrot.lane.b32.xlu0 %v411, 48
        %v567 = vpop.permute.xlu0 %566
        %v570 = vsel %vm280, %v565, 0
        %572 = vmatpush.bf16.msra.mxu0 0
        %573 = vmatpush.bf16.msra.mxu0 0
        %574 = vmatpush.bf16.msra.mxu0 0
        %575 = vmatpush.bf16.msra.mxu0 0
        %576 = vmatpush.bf16.msra.mxu0 0
        %577 = vmatpush.bf16.msra.mxu0 0
        %578 = vmatpush.bf16.msra.mxu0 0
        %579 = vmatpush.bf16.msra.mxu0 %v567
        %580 = vmatmul.bf16.gmra.mxu0 %v570
        %v581 = vpop.f32.mrf.mxu0
        %v582 = vadd.f32 0.0, %v581
        %v583 = vpop.f32.mrf.mxu0
        %v584 = vadd.f32 0.0, %v583
        %585 = vdwg.mxu0
        %588 = vrot.lane.b32.xlu0 %v582, 16
        %v589 = vpop.permute.xlu0 %588
        %590 = vrot.lane.b32.xlu0 %v584, 16
        %v591 = vpop.permute.xlu0 %590
        %v594 = vsel %vm280, %v428, %v589
        %v595 = vsel %vm280, %v430, %v591
        %v596 = vpack.c.bf16 %v594, %v594
        %v597 = vpack.c.bf16 %v595, %v595
        %vm598 = vcmask 257024
        %599 = vst.msk [vmem:[%s267] sm:$0xf] %vm598, %v596
        %600 = vst.msk [vmem:[%s267 + $0x4] sm:$0xf] %vm598, %v597
        %s601 = smul.u32 %s21, 4
        %s602 = sadd.s32 %s601, %s20
        %s603 = smul.u32 2, %s602
        %p604 = scmp.lt.s32.totalorder %s603, 15
        %s605 = scalar_select %p604, %s603, 15
        %s606 = smul.addr %s605, 4
        %s607 = scalar_lea.vmem %s4, %s606
        // Predicated region
        $region41: #{forward.29} parent=35 // pred_check
          %p608 = pneg %p148
        $region42: #{forward.29} parent=35 // pred_check_branch
          %610 = sbr.rel (%p608) target = $region44
        $region43: #{forward.29} parent=35 // pred_region
          %s611 = smul.u32 %s21, 4
          %s612 = sadd.s32 %s611, %s20
          %s613 = smul.u32 2, %s612
        $region44: #{forward.29} parent=35 // pred_fallthru
          _
      $region36: #{forward.29} parent=5 // pred_fallthru
        _
      %p614 = scmp.le.s32.totalorder 2, %s11
      // Predicated region
      $region45: #{forward.29} parent=5 // pred_check
        %p615 = pneg %p614
      $region46: #{forward.29} parent=5 // pred_check_branch
        %617 = sbr.rel (%p615) target = $region48
      $region47: #{forward.29} parent=5 // pred_region
        %s618 = ssub.s32 %s11, 2
        // Predicated region
        $region49: #{forward.29} parent=47 // pred_check
          %p619 = pneg %p154
        $region50: #{forward.29} parent=47 // pred_check_branch
          %621 = sbr.rel (%p619) target = $region52
        $region51: #{forward.29} parent=47 // pred_region
          %s622 = smul.u32 %s23, 4
          %s623 = sadd.s32 %s622, %s22
          %s624 = smul.u32 2, %s623
          %p625 = scmp.lt.s32.totalorder %s624, 15
          %s626 = scalar_select %p625, %s624, 15
          %s627 = smul.addr %s626, 4
          %s628 = scalar_lea.vmem %s4, %s627
        $region52: #{forward.29} parent=47 // pred_fallthru
          _
      $region48: #{forward.29} parent=5 // pred_fallthru
        _
    $region6: #{forward.29} parent=1 // loop_footer
      %s15 = sadd.s32 1, %s11
    $region7: #{forward.29} parent=1 // loop_footer_branch
      %10 = sbr.rel target = $region3
    $region8: #{forward.29} parent=1 // loop_exit
      _
    %629 = vsyncpa [#allocation3], 1
    %s630 = scalar_lea.sflag [#allocation3], 1
    %631 = vsyncpa %s630, 1

// kernel: forward.34
$region0: #{forward.34}
  #allocation0 [shape = 'u32[]', space=smem, size = 0x4, offset = 0x4, fixed_abs, tag = 'smem constant byte address 0x4 - core index']
  #allocation1 [shape = 'u32[72,128]{1,0:T(1,128)}', space=vmem, size = 0x9000, scoped, tag = 'internal scratch']
  #allocation2 [shape = 'f32[32,192]{1,0:T(8,128)}', space=vmem, size = 0x8000, scoped, tag = 'scratch operand']
  %s0 = inlined_call_operand.vmem [shape: bf16[32,64], index: 0, kind: input, shape index: {}]
  %s1 = inlined_call_operand.vmem [shape: bf16[64,192], index: 1, kind: input, shape index: {}]
  %s2 = inlined_call_operand.vmem [shape: f32[1,192], index: 2, kind: input, shape index: {}]
  %s3 = inlined_call_operand.vmem [shape: bf16[32,192], index: 3, kind: output, shape index: {}]
  %s4 = sld [smem:[#allocation0]]
  $region30: #{forward.34} parent=0
    _
  %s6 = ssub.s32 1, %s4
  %s7 = scalar_select 0, %s6, %s4
  // Predicated region
  $region2: #{forward.34} parent=0 // pred_check
    _
  $region3: #{forward.34} parent=0 // pred_check_branch
    %9 = sbr.rel (0) target = $region5
  $region4: #{forward.34} parent=0 // pred_region
    _
  $region5: #{forward.34} parent=0 // pred_fallthru
    _
  // Predicated region
  $region6: #{forward.34} parent=0 // pred_check
    _
  $region7: #{forward.34} parent=0 // pred_check_branch
    %11 = sbr.rel (0) target = $region9
  $region8: #{forward.34} parent=0 // pred_region
    _
  $region9: #{forward.34} parent=0 // pred_fallthru
    _
  // Predicated region
  $region10: #{forward.34} parent=0 // pred_check
    _
  $region11: #{forward.34} parent=0 // pred_check_branch
    %13 = sbr.rel (0) target = $region13
  $region12: #{forward.34} parent=0 // pred_region
    _
  $region13: #{forward.34} parent=0 // pred_fallthru
    _
  %p15 = scmp.eq.s32.totalorder 0, 0
  // Predicated region
  $region14: #{forward.34} parent=0 // pred_check
    %p16 = pneg %p15
  $region15: #{forward.34} parent=0 // pred_check_branch
    %18 = sbr.rel (%p16) target = $region17
  $region16: #{forward.34} parent=0 // pred_region
    %19 = vst [vmem:[#allocation2] sm:$0xff] 0.0
    %vm20 = vcmask 523264
    %21 = vst.msk [vmem:[#allocation2 + $0x8] sm:$0xff] %vm20, 0.0
    %22 = vst [vmem:[#allocation2 + $0x10] sm:$0xff] 0.0
    %23 = vst.msk [vmem:[#allocation2 + $0x18] sm:$0xff] %vm20, 0.0
    %24 = vst [vmem:[#allocation2 + $0x20] sm:$0xff] 0.0
    %25 = vst.msk [vmem:[#allocation2 + $0x28] sm:$0xff] %vm20, 0.0
    %26 = vst [vmem:[#allocation2 + $0x30] sm:$0xff] 0.0
    %27 = vst.msk [vmem:[#allocation2 + $0x38] sm:$0xff] %vm20, 0.0
  $region17: #{forward.34} parent=0 // pred_fallthru
    _
  %v28 = vld [vmem:[#allocation2] sm:$0xff]
  %v29 = vld [vmem:[#allocation2 + $0x8] sm:$0xff]
  %v30 = vld [vmem:[#allocation2 + $0x10] sm:$0xff]
  %v31 = vld [vmem:[#allocation2 + $0x18] sm:$0xff]
  %v32 = vld [vmem:[#allocation2 + $0x20] sm:$0xff]
  %v33 = vld [vmem:[#allocation2 + $0x28] sm:$0xff]
  %v34 = vld [vmem:[#allocation2 + $0x30] sm:$0xff]
  %v35 = vld [vmem:[#allocation2 + $0x38] sm:$0xff]
  %v36 = vld [vmem:[%s0] sm:$0xf]
  %v37 = vld [vmem:[%s0 + $0x4] sm:$0xf]
  %v38 = vld [vmem:[%s0 + $0x8] sm:$0xf]
  %v39 = vld [vmem:[%s0 + $0xc] sm:$0xf]
  %v40 = vld [vmem:[%s1] sm:$0xff]
  %v41 = vld [vmem:[%s1 + $0x8] sm:$0xff]
  %v42 = vld [vmem:[%s1 + $0x10] sm:$0xff]
  %v43 = vld [vmem:[%s1 + $0x18] sm:$0xff]
  %v44 = vld [vmem:[%s1 + $0x20] sm:$0xff]
  %v45 = vld [vmem:[%s1 + $0x28] sm:$0xff]
  %v46 = vld [vmem:[%s1 + $0x30] sm:$0xff]
  %v47 = vld [vmem:[%s1 + $0x38] sm:$0xff]
  %v52 = vunpack.c.l.b16 %v36
  %v53 = vunpack.c.l.b16 %v37
  %v54 = vunpack.c.l.b16 %v38
  %v55 = vunpack.c.l.b16 %v39
  %v56 = vpack.c.b16 %v53, %v52
  %v57 = vpack.c.b16 %v55, %v54
  %v66 = vunpack.c.l.b16 %v40
  %v67 = vunpack.c.h.b16 %v40
  %v68 = vunpack.c.l.b16 %v41
  %v69 = vunpack.c.h.b16 %v41
  %v70 = vunpack.c.l.b16 %v42
  %v71 = vunpack.c.h.b16 %v42
  %v72 = vunpack.c.l.b16 %v43
  %v73 = vunpack.c.h.b16 %v43
  %v74 = vunpack.c.l.b16 %v44
  %v75 = vunpack.c.h.b16 %v44
  %v76 = vunpack.c.l.b16 %v45
  %v77 = vunpack.c.h.b16 %v45
  %v78 = vunpack.c.l.b16 %v46
  %v79 = vunpack.c.h.b16 %v46
  %v80 = vunpack.c.l.b16 %v47
  %v81 = vunpack.c.h.b16 %v47
  %v82 = vpack.c.b16 %v68, %v66
  %v83 = vpack.c.b16 %v69, %v67
  %v84 = vpack.c.b16 %v72, %v70
  %v85 = vpack.c.b16 %v73, %v71
  %v86 = vpack.c.b16 %v76, %v74
  %v87 = vpack.c.b16 %v77, %v75
  %v88 = vpack.c.b16 %v80, %v78
  %v89 = vpack.c.b16 %v81, %v79
  %vm98 = vcmask 523264
  %v100 = vsel %vm98, %v56, 0
  %v103 = vsel %vm98, %v57, 0
  %105 = vmatpush.bf16.msra.mxu0 0
  %106 = vmatpush.bf16.msra.mxu0 0
  %107 = vmatpush.bf16.msra.mxu0 0
  %108 = vmatpush.bf16.msra.mxu0 0
  %109 = vmatpush.bf16.msra.mxu0 %v88
  %110 = vmatpush.bf16.msra.mxu0 %v86
  %111 = vmatpush.bf16.msra.mxu0 %v84
  %112 = vmatpush.bf16.msra.mxu0 %v82
  %113 = vmatmul.bf16.gmra.mxu0 %v100
  %v114 = vpop.f32.mrf.mxu0
  %v115 = vadd.f32 0.0, %v114
  %v116 = vpop.f32.mrf.mxu0
  %v117 = vadd.f32 0.0, %v116
  %118 = vmatmul.bf16.gmra.mxu0 %v103
  %v119 = vpop.f32.mrf.mxu0
  %v120 = vadd.f32 0.0, %v119
  %v121 = vpop.f32.mrf.mxu0
  %v122 = vadd.f32 0.0, %v121
  %123 = vdwg.mxu0
  %124 = vmatpush.bf16.msra.mxu0 0
  %125 = vmatpush.bf16.msra.mxu0 0
  %126 = vmatpush.bf16.msra.mxu0 0
  %127 = vmatpush.bf16.msra.mxu0 0
  %128 = vmatpush.bf16.msra.mxu0 %v89
  %129 = vmatpush.bf16.msra.mxu0 %v87
  %130 = vmatpush.bf16.msra.mxu0 %v85
  %131 = vmatpush.bf16.msra.mxu0 %v83
  %132 = vmatmul.bf16.gmra.mxu0 %v100
  %v133 = vpop.f32.mrf.mxu0
  %v134 = vadd.f32 0.0, %v133
  %v135 = vpop.f32.mrf.mxu0
  %v136 = vadd.f32 0.0, %v135
  %137 = vmatmul.bf16.gmra.mxu0 %v103
  %v138 = vpop.f32.mrf.mxu0
  %v139 = vadd.f32 0.0, %v138
  %v140 = vpop.f32.mrf.mxu0
  %v141 = vadd.f32 0.0, %v140
  %142 = vdwg.mxu0
  %v143 = vadd.f32 %v28, %v115
  %v144 = vadd.f32 %v29, %v134
  %v145 = vadd.f32 %v30, %v117
  %v146 = vadd.f32 %v31, %v136
  %v147 = vadd.f32 %v32, %v120
  %v148 = vadd.f32 %v33, %v139
  %v149 = vadd.f32 %v34, %v122
  %v150 = vadd.f32 %v35, %v141
  %151 = vst [vmem:[#allocation2] sm:$0xff] %v143
  %152 = vst.msk [vmem:[#allocation2 + $0x8] sm:$0xff] %vm98, %v144
  %153 = vst [vmem:[#allocation2 + $0x10] sm:$0xff] %v145
  %154 = vst.msk [vmem:[#allocation2 + $0x18] sm:$0xff] %vm98, %v146
  %155 = vst [vmem:[#allocation2 + $0x20] sm:$0xff] %v147
  %156 = vst.msk [vmem:[#allocation2 + $0x28] sm:$0xff] %vm98, %v148
  %157 = vst [vmem:[#allocation2 + $0x30] sm:$0xff] %v149
  %158 = vst.msk [vmem:[#allocation2 + $0x38] sm:$0xff] %vm98, %v150
  // Predicated region
  $region18: #{forward.34} parent=0 // pred_check
    %p159 = pneg %p15
  $region19: #{forward.34} parent=0 // pred_check_branch
    %161 = sbr.rel (%p159) target = $region21
  $region20: #{forward.34} parent=0 // pred_region
    %v162 = vld [vmem:[#allocation2] sm:$0xff]
    %v163 = vld [vmem:[#allocation2 + $0x8] sm:$0xff]
    %v164 = vld [vmem:[#allocation2 + $0x10] sm:$0xff]
    %v165 = vld [vmem:[#allocation2 + $0x18] sm:$0xff]
    %v166 = vld [vmem:[#allocation2 + $0x20] sm:$0xff]
    %v167 = vld [vmem:[#allocation2 + $0x28] sm:$0xff]
    %v168 = vld [vmem:[#allocation2 + $0x30] sm:$0xff]
    %v169 = vld [vmem:[#allocation2 + $0x38] sm:$0xff]
    %v170 = vld [vmem:[%s2] sm:$0x3]
    %v172 = vperm.slane %v170, 0
    %v173 = vperm.slane %v170, 1
    %v176 = vadd.f32 %v162, %v172
    %v177 = vadd.f32 %v163, %v173
    %v178 = vadd.f32 %v164, %v172
    %v179 = vadd.f32 %v165, %v173
    %v180 = vadd.f32 %v166, %v172
    %v181 = vadd.f32 %v167, %v173
    %v182 = vadd.f32 %v168, %v172
    %v183 = vadd.f32 %v169, %v173
    %v184 = vpack.c.bf16 %v177, %v176
    %v185 = vpack.c.bf16 %v179, %v178
    %v186 = vpack.c.bf16 %v181, %v180
    %v187 = vpack.c.bf16 %v183, %v182
    %vm188 = vcmask 1043456
    %vm189 = vcmask 523268
    %vm190 = vmor %vm189, %vm188
    %191 = vst.msk [vmem:[%s3] sm:$0xff] %vm190, %v184
    %192 = vst.msk [vmem:[%s3 + $0x8] sm:$0xff] %vm190, %v185
    %193 = vst.msk [vmem:[%s3 + $0x10] sm:$0xff] %vm190, %v186
    %194 = vst.msk [vmem:[%s3 + $0x18] sm:$0xff] %vm190, %v187
  $region21: #{forward.34} parent=0 // pred_fallthru
    _
  // Predicated region
  $region22: #{forward.34} parent=0 // pred_check
    _
  $region23: #{forward.34} parent=0 // pred_check_branch
    %196 = sbr.rel (0) target = $region25
  $region24: #{forward.34} parent=0 // pred_region
    _
  $region25: #{forward.34} parent=0 // pred_fallthru
    _
  // Predicated region
  $region26: #{forward.34} parent=0 // pred_check
    _
  $region27: #{forward.34} parent=0 // pred_check_branch
    %198 = sbr.rel (0) target = $region29
  $region28: #{forward.34} parent=0 // pred_region
    _
  $region29: #{forward.34} parent=0 // pred_fallthru
    _

// kernel: forward.33
$region0: #{forward.33}
  #allocation0 [shape = 'u32[]', space=smem, size = 0x4, offset = 0x4, fixed_abs, tag = 'smem constant byte address 0x4 - core index']
  #allocation1 [shape = 'u32[72,128]{1,0:T(1,128)}', space=vmem, size = 0x9000, scoped, tag = 'internal scratch']
  #allocation2 [shape = 'f32[32,64]{1,0:T(8,128)}', space=vmem, size = 0x4000, scoped, tag = 'scratch operand']
  %s0 = inlined_call_operand.vmem [shape: bf16[32,128], index: 0, kind: input, shape index: {}]
  %s1 = inlined_call_operand.vmem [shape: bf16[128,64], index: 1, kind: input, shape index: {}]
  %s2 = inlined_call_operand.vmem [shape: f32[1,64], index: 2, kind: input, shape index: {}]
  %s3 = inlined_call_operand.vmem [shape: f32[1,64], index: 3, kind: input, shape index: {}]
  %s4 = inlined_call_operand.vmem [shape: bf16[32,64], index: 4, kind: output, shape index: {}]
  %s5 = sld [smem:[#allocation0]]
  $region34: #{forward.33} parent=0
    _
  %s7 = ssub.s32 1, %s5
  %s8 = scalar_select 0, %s7, %s5
  // Predicated region
  $region2: #{forward.33} parent=0 // pred_check
    _
  $region3: #{forward.33} parent=0 // pred_check_branch
    %10 = sbr.rel (0) target = $region5
  $region4: #{forward.33} parent=0 // pred_region
    _
  $region5: #{forward.33} parent=0 // pred_fallthru
    _
  // Predicated region
  $region6: #{forward.33} parent=0 // pred_check
    _
  $region7: #{forward.33} parent=0 // pred_check_branch
    %12 = sbr.rel (0) target = $region9
  $region8: #{forward.33} parent=0 // pred_region
    _
  $region9: #{forward.33} parent=0 // pred_fallthru
    _
  // Predicated region
  $region10: #{forward.33} parent=0 // pred_check
    _
  $region11: #{forward.33} parent=0 // pred_check_branch
    %14 = sbr.rel (0) target = $region13
  $region12: #{forward.33} parent=0 // pred_region
    _
  $region13: #{forward.33} parent=0 // pred_fallthru
    _
  // Predicated region
  $region14: #{forward.33} parent=0 // pred_check
    _
  $region15: #{forward.33} parent=0 // pred_check_branch
    %16 = sbr.rel (0) target = $region17
  $region16: #{forward.33} parent=0 // pred_region
    _
  $region17: #{forward.33} parent=0 // pred_fallthru
    _
  %p17 = scmp.eq.s32.totalorder 0, 0
  // Predicated region
  $region18: #{forward.33} parent=0 // pred_check
    %p18 = pneg %p17
  $region19: #{forward.33} parent=0 // pred_check_branch
    %20 = sbr.rel (%p18) target = $region21
  $region20: #{forward.33} parent=0 // pred_region
    %vm21 = vcmask 523264
    %22 = vst.msk [vmem:[#allocation2] sm:$0xff] %vm21, 0.0
    %23 = vst.msk [vmem:[#allocation2 + $0x8] sm:$0xff] %vm21, 0.0
    %24 = vst.msk [vmem:[#allocation2 + $0x10] sm:$0xff] %vm21, 0.0
    %25 = vst.msk [vmem:[#allocation2 + $0x18] sm:$0xff] %vm21, 0.0
  $region21: #{forward.33} parent=0 // pred_fallthru
    _
  %v26 = vld [vmem:[#allocation2] sm:$0xff]
  %v27 = vld [vmem:[#allocation2 + $0x8] sm:$0xff]
  %v28 = vld [vmem:[#allocation2 + $0x10] sm:$0xff]
  %v29 = vld [vmem:[#allocation2 + $0x18] sm:$0xff]
  %v30 = vld [vmem:[%s0] sm:$0xf]
  %v31 = vld [vmem:[%s0 + $0x4] sm:$0xf]
  %v32 = vld [vmem:[%s0 + $0x8] sm:$0xf]
  %v33 = vld [vmem:[%s0 + $0xc] sm:$0xf]
  %v34 = vld [vmem:[%s1] sm:$0xf]
  %v35 = vld [vmem:[%s1 + $0x4] sm:$0xf]
  %v36 = vld [vmem:[%s1 + $0x8] sm:$0xf]
  %v37 = vld [vmem:[%s1 + $0xc] sm:$0xf]
  %v38 = vld [vmem:[%s1 + $0x10] sm:$0xf]
  %v39 = vld [vmem:[%s1 + $0x14] sm:$0xf]
  %v40 = vld [vmem:[%s1 + $0x18] sm:$0xf]
  %v41 = vld [vmem:[%s1 + $0x1c] sm:$0xf]
  %v42 = vld [vmem:[%s1 + $0x20] sm:$0xf]
  %v43 = vld [vmem:[%s1 + $0x24] sm:$0xf]
  %v44 = vld [vmem:[%s1 + $0x28] sm:$0xf]
  %v45 = vld [vmem:[%s1 + $0x2c] sm:$0xf]
  %v46 = vld [vmem:[%s1 + $0x30] sm:$0xf]
  %v47 = vld [vmem:[%s1 + $0x34] sm:$0xf]
  %v48 = vld [vmem:[%s1 + $0x38] sm:$0xf]
  %v49 = vld [vmem:[%s1 + $0x3c] sm:$0xf]
  %v54 = vunpack.c.l.b16 %v30
  %v55 = vunpack.c.l.b16 %v31
  %v56 = vunpack.c.l.b16 %v32
  %v57 = vunpack.c.l.b16 %v33
  %v58 = vpack.c.b16 %v55, %v54
  %v59 = vpack.c.b16 %v57, %v56
  %v78 = vunpack.c.l.b16 %v34
  %v79 = vunpack.c.l.b16 %v35
  %v80 = vunpack.c.l.b16 %v36
  %v81 = vunpack.c.l.b16 %v37
  %v82 = vunpack.c.l.b16 %v38
  %v83 = vunpack.c.l.b16 %v39
  %v84 = vunpack.c.l.b16 %v40
  %v85 = vunpack.c.l.b16 %v41
  %v86 = vunpack.c.l.b16 %v42
  %v87 = vunpack.c.l.b16 %v43
  %v88 = vunpack.c.l.b16 %v44
  %v89 = vunpack.c.l.b16 %v45
  %v90 = vunpack.c.l.b16 %v46
  %v91 = vunpack.c.l.b16 %v47
  %v92 = vunpack.c.l.b16 %v48
  %v93 = vunpack.c.l.b16 %v49
  %v94 = vpack.c.b16 %v79, %v78
  %v95 = vpack.c.b16 %v81, %v80
  %v96 = vpack.c.b16 %v83, %v82
  %v97 = vpack.c.b16 %v85, %v84
  %v98 = vpack.c.b16 %v87, %v86
  %v99 = vpack.c.b16 %v89, %v88
  %v100 = vpack.c.b16 %v91, %v90
  %v101 = vpack.c.b16 %v93, %v92
  %110 = vmatpush.bf16.msra.mxu0 %v101
  %111 = vmatpush.bf16.msra.mxu0 %v100
  %112 = vmatpush.bf16.msra.mxu0 %v99
  %113 = vmatpush.bf16.msra.mxu0 %v98
  %114 = vmatpush.bf16.msra.mxu0 %v97
  %115 = vmatpush.bf16.msra.mxu0 %v96
  %116 = vmatpush.bf16.msra.mxu0 %v95
  %117 = vmatpush.bf16.msra.mxu0 %v94
  %118 = vmatmul.bf16.gmra.mxu0 %v58
  %v119 = vpop.f32.mrf.mxu0
  %v120 = vadd.f32 0.0, %v119
  %v121 = vpop.f32.mrf.mxu0
  %v122 = vadd.f32 0.0, %v121
  %123 = vmatmul.bf16.gmra.mxu0 %v59
  %v124 = vpop.f32.mrf.mxu0
  %v125 = vadd.f32 0.0, %v124
  %v126 = vpop.f32.mrf.mxu0
  %v127 = vadd.f32 0.0, %v126
  %128 = vdwg.mxu0
  %v129 = vadd.f32 %v26, %v120
  %v130 = vadd.f32 %v27, %v122
  %v131 = vadd.f32 %v28, %v125
  %v132 = vadd.f32 %v29, %v127
  %vm133 = vcmask 523264
  %134 = vst.msk [vmem:[#allocation2] sm:$0xff] %vm133, %v129
  %135 = vst.msk [vmem:[#allocation2 + $0x8] sm:$0xff] %vm133, %v130
  %136 = vst.msk [vmem:[#allocation2 + $0x10] sm:$0xff] %vm133, %v131
  %137 = vst.msk [vmem:[#allocation2 + $0x18] sm:$0xff] %vm133, %v132
  // Predicated region
  $region22: #{forward.33} parent=0 // pred_check
    %p138 = pneg %p17
  $region23: #{forward.33} parent=0 // pred_check_branch
    %140 = sbr.rel (%p138) target = $region25
  $region24: #{forward.33} parent=0 // pred_region
    %v141 = vld [vmem:[#allocation2] sm:$0xff]
    %v142 = vld [vmem:[#allocation2 + $0x8] sm:$0xff]
    %v143 = vld [vmem:[#allocation2 + $0x10] sm:$0xff]
    %v144 = vld [vmem:[#allocation2 + $0x18] sm:$0xff]
    %v145 = vsel %vm133, %v141, 0.0
    %146 = vadd.xlane.f32.xlu0 %v145
    %v147 = vpop.xlane.xlu0 %146
    %v148 = vsel %vm133, %v142, 0.0
    %149 = vadd.xlane.f32.xlu0 %v148
    %v150 = vpop.xlane.xlu0 %149
    %v151 = vsel %vm133, %v143, 0.0
    %152 = vadd.xlane.f32.xlu0 %v151
    %v153 = vpop.xlane.xlu0 %152
    %v154 = vsel %vm133, %v144, 0.0
    %155 = vadd.xlane.f32.xlu0 %v154
    %v156 = vpop.xlane.xlu0 %155
    %v157 = vrcp.pop 64.0
    %v158 = vmul.f32 64.0, %v157
    %v159 = vsub.f32 1.0, %v158
    %v160 = vmul.f32 %v157, %v159
    %v161 = vadd.f32 %v157, %v160
    %vm162 = vweird.f32 %v157
    %v163 = vsel %vm162, %v157, %v161
    %v164 = vmul.f32 %v147, %v163
    %v165 = vmul.f32 %v150, %v163
    %v166 = vmul.f32 %v153, %v163
    %v167 = vmul.f32 %v156, %v163
    %v168 = vsub.f32 %v141, %v164
    %v169 = vsub.f32 %v142, %v165
    %v170 = vsub.f32 %v143, %v166
    %v171 = vsub.f32 %v144, %v167
    %v172 = vmul.f32 %v168, %v168
    %v173 = vmul.f32 %v169, %v169
    %v174 = vmul.f32 %v170, %v170
    %v175 = vmul.f32 %v171, %v171
    %v176 = vsel %vm133, %v172, 0.0
    %177 = vadd.xlane.f32.xlu0 %v176
    %v178 = vpop.xlane.xlu0 %177
    %v179 = vsel %vm133, %v173, 0.0
    %180 = vadd.xlane.f32.xlu0 %v179
    %v181 = vpop.xlane.xlu0 %180
    %v182 = vsel %vm133, %v174, 0.0
    %183 = vadd.xlane.f32.xlu0 %v182
    %v184 = vpop.xlane.xlu0 %183
    %v185 = vsel %vm133, %v175, 0.0
    %186 = vadd.xlane.f32.xlu0 %v185
    %v187 = vpop.xlane.xlu0 %186
    %v188 = vmul.f32 %v178, %v163
    %v189 = vmul.f32 %v181, %v163
    %v190 = vmul.f32 %v184, %v163
    %v191 = vmul.f32 %v187, %v163
    %v192 = vadd.f32 %v188, 1e-05
    %v193 = vadd.f32 %v189, 1e-05
    %v194 = vadd.f32 %v190, 1e-05
    %v195 = vadd.f32 %v191, 1e-05
    %v196 = vrsqrt.pop %v192
    %v197 = vmul.f32 %v196, %v192
    %v198 = vmul.f32 %v197, %v196
    %v199 = vmul.f32 0.5, %v198
    %v200 = vsub.f32 1.5, %v199
    %v201 = vmul.f32 %v196, %v200
    %vm202 = vweird.f32 %v192
    %vm203 = vweird.f32 %v196
    %vm204 = vmor %vm202, %vm203
    %v205 = vsel %vm204, %v196, %v201
    %v206 = vrsqrt.pop %v193
    %v207 = vmul.f32 %v206, %v193
    %v208 = vmul.f32 %v207, %v206
    %v209 = vmul.f32 0.5, %v208
    %v210 = vsub.f32 1.5, %v209
    %v211 = vmul.f32 %v206, %v210
    %vm212 = vweird.f32 %v193
    %vm213 = vweird.f32 %v206
    %vm214 = vmor %vm212, %vm213
    %v215 = vsel %vm214, %v206, %v211
    %v216 = vrsqrt.pop %v194
    %v217 = vmul.f32 %v216, %v194
    %v218 = vmul.f32 %v217, %v216
    %v219 = vmul.f32 0.5, %v218
    %v220 = vsub.f32 1.5, %v219
    %v221 = vmul.f32 %v216, %v220
    %vm222 = vweird.f32 %v194
    %vm223 = vweird.f32 %v216
    %vm224 = vmor %vm222, %vm223
    %v225 = vsel %vm224, %v216, %v221
    %v226 = vrsqrt.pop %v195
    %v227 = vmul.f32 %v226, %v195
    %v228 = vmul.f32 %v227, %v226
    %v229 = vmul.f32 0.5, %v228
    %v230 = vsub.f32 1.5, %v229
    %v231 = vmul.f32 %v226, %v230
    %vm232 = vweird.f32 %v195
    %vm233 = vweird.f32 %v226
    %vm234 = vmor %vm232, %vm233
    %v235 = vsel %vm234, %v226, %v231
    %v236 = vmul.f32 %v168, %v205
    %v237 = vmul.f32 %v169, %v215
    %v238 = vmul.f32 %v170, %v225
    %v239 = vmul.f32 %v171, %v235
    %v240 = vld [vmem:[%s2] sm:$0x1]
    %v242 = vperm.slane %v240, 0
    %v244 = vmul.f32 %v236, %v242
    %v245 = vmul.f32 %v237, %v242
    %v246 = vmul.f32 %v238, %v242
    %v247 = vmul.f32 %v239, %v242
    %v248 = vld [vmem:[%s3] sm:$0x1]
    %v250 = vperm.slane %v248, 0
    %v252 = vadd.f32 %v244, %v250
    %v253 = vadd.f32 %v245, %v250
    %v254 = vadd.f32 %v246, %v250
    %v255 = vadd.f32 %v247, %v250
    %v256 = vpack.c.bf16 %v252, %v252
    %v257 = vpack.c.bf16 %v253, %v253
    %v258 = vpack.c.bf16 %v254, %v254
    %v259 = vpack.c.bf16 %v255, %v255
    %vm260 = vcmask 519168
    %261 = vst.msk [vmem:[%s4] sm:$0xf] %vm260, %v256
    %262 = vst.msk [vmem:[%s4 + $0x4] sm:$0xf] %vm260, %v257
    %263 = vst.msk [vmem:[%s4 + $0x8] sm:$0xf] %vm260, %v258
    %264 = vst.msk [vmem:[%s4 + $0xc] sm:$0xf] %vm260, %v259
  $region25: #{forward.33} parent=0 // pred_fallthru
    _
  // Predicated region
  $region26: #{forward.33} parent=0 // pred_check
    _
  $region27: #{forward.33} parent=0 // pred_check_branch
    %266 = sbr.rel (0) target = $region29
  $region28: #{forward.33} parent=0 // pred_region
    _
  $region29: #{forward.33} parent=0 // pred_fallthru
    _
  // Predicated region
  $region30: #{forward.33} parent=0 // pred_check
    _
  $region31: #{forward.33} parent=0 // pred_check_branch
    %268 = sbr.rel (0) target = $region33
  $region32: #{forward.33} parent=0 // pred_region
    _
  $region33: #{forward.33} parent=0 // pred_fallthru
    _

// kernel: forward.36
$region0: #{forward.36}
  #allocation0 [shape = 'u32[]', space=smem, size = 0x4, offset = 0x4, fixed_abs, tag = 'smem constant byte address 0x4 - core index']
  #allocation1 [shape = 'u32[72,128]{1,0:T(1,128)}', space=vmem, size = 0x9000, scoped, tag = 'internal scratch']
  #allocation2 [shape = 'f32[32,64]{1,0:T(8,128)}', space=vmem, size = 0x4000, scoped, tag = 'scratch operand']
  %s0 = inlined_call_operand.vmem [shape: bf16[32,64], index: 0, kind: input, shape index: {}]
  %s1 = inlined_call_operand.vmem [shape: bf16[64,64], index: 1, kind: input, shape index: {}]
  %s2 = inlined_call_operand.vmem [shape: f32[1,64], index: 2, kind: input, shape index: {}]
  %s3 = inlined_call_operand.vmem [shape: f32[1,64], index: 3, kind: input, shape index: {}]
  %s4 = inlined_call_operand.vmem [shape: f32[1,64], index: 4, kind: input, shape index: {}]
  %s5 = inlined_call_operand.vmem [shape: bf16[32,64], index: 5, kind: input, shape index: {}]
  %s6 = inlined_call_operand.vmem [shape: bf16[32,64], index: 6, kind: output, shape index: {}]
  %s7 = sld [smem:[#allocation0]]
  $region42: #{forward.36} parent=0
    _
  %s9 = ssub.s32 1, %s7
  %s10 = scalar_select 0, %s9, %s7
  // Predicated region
  $region2: #{forward.36} parent=0 // pred_check
    _
  $region3: #{forward.36} parent=0 // pred_check_branch
    %12 = sbr.rel (0) target = $region5
  $region4: #{forward.36} parent=0 // pred_region
    _
  $region5: #{forward.36} parent=0 // pred_fallthru
    _
  // Predicated region
  $region6: #{forward.36} parent=0 // pred_check
    _
  $region7: #{forward.36} parent=0 // pred_check_branch
    %14 = sbr.rel (0) target = $region9
  $region8: #{forward.36} parent=0 // pred_region
    _
  $region9: #{forward.36} parent=0 // pred_fallthru
    _
  // Predicated region
  $region10: #{forward.36} parent=0 // pred_check
    _
  $region11: #{forward.36} parent=0 // pred_check_branch
    %16 = sbr.rel (0) target = $region13
  $region12: #{forward.36} parent=0 // pred_region
    _
  $region13: #{forward.36} parent=0 // pred_fallthru
    _
  // Predicated region
  $region14: #{forward.36} parent=0 // pred_check
    _
  $region15: #{forward.36} parent=0 // pred_check_branch
    %18 = sbr.rel (0) target = $region17
  $region16: #{forward.36} parent=0 // pred_region
    _
  $region17: #{forward.36} parent=0 // pred_fallthru
    _
  // Predicated region
  $region18: #{forward.36} parent=0 // pred_check
    _
  $region19: #{forward.36} parent=0 // pred_check_branch
    %20 = sbr.rel (0) target = $region21
  $region20: #{forward.36} parent=0 // pred_region
    _
  $region21: #{forward.36} parent=0 // pred_fallthru
    _
  // Predicated region
  $region22: #{forward.36} parent=0 // pred_check
    _
  $region23: #{forward.36} parent=0 // pred_check_branch
    %22 = sbr.rel (0) target = $region25
  $region24: #{forward.36} parent=0 // pred_region
    _
  $region25: #{forward.36} parent=0 // pred_fallthru
    _
  %p24 = scmp.eq.s32.totalorder 0, 0
  // Predicated region
  $region26: #{forward.36} parent=0 // pred_check
    %p25 = pneg %p24
  $region27: #{forward.36} parent=0 // pred_check_branch
    %27 = sbr.rel (%p25) target = $region29
  $region28: #{forward.36} parent=0 // pred_region
    %vm28 = vcmask 523264
    %29 = vst.msk [vmem:[#allocation2] sm:$0xff] %vm28, 0.0
    %30 = vst.msk [vmem:[#allocation2 + $0x8] sm:$0xff] %vm28, 0.0
    %31 = vst.msk [vmem:[#allocation2 + $0x10] sm:$0xff] %vm28, 0.0
    %32 = vst.msk [vmem:[#allocation2 + $0x18] sm:$0xff] %vm28, 0.0
  $region29: #{forward.36} parent=0 // pred_fallthru
    _
  %v33 = vld [vmem:[#allocation2] sm:$0xff]
  %v34 = vld [vmem:[#allocation2 + $0x8] sm:$0xff]
  %v35 = vld [vmem:[#allocation2 + $0x10] sm:$0xff]
  %v36 = vld [vmem:[#allocation2 + $0x18] sm:$0xff]
  %v37 = vld [vmem:[%s0] sm:$0xf]
  %v38 = vld [vmem:[%s0 + $0x4] sm:$0xf]
  %v39 = vld [vmem:[%s0 + $0x8] sm:$0xf]
  %v40 = vld [vmem:[%s0 + $0xc] sm:$0xf]
  %v41 = vld [vmem:[%s1] sm:$0xf]
  %v42 = vld [vmem:[%s1 + $0x4] sm:$0xf]
  %v43 = vld [vmem:[%s1 + $0x8] sm:$0xf]
  %v44 = vld [vmem:[%s1 + $0xc] sm:$0xf]
  %v45 = vld [vmem:[%s1 + $0x10] sm:$0xf]
  %v46 = vld [vmem:[%s1 + $0x14] sm:$0xf]
  %v47 = vld [vmem:[%s1 + $0x18] sm:$0xf]
  %v48 = vld [vmem:[%s1 + $0x1c] sm:$0xf]
  %v53 = vunpack.c.l.b16 %v37
  %v54 = vunpack.c.l.b16 %v38
  %v55 = vunpack.c.l.b16 %v39
  %v56 = vunpack.c.l.b16 %v40
  %v57 = vpack.c.b16 %v54, %v53
  %v58 = vpack.c.b16 %v56, %v55
  %v67 = vunpack.c.l.b16 %v41
  %v68 = vunpack.c.l.b16 %v42
  %v69 = vunpack.c.l.b16 %v43
  %v70 = vunpack.c.l.b16 %v44
  %v71 = vunpack.c.l.b16 %v45
  %v72 = vunpack.c.l.b16 %v46
  %v73 = vunpack.c.l.b16 %v47
  %v74 = vunpack.c.l.b16 %v48
  %v75 = vpack.c.b16 %v68, %v67
  %v76 = vpack.c.b16 %v70, %v69
  %v77 = vpack.c.b16 %v72, %v71
  %v78 = vpack.c.b16 %v74, %v73
  %vm83 = vcmask 523264
  %v85 = vsel %vm83, %v57, 0
  %v88 = vsel %vm83, %v58, 0
  %90 = vmatpush.bf16.msra.mxu0 0
  %91 = vmatpush.bf16.msra.mxu0 0
  %92 = vmatpush.bf16.msra.mxu0 0
  %93 = vmatpush.bf16.msra.mxu0 0
  %94 = vmatpush.bf16.msra.mxu0 %v78
  %95 = vmatpush.bf16.msra.mxu0 %v77
  %96 = vmatpush.bf16.msra.mxu0 %v76
  %97 = vmatpush.bf16.msra.mxu0 %v75
  %98 = vmatmul.bf16.gmra.mxu0 %v85
  %v99 = vpop.f32.mrf.mxu0
  %v100 = vadd.f32 0.0, %v99
  %v101 = vpop.f32.mrf.mxu0
  %v102 = vadd.f32 0.0, %v101
  %103 = vmatmul.bf16.gmra.mxu0 %v88
  %v104 = vpop.f32.mrf.mxu0
  %v105 = vadd.f32 0.0, %v104
  %v106 = vpop.f32.mrf.mxu0
  %v107 = vadd.f32 0.0, %v106
  %108 = vdwg.mxu0
  %v109 = vadd.f32 %v33, %v100
  %v110 = vadd.f32 %v34, %v102
  %v111 = vadd.f32 %v35, %v105
  %v112 = vadd.f32 %v36, %v107
  %113 = vst.msk [vmem:[#allocation2] sm:$0xff] %vm83, %v109
  %114 = vst.msk [vmem:[#allocation2 + $0x8] sm:$0xff] %vm83, %v110
  %115 = vst.msk [vmem:[#allocation2 + $0x10] sm:$0xff] %vm83, %v111
  %116 = vst.msk [vmem:[#allocation2 + $0x18] sm:$0xff] %vm83, %v112
  // Predicated region
  $region30: #{forward.36} parent=0 // pred_check
    %p117 = pneg %p24
  $region31: #{forward.36} parent=0 // pred_check_branch
    %119 = sbr.rel (%p117) target = $region33
  $region32: #{forward.36} parent=0 // pred_region
    %v120 = vld [vmem:[#allocation2] sm:$0xff]
    %v121 = vld [vmem:[#allocation2 + $0x8] sm:$0xff]
    %v122 = vld [vmem:[#allocation2 + $0x10] sm:$0xff]
    %v123 = vld [vmem:[#allocation2 + $0x18] sm:$0xff]
    %v124 = vld [vmem:[%s2] sm:$0x1]
    %v126 = vperm.slane %v124, 0
    %v128 = vadd.f32 %v120, %v126
    %v129 = vadd.f32 %v121, %v126
    %v130 = vadd.f32 %v122, %v126
    %v131 = vadd.f32 %v123, %v126
    %v132 = vsel %vm83, %v128, 0.0
    %133 = vadd.xlane.f32.xlu0 %v132
    %v134 = vpop.xlane.xlu0 %133
    %v135 = vsel %vm83, %v129, 0.0
    %136 = vadd.xlane.f32.xlu0 %v135
    %v137 = vpop.xlane.xlu0 %136
    %v138 = vsel %vm83, %v130, 0.0
    %139 = vadd.xlane.f32.xlu0 %v138
    %v140 = vpop.xlane.xlu0 %139
    %v141 = vsel %vm83, %v131, 0.0
    %142 = vadd.xlane.f32.xlu0 %v141
    %v143 = vpop.xlane.xlu0 %142
    %v144 = vrcp.pop 64.0
    %v145 = vmul.f32 64.0, %v144
    %v146 = vsub.f32 1.0, %v145
    %v147 = vmul.f32 %v144, %v146
    %v148 = vadd.f32 %v144, %v147
    %vm149 = vweird.f32 %v144
    %v150 = vsel %vm149, %v144, %v148
    %v151 = vmul.f32 %v134, %v150
    %v152 = vmul.f32 %v137, %v150
    %v153 = vmul.f32 %v140, %v150
    %v154 = vmul.f32 %v143, %v150
    %v155 = vsub.f32 %v128, %v151
    %v156 = vsub.f32 %v129, %v152
    %v157 = vsub.f32 %v130, %v153
    %v158 = vsub.f32 %v131, %v154
    %v159 = vmul.f32 %v155, %v155
    %v160 = vmul.f32 %v156, %v156
    %v161 = vmul.f32 %v157, %v157
    %v162 = vmul.f32 %v158, %v158
    %v163 = vsel %vm83, %v159, 0.0
    %164 = vadd.xlane.f32.xlu0 %v163
    %v165 = vpop.xlane.xlu0 %164
    %v166 = vsel %vm83, %v160, 0.0
    %167 = vadd.xlane.f32.xlu0 %v166
    %v168 = vpop.xlane.xlu0 %167
    %v169 = vsel %vm83, %v161, 0.0
    %170 = vadd.xlane.f32.xlu0 %v169
    %v171 = vpop.xlane.xlu0 %170
    %v172 = vsel %vm83, %v162, 0.0
    %173 = vadd.xlane.f32.xlu0 %v172
    %v174 = vpop.xlane.xlu0 %173
    %v175 = vmul.f32 %v165, %v150
    %v176 = vmul.f32 %v168, %v150
    %v177 = vmul.f32 %v171, %v150
    %v178 = vmul.f32 %v174, %v150
    %v179 = vadd.f32 %v175, 1e-05
    %v180 = vadd.f32 %v176, 1e-05
    %v181 = vadd.f32 %v177, 1e-05
    %v182 = vadd.f32 %v178, 1e-05
    %v183 = vrsqrt.pop %v179
    %v184 = vmul.f32 %v183, %v179
    %v185 = vmul.f32 %v184, %v183
    %v186 = vmul.f32 0.5, %v185
    %v187 = vsub.f32 1.5, %v186
    %v188 = vmul.f32 %v183, %v187
    %vm189 = vweird.f32 %v179
    %vm190 = vweird.f32 %v183
    %vm191 = vmor %vm189, %vm190
    %v192 = vsel %vm191, %v183, %v188
    %v193 = vrsqrt.pop %v180
    %v194 = vmul.f32 %v193, %v180
    %v195 = vmul.f32 %v194, %v193
    %v196 = vmul.f32 0.5, %v195
    %v197 = vsub.f32 1.5, %v196
    %v198 = vmul.f32 %v193, %v197
    %vm199 = vweird.f32 %v180
    %vm200 = vweird.f32 %v193
    %vm201 = vmor %vm199, %vm200
    %v202 = vsel %vm201, %v193, %v198
    %v203 = vrsqrt.pop %v181
    %v204 = vmul.f32 %v203, %v181
    %v205 = vmul.f32 %v204, %v203
    %v206 = vmul.f32 0.5, %v205
    %v207 = vsub.f32 1.5, %v206
    %v208 = vmul.f32 %v203, %v207
    %vm209 = vweird.f32 %v181
    %vm210 = vweird.f32 %v203
    %vm211 = vmor %vm209, %vm210
    %v212 = vsel %vm211, %v203, %v208
    %v213 = vrsqrt.pop %v182
    %v214 = vmul.f32 %v213, %v182
    %v215 = vmul.f32 %v214, %v213
    %v216 = vmul.f32 0.5, %v215
    %v217 = vsub.f32 1.5, %v216
    %v218 = vmul.f32 %v213, %v217
    %vm219 = vweird.f32 %v182
    %vm220 = vweird.f32 %v213
    %vm221 = vmor %vm219, %vm220
    %v222 = vsel %vm221, %v213, %v218
    %v223 = vmul.f32 %v155, %v192
    %v224 = vmul.f32 %v156, %v202
    %v225 = vmul.f32 %v157, %v212
    %v226 = vmul.f32 %v158, %v222
    %v227 = vld [vmem:[%s3] sm:$0x1]
    %v229 = vperm.slane %v227, 0
    %v231 = vmul.f32 %v223, %v229
    %v232 = vmul.f32 %v224, %v229
    %v233 = vmul.f32 %v225, %v229
    %v234 = vmul.f32 %v226, %v229
    %v235 = vld [vmem:[%s4] sm:$0x1]
    %v237 = vperm.slane %v235, 0
    %v239 = vadd.f32 %v231, %v237
    %v240 = vadd.f32 %v232, %v237
    %v241 = vadd.f32 %v233, %v237
    %v242 = vadd.f32 %v234, %v237
    %v243 = vld [vmem:[%s5] sm:$0xf]
    %v244 = vld [vmem:[%s5 + $0x4] sm:$0xf]
    %v245 = vld [vmem:[%s5 + $0x8] sm:$0xf]
    %v246 = vld [vmem:[%s5 + $0xc] sm:$0xf]
    %v247 = vunpack.c.l.bf16 %v243
    %v248 = vunpack.c.l.bf16 %v244
    %v249 = vunpack.c.l.bf16 %v245
    %v250 = vunpack.c.l.bf16 %v246
    %v251 = vadd.f32 %v239, %v247
    %v252 = vadd.f32 %v240, %v248
    %v253 = vadd.f32 %v241, %v249
    %v254 = vadd.f32 %v242, %v250
    %v255 = vpack.c.bf16 %v251, %v251
    %v256 = vpack.c.bf16 %v252, %v252
    %v257 = vpack.c.bf16 %v253, %v253
    %v258 = vpack.c.bf16 %v254, %v254
    %vm259 = vcmask 519168
    %260 = vst.msk [vmem:[%s6] sm:$0xf] %vm259, %v255
    %261 = vst.msk [vmem:[%s6 + $0x4] sm:$0xf] %vm259, %v256
    %262 = vst.msk [vmem:[%s6 + $0x8] sm:$0xf] %vm259, %v257
    %263 = vst.msk [vmem:[%s6 + $0xc] sm:$0xf] %vm259, %v258
  $region33: #{forward.36} parent=0 // pred_fallthru
    _
  // Predicated region
  $region34: #{forward.36} parent=0 // pred_check
    _
  $region35: #{forward.36} parent=0 // pred_check_branch
    %265 = sbr.rel (0) target = $region37
  $region36: #{forward.36} parent=0 // pred_region
    _
  $region37: #{forward.36} parent=0 // pred_fallthru
    _
  // Predicated region
  $region38: #{forward.36} parent=0 // pred_check
    _
  $region39: #{forward.36} parent=0 // pred_check_branch
    %267 = sbr.rel (0) target = $region41
  $region40: #{forward.36} parent=0 // pred_region
    _
  $region41: #{forward.36} parent=0 // pred_fallthru
    _

// kernel: forward.37
$region0: #{forward.37}
  #allocation0 [shape = 'u32[]', space=smem, size = 0x4, offset = 0x4, fixed_abs, tag = 'smem constant byte address 0x4 - core index']
  #allocation1 [shape = 'u32[72,128]{1,0:T(1,128)}', space=vmem, size = 0x9000, scoped, tag = 'internal scratch']
  #allocation2 [shape = 'f32[32,256]{1,0:T(8,128)}', space=vmem, size = 0x8000, scoped, tag = 'scratch operand']
  %s0 = inlined_call_operand.vmem [shape: bf16[32,64], index: 0, kind: input, shape index: {}]
  %s1 = inlined_call_operand.vmem [shape: bf16[64,256], index: 1, kind: input, shape index: {}]
  %s2 = inlined_call_operand.vmem [shape: f32[1,256], index: 2, kind: input, shape index: {}]
  %s3 = inlined_call_operand.vmem [shape: bf16[32,256], index: 3, kind: output, shape index: {}]
  %s4 = sld [smem:[#allocation0]]
  $region30: #{forward.37} parent=0
    _
  %s6 = ssub.s32 1, %s4
  %s7 = scalar_select 0, %s6, %s4
  // Predicated region
  $region2: #{forward.37} parent=0 // pred_check
    _
  $region3: #{forward.37} parent=0 // pred_check_branch
    %9 = sbr.rel (0) target = $region5
  $region4: #{forward.37} parent=0 // pred_region
    _
  $region5: #{forward.37} parent=0 // pred_fallthru
    _
  // Predicated region
  $region6: #{forward.37} parent=0 // pred_check
    _
  $region7: #{forward.37} parent=0 // pred_check_branch
    %11 = sbr.rel (0) target = $region9
  $region8: #{forward.37} parent=0 // pred_region
    _
  $region9: #{forward.37} parent=0 // pred_fallthru
    _
  // Predicated region
  $region10: #{forward.37} parent=0 // pred_check
    _
  $region11: #{forward.37} parent=0 // pred_check_branch
    %13 = sbr.rel (0) target = $region13
  $region12: #{forward.37} parent=0 // pred_region
    _
  $region13: #{forward.37} parent=0 // pred_fallthru
    _
  %p15 = scmp.eq.s32.totalorder 0, 0
  // Predicated region
  $region14: #{forward.37} parent=0 // pred_check
    %p16 = pneg %p15
  $region15: #{forward.37} parent=0 // pred_check_branch
    %18 = sbr.rel (%p16) target = $region17
  $region16: #{forward.37} parent=0 // pred_region
    %19 = vst [vmem:[#allocation2] sm:$0xff] 0.0
    %20 = vst [vmem:[#allocation2 + $0x8] sm:$0xff] 0.0
    %21 = vst [vmem:[#allocation2 + $0x10] sm:$0xff] 0.0
    %22 = vst [vmem:[#allocation2 + $0x18] sm:$0xff] 0.0
    %23 = vst [vmem:[#allocation2 + $0x20] sm:$0xff] 0.0
    %24 = vst [vmem:[#allocation2 + $0x28] sm:$0xff] 0.0
    %25 = vst [vmem:[#allocation2 + $0x30] sm:$0xff] 0.0
    %26 = vst [vmem:[#allocation2 + $0x38] sm:$0xff] 0.0
  $region17: #{forward.37} parent=0 // pred_fallthru
    _
  %v27 = vld [vmem:[#allocation2] sm:$0xff]
  %v28 = vld [vmem:[#allocation2 + $0x8] sm:$0xff]
  %v29 = vld [vmem:[#allocation2 + $0x10] sm:$0xff]
  %v30 = vld [vmem:[#allocation2 + $0x18] sm:$0xff]
  %v31 = vld [vmem:[#allocation2 + $0x20] sm:$0xff]
  %v32 = vld [vmem:[#allocation2 + $0x28] sm:$0xff]
  %v33 = vld [vmem:[#allocation2 + $0x30] sm:$0xff]
  %v34 = vld [vmem:[#allocation2 + $0x38] sm:$0xff]
  %v35 = vld [vmem:[%s0] sm:$0xf]
  %v36 = vld [vmem:[%s0 + $0x4] sm:$0xf]
  %v37 = vld [vmem:[%s0 + $0x8] sm:$0xf]
  %v38 = vld [vmem:[%s0 + $0xc] sm:$0xf]
  %v39 = vld [vmem:[%s1] sm:$0xff]
  %v40 = vld [vmem:[%s1 + $0x8] sm:$0xff]
  %v41 = vld [vmem:[%s1 + $0x10] sm:$0xff]
  %v42 = vld [vmem:[%s1 + $0x18] sm:$0xff]
  %v43 = vld [vmem:[%s1 + $0x20] sm:$0xff]
  %v44 = vld [vmem:[%s1 + $0x28] sm:$0xff]
  %v45 = vld [vmem:[%s1 + $0x30] sm:$0xff]
  %v46 = vld [vmem:[%s1 + $0x38] sm:$0xff]
  %v51 = vunpack.c.l.b16 %v35
  %v52 = vunpack.c.l.b16 %v36
  %v53 = vunpack.c.l.b16 %v37
  %v54 = vunpack.c.l.b16 %v38
  %v55 = vpack.c.b16 %v52, %v51
  %v56 = vpack.c.b16 %v54, %v53
  %v65 = vunpack.c.l.b16 %v39
  %v66 = vunpack.c.h.b16 %v39
  %v67 = vunpack.c.l.b16 %v40
  %v68 = vunpack.c.h.b16 %v40
  %v69 = vunpack.c.l.b16 %v41
  %v70 = vunpack.c.h.b16 %v41
  %v71 = vunpack.c.l.b16 %v42
  %v72 = vunpack.c.h.b16 %v42
  %v73 = vunpack.c.l.b16 %v43
  %v74 = vunpack.c.h.b16 %v43
  %v75 = vunpack.c.l.b16 %v44
  %v76 = vunpack.c.h.b16 %v44
  %v77 = vunpack.c.l.b16 %v45
  %v78 = vunpack.c.h.b16 %v45
  %v79 = vunpack.c.l.b16 %v46
  %v80 = vunpack.c.h.b16 %v46
  %v81 = vpack.c.b16 %v67, %v65
  %v82 = vpack.c.b16 %v68, %v66
  %v83 = vpack.c.b16 %v71, %v69
  %v84 = vpack.c.b16 %v72, %v70
  %v85 = vpack.c.b16 %v75, %v73
  %v86 = vpack.c.b16 %v76, %v74
  %v87 = vpack.c.b16 %v79, %v77
  %v88 = vpack.c.b16 %v80, %v78
  %vm97 = vcmask 523264
  %v99 = vsel %vm97, %v55, 0
  %v102 = vsel %vm97, %v56, 0
  %104 = vmatpush.bf16.msra.mxu0 0
  %105 = vmatpush.bf16.msra.mxu0 0
  %106 = vmatpush.bf16.msra.mxu0 0
  %107 = vmatpush.bf16.msra.mxu0 0
  %108 = vmatpush.bf16.msra.mxu0 %v87
  %109 = vmatpush.bf16.msra.mxu0 %v85
  %110 = vmatpush.bf16.msra.mxu0 %v83
  %111 = vmatpush.bf16.msra.mxu0 %v81
  %112 = vmatmul.bf16.gmra.mxu0 %v99
  %v113 = vpop.f32.mrf.mxu0
  %v114 = vadd.f32 0.0, %v113
  %v115 = vpop.f32.mrf.mxu0
  %v116 = vadd.f32 0.0, %v115
  %117 = vmatmul.bf16.gmra.mxu0 %v102
  %v118 = vpop.f32.mrf.mxu0
  %v119 = vadd.f32 0.0, %v118
  %v120 = vpop.f32.mrf.mxu0
  %v121 = vadd.f32 0.0, %v120
  %122 = vdwg.mxu0
  %123 = vmatpush.bf16.msra.mxu0 0
  %124 = vmatpush.bf16.msra.mxu0 0
  %125 = vmatpush.bf16.msra.mxu0 0
  %126 = vmatpush.bf16.msra.mxu0 0
  %127 = vmatpush.bf16.msra.mxu0 %v88
  %128 = vmatpush.bf16.msra.mxu0 %v86
  %129 = vmatpush.bf16.msra.mxu0 %v84
  %130 = vmatpush.bf16.msra.mxu0 %v82
  %131 = vmatmul.bf16.gmra.mxu0 %v99
  %v132 = vpop.f32.mrf.mxu0
  %v133 = vadd.f32 0.0, %v132
  %v134 = vpop.f32.mrf.mxu0
  %v135 = vadd.f32 0.0, %v134
  %136 = vmatmul.bf16.gmra.mxu0 %v102
  %v137 = vpop.f32.mrf.mxu0
  %v138 = vadd.f32 0.0, %v137
  %v139 = vpop.f32.mrf.mxu0
  %v140 = vadd.f32 0.0, %v139
  %141 = vdwg.mxu0
  %v142 = vadd.f32 %v27, %v114
  %v143 = vadd.f32 %v28, %v133
  %v144 = vadd.f32 %v29, %v116
  %v145 = vadd.f32 %v30, %v135
  %v146 = vadd.f32 %v31, %v119
  %v147 = vadd.f32 %v32, %v138
  %v148 = vadd.f32 %v33, %v121
  %v149 = vadd.f32 %v34, %v140
  %150 = vst [vmem:[#allocation2] sm:$0xff] %v142
  %151 = vst [vmem:[#allocation2 + $0x8] sm:$0xff] %v143
  %152 = vst [vmem:[#allocation2 + $0x10] sm:$0xff] %v144
  %153 = vst [vmem:[#allocation2 + $0x18] sm:$0xff] %v145
  %154 = vst [vmem:[#allocation2 + $0x20] sm:$0xff] %v146
  %155 = vst [vmem:[#allocation2 + $0x28] sm:$0xff] %v147
  %156 = vst [vmem:[#allocation2 + $0x30] sm:$0xff] %v148
  %157 = vst [vmem:[#allocation2 + $0x38] sm:$0xff] %v149
  // Predicated region
  $region18: #{forward.37} parent=0 // pred_check
    %p158 = pneg %p15
  $region19: #{forward.37} parent=0 // pred_check_branch
    %160 = sbr.rel (%p158) target = $region21
  $region20: #{forward.37} parent=0 // pred_region
    %v161 = vld [vmem:[#allocation2] sm:$0xff]
    %v162 = vld [vmem:[#allocation2 + $0x8] sm:$0xff]
    %v163 = vld [vmem:[#allocation2 + $0x10] sm:$0xff]
    %v164 = vld [vmem:[#allocation2 + $0x18] sm:$0xff]
    %v165 = vld [vmem:[#allocation2 + $0x20] sm:$0xff]
    %v166 = vld [vmem:[#allocation2 + $0x28] sm:$0xff]
    %v167 = vld [vmem:[#allocation2 + $0x30] sm:$0xff]
    %v168 = vld [vmem:[#allocation2 + $0x38] sm:$0xff]
    %v169 = vld [vmem:[%s2] sm:$0x3]
    %v171 = vperm.slane %v169, 0
    %v172 = vperm.slane %v169, 1
    %v175 = vadd.f32 %v161, %v171
    %v176 = vadd.f32 %v162, %v172
    %v177 = vadd.f32 %v163, %v171
    %v178 = vadd.f32 %v164, %v172
    %v179 = vadd.f32 %v165, %v171
    %v180 = vadd.f32 %v166, %v172
    %v181 = vadd.f32 %v167, %v171
    %v182 = vadd.f32 %v168, %v172
    %v183 = vmul.f32 %v175, 0.5
    %v184 = vmul.f32 %v176, 0.5
    %v185 = vmul.f32 %v177, 0.5
    %v186 = vmul.f32 %v178, 0.5
    %v187 = vmul.f32 %v179, 0.5
    %v188 = vmul.f32 %v180, 0.5
    %v189 = vmul.f32 %v181, 0.5
    %v190 = vmul.f32 %v182, 0.5
    %v191 = vmul.f32 %v175, 0.044715
    %v192 = vmul.f32 %v176, 0.044715
    %v193 = vmul.f32 %v177, 0.044715
    %v194 = vmul.f32 %v178, 0.044715
    %v195 = vmul.f32 %v179, 0.044715
    %v196 = vmul.f32 %v180, 0.044715
    %v197 = vmul.f32 %v181, 0.044715
    %v198 = vmul.f32 %v182, 0.044715
    %v199 = vmul.f32 %v191, %v175
    %v200 = vmul.f32 %v192, %v176
    %v201 = vmul.f32 %v193, %v177
    %v202 = vmul.f32 %v194, %v178
    %v203 = vmul.f32 %v195, %v179
    %v204 = vmul.f32 %v196, %v180
    %v205 = vmul.f32 %v197, %v181
    %v206 = vmul.f32 %v198, %v182
    %v207 = vmul.f32 %v199, %v175
    %v208 = vmul.f32 %v200, %v176
    %v209 = vmul.f32 %v201, %v177
    %v210 = vmul.f32 %v202, %v178
    %v211 = vmul.f32 %v203, %v179
    %v212 = vmul.f32 %v204, %v180
    %v213 = vmul.f32 %v205, %v181
    %v214 = vmul.f32 %v206, %v182
    %v215 = vadd.f32 %v175, %v207
    %v216 = vadd.f32 %v176, %v208
    %v217 = vadd.f32 %v177, %v209
    %v218 = vadd.f32 %v178, %v210
    %v219 = vadd.f32 %v179, %v211
    %v220 = vadd.f32 %v180, %v212
    %v221 = vadd.f32 %v181, %v213
    %v222 = vadd.f32 %v182, %v214
    %v223 = vmul.f32 %v215, 0.7978846
    %v224 = vmul.f32 %v216, 0.7978846
    %v225 = vmul.f32 %v217, 0.7978846
    %v226 = vmul.f32 %v218, 0.7978846
    %v227 = vmul.f32 %v219, 0.7978846
    %v228 = vmul.f32 %v220, 0.7978846
    %v229 = vmul.f32 %v221, 0.7978846
    %v230 = vmul.f32 %v222, 0.7978846
    %v231 = vtanh.pop %v223
    %v232 = vtanh.pop %v224
    %v233 = vtanh.pop %v225
    %v234 = vtanh.pop %v226
    %v235 = vtanh.pop %v227
    %v236 = vtanh.pop %v228
    %v237 = vtanh.pop %v229
    %v238 = vtanh.pop %v230
    %v239 = vadd.f32 %v231, 1.0
    %v240 = vadd.f32 %v232, 1.0
    %v241 = vadd.f32 %v233, 1.0
    %v242 = vadd.f32 %v234, 1.0
    %v243 = vadd.f32 %v235, 1.0
    %v244 = vadd.f32 %v236, 1.0
    %v245 = vadd.f32 %v237, 1.0
    %v246 = vadd.f32 %v238, 1.0
    %v247 = vmul.f32 %v183, %v239
    %v248 = vmul.f32 %v184, %v240
    %v249 = vmul.f32 %v185, %v241
    %v250 = vmul.f32 %v186, %v242
    %v251 = vmul.f32 %v187, %v243
    %v252 = vmul.f32 %v188, %v244
    %v253 = vmul.f32 %v189, %v245
    %v254 = vmul.f32 %v190, %v246
    %v255 = vpack.c.bf16 %v248, %v247
    %v256 = vpack.c.bf16 %v250, %v249
    %v257 = vpack.c.bf16 %v252, %v251
    %v258 = vpack.c.bf16 %v254, %v253
    %259 = vst [vmem:[%s3] sm:$0xff] %v255
    %260 = vst [vmem:[%s3 + $0x8] sm:$0xff] %v256
    %261 = vst [vmem:[%s3 + $0x10] sm:$0xff] %v257
    %262 = vst [vmem:[%s3 + $0x18] sm:$0xff] %v258
  $region21: #{forward.37} parent=0 // pred_fallthru
    _
  // Predicated region
  $region22: #{forward.37} parent=0 // pred_check
    _
  $region23: #{forward.37} parent=0 // pred_check_branch
    %264 = sbr.rel (0) target = $region25
  $region24: #{forward.37} parent=0 // pred_region
    _
  $region25: #{forward.37} parent=0 // pred_fallthru
    _
  // Predicated region
  $region26: #{forward.37} parent=0 // pred_check
    _
  $region27: #{forward.37} parent=0 // pred_check_branch
    %266 = sbr.rel (0) target = $region29
  $region28: #{forward.37} parent=0 // pred_region
    _
  $region29: #{forward.37} parent=0 // pred_fallthru
    _

// kernel: forward.35
$region0: #{forward.35}
  #allocation0 [shape = 'u32[]', space=smem, size = 0x4, offset = 0x4, fixed_abs, tag = 'smem constant byte address 0x4 - core index']
  #allocation1 [shape = 'u32[72,128]{1,0:T(1,128)}', space=vmem, size = 0x9000, scoped, tag = 'internal scratch']
  %s0 = inlined_call_operand.vmem [shape: f32[1,4], index: 0, kind: input, shape index: {}]
  %s1 = inlined_call_operand.vmem [shape: bf16[32,192], index: 1, kind: input, shape index: {}]
  %s2 = inlined_call_operand.vmem [shape: f32[4,16,16], index: 2, kind: input, shape index: {}]
  %s3 = inlined_call_operand.vmem [shape: bf16[32,64], index: 3, kind: output, shape index: {}]
  %s4 = sld [smem:[#allocation0]]
  $region49: #{forward.35} parent=0
    _
  %s6 = ssub.s32 1, %s4
  %s7 = scalar_select 0, %s6, %s4
  $region1: #{forward.35} parent=0
    #allocation2 [shape = 'u8[512]{0}', space=smem, size = 0x200, scoped, tag = 'input window, operand 0, single buffered']
    #allocation3 [shape = 's32[2]{0}', space=sflag, size = 0x8, scoped, tag = 'scoped memory for forward.35']
    %8 = vsyncpa [#allocation3], 0
    loop: start=0, step=1, limit=4
    $region2: #{forward.35} parent=1 // loop_pre_header
      _
    $region3: #{forward.35} parent=1 // loop_header
      %s10 = sphi 0, %s14
      %p11 = scmp.ge.s32.totalorder %s10, 4
      %s17 = sphi 0, %s29
      %s18 = sphi 0, %s25
      %s19 = sphi 0, %s17
      %s20 = sphi 0, %s18
      %s21 = sphi 0, %s19
      %s22 = sphi 0, %s20
      %s30 = sphi 0, %s30
      %s32 = sphi 0, %s30
      %s33 = sphi 0, %s32
      %s47 = sphi 0, %s33
      %s55 = sphi 0, %s57
      %s58 = sphi 0, %s55
      %s59 = sphi 0, %s58
      %s75 = sphi 0, %s59
      %s79 = sphi 0, %s79
      %s81 = sphi 0, %s79
      %s82 = sphi 0, %s81
      %s96 = sphi 0, %s82
      %s104 = sphi 0, %s106
      %s107 = sphi 0, %s104
      %s108 = sphi 0, %s107
      %s124 = sphi 0, %s108
    $region4: #{forward.35} parent=1 // loop_header_branch
      %13 = sbr.rel (%p11) target = $region8
    $region5: #{forward.35} parent=1 // loop_body
      %s15 = ssub.s32 %s10, 1
      %s16 = ssub.s32 %s10, 2
      %s23 = sadd.s32 1, %s18
      %p24 = scmp.ge.s32.totalorder %s23, 2
      %s25 = scalar_select %p24, 0, %s23
      %s26 = sadd.s32 1, %s17
      %s27 = scalar_select %p24, %s26, %s17
      %p28 = scmp.ge.s32.totalorder %s27, 1
      %s29 = scalar_select %p28, 0, %s27
      %s31 = sadd.s32 %s30, 1
      %p34 = scmp.eq.s32.totalorder %s10, 1
      %p35 = scmp.ne.s32.totalorder %s30, %s32
      %p36 = scmp.eq.s32.totalorder %s10, 0
      %p37 = por %p35, %p36
      %p38 = scmp.ne.s32.totalorder %s30, %s32
      %p39 = scmp.eq.s32.totalorder %s15, 1
      %p40 = por %p38, %p39
      %p41 = scmp.ne.s32.totalorder %s32, %s33
      %p42 = scmp.eq.s32.totalorder %s15, 0
      %p43 = por %p41, %p42
      %p44 = scmp.ne.s32.totalorder %s32, %s33
      %p45 = scmp.eq.s32.totalorder %s16, 1
      %p46 = por %p44, %p45
      %p48 = scmp.ne.s32.totalorder %s33, %s47
      %p49 = scmp.eq.s32.totalorder %s16, 0
      %p50 = por %p48, %p49
      %s51 = sadd.s32 %s18, %s17
      %s52 = sadd.s32 %s25, %s29
      %s53 = ssub.s32 %s51, %s52
      %p54 = scmp.eq.s32.totalorder %s53, 0
      %s56 = sadd.s32 %s55, 1
      %s57 = scalar_select %p54, %s55, %s56
      %p60 = pneg %p54
      %p61 = scmp.eq.s32.totalorder %s10, 1
      %p62 = por %p60, %p61
      %p63 = scmp.ne.s32.totalorder %s55, %s58
      %p64 = scmp.eq.s32.totalorder %s10, 0
      %p65 = por %p63, %p64
      %p66 = scmp.ne.s32.totalorder %s55, %s58
      %p67 = scmp.eq.s32.totalorder %s15, 1
      %p68 = por %p66, %p67
      %p69 = scmp.ne.s32.totalorder %s58, %s59
      %p70 = scmp.eq.s32.totalorder %s15, 0
      %p71 = por %p69, %p70
      %p72 = scmp.ne.s32.totalorder %s58, %s59
      %p73 = scmp.eq.s32.totalorder %s16, 1
      %p74 = por %p72, %p73
      %p76 = scmp.ne.s32.totalorder %s59, %s75
      %p77 = scmp.eq.s32.totalorder %s16, 0
      %p78 = por %p76, %p77
      %s80 = sadd.s32 %s79, 1
      %p83 = scmp.eq.s32.totalorder %s10, 1
      %p84 = scmp.ne.s32.totalorder %s79, %s81
      %p85 = scmp.eq.s32.totalorder %s10, 0
      %p86 = por %p84, %p85
      %p87 = scmp.ne.s32.totalorder %s79, %s81
      %p88 = scmp.eq.s32.totalorder %s15, 1
      %p89 = por %p87, %p88
      %p90 = scmp.ne.s32.totalorder %s81, %s82
      %p91 = scmp.eq.s32.totalorder %s15, 0
      %p92 = por %p90, %p91
      %p93 = scmp.ne.s32.totalorder %s81, %s82
      %p94 = scmp.eq.s32.totalorder %s16, 1
      %p95 = por %p93, %p94
      %p97 = scmp.ne.s32.totalorder %s82, %s96
      %p98 = scmp.eq.s32.totalorder %s16, 0
      %p99 = por %p97, %p98
      %s100 = sadd.s32 %s18, %s17
      %s101 = sadd.s32 %s25, %s29
      %s102 = ssub.s32 %s100, %s101
      %p103 = scmp.eq.s32.totalorder %s102, 0
      %s105 = sadd.s32 %s104, 1
      %s106 = scalar_select %p103, %s104, %s105
      %p109 = pneg %p103
      %p110 = scmp.eq.s32.totalorder %s10, 1
      %p111 = por %p109, %p110
      %p112 = scmp.ne.s32.totalorder %s104, %s107
      %p113 = scmp.eq.s32.totalorder %s10, 0
      %p114 = por %p112, %p113
      %p115 = scmp.ne.s32.totalorder %s104, %s107
      %p116 = scmp.eq.s32.totalorder %s15, 1
      %p117 = por %p115, %p116
      %p118 = scmp.ne.s32.totalorder %s107, %s108
      %p119 = scmp.eq.s32.totalorder %s15, 0
      %p120 = por %p118, %p119
      %p121 = scmp.ne.s32.totalorder %s107, %s108
      %p122 = scmp.eq.s32.totalorder %s16, 1
      %p123 = por %p121, %p122
      %p125 = scmp.ne.s32.totalorder %s108, %s124
      %p126 = scmp.eq.s32.totalorder %s16, 0
      %p127 = por %p125, %p126
      %p128 = scmp.le.s32.totalorder 1, %s10
      %p129 = scmp.lt.s32.totalorder %s10, 3
      %p130 = pnand %p128, %p129
      %p131 = pneg %p130
      // Predicated region
      $region9: #{forward.35} parent=5 // pred_check
        _
      $region10: #{forward.35} parent=5 // pred_check_branch
        %133 = sbr.rel (%p130) target = $region12
      $region11: #{forward.35} parent=5 // pred_region
        %s134 = ssub.s32 %s10, 1
        // Predicated region
        $region13: #{forward.35} parent=11 // pred_check
          %p135 = pneg %p43
        $region14: #{forward.35} parent=11 // pred_check_branch
          %137 = sbr.rel (%p135) target = $region16
        $region15: #{forward.35} parent=11 // pred_region
          %139 = vsyncadd [#allocation3], 0
          %s141 = sshll.u32 %s0, 4
          %s142 = int_to_ptr.vmem [resolvable:$true] %s141
          %144 = dma.vmem_to_smem %s142, 16, [#allocation2], [#allocation3]
        $region16: #{forward.35} parent=11 // pred_fallthru
          _
        // Predicated region
        $region17: #{forward.35} parent=11 // pred_check
          %p145 = pneg %p92
        $region18: #{forward.35} parent=11 // pred_check_branch
          %147 = sbr.rel (%p145) target = $region20
        $region19: #{forward.35} parent=11 // pred_region
          _
        $region20: #{forward.35} parent=11 // pred_fallthru
          _
      $region12: #{forward.35} parent=5 // pred_fallthru
        _
      %p148 = scmp.lt.s32.totalorder %s10, 2
      // Predicated region
      $region21: #{forward.35} parent=5 // pred_check
        %p149 = pneg %p148
      $region22: #{forward.35} parent=5 // pred_check_branch
        %151 = sbr.rel (%p149) target = $region24
      $region23: #{forward.35} parent=5 // pred_region
        // Predicated region
        $region25: #{forward.35} parent=23 // pred_check
          %p152 = pneg %p65
        $region26: #{forward.35} parent=23 // pred_check_branch
          %154 = sbr.rel (%p152) target = $region28
        $region27: #{forward.35} parent=23 // pred_region
          %s155 = sadd.s32 %s18, %s17
          %s156 = smul.u32 2, %s155
          %p157 = scmp.lt.s32.totalorder %s156, 3
          %s158 = scalar_select %p157, %s156, 3
          %s159 = smul.addr %s158, 2
          %s160 = smul.addr %s159, 4
          %s161 = scalar_lea.vmem %s1, %s160
          %s162 = sadd.s32 %s18, %s17
          %s163 = smul.u32 2, %s162
        $region28: #{forward.35} parent=23 // pred_fallthru
          _
      $region24: #{forward.35} parent=5 // pred_fallthru
        _
      %p164 = scmp.le.s32.totalorder 1, %s10
      %p165 = scmp.lt.s32.totalorder %s10, 3
      %p166 = pnand %p164, %p165
      %p167 = pneg %p166
      // Predicated region
      $region29: #{forward.35} parent=5 // pred_check
        _
      $region30: #{forward.35} parent=5 // pred_check_branch
        %169 = sbr.rel (%p166) target = $region32
      $region31: #{forward.35} parent=5 // pred_region
        %s170 = ssub.s32 %s10, 1
        // Predicated region
        $region33: #{forward.35} parent=31 // pred_check
          %p171 = pneg %p43
        $region34: #{forward.35} parent=31 // pred_check_branch
          %173 = sbr.rel (%p171) target = $region36
        $region35: #{forward.35} parent=31 // pred_region
          %175 = dma.done [#allocation3], 16
        $region36: #{forward.35} parent=31 // pred_fallthru
          _
        %176 = sfence
        %p177 = pneg %p43
        %p178 = pneg %p40
        %s179 = sadd.s32 %s20, %s19
        %s180 = smul.u32 2, %s179
        %p181 = scmp.lt.s32.totalorder %s180, 3
        %s182 = scalar_select %p181, %s180, 3
        %s183 = smul.addr %s182, 2
        %s184 = smul.addr %s183, 4
        %s185 = scalar_lea.vmem %s1, %s184
        %p186 = pneg %p71
        %p187 = pneg %p68
        %p188 = pneg %p92
        %p189 = pneg %p89
        %p190 = pneg %p120
        %p191 = pneg %p117
        %s192 = sadd.s32 %s20, %s19
        %s193 = smul.u32 2, %s192
        %p194 = scmp.lt.s32.totalorder %s193, 3
        %s195 = scalar_select %p194, %s193, 3
        %s196 = smul.addr %s195, 4
        %s197 = scalar_lea.vmem %s3, %s196
        %s198 = sadd.s32 %s20, %s19
        %s199 = smul.u32 2, %s198
        %p200 = scmp.lt.s32.totalorder %s199, 3
        %s201 = scalar_select %p200, %s199, 3
        %s202 = smul.addr %s201, 2
        %s203 = smul.addr %s202, 4
        %s204 = scalar_lea.vmem %s1, %s203
        %s205 = sadd.s32 %s20, %s19
        %s206 = smul.u32 2, %s205
        %s207 = sadd.s32 %s20, %s19
        %s208 = smul.u32 2, %s207
        %p209 = scmp.lt.s32.totalorder %s208, 3
        %s210 = scalar_select %p209, %s208, 3
        %s211 = smul.addr %s210, 4
        %s212 = scalar_lea.vmem %s3, %s211
        %s213 = sadd.s32 %s20, %s19
        %s214 = smul.u32 2, %s213
        %v216 = vld [vmem:[%s204] sm:$0xff]
        %v217 = vld [vmem:[%s204 + $0x8] sm:$0xff]
        %v218 = vunpack.c.l.bf16 %v216
        %v219 = vunpack.c.l.bf16 %v217
        %v220 = vmul.f32 %v218, %v218
        %v221 = vmul.f32 %v219, %v219
        %vm222 = vcmask 130048
        %v223 = vsel %vm222, %v220, 0.0
        %224 = vadd.xlane.f32.xlu0 %v223
        %v225 = vpop.xlane.xlu0 %224
        %v226 = vsel %vm222, %v221, 0.0
        %227 = vadd.xlane.f32.xlu0 %v226
        %v228 = vpop.xlane.xlu0 %227
        %v229 = vadd.f32 %v225, 1e-12
        %v230 = vadd.f32 %v228, 1e-12
        %v231 = vrsqrt.pop %v229
        %v232 = vmul.f32 %v231, %v229
        %v233 = vmul.f32 %v232, %v231
        %v234 = vmul.f32 0.5, %v233
        %v235 = vsub.f32 1.5, %v234
        %v236 = vmul.f32 %v231, %v235
        %vm237 = vweird.f32 %v229
        %vm238 = vweird.f32 %v231
        %vm239 = vmor %vm237, %vm238
        %v240 = vsel %vm239, %v231, %v236
        %v241 = vrsqrt.pop %v230
        %v242 = vmul.f32 %v241, %v230
        %v243 = vmul.f32 %v242, %v241
        %v244 = vmul.f32 0.5, %v243
        %v245 = vsub.f32 1.5, %v244
        %v246 = vmul.f32 %v241, %v245
        %vm247 = vweird.f32 %v230
        %vm248 = vweird.f32 %v241
        %vm249 = vmor %vm247, %vm248
        %v250 = vsel %vm249, %v241, %v246
        %v251 = vmul.f32 %v218, %v240
        %v252 = vmul.f32 %v219, %v250
        %255 = vrot.lane.b32.xlu0 %v220, 64
        %v256 = vpop.permute.xlu0 %255
        %257 = vrot.lane.b32.xlu0 %v221, 64
        %v258 = vpop.permute.xlu0 %257
        %v261 = vsel %vm222, %v256, 0.0
        %262 = vadd.xlane.f32.xlu0 %v261
        %v263 = vpop.xlane.xlu0 %262
        %v264 = vsel %vm222, %v258, 0.0
        %265 = vadd.xlane.f32.xlu0 %v264
        %v266 = vpop.xlane.xlu0 %265
        %v267 = vadd.f32 %v263, 1e-12
        %v268 = vadd.f32 %v266, 1e-12
        %v269 = vrsqrt.pop %v267
        %v270 = vmul.f32 %v269, %v267
        %v271 = vmul.f32 %v270, %v269
        %v272 = vmul.f32 0.5, %v271
        %v273 = vsub.f32 1.5, %v272
        %v274 = vmul.f32 %v269, %v273
        %vm275 = vweird.f32 %v267
        %vm276 = vweird.f32 %v269
        %vm277 = vmor %vm275, %vm276
        %v278 = vsel %vm277, %v269, %v274
        %v279 = vrsqrt.pop %v268
        %v280 = vmul.f32 %v279, %v268
        %v281 = vmul.f32 %v280, %v279
        %v282 = vmul.f32 0.5, %v281
        %v283 = vsub.f32 1.5, %v282
        %v284 = vmul.f32 %v279, %v283
        %vm285 = vweird.f32 %v268
        %vm286 = vweird.f32 %v279
        %vm287 = vmor %vm285, %vm286
        %v288 = vsel %vm287, %v279, %v284
        %v289 = vmul.f32 %v218, %v278
        %v290 = vmul.f32 %v219, %v288
        %v291 = vpack.c.bf16 %v252, %v251
        %v292 = vpack.c.bf16 %v290, %v289
        %294 = vrot.lane.b32.xlu0 %v292, 64
        %v295 = vpop.permute.xlu0 %294
        %v297 = vsel %vm222, %v291, 0
        %v300 = vsel %vm222, %v295, 0
        %302 = vmatpush.bf16.xpose.msra.mxu0 0
        %303 = vmatpush.bf16.xpose.msra.mxu0 0
        %304 = vmatpush.bf16.xpose.msra.mxu0 0
        %305 = vmatpush.bf16.xpose.msra.mxu0 0
        %306 = vmatpush.bf16.xpose.msra.mxu0 0
        %307 = vmatpush.bf16.xpose.msra.mxu0 0
        %308 = vmatpush.bf16.xpose.msra.mxu0 0
        %309 = vmatpush.bf16.xpose.msra.mxu0 %v300
        %310 = vmatmul.bf16.gmra.mxu0 %v297
        %v311 = vpop.f32.mrf.mxu0
        %v312 = vadd.f32 0.0, %v311
        %v313 = vpop.f32.mrf.mxu0
        %v314 = vadd.f32 0.0, %v313
        %315 = vdwg.mxu0
        %s316 = sld [smem:[#allocation2]]
        %v317 = vstv %s316
        %v318 = vmul.f32 %v312, %v317
        %v319 = vmul.f32 %v314, %v317
        %v320 = vld [vmem:[%s2] sm:$0xff]
        %v321 = vld [vmem:[%s2 + $0x8] sm:$0xff]
        %v322 = vadd.f32 %v318, %v320
        %v323 = vadd.f32 %v319, %v321
        %v324 = vsel %vm222, %v322, -inf
        %325 = vmax.xlane.f32.xlu0 %v324
        %v326 = vpop.xlane.xlu0 %325
        %v327 = vsel %vm222, %v323, -inf
        %328 = vmax.xlane.f32.xlu0 %v327
        %v329 = vpop.xlane.xlu0 %328
        %v330 = vsub.f32 %v322, %v326
        %v331 = vsub.f32 %v323, %v329
        %v332 = vmul.f32 %v330, 1.442695
        %v333 = vpow.pop %v332
        %v334 = vmul.f32 %v331, 1.442695
        %v335 = vpow.pop %v334
        %v336 = vsel %vm222, %v333, 0.0
        %337 = vadd.xlane.f32.xlu0 %v336
        %v338 = vpop.xlane.xlu0 %337
        %v339 = vsel %vm222, %v335, 0.0
        %340 = vadd.xlane.f32.xlu0 %v339
        %v341 = vpop.xlane.xlu0 %340
        %v342 = vrcp.pop %v338
        %v343 = vrcp.pop %v341
        %v344 = vmul.f32 %v333, %v342
        %v345 = vmul.f32 %v335, %v343
        %v346 = vpack.c.bf16 %v345, %v344
        %v349 = vunpack.c.h.b16 %v216
        %v350 = vunpack.c.h.b16 %v217
        %v351 = vpack.c.b16 %v350, %v349
        %v354 = vsel %vm222, %v346, 0
        %356 = vmatpush.bf16.msra.mxu0 0
        %357 = vmatpush.bf16.msra.mxu0 0
        %358 = vmatpush.bf16.msra.mxu0 0
        %359 = vmatpush.bf16.msra.mxu0 0
        %360 = vmatpush.bf16.msra.mxu0 0
        %361 = vmatpush.bf16.msra.mxu0 0
        %362 = vmatpush.bf16.msra.mxu0 0
        %363 = vmatpush.bf16.msra.mxu0 %v351
        %364 = vmatmul.bf16.gmra.mxu0 %v354
        %v365 = vpop.f32.mrf.mxu0
        %v366 = vadd.f32 0.0, %v365
        %v367 = vpop.f32.mrf.mxu0
        %v368 = vadd.f32 0.0, %v367
        %369 = vdwg.mxu0
        %370 = vrot.lane.b32.xlu0 %v220, 112
        %v371 = vpop.permute.xlu0 %370
        %372 = vrot.lane.b32.xlu0 %v221, 112
        %v373 = vpop.permute.xlu0 %372
        %v376 = vsel %vm222, %v371, 0.0
        %377 = vadd.xlane.f32.xlu0 %v376
        %v378 = vpop.xlane.xlu0 %377
        %v379 = vsel %vm222, %v373, 0.0
        %380 = vadd.xlane.f32.xlu0 %v379
        %v381 = vpop.xlane.xlu0 %380
        %v382 = vadd.f32 %v378, 1e-12
        %v383 = vadd.f32 %v381, 1e-12
        %v384 = vrsqrt.pop %v382
        %v385 = vmul.f32 %v384, %v382
        %v386 = vmul.f32 %v385, %v384
        %v387 = vmul.f32 0.5, %v386
        %v388 = vsub.f32 1.5, %v387
        %v389 = vmul.f32 %v384, %v388
        %vm390 = vweird.f32 %v382
        %vm391 = vweird.f32 %v384
        %vm392 = vmor %vm390, %vm391
        %v393 = vsel %vm392, %v384, %v389
        %v394 = vrsqrt.pop %v383
        %v395 = vmul.f32 %v394, %v383
        %v396 = vmul.f32 %v395, %v394
        %v397 = vmul.f32 0.5, %v396
        %v398 = vsub.f32 1.5, %v397
        %v399 = vmul.f32 %v394, %v398
        %vm400 = vweird.f32 %v383
        %vm401 = vweird.f32 %v394
        %vm402 = vmor %vm400, %vm401
        %v403 = vsel %vm402, %v394, %v399
        %v404 = vmul.f32 %v218, %v393
        %v405 = vmul.f32 %v219, %v403
        %406 = vrot.lane.b32.xlu0 %v220, 48
        %v407 = vpop.permute.xlu0 %406
        %408 = vrot.lane.b32.xlu0 %v221, 48
        %v409 = vpop.permute.xlu0 %408
        %v412 = vsel %vm222, %v407, 0.0
        %413 = vadd.xlane.f32.xlu0 %v412
        %v414 = vpop.xlane.xlu0 %413
        %v415 = vsel %vm222, %v409, 0.0
        %416 = vadd.xlane.f32.xlu0 %v415
        %v417 = vpop.xlane.xlu0 %416
        %v418 = vadd.f32 %v414, 1e-12
        %v419 = vadd.f32 %v417, 1e-12
        %v420 = vrsqrt.pop %v418
        %v421 = vmul.f32 %v420, %v418
        %v422 = vmul.f32 %v421, %v420
        %v423 = vmul.f32 0.5, %v422
        %v424 = vsub.f32 1.5, %v423
        %v425 = vmul.f32 %v420, %v424
        %vm426 = vweird.f32 %v418
        %vm427 = vweird.f32 %v420
        %vm428 = vmor %vm426, %vm427
        %v429 = vsel %vm428, %v420, %v425
        %v430 = vrsqrt.pop %v419
        %v431 = vmul.f32 %v430, %v419
        %v432 = vmul.f32 %v431, %v430
        %v433 = vmul.f32 0.5, %v432
        %v434 = vsub.f32 1.5, %v433
        %v435 = vmul.f32 %v430, %v434
        %vm436 = vweird.f32 %v419
        %vm437 = vweird.f32 %v430
        %vm438 = vmor %vm436, %vm437
        %v439 = vsel %vm438, %v430, %v435
        %v440 = vmul.f32 %v218, %v429
        %v441 = vmul.f32 %v219, %v439
        %v442 = vpack.c.bf16 %v405, %v404
        %v443 = vpack.c.bf16 %v441, %v440
        %445 = vrot.lane.b32.xlu0 %v442, 112
        %v446 = vpop.permute.xlu0 %445
        %448 = vrot.lane.b32.xlu0 %v443, 48
        %v449 = vpop.permute.xlu0 %448
        %v451 = vsel %vm222, %v446, 0
        %v454 = vsel %vm222, %v449, 0
        %456 = vmatpush.bf16.xpose.msra.mxu0 0
        %457 = vmatpush.bf16.xpose.msra.mxu0 0
        %458 = vmatpush.bf16.xpose.msra.mxu0 0
        %459 = vmatpush.bf16.xpose.msra.mxu0 0
        %460 = vmatpush.bf16.xpose.msra.mxu0 0
        %461 = vmatpush.bf16.xpose.msra.mxu0 0
        %462 = vmatpush.bf16.xpose.msra.mxu0 0
        %463 = vmatpush.bf16.xpose.msra.mxu0 %v454
        %464 = vmatmul.bf16.gmra.mxu0 %v451
        %v465 = vpop.f32.mrf.mxu0
        %v466 = vadd.f32 0.0, %v465
        %v467 = vpop.f32.mrf.mxu0
        %v468 = vadd.f32 0.0, %v467
        %469 = vdwg.mxu0
        %s470 = sld [smem:[#allocation2 + $0x1]]
        %v471 = vstv %s470
        %v472 = vmul.f32 %v466, %v471
        %v473 = vmul.f32 %v468, %v471
        %s474 = scalar_lea.vmem %s2, 16
        %v475 = vld [vmem:[%s474] sm:$0xff]
        %v476 = vld [vmem:[%s474 + $0x8] sm:$0xff]
        %v477 = vadd.f32 %v472, %v475
        %v478 = vadd.f32 %v473, %v476
        %v479 = vsel %vm222, %v477, -inf
        %480 = vmax.xlane.f32.xlu0 %v479
        %v481 = vpop.xlane.xlu0 %480
        %v482 = vsel %vm222, %v478, -inf
        %483 = vmax.xlane.f32.xlu0 %v482
        %v484 = vpop.xlane.xlu0 %483
        %v485 = vsub.f32 %v477, %v481
        %v486 = vsub.f32 %v478, %v484
        %v487 = vmul.f32 %v485, 1.442695
        %v488 = vpow.pop %v487
        %v489 = vmul.f32 %v486, 1.442695
        %v490 = vpow.pop %v489
        %v491 = vsel %vm222, %v488, 0.0
        %492 = vadd.xlane.f32.xlu0 %v491
        %v493 = vpop.xlane.xlu0 %492
        %v494 = vsel %vm222, %v490, 0.0
        %495 = vadd.xlane.f32.xlu0 %v494
        %v496 = vpop.xlane.xlu0 %495
        %v497 = vrcp.pop %v493
        %v498 = vrcp.pop %v496
        %v499 = vmul.f32 %v488, %v497
        %v500 = vmul.f32 %v490, %v498
        %v501 = vpack.c.bf16 %v500, %v499
        %502 = vrot.lane.b32.xlu0 %v351, 112
        %v503 = vpop.permute.xlu0 %502
        %v506 = vsel %vm222, %v501, 0
        %508 = vmatpush.bf16.msra.mxu0 0
        %509 = vmatpush.bf16.msra.mxu0 0
        %510 = vmatpush.bf16.msra.mxu0 0
        %511 = vmatpush.bf16.msra.mxu0 0
        %512 = vmatpush.bf16.msra.mxu0 0
        %513 = vmatpush.bf16.msra.mxu0 0
        %514 = vmatpush.bf16.msra.mxu0 0
        %515 = vmatpush.bf16.msra.mxu0 %v503
        %516 = vmatmul.bf16.gmra.mxu0 %v506
        %v517 = vpop.f32.mrf.mxu0
        %v518 = vadd.f32 0.0, %v517
        %v519 = vpop.f32.mrf.mxu0
        %v520 = vadd.f32 0.0, %v519
        %521 = vdwg.mxu0
        %522 = vrot.lane.b32.xlu0 %v220, 96
        %v523 = vpop.permute.xlu0 %522
        %524 = vrot.lane.b32.xlu0 %v221, 96
        %v525 = vpop.permute.xlu0 %524
        %v528 = vsel %vm222, %v523, 0.0
        %529 = vadd.xlane.f32.xlu0 %v528
        %v530 = vpop.xlane.xlu0 %529
        %v531 = vsel %vm222, %v525, 0.0
        %532 = vadd.xlane.f32.xlu0 %v531
        %v533 = vpop.xlane.xlu0 %532
        %v534 = vadd.f32 %v530, 1e-12
        %v535 = vadd.f32 %v533, 1e-12
        %v536 = vrsqrt.pop %v534
        %v537 = vmul.f32 %v536, %v534
        %v538 = vmul.f32 %v537, %v536
        %v539 = vmul.f32 0.5, %v538
        %v540 = vsub.f32 1.5, %v539
        %v541 = vmul.f32 %v536, %v540
        %vm542 = vweird.f32 %v534
        %vm543 = vweird.f32 %v536
        %vm544 = vmor %vm542, %vm543
        %v545 = vsel %vm544, %v536, %v541
        %v546 = vrsqrt.pop %v535
        %v547 = vmul.f32 %v546, %v535
        %v548 = vmul.f32 %v547, %v546
        %v549 = vmul.f32 0.5, %v548
        %v550 = vsub.f32 1.5, %v549
        %v551 = vmul.f32 %v546, %v550
        %vm552 = vweird.f32 %v535
        %vm553 = vweird.f32 %v546
        %vm554 = vmor %vm552, %vm553
        %v555 = vsel %vm554, %v546, %v551
        %v556 = vmul.f32 %v218, %v545
        %v557 = vmul.f32 %v219, %v555
        %558 = vrot.lane.b32.xlu0 %v220, 32
        %v559 = vpop.permute.xlu0 %558
        %560 = vrot.lane.b32.xlu0 %v221, 32
        %v561 = vpop.permute.xlu0 %560
        %v564 = vsel %vm222, %v559, 0.0
        %565 = vadd.xlane.f32.xlu0 %v564
        %v566 = vpop.xlane.xlu0 %565
        %v567 = vsel %vm222, %v561, 0.0
        %568 = vadd.xlane.f32.xlu0 %v567
        %v569 = vpop.xlane.xlu0 %568
        %v570 = vadd.f32 %v566, 1e-12
        %v571 = vadd.f32 %v569, 1e-12
        %v572 = vrsqrt.pop %v570
        %v573 = vmul.f32 %v572, %v570
        %v574 = vmul.f32 %v573, %v572
        %v575 = vmul.f32 0.5, %v574
        %v576 = vsub.f32 1.5, %v575
        %v577 = vmul.f32 %v572, %v576
        %vm578 = vweird.f32 %v570
        %vm579 = vweird.f32 %v572
        %vm580 = vmor %vm578, %vm579
        %v581 = vsel %vm580, %v572, %v577
        %v582 = vrsqrt.pop %v571
        %v583 = vmul.f32 %v582, %v571
        %v584 = vmul.f32 %v583, %v582
        %v585 = vmul.f32 0.5, %v584
        %v586 = vsub.f32 1.5, %v585
        %v587 = vmul.f32 %v582, %v586
        %vm588 = vweird.f32 %v571
        %vm589 = vweird.f32 %v582
        %vm590 = vmor %vm588, %vm589
        %v591 = vsel %vm590, %v582, %v587
        %v592 = vmul.f32 %v218, %v581
        %v593 = vmul.f32 %v219, %v591
        %v594 = vpack.c.bf16 %v557, %v556
        %v595 = vpack.c.bf16 %v593, %v592
        %597 = vrot.lane.b32.xlu0 %v594, 96
        %v598 = vpop.permute.xlu0 %597
        %600 = vrot.lane.b32.xlu0 %v595, 32
        %v601 = vpop.permute.xlu0 %600
        %v603 = vsel %vm222, %v598, 0
        %v606 = vsel %vm222, %v601, 0
        %608 = vmatpush.bf16.xpose.msra.mxu0 0
        %609 = vmatpush.bf16.xpose.msra.mxu0 0
        %610 = vmatpush.bf16.xpose.msra.mxu0 0
        %611 = vmatpush.bf16.xpose.msra.mxu0 0
        %612 = vmatpush.bf16.xpose.msra.mxu0 0
        %613 = vmatpush.bf16.xpose.msra.mxu0 0
        %614 = vmatpush.bf16.xpose.msra.mxu0 0
        %615 = vmatpush.bf16.xpose.msra.mxu0 %v606
        %616 = vmatmul.bf16.gmra.mxu0 %v603
        %v617 = vpop.f32.mrf.mxu0
        %v618 = vadd.f32 0.0, %v617
        %v619 = vpop.f32.mrf.mxu0
        %v620 = vadd.f32 0.0, %v619
        %621 = vdwg.mxu0
        %s622 = sld [smem:[#allocation2 + $0x2]]
        %v623 = vstv %s622
        %v624 = vmul.f32 %v618, %v623
        %v625 = vmul.f32 %v620, %v623
        %s626 = scalar_lea.vmem %s2, 32
        %v627 = vld [vmem:[%s626] sm:$0xff]
        %v628 = vld [vmem:[%s626 + $0x8] sm:$0xff]
        %v629 = vadd.f32 %v624, %v627
        %v630 = vadd.f32 %v625, %v628
        %v631 = vsel %vm222, %v629, -inf
        %632 = vmax.xlane.f32.xlu0 %v631
        %v633 = vpop.xlane.xlu0 %632
        %v634 = vsel %vm222, %v630, -inf
        %635 = vmax.xlane.f32.xlu0 %v634
        %v636 = vpop.xlane.xlu0 %635
        %v637 = vsub.f32 %v629, %v633
        %v638 = vsub.f32 %v630, %v636
        %v639 = vmul.f32 %v637, 1.442695
        %v640 = vpow.pop %v639
        %v641 = vmul.f32 %v638, 1.442695
        %v642 = vpow.pop %v641
        %v643 = vsel %vm222, %v640, 0.0
        %644 = vadd.xlane.f32.xlu0 %v643
        %v645 = vpop.xlane.xlu0 %644
        %v646 = vsel %vm222, %v642, 0.0
        %647 = vadd.xlane.f32.xlu0 %v646
        %v648 = vpop.xlane.xlu0 %647
        %v649 = vrcp.pop %v645
        %v650 = vrcp.pop %v648
        %v651 = vmul.f32 %v640, %v649
        %v652 = vmul.f32 %v642, %v650
        %v653 = vpack.c.bf16 %v652, %v651
        %654 = vrot.lane.b32.xlu0 %v351, 96
        %v655 = vpop.permute.xlu0 %654
        %v658 = vsel %vm222, %v653, 0
        %660 = vmatpush.bf16.msra.mxu0 0
        %661 = vmatpush.bf16.msra.mxu0 0
        %662 = vmatpush.bf16.msra.mxu0 0
        %663 = vmatpush.bf16.msra.mxu0 0
        %664 = vmatpush.bf16.msra.mxu0 0
        %665 = vmatpush.bf16.msra.mxu0 0
        %666 = vmatpush.bf16.msra.mxu0 0
        %667 = vmatpush.bf16.msra.mxu0 %v655
        %668 = vmatmul.bf16.gmra.mxu0 %v658
        %v669 = vpop.f32.mrf.mxu0
        %v670 = vadd.f32 0.0, %v669
        %v671 = vpop.f32.mrf.mxu0
        %v672 = vadd.f32 0.0, %v671
        %673 = vdwg.mxu0
        %674 = vrot.lane.b32.xlu0 %v220, 80
        %v675 = vpop.permute.xlu0 %674
        %676 = vrot.lane.b32.xlu0 %v221, 80
        %v677 = vpop.permute.xlu0 %676
        %v680 = vsel %vm222, %v675, 0.0
        %681 = vadd.xlane.f32.xlu0 %v680
        %v682 = vpop.xlane.xlu0 %681
        %v683 = vsel %vm222, %v677, 0.0
        %684 = vadd.xlane.f32.xlu0 %v683
        %v685 = vpop.xlane.xlu0 %684
        %v686 = vadd.f32 %v682, 1e-12
        %v687 = vadd.f32 %v685, 1e-12
        %v688 = vrsqrt.pop %v686
        %v689 = vmul.f32 %v688, %v686
        %v690 = vmul.f32 %v689, %v688
        %v691 = vmul.f32 0.5, %v690
        %v692 = vsub.f32 1.5, %v691
        %v693 = vmul.f32 %v688, %v692
        %vm694 = vweird.f32 %v686
        %vm695 = vweird.f32 %v688
        %vm696 = vmor %vm694, %vm695
        %v697 = vsel %vm696, %v688, %v693
        %v698 = vrsqrt.pop %v687
        %v699 = vmul.f32 %v698, %v687
        %v700 = vmul.f32 %v699, %v698
        %v701 = vmul.f32 0.5, %v700
        %v702 = vsub.f32 1.5, %v701
        %v703 = vmul.f32 %v698, %v702
        %vm704 = vweird.f32 %v687
        %vm705 = vweird.f32 %v698
        %vm706 = vmor %vm704, %vm705
        %v707 = vsel %vm706, %v698, %v703
        %v708 = vmul.f32 %v218, %v697
        %v709 = vmul.f32 %v219, %v707
        %710 = vrot.lane.b32.xlu0 %v220, 16
        %v711 = vpop.permute.xlu0 %710
        %712 = vrot.lane.b32.xlu0 %v221, 16
        %v713 = vpop.permute.xlu0 %712
        %v716 = vsel %vm222, %v711, 0.0
        %717 = vadd.xlane.f32.xlu0 %v716
        %v718 = vpop.xlane.xlu0 %717
        %v719 = vsel %vm222, %v713, 0.0
        %720 = vadd.xlane.f32.xlu0 %v719
        %v721 = vpop.xlane.xlu0 %720
        %v722 = vadd.f32 %v718, 1e-12
        %v723 = vadd.f32 %v721, 1e-12
        %v724 = vrsqrt.pop %v722
        %v725 = vmul.f32 %v724, %v722
        %v726 = vmul.f32 %v725, %v724
        %v727 = vmul.f32 0.5, %v726
        %v728 = vsub.f32 1.5, %v727
        %v729 = vmul.f32 %v724, %v728
        %vm730 = vweird.f32 %v722
        %vm731 = vweird.f32 %v724
        %vm732 = vmor %vm730, %vm731
        %v733 = vsel %vm732, %v724, %v729
        %v734 = vrsqrt.pop %v723
        %v735 = vmul.f32 %v734, %v723
        %v736 = vmul.f32 %v735, %v734
        %v737 = vmul.f32 0.5, %v736
        %v738 = vsub.f32 1.5, %v737
        %v739 = vmul.f32 %v734, %v738
        %vm740 = vweird.f32 %v723
        %vm741 = vweird.f32 %v734
        %vm742 = vmor %vm740, %vm741
        %v743 = vsel %vm742, %v734, %v739
        %v744 = vmul.f32 %v218, %v733
        %v745 = vmul.f32 %v219, %v743
        %v746 = vpack.c.bf16 %v709, %v708
        %v747 = vpack.c.bf16 %v745, %v744
        %749 = vrot.lane.b32.xlu0 %v746, 80
        %v750 = vpop.permute.xlu0 %749
        %752 = vrot.lane.b32.xlu0 %v747, 16
        %v753 = vpop.permute.xlu0 %752
        %v755 = vsel %vm222, %v750, 0
        %v758 = vsel %vm222, %v753, 0
        %760 = vmatpush.bf16.xpose.msra.mxu0 0
        %761 = vmatpush.bf16.xpose.msra.mxu0 0
        %762 = vmatpush.bf16.xpose.msra.mxu0 0
        %763 = vmatpush.bf16.xpose.msra.mxu0 0
        %764 = vmatpush.bf16.xpose.msra.mxu0 0
        %765 = vmatpush.bf16.xpose.msra.mxu0 0
        %766 = vmatpush.bf16.xpose.msra.mxu0 0
        %767 = vmatpush.bf16.xpose.msra.mxu0 %v758
        %768 = vmatmul.bf16.gmra.mxu0 %v755
        %v769 = vpop.f32.mrf.mxu0
        %v770 = vadd.f32 0.0, %v769
        %v771 = vpop.f32.mrf.mxu0
        %v772 = vadd.f32 0.0, %v771
        %773 = vdwg.mxu0
        %s774 = sld [smem:[#allocation2 + $0x3]]
        %v775 = vstv %s774
        %v776 = vmul.f32 %v770, %v775
        %v777 = vmul.f32 %v772, %v775
        %s778 = scalar_lea.vmem %s2, 48
        %v779 = vld [vmem:[%s778] sm:$0xff]
        %v780 = vld [vmem:[%s778 + $0x8] sm:$0xff]
        %v781 = vadd.f32 %v776, %v779
        %v782 = vadd.f32 %v777, %v780
        %v783 = vsel %vm222, %v781, -inf
        %784 = vmax.xlane.f32.xlu0 %v783
        %v785 = vpop.xlane.xlu0 %784
        %v786 = vsel %vm222, %v782, -inf
        %787 = vmax.xlane.f32.xlu0 %v786
        %v788 = vpop.xlane.xlu0 %787
        %v789 = vsub.f32 %v781, %v785
        %v790 = vsub.f32 %v782, %v788
        %v791 = vmul.f32 %v789, 1.442695
        %v792 = vpow.pop %v791
        %v793 = vmul.f32 %v790, 1.442695
        %v794 = vpow.pop %v793
        %v795 = vsel %vm222, %v792, 0.0
        %796 = vadd.xlane.f32.xlu0 %v795
        %v797 = vpop.xlane.xlu0 %796
        %v798 = vsel %vm222, %v794, 0.0
        %799 = vadd.xlane.f32.xlu0 %v798
        %v800 = vpop.xlane.xlu0 %799
        %v801 = vrcp.pop %v797
        %v802 = vrcp.pop %v800
        %v803 = vmul.f32 %v792, %v801
        %v804 = vmul.f32 %v794, %v802
        %v805 = vpack.c.bf16 %v804, %v803
        %806 = vrot.lane.b32.xlu0 %v351, 80
        %v807 = vpop.permute.xlu0 %806
        %v810 = vsel %vm222, %v805, 0
        %812 = vmatpush.bf16.msra.mxu0 0
        %813 = vmatpush.bf16.msra.mxu0 0
        %814 = vmatpush.bf16.msra.mxu0 0
        %815 = vmatpush.bf16.msra.mxu0 0
        %816 = vmatpush.bf16.msra.mxu0 0
        %817 = vmatpush.bf16.msra.mxu0 0
        %818 = vmatpush.bf16.msra.mxu0 0
        %819 = vmatpush.bf16.msra.mxu0 %v807
        %820 = vmatmul.bf16.gmra.mxu0 %v810
        %v821 = vpop.f32.mrf.mxu0
        %v822 = vadd.f32 0.0, %v821
        %v823 = vpop.f32.mrf.mxu0
        %v824 = vadd.f32 0.0, %v823
        %825 = vdwg.mxu0
        %828 = vrot.lane.b32.xlu0 %v518, 16
        %v829 = vpop.permute.xlu0 %828
        %830 = vrot.lane.b32.xlu0 %v520, 16
        %v831 = vpop.permute.xlu0 %830
        %836 = vrot.lane.b32.xlu0 %v670, 32
        %v837 = vpop.permute.xlu0 %836
        %838 = vrot.lane.b32.xlu0 %v672, 32
        %v839 = vpop.permute.xlu0 %838
        %844 = vrot.lane.b32.xlu0 %v822, 48
        %v845 = vpop.permute.xlu0 %844
        %846 = vrot.lane.b32.xlu0 %v824, 48
        %v847 = vpop.permute.xlu0 %846
        %v850 = vsel %vm222, %v366, %v829
        %v851 = vsel %vm222, %v368, %v831
        %vm852 = vcmask 261120
        %v853 = vsel %vm852, %v850, %v837
        %v854 = vsel %vm852, %v851, %v839
        %vm855 = vcmask 392192
        %v856 = vsel %vm855, %v853, %v845
        %v857 = vsel %vm855, %v854, %v847
        %v858 = vpack.c.bf16 %v856, %v856
        %v859 = vpack.c.bf16 %v857, %v857
        %vm860 = vcmask 519168
        %861 = vst.msk [vmem:[%s212] sm:$0xf] %vm860, %v858
        %862 = vst.msk [vmem:[%s212 + $0x4] sm:$0xf] %vm860, %v859
        %s863 = sadd.s32 %s20, %s19
        %s864 = smul.u32 2, %s863
        %p865 = scmp.lt.s32.totalorder %s864, 3
        %s866 = scalar_select %p865, %s864, 3
        %s867 = smul.addr %s866, 4
        %s868 = scalar_lea.vmem %s3, %s867
        // Predicated region
        $region37: #{forward.35} parent=31 // pred_check
          %p869 = pneg %p117
        $region38: #{forward.35} parent=31 // pred_check_branch
          %871 = sbr.rel (%p869) target = $region40
        $region39: #{forward.35} parent=31 // pred_region
          %s872 = sadd.s32 %s20, %s19
          %s873 = smul.u32 2, %s872
        $region40: #{forward.35} parent=31 // pred_fallthru
          _
      $region32: #{forward.35} parent=5 // pred_fallthru
        _
      %p874 = scmp.le.s32.totalorder 2, %s10
      // Predicated region
      $region41: #{forward.35} parent=5 // pred_check
        %p875 = pneg %p874
      $region42: #{forward.35} parent=5 // pred_check_branch
        %877 = sbr.rel (%p875) target = $region44
      $region43: #{forward.35} parent=5 // pred_region
        %s878 = ssub.s32 %s10, 2
        // Predicated region
        $region45: #{forward.35} parent=43 // pred_check
          %p879 = pneg %p123
        $region46: #{forward.35} parent=43 // pred_check_branch
          %881 = sbr.rel (%p879) target = $region48
        $region47: #{forward.35} parent=43 // pred_region
          %s882 = sadd.s32 %s22, %s21
          %s883 = smul.u32 2, %s882
          %p884 = scmp.lt.s32.totalorder %s883, 3
          %s885 = scalar_select %p884, %s883, 3
          %s886 = smul.addr %s885, 4
          %s887 = scalar_lea.vmem %s3, %s886
        $region48: #{forward.35} parent=43 // pred_fallthru
          _
      $region44: #{forward.35} parent=5 // pred_fallthru
        _
    $region6: #{forward.35} parent=1 // loop_footer
      %s14 = sadd.s32 1, %s10
    $region7: #{forward.35} parent=1 // loop_footer_branch
      %9 = sbr.rel target = $region3
    $region8: #{forward.35} parent=1 // loop_exit
      _
    %888 = vsyncpa [#allocation3], 1
    %s889 = scalar_lea.sflag [#allocation3], 1
    %890 = vsyncpa %s889, 1

// kernel: forward.38
$region0: #{forward.38}
  #allocation0 [shape = 'u32[]', space=smem, size = 0x4, offset = 0x4, fixed_abs, tag = 'smem constant byte address 0x4 - core index']
  #allocation1 [shape = 'u32[72,128]{1,0:T(1,128)}', space=vmem, size = 0x9000, scoped, tag = 'internal scratch']
  #allocation2 [shape = 'f32[32,64]{1,0:T(8,128)}', space=vmem, size = 0x4000, scoped, tag = 'scratch operand']
  %s0 = inlined_call_operand.vmem [shape: bf16[32,256], index: 0, kind: input, shape index: {}]
  %s1 = inlined_call_operand.vmem [shape: bf16[256,64], index: 1, kind: input, shape index: {}]
  %s2 = inlined_call_operand.vmem [shape: f32[1,64], index: 2, kind: input, shape index: {}]
  %s3 = inlined_call_operand.vmem [shape: f32[1,64], index: 3, kind: input, shape index: {}]
  %s4 = inlined_call_operand.vmem [shape: f32[1,64], index: 4, kind: input, shape index: {}]
  %s5 = inlined_call_operand.vmem [shape: bf16[32,64], index: 5, kind: input, shape index: {}]
  %s6 = inlined_call_operand.vmem [shape: bf16[32,64], index: 6, kind: output, shape index: {}]
  %s7 = sld [smem:[#allocation0]]
  $region106: #{forward.38} parent=0
    _
  %s9 = ssub.s32 1, %s7
  %s10 = scalar_select 0, %s9, %s7
  $region1: #{forward.38} parent=0
    #allocation3 [shape = 'u8[16384]{0}', space=vmem, size = 0x4000, scoped, tag = 'input window, operand 0']
    loop: start=0, step=1, limit=4
    $region2: #{forward.38} parent=1 // loop_pre_header
      _
    $region3: #{forward.38} parent=1 // loop_header
      %s12 = sphi 0, %s16
      %p13 = scmp.ge.s32.totalorder %s12, 4
      %s19 = sphi 0, %s31
      %s20 = sphi 0, %s27
      %s21 = sphi 0, %s19
      %s22 = sphi 0, %s20
      %s23 = sphi 0, %s21
      %s24 = sphi 0, %s22
      %s36 = sphi 0, %s38
      %s39 = sphi 0, %s36
      %s40 = sphi 0, %s39
      %s56 = sphi 0, %s40
      %s62 = sphi 0, %s64
      %s65 = sphi 0, %s62
      %s66 = sphi 0, %s65
      %s82 = sphi 0, %s66
      %s86 = sphi 0, %s86
      %s88 = sphi 0, %s86
      %s89 = sphi 0, %s88
      %s103 = sphi 0, %s89
      %s107 = sphi 0, %s107
      %s109 = sphi 0, %s107
      %s110 = sphi 0, %s109
      %s124 = sphi 0, %s110
      %s128 = sphi 0, %s128
      %s130 = sphi 0, %s128
      %s131 = sphi 0, %s130
      %s145 = sphi 0, %s131
      %s151 = sphi 0, %s153
      %s154 = sphi 0, %s151
      %s155 = sphi 0, %s154
      %s171 = sphi 0, %s155
      %s177 = sphi 0, %s179
      %s180 = sphi 0, %s177
      %s181 = sphi 0, %s180
      %s197 = sphi 0, %s181
    $region4: #{forward.38} parent=1 // loop_header_branch
      %15 = sbr.rel (%p13) target = $region8
    $region5: #{forward.38} parent=1 // loop_body
      %s17 = ssub.s32 %s12, 1
      %s18 = ssub.s32 %s12, 2
      %s25 = sadd.s32 1, %s20
      %p26 = scmp.ge.s32.totalorder %s25, 2
      %s27 = scalar_select %p26, 0, %s25
      %s28 = sadd.s32 1, %s19
      %s29 = scalar_select %p26, %s28, %s19
      %p30 = scmp.ge.s32.totalorder %s29, 1
      %s31 = scalar_select %p30, 0, %s29
      %s32 = ssub.s32 %s19, %s31
      %s33 = ssub.s32 %s20, %s27
      %s34 = sor.u32 %s32, %s33
      %p35 = scmp.eq.s32.totalorder %s34, 0
      %s37 = sadd.s32 %s36, 1
      %s38 = scalar_select %p35, %s36, %s37
      %p41 = pneg %p35
      %p42 = scmp.eq.s32.totalorder %s12, 1
      %p43 = por %p41, %p42
      %p44 = scmp.ne.s32.totalorder %s36, %s39
      %p45 = scmp.eq.s32.totalorder %s12, 0
      %p46 = por %p44, %p45
      %p47 = scmp.ne.s32.totalorder %s36, %s39
      %p48 = scmp.eq.s32.totalorder %s17, 1
      %p49 = por %p47, %p48
      %p50 = scmp.ne.s32.totalorder %s39, %s40
      %p51 = scmp.eq.s32.totalorder %s17, 0
      %p52 = por %p50, %p51
      %p53 = scmp.ne.s32.totalorder %s39, %s40
      %p54 = scmp.eq.s32.totalorder %s18, 1
      %p55 = por %p53, %p54
      %p57 = scmp.ne.s32.totalorder %s40, %s56
      %p58 = scmp.eq.s32.totalorder %s18, 0
      %p59 = por %p57, %p58
      %s60 = ssub.s32 %s20, %s27
      %p61 = scmp.eq.s32.totalorder %s60, 0
      %s63 = sadd.s32 %s62, 1
      %s64 = scalar_select %p61, %s62, %s63
      %p67 = pneg %p61
      %p68 = scmp.eq.s32.totalorder %s12, 1
      %p69 = por %p67, %p68
      %p70 = scmp.ne.s32.totalorder %s62, %s65
      %p71 = scmp.eq.s32.totalorder %s12, 0
      %p72 = por %p70, %p71
      %p73 = scmp.ne.s32.totalorder %s62, %s65
      %p74 = scmp.eq.s32.totalorder %s17, 1
      %p75 = por %p73, %p74
      %p76 = scmp.ne.s32.totalorder %s65, %s66
      %p77 = scmp.eq.s32.totalorder %s17, 0
      %p78 = por %p76, %p77
      %p79 = scmp.ne.s32.totalorder %s65, %s66
      %p80 = scmp.eq.s32.totalorder %s18, 1
      %p81 = por %p79, %p80
      %p83 = scmp.ne.s32.totalorder %s66, %s82
      %p84 = scmp.eq.s32.totalorder %s18, 0
      %p85 = por %p83, %p84
      %s87 = sadd.s32 %s86, 1
      %p90 = scmp.eq.s32.totalorder %s12, 1
      %p91 = scmp.ne.s32.totalorder %s86, %s88
      %p92 = scmp.eq.s32.totalorder %s12, 0
      %p93 = por %p91, %p92
      %p94 = scmp.ne.s32.totalorder %s86, %s88
      %p95 = scmp.eq.s32.totalorder %s17, 1
      %p96 = por %p94, %p95
      %p97 = scmp.ne.s32.totalorder %s88, %s89
      %p98 = scmp.eq.s32.totalorder %s17, 0
      %p99 = por %p97, %p98
      %p100 = scmp.ne.s32.totalorder %s88, %s89
      %p101 = scmp.eq.s32.totalorder %s18, 1
      %p102 = por %p100, %p101
      %p104 = scmp.ne.s32.totalorder %s89, %s103
      %p105 = scmp.eq.s32.totalorder %s18, 0
      %p106 = por %p104, %p105
      %s108 = sadd.s32 %s107, 1
      %p111 = scmp.eq.s32.totalorder %s12, 1
      %p112 = scmp.ne.s32.totalorder %s107, %s109
      %p113 = scmp.eq.s32.totalorder %s12, 0
      %p114 = por %p112, %p113
      %p115 = scmp.ne.s32.totalorder %s107, %s109
      %p116 = scmp.eq.s32.totalorder %s17, 1
      %p117 = por %p115, %p116
      %p118 = scmp.ne.s32.totalorder %s109, %s110
      %p119 = scmp.eq.s32.totalorder %s17, 0
      %p120 = por %p118, %p119
      %p121 = scmp.ne.s32.totalorder %s109, %s110
      %p122 = scmp.eq.s32.totalorder %s18, 1
      %p123 = por %p121, %p122
      %p125 = scmp.ne.s32.totalorder %s110, %s124
      %p126 = scmp.eq.s32.totalorder %s18, 0
      %p127 = por %p125, %p126
      %s129 = sadd.s32 %s128, 1
      %p132 = scmp.eq.s32.totalorder %s12, 1
      %p133 = scmp.ne.s32.totalorder %s128, %s130
      %p134 = scmp.eq.s32.totalorder %s12, 0
      %p135 = por %p133, %p134
      %p136 = scmp.ne.s32.totalorder %s128, %s130
      %p137 = scmp.eq.s32.totalorder %s17, 1
      %p138 = por %p136, %p137
      %p139 = scmp.ne.s32.totalorder %s130, %s131
      %p140 = scmp.eq.s32.totalorder %s17, 0
      %p141 = por %p139, %p140
      %p142 = scmp.ne.s32.totalorder %s130, %s131
      %p143 = scmp.eq.s32.totalorder %s18, 1
      %p144 = por %p142, %p143
      %p146 = scmp.ne.s32.totalorder %s131, %s145
      %p147 = scmp.eq.s32.totalorder %s18, 0
      %p148 = por %p146, %p147
      %s149 = ssub.s32 %s19, %s31
      %p150 = scmp.eq.s32.totalorder %s149, 0
      %s152 = sadd.s32 %s151, 1
      %s153 = scalar_select %p150, %s151, %s152
      %p156 = pneg %p150
      %p157 = scmp.eq.s32.totalorder %s12, 1
      %p158 = por %p156, %p157
      %p159 = scmp.ne.s32.totalorder %s151, %s154
      %p160 = scmp.eq.s32.totalorder %s12, 0
      %p161 = por %p159, %p160
      %p162 = scmp.ne.s32.totalorder %s151, %s154
      %p163 = scmp.eq.s32.totalorder %s17, 1
      %p164 = por %p162, %p163
      %p165 = scmp.ne.s32.totalorder %s154, %s155
      %p166 = scmp.eq.s32.totalorder %s17, 0
      %p167 = por %p165, %p166
      %p168 = scmp.ne.s32.totalorder %s154, %s155
      %p169 = scmp.eq.s32.totalorder %s18, 1
      %p170 = por %p168, %p169
      %p172 = scmp.ne.s32.totalorder %s155, %s171
      %p173 = scmp.eq.s32.totalorder %s18, 0
      %p174 = por %p172, %p173
      %s175 = ssub.s32 %s19, %s31
      %p176 = scmp.eq.s32.totalorder %s175, 0
      %s178 = sadd.s32 %s177, 1
      %s179 = scalar_select %p176, %s177, %s178
      %p182 = pneg %p176
      %p183 = scmp.eq.s32.totalorder %s12, 1
      %p184 = por %p182, %p183
      %p185 = scmp.ne.s32.totalorder %s177, %s180
      %p186 = scmp.eq.s32.totalorder %s12, 0
      %p187 = por %p185, %p186
      %p188 = scmp.ne.s32.totalorder %s177, %s180
      %p189 = scmp.eq.s32.totalorder %s17, 1
      %p190 = por %p188, %p189
      %p191 = scmp.ne.s32.totalorder %s180, %s181
      %p192 = scmp.eq.s32.totalorder %s17, 0
      %p193 = por %p191, %p192
      %p194 = scmp.ne.s32.totalorder %s180, %s181
      %p195 = scmp.eq.s32.totalorder %s18, 1
      %p196 = por %p194, %p195
      %p198 = scmp.ne.s32.totalorder %s181, %s197
      %p199 = scmp.eq.s32.totalorder %s18, 0
      %p200 = por %p198, %p199
      %p201 = scmp.le.s32.totalorder 1, %s12
      %p202 = scmp.lt.s32.totalorder %s12, 3
      %p203 = pnand %p201, %p202
      %p204 = pneg %p203
      // Predicated region
      $region9: #{forward.38} parent=5 // pred_check
        _
      $region10: #{forward.38} parent=5 // pred_check_branch
        %206 = sbr.rel (%p203) target = $region12
      $region11: #{forward.38} parent=5 // pred_region
        %s207 = ssub.s32 %s12, 1
        // Predicated region
        $region13: #{forward.38} parent=11 // pred_check
          %p208 = pneg %p99
        $region14: #{forward.38} parent=11 // pred_check_branch
          %210 = sbr.rel (%p208) target = $region16
        $region15: #{forward.38} parent=11 // pred_region
          _
        $region16: #{forward.38} parent=11 // pred_fallthru
          _
        // Predicated region
        $region17: #{forward.38} parent=11 // pred_check
          %p211 = pneg %p120
        $region18: #{forward.38} parent=11 // pred_check_branch
          %213 = sbr.rel (%p211) target = $region20
        $region19: #{forward.38} parent=11 // pred_region
          _
        $region20: #{forward.38} parent=11 // pred_fallthru
          _
        // Predicated region
        $region21: #{forward.38} parent=11 // pred_check
          %p214 = pneg %p141
        $region22: #{forward.38} parent=11 // pred_check_branch
          %216 = sbr.rel (%p214) target = $region24
        $region23: #{forward.38} parent=11 // pred_region
          _
        $region24: #{forward.38} parent=11 // pred_fallthru
          _
        // Predicated region
        $region25: #{forward.38} parent=11 // pred_check
          %p217 = pneg %p167
        $region26: #{forward.38} parent=11 // pred_check_branch
          %219 = sbr.rel (%p217) target = $region28
        $region27: #{forward.38} parent=11 // pred_region
          %s220 = smul.u32 4, %s21
          %p221 = scmp.lt.s32.totalorder %s220, 3
          %s222 = scalar_select %p221, %s220, 3
          %s223 = smul.addr %s222, 4
          %s224 = scalar_lea.vmem %s5, %s223
          %s225 = smul.u32 4, %s21
        $region28: #{forward.38} parent=11 // pred_fallthru
          _
      $region12: #{forward.38} parent=5 // pred_fallthru
        _
      %p226 = scmp.lt.s32.totalorder %s12, 2
      // Predicated region
      $region29: #{forward.38} parent=5 // pred_check
        %p227 = pneg %p226
      $region30: #{forward.38} parent=5 // pred_check_branch
        %229 = sbr.rel (%p227) target = $region32
      $region31: #{forward.38} parent=5 // pred_region
        // Predicated region
        $region33: #{forward.38} parent=31 // pred_check
          %p230 = pneg %p46
        $region34: #{forward.38} parent=31 // pred_check_branch
          %232 = sbr.rel (%p230) target = $region36
        $region35: #{forward.38} parent=31 // pred_region
          %s233 = sand.u32 %s36, 1
          %s234 = sand.u32 %s36, 1
          %s235 = smul.addr %s234, 16
          %s236 = scalar_lea.vmem [#allocation3], %s235
          %s237 = smul.u32 4, %s19
          %s238 = smul.addr %s237, 2
          %s239 = sadd.s32 %s20, %s238
          %s240 = smul.addr %s239, 4
          %s241 = scalar_lea.vmem %s0, %s240
          // Predicated region
          $region37: #{forward.38} parent=35 // pred_check
            _
          $region38: #{forward.38} parent=35 // pred_check_branch
            %243 = sbr.rel (0) target = $region40
          $region39: #{forward.38} parent=35 // pred_region
            // Predicated region
            $region41: #{forward.38} parent=39 // pred_check
              _
            $region42: #{forward.38} parent=39 // pred_check_branch
              %245 = sbr.rel target = $region44
            $region43: #{forward.38} parent=39 // pred_region
              // Predicated region
              $region56: #{forward.38} parent=43 // pred_check
                _
              $region57: #{forward.38} parent=43 // pred_check_branch
                %267 = sbr.rel (0) target = $region59
              $region58: #{forward.38} parent=43 // pred_region
                loop: start=0, step=1, limit=1
                $region60: #{forward.38} parent=58 // loop_pre_header
                  _
                $region61: #{forward.38} parent=58 // loop_header
                  %s269 = sphi 0, %s273
                  %p270 = scmp.ge.s32.totalorder %s269, 1
                  %s274 = sphi %s241, %s241
                  %s275 = sphi %s236, %s236
                $region62: #{forward.38} parent=58 // loop_header_branch
                  %272 = sbr.rel (%p270) target = $region66
                $region63: #{forward.38} parent=58 // loop_body
                  _
                $region64: #{forward.38} parent=58 // loop_footer
                  %s273 = sadd.s32 1, %s269
                $region65: #{forward.38} parent=58 // loop_footer_branch
                  %268 = sbr.rel target = $region61
                $region66: #{forward.38} parent=58 // loop_exit
                  _
                %s277 = ssub.s32 16, 1
                loop: start=0, step=1, limit=1
                $region67: #{forward.38} parent=58 // loop_pre_header
                  _
                $region68: #{forward.38} parent=58 // loop_header
                  %s279 = sphi 0, %s283
                  %p280 = scmp.ge.s32.totalorder %s279, 1
                  %s284 = sphi %s241, %s241
                  %s285 = sphi %s236, %s236
                $region69: #{forward.38} parent=58 // loop_header_branch
                  %282 = sbr.rel (%p280) target = $region73
                $region70: #{forward.38} parent=58 // loop_body
                  %v286 = vld [vmem:[%s284] sm:%s277]
                  %287 = vst [vmem:[%s285] sm:%s277] %v286
                  %v288 = vld [vmem:[%s284 + $0x8] sm:%s277]
                  %289 = vst [vmem:[%s285 + $0x4] sm:%s277] %v288
                  %v290 = vld [vmem:[%s284 + $0x10] sm:%s277]
                  %291 = vst [vmem:[%s285 + $0x8] sm:%s277] %v290
                  %v292 = vld [vmem:[%s284 + $0x18] sm:%s277]
                  %293 = vst [vmem:[%s285 + $0xc] sm:%s277] %v292
                $region71: #{forward.38} parent=58 // loop_footer
                  %s283 = sadd.s32 1, %s279
                $region72: #{forward.38} parent=58 // loop_footer_branch
                  %278 = sbr.rel target = $region68
                $region73: #{forward.38} parent=58 // loop_exit
                  _
              $region59: #{forward.38} parent=43 // pred_fallthru
                _
            $region44: #{forward.38} parent=39 // pred_fallthru
              _
            // Predicated region
            $region45: #{forward.38} parent=39 // pred_check
              _
            $region46: #{forward.38} parent=39 // pred_check_branch
              %247 = sbr.rel (0) target = $region48
            $region47: #{forward.38} parent=39 // pred_region
              %s249 = ssub.s32 16, 1
              loop: start=0, step=1, limit=1
              $region49: #{forward.38} parent=47 // loop_pre_header
                _
              $region50: #{forward.38} parent=47 // loop_header
                %s251 = sphi 0, %s255
                %p252 = scmp.ge.s32.totalorder %s251, 1
                %s256 = sphi %s241, %s241
                %s257 = sphi %s236, %s236
              $region51: #{forward.38} parent=47 // loop_header_branch
                %254 = sbr.rel (%p252) target = $region55
              $region52: #{forward.38} parent=47 // loop_body
                %v258 = vld [vmem:[%s256] sm:%s249]
                %259 = vst [vmem:[%s257] sm:%s249] %v258
                %v260 = vld [vmem:[%s256 + $0x8] sm:%s249]
                %261 = vst [vmem:[%s257 + $0x4] sm:%s249] %v260
                %v262 = vld [vmem:[%s256 + $0x10] sm:%s249]
                %263 = vst [vmem:[%s257 + $0x8] sm:%s249] %v262
                %v264 = vld [vmem:[%s256 + $0x18] sm:%s249]
                %265 = vst [vmem:[%s257 + $0xc] sm:%s249] %v264
              $region53: #{forward.38} parent=47 // loop_footer
                %s255 = sadd.s32 1, %s251
              $region54: #{forward.38} parent=47 // loop_footer_branch
                %250 = sbr.rel target = $region50
              $region55: #{forward.38} parent=47 // loop_exit
                _
            $region48: #{forward.38} parent=39 // pred_fallthru
              _
          $region40: #{forward.38} parent=35 // pred_fallthru
            _
          %294 = vnop
        $region36: #{forward.38} parent=31 // pred_fallthru
          _
        // Predicated region
        $region74: #{forward.38} parent=31 // pred_check
          %p295 = pneg %p72
        $region75: #{forward.38} parent=31 // pred_check_branch
          %297 = sbr.rel (%p295) target = $region77
        $region76: #{forward.38} parent=31 // pred_region
          %s298 = smul.u32 16, %s20
          %p299 = scmp.lt.s32.totalorder %s298, 31
          %s300 = scalar_select %p299, %s298, 31
          %s301 = smul.addr %s300, 4
          %s302 = scalar_lea.vmem %s1, %s301
          %s303 = smul.u32 16, %s20
        $region77: #{forward.38} parent=31 // pred_fallthru
          _
      $region32: #{forward.38} parent=5 // pred_fallthru
        _
      %p304 = scmp.le.s32.totalorder 1, %s12
      %p305 = scmp.lt.s32.totalorder %s12, 3
      %p306 = pnand %p304, %p305
      %p307 = pneg %p306
      // Predicated region
      $region78: #{forward.38} parent=5 // pred_check
        _
      $region79: #{forward.38} parent=5 // pred_check_branch
        %309 = sbr.rel (%p306) target = $region81
      $region80: #{forward.38} parent=5 // pred_region
        %s310 = ssub.s32 %s12, 1
        %s311 = sand.u32 %s39, 1
        %s312 = sand.u32 %s39, 1
        %s313 = smul.addr %s312, 16
        %s314 = scalar_lea.vmem [#allocation3], %s313
        // Predicated region
        $region82: #{forward.38} parent=80 // pred_check
          %p315 = pneg %p52
        $region83: #{forward.38} parent=80 // pred_check_branch
          %317 = sbr.rel (%p315) target = $region85
        $region84: #{forward.38} parent=80 // pred_region
          _
        $region85: #{forward.38} parent=80 // pred_fallthru
          _
        %s318 = sand.u32 %s39, 1
        %s319 = sand.u32 %s39, 1
        %s320 = smul.addr %s319, 16
        %s321 = scalar_lea.vmem [#allocation3], %s320
        %p322 = pneg %p52
        %p323 = pneg %p49
        %s324 = smul.u32 16, %s22
        %p325 = scmp.lt.s32.totalorder %s324, 31
        %s326 = scalar_select %p325, %s324, 31
        %s327 = smul.addr %s326, 4
        %s328 = scalar_lea.vmem %s1, %s327
        %p329 = pneg %p78
        %p330 = pneg %p75
        %p331 = pneg %p99
        %p332 = pneg %p96
        %p333 = pneg %p120
        %p334 = pneg %p117
        %p335 = pneg %p141
        %p336 = pneg %p138
        %s337 = smul.u32 4, %s21
        %p338 = scmp.lt.s32.totalorder %s337, 3
        %s339 = scalar_select %p338, %s337, 3
        %s340 = smul.addr %s339, 4
        %s341 = scalar_lea.vmem %s5, %s340
        %p342 = pneg %p167
        %p343 = pneg %p164
        %p344 = pneg %p193
        %p345 = pneg %p190
        %s346 = smul.u32 4, %s21
        %p347 = scmp.lt.s32.totalorder %s346, 3
        %s348 = scalar_select %p347, %s346, 3
        %s349 = smul.addr %s348, 4
        %s350 = scalar_lea.vmem %s6, %s349
        %s351 = smul.u32 4, %s21
        %s352 = smul.u32 16, %s22
        %p353 = scmp.lt.s32.totalorder %s352, 31
        %s354 = scalar_select %p353, %s352, 31
        %s355 = smul.addr %s354, 4
        %s356 = scalar_lea.vmem %s1, %s355
        %s357 = smul.u32 16, %s22
        %s358 = smul.u32 4, %s21
        %p359 = scmp.lt.s32.totalorder %s358, 3
        %s360 = scalar_select %p359, %s358, 3
        %s361 = smul.addr %s360, 4
        %s362 = scalar_lea.vmem %s5, %s361
        %s363 = smul.u32 4, %s21
        %s364 = smul.u32 4, %s21
        %p365 = scmp.lt.s32.totalorder %s364, 3
        %s366 = scalar_select %p365, %s364, 3
        %s367 = smul.addr %s366, 4
        %s368 = scalar_lea.vmem %s6, %s367
        %s369 = smul.u32 4, %s21
        %p370 = scmp.eq.s32.totalorder %s22, 0
        // Predicated region
        $region86: #{forward.38} parent=80 // pred_check
          %p371 = pneg %p370
        $region87: #{forward.38} parent=80 // pred_check_branch
          %373 = sbr.rel (%p371) target = $region89
        $region88: #{forward.38} parent=80 // pred_region
          %vm374 = vcmask 523264
          %375 = vst.msk [vmem:[#allocation2] sm:$0xff] %vm374, 0.0
          %376 = vst.msk [vmem:[#allocation2 + $0x8] sm:$0xff] %vm374, 0.0
          %377 = vst.msk [vmem:[#allocation2 + $0x10] sm:$0xff] %vm374, 0.0
          %378 = vst.msk [vmem:[#allocation2 + $0x18] sm:$0xff] %vm374, 0.0
        $region89: #{forward.38} parent=80 // pred_fallthru
          _
        %v379 = vld [vmem:[#allocation2] sm:$0xff]
        %v380 = vld [vmem:[#allocation2 + $0x8] sm:$0xff]
        %v381 = vld [vmem:[#allocation2 + $0x10] sm:$0xff]
        %v382 = vld [vmem:[#allocation2 + $0x18] sm:$0xff]
        %v383 = vld [vmem:[%s314] sm:$0xf]
        %v384 = vld [vmem:[%s314 + $0x4] sm:$0xf]
        %v385 = vld [vmem:[%s314 + $0x8] sm:$0xf]
        %v386 = vld [vmem:[%s314 + $0xc] sm:$0xf]
        %v387 = vld [vmem:[%s356] sm:$0xf]
        %v388 = vld [vmem:[%s356 + $0x4] sm:$0xf]
        %v389 = vld [vmem:[%s356 + $0x8] sm:$0xf]
        %v390 = vld [vmem:[%s356 + $0xc] sm:$0xf]
        %v391 = vld [vmem:[%s356 + $0x10] sm:$0xf]
        %v392 = vld [vmem:[%s356 + $0x14] sm:$0xf]
        %v393 = vld [vmem:[%s356 + $0x18] sm:$0xf]
        %v394 = vld [vmem:[%s356 + $0x1c] sm:$0xf]
        %v395 = vld [vmem:[%s356 + $0x20] sm:$0xf]
        %v396 = vld [vmem:[%s356 + $0x24] sm:$0xf]
        %v397 = vld [vmem:[%s356 + $0x28] sm:$0xf]
        %v398 = vld [vmem:[%s356 + $0x2c] sm:$0xf]
        %v399 = vld [vmem:[%s356 + $0x30] sm:$0xf]
        %v400 = vld [vmem:[%s356 + $0x34] sm:$0xf]
        %v401 = vld [vmem:[%s356 + $0x38] sm:$0xf]
        %v402 = vld [vmem:[%s356 + $0x3c] sm:$0xf]
        %v407 = vunpack.c.l.b16 %v383
        %v408 = vunpack.c.l.b16 %v384
        %v409 = vunpack.c.l.b16 %v385
        %v410 = vunpack.c.l.b16 %v386
        %v411 = vpack.c.b16 %v408, %v407
        %v412 = vpack.c.b16 %v410, %v409
        %v431 = vunpack.c.l.b16 %v387
        %v432 = vunpack.c.l.b16 %v388
        %v433 = vunpack.c.l.b16 %v389
        %v434 = vunpack.c.l.b16 %v390
        %v435 = vunpack.c.l.b16 %v391
        %v436 = vunpack.c.l.b16 %v392
        %v437 = vunpack.c.l.b16 %v393
        %v438 = vunpack.c.l.b16 %v394
        %v439 = vunpack.c.l.b16 %v395
        %v440 = vunpack.c.l.b16 %v396
        %v441 = vunpack.c.l.b16 %v397
        %v442 = vunpack.c.l.b16 %v398
        %v443 = vunpack.c.l.b16 %v399
        %v444 = vunpack.c.l.b16 %v400
        %v445 = vunpack.c.l.b16 %v401
        %v446 = vunpack.c.l.b16 %v402
        %v447 = vpack.c.b16 %v432, %v431
        %v448 = vpack.c.b16 %v434, %v433
        %v449 = vpack.c.b16 %v436, %v435
        %v450 = vpack.c.b16 %v438, %v437
        %v451 = vpack.c.b16 %v440, %v439
        %v452 = vpack.c.b16 %v442, %v441
        %v453 = vpack.c.b16 %v444, %v443
        %v454 = vpack.c.b16 %v446, %v445
        %463 = vmatpush.bf16.msra.mxu0 %v454
        %464 = vmatpush.bf16.msra.mxu0 %v453
        %465 = vmatpush.bf16.msra.mxu0 %v452
        %466 = vmatpush.bf16.msra.mxu0 %v451
        %467 = vmatpush.bf16.msra.mxu0 %v450
        %468 = vmatpush.bf16.msra.mxu0 %v449
        %469 = vmatpush.bf16.msra.mxu0 %v448
        %470 = vmatpush.bf16.msra.mxu0 %v447
        %471 = vmatmul.bf16.gmra.mxu0 %v411
        %v472 = vpop.f32.mrf.mxu0
        %v473 = vadd.f32 0.0, %v472
        %v474 = vpop.f32.mrf.mxu0
        %v475 = vadd.f32 0.0, %v474
        %476 = vmatmul.bf16.gmra.mxu0 %v412
        %v477 = vpop.f32.mrf.mxu0
        %v478 = vadd.f32 0.0, %v477
        %v479 = vpop.f32.mrf.mxu0
        %v480 = vadd.f32 0.0, %v479
        %481 = vdwg.mxu0
        %v482 = vadd.f32 %v379, %v473
        %v483 = vadd.f32 %v380, %v475
        %v484 = vadd.f32 %v381, %v478
        %v485 = vadd.f32 %v382, %v480
        %vm486 = vcmask 523264
        %487 = vst.msk [vmem:[#allocation2] sm:$0xff] %vm486, %v482
        %488 = vst.msk [vmem:[#allocation2 + $0x8] sm:$0xff] %vm486, %v483
        %489 = vst.msk [vmem:[#allocation2 + $0x10] sm:$0xff] %vm486, %v484
        %490 = vst.msk [vmem:[#allocation2 + $0x18] sm:$0xff] %vm486, %v485
        %p491 = scmp.eq.s32.totalorder %s22, 1
        // Predicated region
        $region90: #{forward.38} parent=80 // pred_check
          %p492 = pneg %p491
        $region91: #{forward.38} parent=80 // pred_check_branch
          %494 = sbr.rel (%p492) target = $region93
        $region92: #{forward.38} parent=80 // pred_region
          %v495 = vld [vmem:[#allocation2] sm:$0xff]
          %v496 = vld [vmem:[#allocation2 + $0x8] sm:$0xff]
          %v497 = vld [vmem:[#allocation2 + $0x10] sm:$0xff]
          %v498 = vld [vmem:[#allocation2 + $0x18] sm:$0xff]
          %v499 = vld [vmem:[%s2] sm:$0x1]
          %v501 = vperm.slane %v499, 0
          %v503 = vadd.f32 %v495, %v501
          %v504 = vadd.f32 %v496, %v501
          %v505 = vadd.f32 %v497, %v501
          %v506 = vadd.f32 %v498, %v501
          %v507 = vsel %vm486, %v503, 0.0
          %508 = vadd.xlane.f32.xlu0 %v507
          %v509 = vpop.xlane.xlu0 %508
          %v510 = vsel %vm486, %v504, 0.0
          %511 = vadd.xlane.f32.xlu0 %v510
          %v512 = vpop.xlane.xlu0 %511
          %v513 = vsel %vm486, %v505, 0.0
          %514 = vadd.xlane.f32.xlu0 %v513
          %v515 = vpop.xlane.xlu0 %514
          %v516 = vsel %vm486, %v506, 0.0
          %517 = vadd.xlane.f32.xlu0 %v516
          %v518 = vpop.xlane.xlu0 %517
          %v519 = vrcp.pop 64.0
          %v520 = vmul.f32 64.0, %v519
          %v521 = vsub.f32 1.0, %v520
          %v522 = vmul.f32 %v519, %v521
          %v523 = vadd.f32 %v519, %v522
          %vm524 = vweird.f32 %v519
          %v525 = vsel %vm524, %v519, %v523
          %v526 = vmul.f32 %v509, %v525
          %v527 = vmul.f32 %v512, %v525
          %v528 = vmul.f32 %v515, %v525
          %v529 = vmul.f32 %v518, %v525
          %v530 = vsub.f32 %v503, %v526
          %v531 = vsub.f32 %v504, %v527
          %v532 = vsub.f32 %v505, %v528
          %v533 = vsub.f32 %v506, %v529
          %v534 = vmul.f32 %v530, %v530
          %v535 = vmul.f32 %v531, %v531
          %v536 = vmul.f32 %v532, %v532
          %v537 = vmul.f32 %v533, %v533
          %v538 = vsel %vm486, %v534, 0.0
          %539 = vadd.xlane.f32.xlu0 %v538
          %v540 = vpop.xlane.xlu0 %539
          %v541 = vsel %vm486, %v535, 0.0
          %542 = vadd.xlane.f32.xlu0 %v541
          %v543 = vpop.xlane.xlu0 %542
          %v544 = vsel %vm486, %v536, 0.0
          %545 = vadd.xlane.f32.xlu0 %v544
          %v546 = vpop.xlane.xlu0 %545
          %v547 = vsel %vm486, %v537, 0.0
          %548 = vadd.xlane.f32.xlu0 %v547
          %v549 = vpop.xlane.xlu0 %548
          %v550 = vmul.f32 %v540, %v525
          %v551 = vmul.f32 %v543, %v525
          %v552 = vmul.f32 %v546, %v525
          %v553 = vmul.f32 %v549, %v525
          %v554 = vadd.f32 %v550, 1e-05
          %v555 = vadd.f32 %v551, 1e-05
          %v556 = vadd.f32 %v552, 1e-05
          %v557 = vadd.f32 %v553, 1e-05
          %v558 = vrsqrt.pop %v554
          %v559 = vmul.f32 %v558, %v554
          %v560 = vmul.f32 %v559, %v558
          %v561 = vmul.f32 0.5, %v560
          %v562 = vsub.f32 1.5, %v561
          %v563 = vmul.f32 %v558, %v562
          %vm564 = vweird.f32 %v554
          %vm565 = vweird.f32 %v558
          %vm566 = vmor %vm564, %vm565
          %v567 = vsel %vm566, %v558, %v563
          %v568 = vrsqrt.pop %v555
          %v569 = vmul.f32 %v568, %v555
          %v570 = vmul.f32 %v569, %v568
          %v571 = vmul.f32 0.5, %v570
          %v572 = vsub.f32 1.5, %v571
          %v573 = vmul.f32 %v568, %v572
          %vm574 = vweird.f32 %v555
          %vm575 = vweird.f32 %v568
          %vm576 = vmor %vm574, %vm575
          %v577 = vsel %vm576, %v568, %v573
          %v578 = vrsqrt.pop %v556
          %v579 = vmul.f32 %v578, %v556
          %v580 = vmul.f32 %v579, %v578
          %v581 = vmul.f32 0.5, %v580
          %v582 = vsub.f32 1.5, %v581
          %v583 = vmul.f32 %v578, %v582
          %vm584 = vweird.f32 %v556
          %vm585 = vweird.f32 %v578
          %vm586 = vmor %vm584, %vm585
          %v587 = vsel %vm586, %v578, %v583
          %v588 = vrsqrt.pop %v557
          %v589 = vmul.f32 %v588, %v557
          %v590 = vmul.f32 %v589, %v588
          %v591 = vmul.f32 0.5, %v590
          %v592 = vsub.f32 1.5, %v591
          %v593 = vmul.f32 %v588, %v592
          %vm594 = vweird.f32 %v557
          %vm595 = vweird.f32 %v588
          %vm596 = vmor %vm594, %vm595
          %v597 = vsel %vm596, %v588, %v593
          %v598 = vmul.f32 %v530, %v567
          %v599 = vmul.f32 %v531, %v577
          %v600 = vmul.f32 %v532, %v587
          %v601 = vmul.f32 %v533, %v597
          %v602 = vld [vmem:[%s3] sm:$0x1]
          %v604 = vperm.slane %v602, 0
          %v606 = vmul.f32 %v598, %v604
          %v607 = vmul.f32 %v599, %v604
          %v608 = vmul.f32 %v600, %v604
          %v609 = vmul.f32 %v601, %v604
          %v610 = vld [vmem:[%s4] sm:$0x1]
          %v612 = vperm.slane %v610, 0
          %v614 = vadd.f32 %v606, %v612
          %v615 = vadd.f32 %v607, %v612
          %v616 = vadd.f32 %v608, %v612
          %v617 = vadd.f32 %v609, %v612
          %v618 = vld [vmem:[%s362] sm:$0xf]
          %v619 = vld [vmem:[%s362 + $0x4] sm:$0xf]
          %v620 = vld [vmem:[%s362 + $0x8] sm:$0xf]
          %v621 = vld [vmem:[%s362 + $0xc] sm:$0xf]
          %v622 = vunpack.c.l.bf16 %v618
          %v623 = vunpack.c.l.bf16 %v619
          %v624 = vunpack.c.l.bf16 %v620
          %v625 = vunpack.c.l.bf16 %v621
          %v626 = vadd.f32 %v614, %v622
          %v627 = vadd.f32 %v615, %v623
          %v628 = vadd.f32 %v616, %v624
          %v629 = vadd.f32 %v617, %v625
          %v630 = vpack.c.bf16 %v626, %v626
          %v631 = vpack.c.bf16 %v627, %v627
          %v632 = vpack.c.bf16 %v628, %v628
          %v633 = vpack.c.bf16 %v629, %v629
          %vm634 = vcmask 519168
          %635 = vst.msk [vmem:[%s368] sm:$0xf] %vm634, %v630
          %636 = vst.msk [vmem:[%s368 + $0x4] sm:$0xf] %vm634, %v631
          %637 = vst.msk [vmem:[%s368 + $0x8] sm:$0xf] %vm634, %v632
          %638 = vst.msk [vmem:[%s368 + $0xc] sm:$0xf] %vm634, %v633
        $region93: #{forward.38} parent=80 // pred_fallthru
          _
        %s639 = smul.u32 4, %s21
        %p640 = scmp.lt.s32.totalorder %s639, 3
        %s641 = scalar_select %p640, %s639, 3
        %s642 = smul.addr %s641, 4
        %s643 = scalar_lea.vmem %s6, %s642
        // Predicated region
        $region94: #{forward.38} parent=80 // pred_check
          %p644 = pneg %p190
        $region95: #{forward.38} parent=80 // pred_check_branch
          %646 = sbr.rel (%p644) target = $region97
        $region96: #{forward.38} parent=80 // pred_region
          %s647 = smul.u32 4, %s21
        $region97: #{forward.38} parent=80 // pred_fallthru
          _
        // Predicated region
        $region98: #{forward.38} parent=80 // pred_check
          %p648 = pneg %p190
        $region99: #{forward.38} parent=80 // pred_check_branch
          %650 = sbr.rel (%p648) target = $region101
        $region100: #{forward.38} parent=80 // pred_region
          %s651 = smul.u32 4, %s21
          %p652 = scmp.lt.s32.totalorder %s651, 3
          %s653 = scalar_select %p652, %s651, 3
          %s654 = smul.addr %s653, 4
          %s655 = scalar_lea.vmem %s6, %s654
        $region101: #{forward.38} parent=80 // pred_fallthru
          _
      $region81: #{forward.38} parent=5 // pred_fallthru
        _
      %p656 = scmp.le.s32.totalorder 2, %s12
      // Predicated region
      $region102: #{forward.38} parent=5 // pred_check
        %p657 = pneg %p656
      $region103: #{forward.38} parent=5 // pred_check_branch
        %659 = sbr.rel (%p657) target = $region105
      $region104: #{forward.38} parent=5 // pred_region
        %s660 = ssub.s32 %s12, 2
      $region105: #{forward.38} parent=5 // pred_fallthru
        _
    $region6: #{forward.38} parent=1 // loop_footer
      %s16 = sadd.s32 1, %s12
    $region7: #{forward.38} parent=1 // loop_footer_branch
      %11 = sbr.rel target = $region3
    $region8: #{forward.38} parent=1 // loop_exit
      _

</llo_original>
